<compile_context>
chip_gen: v5e
topology: v5e:2x2
jax: 0.10.0
libtpu: 0.0.40
codegen_flags: <defaults>
</compile_context>

<pallas_src>
import jax
import jax.numpy as jnp
import numpy as np
from jax.experimental import pallas as pl
from jax.experimental.pallas import tpu as pltpu

NUM_SPATIAL = 16                 # 4 x 4 adaptive-pool output pixels
CONV_OUT = 128                   # BasicConv2d out_channels
HIDDEN = 1024                    # fc1 out features
FC1_IN = NUM_SPATIAL * CONV_OUT  # 2048
BN_EPS = 1e-3


def _round_up(x, m):
    return (x + m - 1) // m * m


def _pick_batch_tile(n, k_win, cin, nc_pad, itemsize):
    """Largest batch tile (multiple of 8) whose working set fits a conservative
    VMEM budget (sized so it also fits v7x's 64 MiB physical VMEM). Uses
    lane-padded sizes (last dim padded to 128 in VMEM)."""
    n8 = _round_up(max(n, 1), 8)
    cin_l = _round_up(cin, 128)                       # VMEM lane padding
    weight_bytes = (cin_l * CONV_OUT + FC1_IN * HIDDEN + HIDDEN * nc_pad) * itemsize
    budget = 28 * 1024 * 1024
    tn = 8
    for cand in (256, 128, 64, 32, 16, 8):
        xk_tile = 2 * k_win * NUM_SPATIAL * cand * cin_l * itemsize   # double-buffered
        out_tile = 2 * cand * nc_pad * 4
        interm = cand * (NUM_SPATIAL * cin_l                 # pooled (f32)
                         + 2 * NUM_SPATIAL * CONV_OUT        # conv f32 + flatten copy
                         + FC1_IN + HIDDEN + nc_pad) * 4
        if weight_bytes + xk_tile + out_tile + interm <= budget:
            tn = cand
            break
    return min(tn, n8)


def inception_aux_kernel(xk_ref, wc_ref, bnb_ref, w1_ref, b1_ref, w2_ref,
                         b2_ref, out_ref):
    # xk : [K, 16, TN, Cin] (pool-window element, pool pixel, batch, channel)
    # wc : [Cin, 128] (BN scale and 1/K folded in)     bnb: [1, 128]  f32
    # w1 : [2048, 1024] (rows permuted to s*128+c)     b1 : [1, 1024] f32
    # w2 : [1024, NCpad]                               b2 : [1, NCpad] f32
    # out: [TN, NCpad] f32
    k_win, n_sp, tn, cin = xk_ref.shape
    cdt = wc_ref.dtype

    # Adaptive 4x4 average pool: window-sum in f32 (the 1/K divisor lives in
    # the conv weight). K is a trace-time constant -> static unrolled adds.
    pooled = xk_ref[0].astype(jnp.float32)
    for k in range(1, k_win):
        pooled = pooled + xk_ref[k].astype(jnp.float32)
    pooled = pooled.reshape(n_sp * tn, cin)            # rows ordered s*TN + n (free)

    # 1x1 conv (bias=False) + folded BatchNorm + ReLU: one big MXU matmul.
    conv = jnp.dot(pooled.astype(cdt), wc_ref[...],
                   preferred_element_type=jnp.float32)
    conv = jnp.maximum(conv + bnb_ref[...], 0.0).astype(cdt)   # [16*TN, 128]

    # torch.flatten(x, 1): assemble a lane-dense [TN, 2048] activation whose
    # column index is s*128 + c (w1 rows were permuted to match in the wrapper).
    # Done in the compute dtype so the relayout copies move half the bytes.
    act = jnp.concatenate(
        [conv[s * tn:(s + 1) * tn, :] for s in range(n_sp)], axis=1)

    # fc1 + ReLU as a single K=2048 matmul (accumulation stays inside the MXU).
    h = jnp.dot(act, w1_ref[...], preferred_element_type=jnp.float32)
    h = jnp.maximum(h + b1_ref[...], 0.0).astype(cdt)

    # TODO(synk): dropout(p=0.7) is an inference-time identity; training-mode
    # random masking is intentionally not implemented here.

    # fc2 (num_classes padded to a multiple of 128 -> unmasked lane-dense store).
    out = jnp.dot(h, w2_ref[...], preferred_element_type=jnp.float32)
    out_ref[...] = (out + b2_ref[...]).astype(out_ref.dtype)


def inception_aux_forward(x, params, *, use_bf16=True):
    """x: [N, Cin, H, W] (NCHW, H and W divisible by 4). Returns [N, num_classes]."""
    wc, gamma, beta, rmean, rvar, w1, b1, w2, b2 = params
    N, C, H, W = x.shape
    # TODO(synk): uneven adaptive-pool windows (H or W not divisible by 4) not handled.
    assert H % 4 == 0 and W % 4 == 0
    hk, wk = H // 4, W // 4
    k_win = hk * wk
    num_classes = w2.shape[0]
    nc_pad = _round_up(num_classes, 128)
    act_dtype = jnp.bfloat16 if use_bf16 else jnp.float32
    itemsize = jnp.dtype(act_dtype).itemsize

    # ---- layout-only glue (plus linear-algebra folding; no compute hoisted) ----
    # NCHW -> [K, 16, N, Cin]: k = pool-window element (ih*wk+iw), s = oh*4+ow.
    xk = (x.reshape(N, C, 4, hk, 4, wk)        # (n, c, oh, ih, ow, iw)
           .transpose(3, 5, 2, 4, 0, 1)        # (ih, iw, oh, ow, n, c)
           .reshape(k_win, NUM_SPATIAL, N, C))
    # Fold inference BatchNorm scale and the 1/K pool divisor into the conv weight.
    scale = gamma / jnp.sqrt(rvar + BN_EPS)
    wc_k = (wc.T * (scale / k_win)[None, :]).astype(act_dtype)          # [Cin, 128]
    bnb = (beta - rmean * scale).reshape(1, CONV_OUT).astype(jnp.float32)
    # fc1 weight [1024, 2048]; torch flatten column index = c*16 + s
    # -> reorder rows to s*128 + c so the kernel's [TN, 2048] activation matches.
    w1_k = (w1.T.reshape(CONV_OUT, NUM_SPATIAL, HIDDEN)
              .transpose(1, 0, 2).reshape(FC1_IN, HIDDEN)).astype(act_dtype)
    b1_k = b1.reshape(1, HIDDEN).astype(jnp.float32)
    # fc2 weight/bias padded to a lane-dense multiple of 128 classes.
    w2_k = jnp.pad(w2.T, ((0, 0), (0, nc_pad - num_classes))).astype(act_dtype)
    b2_k = jnp.pad(b2, (0, nc_pad - num_classes)).reshape(1, nc_pad).astype(jnp.float32)

    # Batch tiling: biggest tile that fits a conservative VMEM budget; pad N.
    tn = _pick_batch_tile(N, k_win, C, nc_pad, itemsize)
    n_pad = _round_up(max(N, tn), tn)
    if n_pad != N:
        xk = jnp.pad(xk, ((0, 0), (0, 0), (0, n_pad - N), (0, 0)))
    xk = xk.astype(act_dtype)

    grid = (n_pad // tn,)
    flops = 2 * n_pad * (NUM_SPATIAL * C * CONV_OUT + FC1_IN * HIDDEN
                         + HIDDEN * nc_pad)
    bytes_accessed = (xk.size * itemsize
                      + (wc_k.size + w1_k.size + w2_k.size) * itemsize
                      + (CONV_OUT + HIDDEN + nc_pad) * 4
                      + n_pad * nc_pad * 4)

    out = pl.pallas_call(
        inception_aux_kernel,
        out_shape=jax.ShapeDtypeStruct((n_pad, nc_pad), jnp.float32),
        grid=grid,
        in_specs=[
            # streamed activation tile (double-buffered by the pipeline)
            pl.BlockSpec((k_win, NUM_SPATIAL, tn, C), lambda i: (0, 0, i, 0)),
            # weights/biases: constant index maps -> DMA'd once, VMEM-resident
            pl.BlockSpec((C, CONV_OUT), lambda i: (0, 0)),
            pl.BlockSpec((1, CONV_OUT), lambda i: (0, 0)),
            pl.BlockSpec((FC1_IN, HIDDEN), lambda i: (0, 0)),
            pl.BlockSpec((1, HIDDEN), lambda i: (0, 0)),
            pl.BlockSpec((HIDDEN, nc_pad), lambda i: (0, 0)),
            pl.BlockSpec((1, nc_pad), lambda i: (0, 0)),
        ],
        out_specs=pl.BlockSpec((tn, nc_pad), lambda i: (i, 0)),
        compiler_params=pltpu.CompilerParams(
            dimension_semantics=("parallel",),
            vmem_limit_bytes=48 * 1024 * 1024,
        ),
        cost_estimate=pl.CostEstimate(
            flops=int(flops), transcendentals=0,
            bytes_accessed=int(bytes_accessed)),
    )(xk, wc_k, bnb, w1_k, b1_k, w2_k, b2_k)
    return out[:N, :num_classes]


def ref_forward(x, params):
    """Pure-JAX f32 reference mimicking the PyTorch module (inference mode)."""
    wc, gamma, beta, rmean, rvar, w1, b1, w2, b2 = params
    N, C, H, W = x.shape
    pooled = x.reshape(N, C, 4, H // 4, 4, W // 4).mean(axis=(3, 5))   # [N,C,4,4]
    conv = jnp.einsum('oc,nchw->nohw', wc, pooled)                     # 1x1 conv
    scale = gamma / jnp.sqrt(rvar + BN_EPS)
    conv = conv * scale[None, :, None, None] \
         + (beta - rmean * scale)[None, :, None, None]
    conv = jnp.maximum(conv, 0.0)
    flat = conv.reshape(N, -1)                                         # torch.flatten(x, 1)
    h = jnp.maximum(flat @ w1.T + b1, 0.0)
    return h @ w2.T + b2


def make_params(key, in_channels, num_classes):
    ks = jax.random.split(key, 9)
    wc = jax.random.normal(ks[0], (CONV_OUT, in_channels), jnp.float32) * 0.1
    gamma = jax.random.uniform(ks[1], (CONV_OUT,), jnp.float32, 0.5, 1.5)
    beta = jax.random.normal(ks[2], (CONV_OUT,), jnp.float32) * 0.1
    rmean = jax.random.normal(ks[3], (CONV_OUT,), jnp.float32) * 0.1
    rvar = jax.random.uniform(ks[4], (CONV_OUT,), jnp.float32, 0.5, 1.5)
    w1 = jax.random.normal(ks[5], (HIDDEN, FC1_IN), jnp.float32) * 0.02
    b1 = jax.random.normal(ks[6], (HIDDEN,), jnp.float32) * 0.02
    w2 = jax.random.normal(ks[7], (num_classes, HIDDEN), jnp.float32) * 0.02
    b2 = jax.random.normal(ks[8], (num_classes,), jnp.float32) * 0.02
    return (wc, gamma, beta, rmean, rvar, w1, b1, w2, b2)


if __name__ == "__main__":
    N, C_IN, H, W = 2, 8, 16, 16
    NUM_CLASSES = 10

    key = jax.random.PRNGKey(0)
    kx, kp = jax.random.split(key)
    x = jax.random.normal(kx, (N, C_IN, H, W), jnp.float32)
    params = make_params(kp, C_IN, NUM_CLASSES)

    out = jax.block_until_ready(inception_aux_forward(x, params))
    ref = ref_forward(x, params)

    # bf16 activation/weight streaming with f32 accumulation -> loose-ish tolerance.
    np.testing.assert_allclose(np.asarray(out), np.asarray(ref), rtol=2e-2, atol=2e-2)
    assert out.shape == (N, NUM_CLASSES)
    print("KERNEL_OK")
</pallas_src>

<mosaic_0001>
module attributes {stable_mosaic.version = 11 : i64} {
  func.func @inception_aux_kernel(%arg0: i32, %arg1: memref<16x16x8x8xbf16, #tpu.memory_space<vmem>>, %arg2: memref<8x128xbf16, #tpu.memory_space<vmem>>, %arg3: memref<1x128xf32, #tpu.memory_space<vmem>>, %arg4: memref<2048x1024xbf16, #tpu.memory_space<vmem>>, %arg5: memref<1x1024xf32, #tpu.memory_space<vmem>>, %arg6: memref<1024x128xbf16, #tpu.memory_space<vmem>>, %arg7: memref<1x128xf32, #tpu.memory_space<vmem>>, %arg8: memref<8x128xf32, #tpu.memory_space<vmem>>) attributes {dimension_semantics = [#tpu.dimension_semantics<parallel>], iteration_bounds = array<i64: 1>, scalar_prefetch = 0 : i64, scratch_operands = 0 : i64, tpu.core_type = #tpu.core_type<tc>, window_params = [{transform_indices = @transform_0, window_bounds = array<i64: 16, 16, 8, 8>}, {pipeline_mode = #tpu.pipeline_mode<synchronous>, transform_indices = @transform_1, window_bounds = array<i64: 8, 128>}, {pipeline_mode = #tpu.pipeline_mode<synchronous>, transform_indices = @transform_2, window_bounds = array<i64: 1, 128>}, {pipeline_mode = #tpu.pipeline_mode<synchronous>, transform_indices = @transform_3, window_bounds = array<i64: 2048, 1024>}, {pipeline_mode = #tpu.pipeline_mode<synchronous>, transform_indices = @transform_4, window_bounds = array<i64: 1, 1024>}, {pipeline_mode = #tpu.pipeline_mode<synchronous>, transform_indices = @transform_5, window_bounds = array<i64: 1024, 128>}, {pipeline_mode = #tpu.pipeline_mode<synchronous>, transform_indices = @transform_6, window_bounds = array<i64: 1, 128>}, {transform_indices = @transform_7, window_bounds = array<i64: 8, 128>}]} {
    %c0 = arith.constant 0 : index
    %c0_0 = arith.constant 0 : index
    %c0_1 = arith.constant 0 : index
    %c0_2 = arith.constant 0 : index
    %0 = vector.load %arg1[%c0, %c0_0, %c0_1, %c0_2] : memref<16x16x8x8xbf16, #tpu.memory_space<vmem>>, vector<1x16x8x8xbf16>
    %1 = vector.shape_cast %0 : vector<1x16x8x8xbf16> to vector<16x8x8xbf16>
    %2 = arith.extf %1 : vector<16x8x8xbf16> to vector<16x8x8xf32>
    %c1 = arith.constant 1 : index
    %c0_3 = arith.constant 0 : index
    %c0_4 = arith.constant 0 : index
    %c0_5 = arith.constant 0 : index
    %3 = vector.load %arg1[%c1, %c0_3, %c0_4, %c0_5] : memref<16x16x8x8xbf16, #tpu.memory_space<vmem>>, vector<1x16x8x8xbf16>
    %4 = vector.shape_cast %3 : vector<1x16x8x8xbf16> to vector<16x8x8xbf16>
    %5 = arith.extf %4 : vector<16x8x8xbf16> to vector<16x8x8xf32>
    %6 = arith.addf %2, %5 : vector<16x8x8xf32>
    %c2 = arith.constant 2 : index
    %c0_6 = arith.constant 0 : index
    %c0_7 = arith.constant 0 : index
    %c0_8 = arith.constant 0 : index
    %7 = vector.load %arg1[%c2, %c0_6, %c0_7, %c0_8] : memref<16x16x8x8xbf16, #tpu.memory_space<vmem>>, vector<1x16x8x8xbf16>
    %8 = vector.shape_cast %7 : vector<1x16x8x8xbf16> to vector<16x8x8xbf16>
    %9 = arith.extf %8 : vector<16x8x8xbf16> to vector<16x8x8xf32>
    %10 = arith.addf %6, %9 : vector<16x8x8xf32>
    %c3 = arith.constant 3 : index
    %c0_9 = arith.constant 0 : index
    %c0_10 = arith.constant 0 : index
    %c0_11 = arith.constant 0 : index
    %11 = vector.load %arg1[%c3, %c0_9, %c0_10, %c0_11] : memref<16x16x8x8xbf16, #tpu.memory_space<vmem>>, vector<1x16x8x8xbf16>
    %12 = vector.shape_cast %11 : vector<1x16x8x8xbf16> to vector<16x8x8xbf16>
    %13 = arith.extf %12 : vector<16x8x8xbf16> to vector<16x8x8xf32>
    %14 = arith.addf %10, %13 : vector<16x8x8xf32>
    %c4 = arith.constant 4 : index
    %c0_12 = arith.constant 0 : index
    %c0_13 = arith.constant 0 : index
    %c0_14 = arith.constant 0 : index
    %15 = vector.load %arg1[%c4, %c0_12, %c0_13, %c0_14] : memref<16x16x8x8xbf16, #tpu.memory_space<vmem>>, vector<1x16x8x8xbf16>
    %16 = vector.shape_cast %15 : vector<1x16x8x8xbf16> to vector<16x8x8xbf16>
    %17 = arith.extf %16 : vector<16x8x8xbf16> to vector<16x8x8xf32>
    %18 = arith.addf %14, %17 : vector<16x8x8xf32>
    %c5 = arith.constant 5 : index
    %c0_15 = arith.constant 0 : index
    %c0_16 = arith.constant 0 : index
    %c0_17 = arith.constant 0 : index
    %19 = vector.load %arg1[%c5, %c0_15, %c0_16, %c0_17] : memref<16x16x8x8xbf16, #tpu.memory_space<vmem>>, vector<1x16x8x8xbf16>
    %20 = vector.shape_cast %19 : vector<1x16x8x8xbf16> to vector<16x8x8xbf16>
    %21 = arith.extf %20 : vector<16x8x8xbf16> to vector<16x8x8xf32>
    %22 = arith.addf %18, %21 : vector<16x8x8xf32>
    %c6 = arith.constant 6 : index
    %c0_18 = arith.constant 0 : index
    %c0_19 = arith.constant 0 : index
    %c0_20 = arith.constant 0 : index
    %23 = vector.load %arg1[%c6, %c0_18, %c0_19, %c0_20] : memref<16x16x8x8xbf16, #tpu.memory_space<vmem>>, vector<1x16x8x8xbf16>
    %24 = vector.shape_cast %23 : vector<1x16x8x8xbf16> to vector<16x8x8xbf16>
    %25 = arith.extf %24 : vector<16x8x8xbf16> to vector<16x8x8xf32>
    %26 = arith.addf %22, %25 : vector<16x8x8xf32>
    %c7 = arith.constant 7 : index
    %c0_21 = arith.constant 0 : index
    %c0_22 = arith.constant 0 : index
    %c0_23 = arith.constant 0 : index
    %27 = vector.load %arg1[%c7, %c0_21, %c0_22, %c0_23] : memref<16x16x8x8xbf16, #tpu.memory_space<vmem>>, vector<1x16x8x8xbf16>
    %28 = vector.shape_cast %27 : vector<1x16x8x8xbf16> to vector<16x8x8xbf16>
    %29 = arith.extf %28 : vector<16x8x8xbf16> to vector<16x8x8xf32>
    %30 = arith.addf %26, %29 : vector<16x8x8xf32>
    %c8 = arith.constant 8 : index
    %c0_24 = arith.constant 0 : index
    %c0_25 = arith.constant 0 : index
    %c0_26 = arith.constant 0 : index
    %31 = vector.load %arg1[%c8, %c0_24, %c0_25, %c0_26] : memref<16x16x8x8xbf16, #tpu.memory_space<vmem>>, vector<1x16x8x8xbf16>
    %32 = vector.shape_cast %31 : vector<1x16x8x8xbf16> to vector<16x8x8xbf16>
    %33 = arith.extf %32 : vector<16x8x8xbf16> to vector<16x8x8xf32>
    %34 = arith.addf %30, %33 : vector<16x8x8xf32>
    %c9 = arith.constant 9 : index
    %c0_27 = arith.constant 0 : index
    %c0_28 = arith.constant 0 : index
    %c0_29 = arith.constant 0 : index
    %35 = vector.load %arg1[%c9, %c0_27, %c0_28, %c0_29] : memref<16x16x8x8xbf16, #tpu.memory_space<vmem>>, vector<1x16x8x8xbf16>
    %36 = vector.shape_cast %35 : vector<1x16x8x8xbf16> to vector<16x8x8xbf16>
    %37 = arith.extf %36 : vector<16x8x8xbf16> to vector<16x8x8xf32>
    %38 = arith.addf %34, %37 : vector<16x8x8xf32>
    %c10 = arith.constant 10 : index
    %c0_30 = arith.constant 0 : index
    %c0_31 = arith.constant 0 : index
    %c0_32 = arith.constant 0 : index
    %39 = vector.load %arg1[%c10, %c0_30, %c0_31, %c0_32] : memref<16x16x8x8xbf16, #tpu.memory_space<vmem>>, vector<1x16x8x8xbf16>
    %40 = vector.shape_cast %39 : vector<1x16x8x8xbf16> to vector<16x8x8xbf16>
    %41 = arith.extf %40 : vector<16x8x8xbf16> to vector<16x8x8xf32>
    %42 = arith.addf %38, %41 : vector<16x8x8xf32>
    %c11 = arith.constant 11 : index
    %c0_33 = arith.constant 0 : index
    %c0_34 = arith.constant 0 : index
    %c0_35 = arith.constant 0 : index
    %43 = vector.load %arg1[%c11, %c0_33, %c0_34, %c0_35] : memref<16x16x8x8xbf16, #tpu.memory_space<vmem>>, vector<1x16x8x8xbf16>
    %44 = vector.shape_cast %43 : vector<1x16x8x8xbf16> to vector<16x8x8xbf16>
    %45 = arith.extf %44 : vector<16x8x8xbf16> to vector<16x8x8xf32>
    %46 = arith.addf %42, %45 : vector<16x8x8xf32>
    %c12 = arith.constant 12 : index
    %c0_36 = arith.constant 0 : index
    %c0_37 = arith.constant 0 : index
    %c0_38 = arith.constant 0 : index
    %47 = vector.load %arg1[%c12, %c0_36, %c0_37, %c0_38] : memref<16x16x8x8xbf16, #tpu.memory_space<vmem>>, vector<1x16x8x8xbf16>
    %48 = vector.shape_cast %47 : vector<1x16x8x8xbf16> to vector<16x8x8xbf16>
    %49 = arith.extf %48 : vector<16x8x8xbf16> to vector<16x8x8xf32>
    %50 = arith.addf %46, %49 : vector<16x8x8xf32>
    %c13 = arith.constant 13 : index
    %c0_39 = arith.constant 0 : index
    %c0_40 = arith.constant 0 : index
    %c0_41 = arith.constant 0 : index
    %51 = vector.load %arg1[%c13, %c0_39, %c0_40, %c0_41] : memref<16x16x8x8xbf16, #tpu.memory_space<vmem>>, vector<1x16x8x8xbf16>
    %52 = vector.shape_cast %51 : vector<1x16x8x8xbf16> to vector<16x8x8xbf16>
    %53 = arith.extf %52 : vector<16x8x8xbf16> to vector<16x8x8xf32>
    %54 = arith.addf %50, %53 : vector<16x8x8xf32>
    %c14 = arith.constant 14 : index
    %c0_42 = arith.constant 0 : index
    %c0_43 = arith.constant 0 : index
    %c0_44 = arith.constant 0 : index
    %55 = vector.load %arg1[%c14, %c0_42, %c0_43, %c0_44] : memref<16x16x8x8xbf16, #tpu.memory_space<vmem>>, vector<1x16x8x8xbf16>
    %56 = vector.shape_cast %55 : vector<1x16x8x8xbf16> to vector<16x8x8xbf16>
    %57 = arith.extf %56 : vector<16x8x8xbf16> to vector<16x8x8xf32>
    %58 = arith.addf %54, %57 : vector<16x8x8xf32>
    %c15 = arith.constant 15 : index
    %c0_45 = arith.constant 0 : index
    %c0_46 = arith.constant 0 : index
    %c0_47 = arith.constant 0 : index
    %59 = vector.load %arg1[%c15, %c0_45, %c0_46, %c0_47] : memref<16x16x8x8xbf16, #tpu.memory_space<vmem>>, vector<1x16x8x8xbf16>
    %60 = vector.shape_cast %59 : vector<1x16x8x8xbf16> to vector<16x8x8xbf16>
    %61 = arith.extf %60 : vector<16x8x8xbf16> to vector<16x8x8xf32>
    %62 = arith.addf %58, %61 : vector<16x8x8xf32>
    %63 = vector.shape_cast %62 : vector<16x8x8xf32> to vector<128x8xf32>
    %64 = arith.truncf %63 : vector<128x8xf32> to vector<128x8xbf16>
    %c0_48 = arith.constant 0 : index
    %c0_49 = arith.constant 0 : index
    %65 = vector.load %arg2[%c0_48, %c0_49] : memref<8x128xbf16, #tpu.memory_space<vmem>>, vector<8x128xbf16>
    %cst = arith.constant dense<0.000000e+00> : vector<128x128xf32>
    %66 = tpu.matmul %64, %65, %cst {dimension_numbers = #tpu.dot_dimension_numbers<[1], [0], [0], [1], [0, 0, 1, 1], [], []>} : vector<128x8xbf16>, vector<8x128xbf16>, vector<128x128xf32> -> vector<128x128xf32>
    %c0_50 = arith.constant 0 : index
    %c0_51 = arith.constant 0 : index
    %67 = vector.load %arg3[%c0_50, %c0_51] : memref<1x128xf32, #tpu.memory_space<vmem>>, vector<1x128xf32>
    %68 = vector.broadcast %67 : vector<1x128xf32> to vector<128x128xf32>
    %69 = arith.addf %66, %68 : vector<128x128xf32>
    %cst_52 = arith.constant 0.000000e+00 : f32
    %70 = vector.broadcast %cst_52 : f32 to vector<128x128xf32>
    %71 = arith.maximumf %69, %70 : vector<128x128xf32>
    %72 = arith.truncf %71 : vector<128x128xf32> to vector<128x128xbf16>
    %73 = vector.extract_strided_slice %72 {offsets = [0, 0], sizes = [8, 128], strides = [1, 1]} : vector<128x128xbf16> to vector<8x128xbf16>
    %74 = vector.extract_strided_slice %72 {offsets = [8, 0], sizes = [8, 128], strides = [1, 1]} : vector<128x128xbf16> to vector<8x128xbf16>
    %75 = vector.extract_strided_slice %72 {offsets = [16, 0], sizes = [8, 128], strides = [1, 1]} : vector<128x128xbf16> to vector<8x128xbf16>
    %76 = vector.extract_strided_slice %72 {offsets = [24, 0], sizes = [8, 128], strides = [1, 1]} : vector<128x128xbf16> to vector<8x128xbf16>
    %77 = vector.extract_strided_slice %72 {offsets = [32, 0], sizes = [8, 128], strides = [1, 1]} : vector<128x128xbf16> to vector<8x128xbf16>
    %78 = vector.extract_strided_slice %72 {offsets = [40, 0], sizes = [8, 128], strides = [1, 1]} : vector<128x128xbf16> to vector<8x128xbf16>
    %79 = vector.extract_strided_slice %72 {offsets = [48, 0], sizes = [8, 128], strides = [1, 1]} : vector<128x128xbf16> to vector<8x128xbf16>
    %80 = vector.extract_strided_slice %72 {offsets = [56, 0], sizes = [8, 128], strides = [1, 1]} : vector<128x128xbf16> to vector<8x128xbf16>
    %81 = vector.extract_strided_slice %72 {offsets = [64, 0], sizes = [8, 128], strides = [1, 1]} : vector<128x128xbf16> to vector<8x128xbf16>
    %82 = vector.extract_strided_slice %72 {offsets = [72, 0], sizes = [8, 128], strides = [1, 1]} : vector<128x128xbf16> to vector<8x128xbf16>
    %83 = vector.extract_strided_slice %72 {offsets = [80, 0], sizes = [8, 128], strides = [1, 1]} : vector<128x128xbf16> to vector<8x128xbf16>
    %84 = vector.extract_strided_slice %72 {offsets = [88, 0], sizes = [8, 128], strides = [1, 1]} : vector<128x128xbf16> to vector<8x128xbf16>
    %85 = vector.extract_strided_slice %72 {offsets = [96, 0], sizes = [8, 128], strides = [1, 1]} : vector<128x128xbf16> to vector<8x128xbf16>
    %86 = vector.extract_strided_slice %72 {offsets = [104, 0], sizes = [8, 128], strides = [1, 1]} : vector<128x128xbf16> to vector<8x128xbf16>
    %87 = vector.extract_strided_slice %72 {offsets = [112, 0], sizes = [8, 128], strides = [1, 1]} : vector<128x128xbf16> to vector<8x128xbf16>
    %88 = vector.extract_strided_slice %72 {offsets = [120, 0], sizes = [8, 128], strides = [1, 1]} : vector<128x128xbf16> to vector<8x128xbf16>
    %89 = tpu.concatenate %73, %74, %75, %76, %77, %78, %79, %80, %81, %82, %83, %84, %85, %86, %87, %88 in 1 : vector<8x128xbf16>, vector<8x128xbf16>, vector<8x128xbf16>, vector<8x128xbf16>, vector<8x128xbf16>, vector<8x128xbf16>, vector<8x128xbf16>, vector<8x128xbf16>, vector<8x128xbf16>, vector<8x128xbf16>, vector<8x128xbf16>, vector<8x128xbf16>, vector<8x128xbf16>, vector<8x128xbf16>, vector<8x128xbf16>, vector<8x128xbf16> -> vector<8x2048xbf16>
    %c0_53 = arith.constant 0 : index
    %c0_54 = arith.constant 0 : index
    %90 = vector.load %arg4[%c0_53, %c0_54] : memref<2048x1024xbf16, #tpu.memory_space<vmem>>, vector<2048x1024xbf16>
    %cst_55 = arith.constant dense<0.000000e+00> : vector<8x1024xf32>
    %91 = tpu.matmul %89, %90, %cst_55 {dimension_numbers = #tpu.dot_dimension_numbers<[1], [0], [0], [1], [0, 0, 1, 1], [], []>} : vector<8x2048xbf16>, vector<2048x1024xbf16>, vector<8x1024xf32> -> vector<8x1024xf32>
    %c0_56 = arith.constant 0 : index
    %c0_57 = arith.constant 0 : index
    %92 = vector.load %arg5[%c0_56, %c0_57] : memref<1x1024xf32, #tpu.memory_space<vmem>>, vector<1x1024xf32>
    %93 = vector.broadcast %92 : vector<1x1024xf32> to vector<8x1024xf32>
    %94 = arith.addf %91, %93 : vector<8x1024xf32>
    %cst_58 = arith.constant 0.000000e+00 : f32
    %95 = vector.broadcast %cst_58 : f32 to vector<8x1024xf32>
    %96 = arith.maximumf %94, %95 : vector<8x1024xf32>
    %97 = arith.truncf %96 : vector<8x1024xf32> to vector<8x1024xbf16>
    %c0_59 = arith.constant 0 : index
    %c0_60 = arith.constant 0 : index
    %98 = vector.load %arg6[%c0_59, %c0_60] : memref<1024x128xbf16, #tpu.memory_space<vmem>>, vector<1024x128xbf16>
    %cst_61 = arith.constant dense<0.000000e+00> : vector<8x128xf32>
    %99 = tpu.matmul %97, %98, %cst_61 {dimension_numbers = #tpu.dot_dimension_numbers<[1], [0], [0], [1], [0, 0, 1, 1], [], []>} : vector<8x1024xbf16>, vector<1024x128xbf16>, vector<8x128xf32> -> vector<8x128xf32>
    %c0_62 = arith.constant 0 : index
    %c0_63 = arith.constant 0 : index
    %100 = vector.load %arg7[%c0_62, %c0_63] : memref<1x128xf32, #tpu.memory_space<vmem>>, vector<1x128xf32>
    %101 = vector.broadcast %100 : vector<1x128xf32> to vector<8x128xf32>
    %102 = arith.addf %99, %101 : vector<8x128xf32>
    %c0_64 = arith.constant 0 : index
    %c0_65 = arith.constant 0 : index
    %103 = vector.load %arg8[%c0_64, %c0_65] : memref<8x128xf32, #tpu.memory_space<vmem>>, vector<8x128xf32>
    tpu.vector_store %arg8[%c0_64, %c0_65], %102 {strides = array<i32>} : memref<8x128xf32, #tpu.memory_space<vmem>>, vector<8x128xf32>,
    return
  }
  func.func @transform_0(%arg0: i32) -> (i32, i32, i32, i32) {
    %c0_i32 = arith.constant 0 : i32
    %c0_i32_0 = arith.constant 0 : i32
    %c0_i32_1 = arith.constant 0 : i32
    %c0_i32_2 = arith.constant 0 : i32
    return %c0_i32, %c0_i32_0, %arg0, %c0_i32_1 : i32, i32, i32, i32
  }
  func.func @transform_1(%arg0: i32) -> (i32, i32) {
    %c0_i32 = arith.constant 0 : i32
    %c0_i32_0 = arith.constant 0 : i32
    %c0_i32_1 = arith.constant 0 : i32
    return %c0_i32, %c0_i32_0 : i32, i32
  }
  func.func @transform_2(%arg0: i32) -> (i32, i32) {
    %c0_i32 = arith.constant 0 : i32
    %c0_i32_0 = arith.constant 0 : i32
    %c0_i32_1 = arith.constant 0 : i32
    return %c0_i32, %c0_i32_0 : i32, i32
  }
  func.func @transform_3(%arg0: i32) -> (i32, i32) {
    %c0_i32 = arith.constant 0 : i32
    %c0_i32_0 = arith.constant 0 : i32
    %c0_i32_1 = arith.constant 0 : i32
    return %c0_i32, %c0_i32_0 : i32, i32
  }
  func.func @transform_4(%arg0: i32) -> (i32, i32) {
    %c0_i32 = arith.constant 0 : i32
    %c0_i32_0 = arith.constant 0 : i32
    %c0_i32_1 = arith.constant 0 : i32
    return %c0_i32, %c0_i32_0 : i32, i32
  }
  func.func @transform_5(%arg0: i32) -> (i32, i32) {
    %c0_i32 = arith.constant 0 : i32
    %c0_i32_0 = arith.constant 0 : i32
    %c0_i32_1 = arith.constant 0 : i32
    return %c0_i32, %c0_i32_0 : i32, i32
  }
  func.func @transform_6(%arg0: i32) -> (i32, i32) {
    %c0_i32 = arith.constant 0 : i32
    %c0_i32_0 = arith.constant 0 : i32
    %c0_i32_1 = arith.constant 0 : i32
    return %c0_i32, %c0_i32_0 : i32, i32
  }
  func.func @transform_7(%arg0: i32) -> (i32, i32) {
    %c0_i32 = arith.constant 0 : i32
    %c0_i32_0 = arith.constant 0 : i32
    return %arg0, %c0_i32 : i32, i32
  }
}

</mosaic_0001>

<llo_original>
// kernel: tpu_custom_call.1
$region0: #{tpu_custom_call.1}
  #allocation0 [shape = 'u32[]', space=smem, size = 0x4, offset = 0x4, fixed_abs, tag = 'smem constant byte address 0x4 - core index']
  #allocation1 [shape = 'u32[72,128]{1,0:T(1,128)}', space=vmem, size = 0x9000, scoped, tag = 'internal scratch']
  %s0 = inlined_call_operand.vmem [shape: bf16[16,16,8,8], index: 0, kind: input, shape index: {}]
  %s1 = inlined_call_operand.hbm [shape: bf16[8,128], index: 1, kind: input, shape index: {}]
  %s2 = inlined_call_operand.hbm [shape: f32[1,128], index: 2, kind: input, shape index: {}]
  %s3 = inlined_call_operand.hbm [shape: bf16[2048,1024], index: 3, kind: input, shape index: {}]
  %s4 = inlined_call_operand.hbm [shape: f32[1,1024], index: 4, kind: input, shape index: {}]
  %s5 = inlined_call_operand.hbm [shape: bf16[1024,128], index: 5, kind: input, shape index: {}]
  %s6 = inlined_call_operand.hbm [shape: f32[1,128], index: 6, kind: input, shape index: {}]
  %s7 = inlined_call_operand.hbm [shape: f32[8,128], index: 7, kind: output, shape index: {}]
  %s8 = sld [smem:[#allocation0]]
  $region62: #{tpu_custom_call.1} parent=0
    _
  %s10 = ssub.s32 1, %s8
  %s11 = scalar_select 0, %s10, %s8
  $region1: #{tpu_custom_call.1} parent=0
    #allocation2 [shape = 'u8[2048]{0}', space=vmem, size = 0x800, scoped, tag = 'input window, operand 1, single buffered']
    #allocation3 [shape = 's32[1]{0}', space=sflag, size = 0x4, scoped, tag = 'scoped memory for tpu_custom_call.1']
    #allocation4 [shape = 's32[1]{0}', space=sflag, size = 0x4, scoped, tag = 'scoped memory for tpu_custom_call.1']
    #allocation5 [shape = 'u8[512]{0}', space=vmem, size = 0x400, scoped, tag = 'input window, operand 2, single buffered']
    #allocation6 [shape = 's32[1]{0}', space=sflag, size = 0x4, scoped, tag = 'scoped memory for tpu_custom_call.1']
    #allocation7 [shape = 'u8[4194304]{0}', space=vmem, size = 0x400000, scoped, tag = 'input window, operand 3, single buffered']
    #allocation8 [shape = 'u8[4096]{0}', space=vmem, size = 0x1000, scoped, tag = 'input window, operand 4, single buffered']
    #allocation9 [shape = 's32[1]{0}', space=sflag, size = 0x4, scoped, tag = 'scoped memory for tpu_custom_call.1']
    #allocation10 [shape = 'u8[262144]{0}', space=vmem, size = 0x40000, scoped, tag = 'input window, operand 5, single buffered']
    #allocation11 [shape = 'u8[512]{0}', space=vmem, size = 0x400, scoped, tag = 'input window, operand 6, single buffered']
    #allocation12 [shape = 's32[1]{0}', space=sflag, size = 0x4, scoped, tag = 'scoped memory for tpu_custom_call.1']
    #allocation13 [shape = 'u8[4096]{0}', space=vmem, size = 0x1000, scoped, tag = 'output window, operand 0, single buffered']
    %12 = vsyncpa [#allocation3], 0
    %13 = vsyncpa [#allocation6], 0
    %14 = vsyncpa [#allocation9], 0
    %15 = vsyncpa [#allocation12], 0
    %16 = vsyncpa [#allocation4], 0
    // Predicated region
    $region2: #{tpu_custom_call.1} parent=1 // pred_check
      _
    $region3: #{tpu_custom_call.1} parent=1 // pred_check_branch
      %18 = sbr.rel (0) target = $region5
    $region4: #{tpu_custom_call.1} parent=1 // pred_region
      _
    $region5: #{tpu_custom_call.1} parent=1 // pred_fallthru
      _
    // Predicated region
    $region6: #{tpu_custom_call.1} parent=1 // pred_check
      _
    $region7: #{tpu_custom_call.1} parent=1 // pred_check_branch
      %20 = sbr.rel (0) target = $region9
    $region8: #{tpu_custom_call.1} parent=1 // pred_region
      %22 = vsyncadd [#allocation3], 0
      %s24 = sshll.u32 %s1, 4
      %s25 = int_to_ptr.hbm [resolvable:$true] %s24
      %s26 = sshll.u32 [#allocation2], 4
      %s27 = int_to_ptr.vmem [resolvable:$true] %s26
      %29 = dma.hbm_to_vmem [thread:$0]  %s25, 64, %s27, [#allocation3]
    $region9: #{tpu_custom_call.1} parent=1 // pred_fallthru
      _
    // Predicated region
    $region10: #{tpu_custom_call.1} parent=1 // pred_check
      _
    $region11: #{tpu_custom_call.1} parent=1 // pred_check_branch
      %31 = sbr.rel (0) target = $region13
    $region12: #{tpu_custom_call.1} parent=1 // pred_region
      %33 = vsyncadd [#allocation6], 0
      %s35 = sshll.u32 %s2, 4
      %s36 = int_to_ptr.hbm [resolvable:$true] %s35
      %s37 = sshll.u32 [#allocation5], 4
      %s38 = int_to_ptr.vmem [resolvable:$true] %s37
      %40 = dma.hbm_to_vmem [thread:$0]  %s36, 16, %s38, [#allocation6]
    $region13: #{tpu_custom_call.1} parent=1 // pred_fallthru
      _
    // Predicated region
    $region14: #{tpu_custom_call.1} parent=1 // pred_check
      _
    $region15: #{tpu_custom_call.1} parent=1 // pred_check_branch
      %42 = sbr.rel (0) target = $region17
    $region16: #{tpu_custom_call.1} parent=1 // pred_region
      %44 = vsyncadd [#allocation6], 0
      %s45 = sshll.u32 %s3, 4
      %s46 = int_to_ptr.hbm [resolvable:$true] %s45
      %s47 = sshll.u32 [#allocation7], 4
      %s48 = int_to_ptr.vmem [resolvable:$true] %s47
      %53 = dma.hbm_to_vmem [thread:$0]  %s46, 131072, %s48, [#allocation6], 512, 512, 32
    $region17: #{tpu_custom_call.1} parent=1 // pred_fallthru
      _
    // Predicated region
    $region18: #{tpu_custom_call.1} parent=1 // pred_check
      _
    $region19: #{tpu_custom_call.1} parent=1 // pred_check_branch
      %55 = sbr.rel (0) target = $region21
    $region20: #{tpu_custom_call.1} parent=1 // pred_region
      %57 = vsyncadd [#allocation9], 0
      %s59 = sshll.u32 %s4, 4
      %s60 = int_to_ptr.hbm [resolvable:$true] %s59
      %s61 = sshll.u32 [#allocation8], 4
      %s62 = int_to_ptr.vmem [resolvable:$true] %s61
      %64 = dma.hbm_to_vmem [thread:$0]  %s60, 128, %s62, [#allocation9]
    $region21: #{tpu_custom_call.1} parent=1 // pred_fallthru
      _
    // Predicated region
    $region22: #{tpu_custom_call.1} parent=1 // pred_check
      _
    $region23: #{tpu_custom_call.1} parent=1 // pred_check_branch
      %66 = sbr.rel (0) target = $region25
    $region24: #{tpu_custom_call.1} parent=1 // pred_region
      %68 = vsyncadd [#allocation9], 0
      %s69 = sshll.u32 %s5, 4
      %s70 = int_to_ptr.hbm [resolvable:$true] %s69
      %s71 = sshll.u32 [#allocation10], 4
      %s72 = int_to_ptr.vmem [resolvable:$true] %s71
      %77 = dma.hbm_to_vmem [thread:$0]  %s70, 8192, %s72, [#allocation9], 64, 64, 4
    $region25: #{tpu_custom_call.1} parent=1 // pred_fallthru
      _
    // Predicated region
    $region26: #{tpu_custom_call.1} parent=1 // pred_check
      _
    $region27: #{tpu_custom_call.1} parent=1 // pred_check_branch
      %79 = sbr.rel (0) target = $region29
    $region28: #{tpu_custom_call.1} parent=1 // pred_region
      %81 = vsyncadd [#allocation12], 0
      %s83 = sshll.u32 %s6, 4
      %s84 = int_to_ptr.hbm [resolvable:$true] %s83
      %s85 = sshll.u32 [#allocation11], 4
      %s86 = int_to_ptr.vmem [resolvable:$true] %s85
      %88 = dma.hbm_to_vmem [thread:$0]  %s84, 16, %s86, [#allocation12]
    $region29: #{tpu_custom_call.1} parent=1 // pred_fallthru
      _
    // Predicated region
    $region30: #{tpu_custom_call.1} parent=1 // pred_check
      _
    $region31: #{tpu_custom_call.1} parent=1 // pred_check_branch
      %90 = sbr.rel (0) target = $region33
    $region32: #{tpu_custom_call.1} parent=1 // pred_region
      %92 = dma.done [#allocation3], 64
    $region33: #{tpu_custom_call.1} parent=1 // pred_fallthru
      _
    // Predicated region
    $region34: #{tpu_custom_call.1} parent=1 // pred_check
      _
    $region35: #{tpu_custom_call.1} parent=1 // pred_check_branch
      %94 = sbr.rel (0) target = $region37
    $region36: #{tpu_custom_call.1} parent=1 // pred_region
      %96 = dma.done [#allocation6], 16
    $region37: #{tpu_custom_call.1} parent=1 // pred_fallthru
      _
    // Predicated region
    $region38: #{tpu_custom_call.1} parent=1 // pred_check
      _
    $region39: #{tpu_custom_call.1} parent=1 // pred_check_branch
      %98 = sbr.rel (0) target = $region41
    $region40: #{tpu_custom_call.1} parent=1 // pred_region
      %100 = dma.done [#allocation6], 131072
    $region41: #{tpu_custom_call.1} parent=1 // pred_fallthru
      _
    // Predicated region
    $region42: #{tpu_custom_call.1} parent=1 // pred_check
      _
    $region43: #{tpu_custom_call.1} parent=1 // pred_check_branch
      %102 = sbr.rel (0) target = $region45
    $region44: #{tpu_custom_call.1} parent=1 // pred_region
      %104 = dma.done [#allocation9], 128
    $region45: #{tpu_custom_call.1} parent=1 // pred_fallthru
      _
    // Predicated region
    $region46: #{tpu_custom_call.1} parent=1 // pred_check
      _
    $region47: #{tpu_custom_call.1} parent=1 // pred_check_branch
      %106 = sbr.rel (0) target = $region49
    $region48: #{tpu_custom_call.1} parent=1 // pred_region
      %108 = dma.done [#allocation9], 8192
    $region49: #{tpu_custom_call.1} parent=1 // pred_fallthru
      _
    // Predicated region
    $region50: #{tpu_custom_call.1} parent=1 // pred_check
      _
    $region51: #{tpu_custom_call.1} parent=1 // pred_check_branch
      %110 = sbr.rel (0) target = $region53
    $region52: #{tpu_custom_call.1} parent=1 // pred_region
      %112 = dma.done [#allocation12], 16
    $region53: #{tpu_custom_call.1} parent=1 // pred_fallthru
      _
    %v114 = vld [vmem:[%s0] sm:$0xf]
    %v115 = vld [vmem:[%s0 + $0x4] sm:$0xf]
    %v116 = vld [vmem:[%s0 + $0x8] sm:$0xf]
    %v117 = vld [vmem:[%s0 + $0xc] sm:$0xf]
    %v118 = vld [vmem:[%s0 + $0x10] sm:$0xf]
    %v119 = vld [vmem:[%s0 + $0x14] sm:$0xf]
    %v120 = vld [vmem:[%s0 + $0x18] sm:$0xf]
    %v121 = vld [vmem:[%s0 + $0x1c] sm:$0xf]
    %v122 = vld [vmem:[%s0 + $0x20] sm:$0xf]
    %v123 = vld [vmem:[%s0 + $0x24] sm:$0xf]
    %v124 = vld [vmem:[%s0 + $0x28] sm:$0xf]
    %v125 = vld [vmem:[%s0 + $0x2c] sm:$0xf]
    %v126 = vld [vmem:[%s0 + $0x30] sm:$0xf]
    %v127 = vld [vmem:[%s0 + $0x34] sm:$0xf]
    %v128 = vld [vmem:[%s0 + $0x38] sm:$0xf]
    %v129 = vld [vmem:[%s0 + $0x3c] sm:$0xf]
    %v130 = vunpack.c.l.bf16 %v114
    %v131 = vunpack.c.l.bf16 %v115
    %v132 = vunpack.c.l.bf16 %v116
    %v133 = vunpack.c.l.bf16 %v117
    %v134 = vunpack.c.l.bf16 %v118
    %v135 = vunpack.c.l.bf16 %v119
    %v136 = vunpack.c.l.bf16 %v120
    %v137 = vunpack.c.l.bf16 %v121
    %v138 = vunpack.c.l.bf16 %v122
    %v139 = vunpack.c.l.bf16 %v123
    %v140 = vunpack.c.l.bf16 %v124
    %v141 = vunpack.c.l.bf16 %v125
    %v142 = vunpack.c.l.bf16 %v126
    %v143 = vunpack.c.l.bf16 %v127
    %v144 = vunpack.c.l.bf16 %v128
    %v145 = vunpack.c.l.bf16 %v129
    %s146 = scalar_lea.vmem %s0, 64
    %v147 = vld [vmem:[%s146] sm:$0xf]
    %v148 = vld [vmem:[%s146 + $0x4] sm:$0xf]
    %v149 = vld [vmem:[%s146 + $0x8] sm:$0xf]
    %v150 = vld [vmem:[%s146 + $0xc] sm:$0xf]
    %v151 = vld [vmem:[%s146 + $0x10] sm:$0xf]
    %v152 = vld [vmem:[%s146 + $0x14] sm:$0xf]
    %v153 = vld [vmem:[%s146 + $0x18] sm:$0xf]
    %v154 = vld [vmem:[%s146 + $0x1c] sm:$0xf]
    %v155 = vld [vmem:[%s146 + $0x20] sm:$0xf]
    %v156 = vld [vmem:[%s146 + $0x24] sm:$0xf]
    %v157 = vld [vmem:[%s146 + $0x28] sm:$0xf]
    %v158 = vld [vmem:[%s146 + $0x2c] sm:$0xf]
    %v159 = vld [vmem:[%s146 + $0x30] sm:$0xf]
    %v160 = vld [vmem:[%s146 + $0x34] sm:$0xf]
    %v161 = vld [vmem:[%s146 + $0x38] sm:$0xf]
    %v162 = vld [vmem:[%s146 + $0x3c] sm:$0xf]
    %v163 = vunpack.c.l.bf16 %v147
    %v164 = vunpack.c.l.bf16 %v148
    %v165 = vunpack.c.l.bf16 %v149
    %v166 = vunpack.c.l.bf16 %v150
    %v167 = vunpack.c.l.bf16 %v151
    %v168 = vunpack.c.l.bf16 %v152
    %v169 = vunpack.c.l.bf16 %v153
    %v170 = vunpack.c.l.bf16 %v154
    %v171 = vunpack.c.l.bf16 %v155
    %v172 = vunpack.c.l.bf16 %v156
    %v173 = vunpack.c.l.bf16 %v157
    %v174 = vunpack.c.l.bf16 %v158
    %v175 = vunpack.c.l.bf16 %v159
    %v176 = vunpack.c.l.bf16 %v160
    %v177 = vunpack.c.l.bf16 %v161
    %v178 = vunpack.c.l.bf16 %v162
    %v179 = vadd.f32 %v130, %v163
    %v180 = vadd.f32 %v131, %v164
    %v181 = vadd.f32 %v132, %v165
    %v182 = vadd.f32 %v133, %v166
    %v183 = vadd.f32 %v134, %v167
    %v184 = vadd.f32 %v135, %v168
    %v185 = vadd.f32 %v136, %v169
    %v186 = vadd.f32 %v137, %v170
    %v187 = vadd.f32 %v138, %v171
    %v188 = vadd.f32 %v139, %v172
    %v189 = vadd.f32 %v140, %v173
    %v190 = vadd.f32 %v141, %v174
    %v191 = vadd.f32 %v142, %v175
    %v192 = vadd.f32 %v143, %v176
    %v193 = vadd.f32 %v144, %v177
    %v194 = vadd.f32 %v145, %v178
    %s195 = scalar_lea.vmem %s0, 128
    %v196 = vld [vmem:[%s195] sm:$0xf]
    %v197 = vld [vmem:[%s195 + $0x4] sm:$0xf]
    %v198 = vld [vmem:[%s195 + $0x8] sm:$0xf]
    %v199 = vld [vmem:[%s195 + $0xc] sm:$0xf]
    %v200 = vld [vmem:[%s195 + $0x10] sm:$0xf]
    %v201 = vld [vmem:[%s195 + $0x14] sm:$0xf]
    %v202 = vld [vmem:[%s195 + $0x18] sm:$0xf]
    %v203 = vld [vmem:[%s195 + $0x1c] sm:$0xf]
    %v204 = vld [vmem:[%s195 + $0x20] sm:$0xf]
    %v205 = vld [vmem:[%s195 + $0x24] sm:$0xf]
    %v206 = vld [vmem:[%s195 + $0x28] sm:$0xf]
    %v207 = vld [vmem:[%s195 + $0x2c] sm:$0xf]
    %v208 = vld [vmem:[%s195 + $0x30] sm:$0xf]
    %v209 = vld [vmem:[%s195 + $0x34] sm:$0xf]
    %v210 = vld [vmem:[%s195 + $0x38] sm:$0xf]
    %v211 = vld [vmem:[%s195 + $0x3c] sm:$0xf]
    %v212 = vunpack.c.l.bf16 %v196
    %v213 = vunpack.c.l.bf16 %v197
    %v214 = vunpack.c.l.bf16 %v198
    %v215 = vunpack.c.l.bf16 %v199
    %v216 = vunpack.c.l.bf16 %v200
    %v217 = vunpack.c.l.bf16 %v201
    %v218 = vunpack.c.l.bf16 %v202
    %v219 = vunpack.c.l.bf16 %v203
    %v220 = vunpack.c.l.bf16 %v204
    %v221 = vunpack.c.l.bf16 %v205
    %v222 = vunpack.c.l.bf16 %v206
    %v223 = vunpack.c.l.bf16 %v207
    %v224 = vunpack.c.l.bf16 %v208
    %v225 = vunpack.c.l.bf16 %v209
    %v226 = vunpack.c.l.bf16 %v210
    %v227 = vunpack.c.l.bf16 %v211
    %v228 = vadd.f32 %v179, %v212
    %v229 = vadd.f32 %v180, %v213
    %v230 = vadd.f32 %v181, %v214
    %v231 = vadd.f32 %v182, %v215
    %v232 = vadd.f32 %v183, %v216
    %v233 = vadd.f32 %v184, %v217
    %v234 = vadd.f32 %v185, %v218
    %v235 = vadd.f32 %v186, %v219
    %v236 = vadd.f32 %v187, %v220
    %v237 = vadd.f32 %v188, %v221
    %v238 = vadd.f32 %v189, %v222
    %v239 = vadd.f32 %v190, %v223
    %v240 = vadd.f32 %v191, %v224
    %v241 = vadd.f32 %v192, %v225
    %v242 = vadd.f32 %v193, %v226
    %v243 = vadd.f32 %v194, %v227
    %s244 = scalar_lea.vmem %s0, 192
    %v245 = vld [vmem:[%s244] sm:$0xf]
    %v246 = vld [vmem:[%s244 + $0x4] sm:$0xf]
    %v247 = vld [vmem:[%s244 + $0x8] sm:$0xf]
    %v248 = vld [vmem:[%s244 + $0xc] sm:$0xf]
    %v249 = vld [vmem:[%s244 + $0x10] sm:$0xf]
    %v250 = vld [vmem:[%s244 + $0x14] sm:$0xf]
    %v251 = vld [vmem:[%s244 + $0x18] sm:$0xf]
    %v252 = vld [vmem:[%s244 + $0x1c] sm:$0xf]
    %v253 = vld [vmem:[%s244 + $0x20] sm:$0xf]
    %v254 = vld [vmem:[%s244 + $0x24] sm:$0xf]
    %v255 = vld [vmem:[%s244 + $0x28] sm:$0xf]
    %v256 = vld [vmem:[%s244 + $0x2c] sm:$0xf]
    %v257 = vld [vmem:[%s244 + $0x30] sm:$0xf]
    %v258 = vld [vmem:[%s244 + $0x34] sm:$0xf]
    %v259 = vld [vmem:[%s244 + $0x38] sm:$0xf]
    %v260 = vld [vmem:[%s244 + $0x3c] sm:$0xf]
    %v261 = vunpack.c.l.bf16 %v245
    %v262 = vunpack.c.l.bf16 %v246
    %v263 = vunpack.c.l.bf16 %v247
    %v264 = vunpack.c.l.bf16 %v248
    %v265 = vunpack.c.l.bf16 %v249
    %v266 = vunpack.c.l.bf16 %v250
    %v267 = vunpack.c.l.bf16 %v251
    %v268 = vunpack.c.l.bf16 %v252
    %v269 = vunpack.c.l.bf16 %v253
    %v270 = vunpack.c.l.bf16 %v254
    %v271 = vunpack.c.l.bf16 %v255
    %v272 = vunpack.c.l.bf16 %v256
    %v273 = vunpack.c.l.bf16 %v257
    %v274 = vunpack.c.l.bf16 %v258
    %v275 = vunpack.c.l.bf16 %v259
    %v276 = vunpack.c.l.bf16 %v260
    %v277 = vadd.f32 %v228, %v261
    %v278 = vadd.f32 %v229, %v262
    %v279 = vadd.f32 %v230, %v263
    %v280 = vadd.f32 %v231, %v264
    %v281 = vadd.f32 %v232, %v265
    %v282 = vadd.f32 %v233, %v266
    %v283 = vadd.f32 %v234, %v267
    %v284 = vadd.f32 %v235, %v268
    %v285 = vadd.f32 %v236, %v269
    %v286 = vadd.f32 %v237, %v270
    %v287 = vadd.f32 %v238, %v271
    %v288 = vadd.f32 %v239, %v272
    %v289 = vadd.f32 %v240, %v273
    %v290 = vadd.f32 %v241, %v274
    %v291 = vadd.f32 %v242, %v275
    %v292 = vadd.f32 %v243, %v276
    %s293 = scalar_lea.vmem %s0, 256
    %v294 = vld [vmem:[%s293] sm:$0xf]
    %v295 = vld [vmem:[%s293 + $0x4] sm:$0xf]
    %v296 = vld [vmem:[%s293 + $0x8] sm:$0xf]
    %v297 = vld [vmem:[%s293 + $0xc] sm:$0xf]
    %v298 = vld [vmem:[%s293 + $0x10] sm:$0xf]
    %v299 = vld [vmem:[%s293 + $0x14] sm:$0xf]
    %v300 = vld [vmem:[%s293 + $0x18] sm:$0xf]
    %v301 = vld [vmem:[%s293 + $0x1c] sm:$0xf]
    %v302 = vld [vmem:[%s293 + $0x20] sm:$0xf]
    %v303 = vld [vmem:[%s293 + $0x24] sm:$0xf]
    %v304 = vld [vmem:[%s293 + $0x28] sm:$0xf]
    %v305 = vld [vmem:[%s293 + $0x2c] sm:$0xf]
    %v306 = vld [vmem:[%s293 + $0x30] sm:$0xf]
    %v307 = vld [vmem:[%s293 + $0x34] sm:$0xf]
    %v308 = vld [vmem:[%s293 + $0x38] sm:$0xf]
    %v309 = vld [vmem:[%s293 + $0x3c] sm:$0xf]
    %v310 = vunpack.c.l.bf16 %v294
    %v311 = vunpack.c.l.bf16 %v295
    %v312 = vunpack.c.l.bf16 %v296
    %v313 = vunpack.c.l.bf16 %v297
    %v314 = vunpack.c.l.bf16 %v298
    %v315 = vunpack.c.l.bf16 %v299
    %v316 = vunpack.c.l.bf16 %v300
    %v317 = vunpack.c.l.bf16 %v301
    %v318 = vunpack.c.l.bf16 %v302
    %v319 = vunpack.c.l.bf16 %v303
    %v320 = vunpack.c.l.bf16 %v304
    %v321 = vunpack.c.l.bf16 %v305
    %v322 = vunpack.c.l.bf16 %v306
    %v323 = vunpack.c.l.bf16 %v307
    %v324 = vunpack.c.l.bf16 %v308
    %v325 = vunpack.c.l.bf16 %v309
    %v326 = vadd.f32 %v277, %v310
    %v327 = vadd.f32 %v278, %v311
    %v328 = vadd.f32 %v279, %v312
    %v329 = vadd.f32 %v280, %v313
    %v330 = vadd.f32 %v281, %v314
    %v331 = vadd.f32 %v282, %v315
    %v332 = vadd.f32 %v283, %v316
    %v333 = vadd.f32 %v284, %v317
    %v334 = vadd.f32 %v285, %v318
    %v335 = vadd.f32 %v286, %v319
    %v336 = vadd.f32 %v287, %v320
    %v337 = vadd.f32 %v288, %v321
    %v338 = vadd.f32 %v289, %v322
    %v339 = vadd.f32 %v290, %v323
    %v340 = vadd.f32 %v291, %v324
    %v341 = vadd.f32 %v292, %v325
    %s342 = scalar_lea.vmem %s0, 320
    %v343 = vld [vmem:[%s342] sm:$0xf]
    %v344 = vld [vmem:[%s342 + $0x4] sm:$0xf]
    %v345 = vld [vmem:[%s342 + $0x8] sm:$0xf]
    %v346 = vld [vmem:[%s342 + $0xc] sm:$0xf]
    %v347 = vld [vmem:[%s342 + $0x10] sm:$0xf]
    %v348 = vld [vmem:[%s342 + $0x14] sm:$0xf]
    %v349 = vld [vmem:[%s342 + $0x18] sm:$0xf]
    %v350 = vld [vmem:[%s342 + $0x1c] sm:$0xf]
    %v351 = vld [vmem:[%s342 + $0x20] sm:$0xf]
    %v352 = vld [vmem:[%s342 + $0x24] sm:$0xf]
    %v353 = vld [vmem:[%s342 + $0x28] sm:$0xf]
    %v354 = vld [vmem:[%s342 + $0x2c] sm:$0xf]
    %v355 = vld [vmem:[%s342 + $0x30] sm:$0xf]
    %v356 = vld [vmem:[%s342 + $0x34] sm:$0xf]
    %v357 = vld [vmem:[%s342 + $0x38] sm:$0xf]
    %v358 = vld [vmem:[%s342 + $0x3c] sm:$0xf]
    %v359 = vunpack.c.l.bf16 %v343
    %v360 = vunpack.c.l.bf16 %v344
    %v361 = vunpack.c.l.bf16 %v345
    %v362 = vunpack.c.l.bf16 %v346
    %v363 = vunpack.c.l.bf16 %v347
    %v364 = vunpack.c.l.bf16 %v348
    %v365 = vunpack.c.l.bf16 %v349
    %v366 = vunpack.c.l.bf16 %v350
    %v367 = vunpack.c.l.bf16 %v351
    %v368 = vunpack.c.l.bf16 %v352
    %v369 = vunpack.c.l.bf16 %v353
    %v370 = vunpack.c.l.bf16 %v354
    %v371 = vunpack.c.l.bf16 %v355
    %v372 = vunpack.c.l.bf16 %v356
    %v373 = vunpack.c.l.bf16 %v357
    %v374 = vunpack.c.l.bf16 %v358
    %v375 = vadd.f32 %v326, %v359
    %v376 = vadd.f32 %v327, %v360
    %v377 = vadd.f32 %v328, %v361
    %v378 = vadd.f32 %v329, %v362
    %v379 = vadd.f32 %v330, %v363
    %v380 = vadd.f32 %v331, %v364
    %v381 = vadd.f32 %v332, %v365
    %v382 = vadd.f32 %v333, %v366
    %v383 = vadd.f32 %v334, %v367
    %v384 = vadd.f32 %v335, %v368
    %v385 = vadd.f32 %v336, %v369
    %v386 = vadd.f32 %v337, %v370
    %v387 = vadd.f32 %v338, %v371
    %v388 = vadd.f32 %v339, %v372
    %v389 = vadd.f32 %v340, %v373
    %v390 = vadd.f32 %v341, %v374
    %s391 = scalar_lea.vmem %s0, 384
    %v392 = vld [vmem:[%s391] sm:$0xf]
    %v393 = vld [vmem:[%s391 + $0x4] sm:$0xf]
    %v394 = vld [vmem:[%s391 + $0x8] sm:$0xf]
    %v395 = vld [vmem:[%s391 + $0xc] sm:$0xf]
    %v396 = vld [vmem:[%s391 + $0x10] sm:$0xf]
    %v397 = vld [vmem:[%s391 + $0x14] sm:$0xf]
    %v398 = vld [vmem:[%s391 + $0x18] sm:$0xf]
    %v399 = vld [vmem:[%s391 + $0x1c] sm:$0xf]
    %v400 = vld [vmem:[%s391 + $0x20] sm:$0xf]
    %v401 = vld [vmem:[%s391 + $0x24] sm:$0xf]
    %v402 = vld [vmem:[%s391 + $0x28] sm:$0xf]
    %v403 = vld [vmem:[%s391 + $0x2c] sm:$0xf]
    %v404 = vld [vmem:[%s391 + $0x30] sm:$0xf]
    %v405 = vld [vmem:[%s391 + $0x34] sm:$0xf]
    %v406 = vld [vmem:[%s391 + $0x38] sm:$0xf]
    %v407 = vld [vmem:[%s391 + $0x3c] sm:$0xf]
    %v408 = vunpack.c.l.bf16 %v392
    %v409 = vunpack.c.l.bf16 %v393
    %v410 = vunpack.c.l.bf16 %v394
    %v411 = vunpack.c.l.bf16 %v395
    %v412 = vunpack.c.l.bf16 %v396
    %v413 = vunpack.c.l.bf16 %v397
    %v414 = vunpack.c.l.bf16 %v398
    %v415 = vunpack.c.l.bf16 %v399
    %v416 = vunpack.c.l.bf16 %v400
    %v417 = vunpack.c.l.bf16 %v401
    %v418 = vunpack.c.l.bf16 %v402
    %v419 = vunpack.c.l.bf16 %v403
    %v420 = vunpack.c.l.bf16 %v404
    %v421 = vunpack.c.l.bf16 %v405
    %v422 = vunpack.c.l.bf16 %v406
    %v423 = vunpack.c.l.bf16 %v407
    %v424 = vadd.f32 %v375, %v408
    %v425 = vadd.f32 %v376, %v409
    %v426 = vadd.f32 %v377, %v410
    %v427 = vadd.f32 %v378, %v411
    %v428 = vadd.f32 %v379, %v412
    %v429 = vadd.f32 %v380, %v413
    %v430 = vadd.f32 %v381, %v414
    %v431 = vadd.f32 %v382, %v415
    %v432 = vadd.f32 %v383, %v416
    %v433 = vadd.f32 %v384, %v417
    %v434 = vadd.f32 %v385, %v418
    %v435 = vadd.f32 %v386, %v419
    %v436 = vadd.f32 %v387, %v420
    %v437 = vadd.f32 %v388, %v421
    %v438 = vadd.f32 %v389, %v422
    %v439 = vadd.f32 %v390, %v423
    %s440 = scalar_lea.vmem %s0, 448
    %v441 = vld [vmem:[%s440] sm:$0xf]
    %v442 = vld [vmem:[%s440 + $0x4] sm:$0xf]
    %v443 = vld [vmem:[%s440 + $0x8] sm:$0xf]
    %v444 = vld [vmem:[%s440 + $0xc] sm:$0xf]
    %v445 = vld [vmem:[%s440 + $0x10] sm:$0xf]
    %v446 = vld [vmem:[%s440 + $0x14] sm:$0xf]
    %v447 = vld [vmem:[%s440 + $0x18] sm:$0xf]
    %v448 = vld [vmem:[%s440 + $0x1c] sm:$0xf]
    %v449 = vld [vmem:[%s440 + $0x20] sm:$0xf]
    %v450 = vld [vmem:[%s440 + $0x24] sm:$0xf]
    %v451 = vld [vmem:[%s440 + $0x28] sm:$0xf]
    %v452 = vld [vmem:[%s440 + $0x2c] sm:$0xf]
    %v453 = vld [vmem:[%s440 + $0x30] sm:$0xf]
    %v454 = vld [vmem:[%s440 + $0x34] sm:$0xf]
    %v455 = vld [vmem:[%s440 + $0x38] sm:$0xf]
    %v456 = vld [vmem:[%s440 + $0x3c] sm:$0xf]
    %v457 = vunpack.c.l.bf16 %v441
    %v458 = vunpack.c.l.bf16 %v442
    %v459 = vunpack.c.l.bf16 %v443
    %v460 = vunpack.c.l.bf16 %v444
    %v461 = vunpack.c.l.bf16 %v445
    %v462 = vunpack.c.l.bf16 %v446
    %v463 = vunpack.c.l.bf16 %v447
    %v464 = vunpack.c.l.bf16 %v448
    %v465 = vunpack.c.l.bf16 %v449
    %v466 = vunpack.c.l.bf16 %v450
    %v467 = vunpack.c.l.bf16 %v451
    %v468 = vunpack.c.l.bf16 %v452
    %v469 = vunpack.c.l.bf16 %v453
    %v470 = vunpack.c.l.bf16 %v454
    %v471 = vunpack.c.l.bf16 %v455
    %v472 = vunpack.c.l.bf16 %v456
    %v473 = vadd.f32 %v424, %v457
    %v474 = vadd.f32 %v425, %v458
    %v475 = vadd.f32 %v426, %v459
    %v476 = vadd.f32 %v427, %v460
    %v477 = vadd.f32 %v428, %v461
    %v478 = vadd.f32 %v429, %v462
    %v479 = vadd.f32 %v430, %v463
    %v480 = vadd.f32 %v431, %v464
    %v481 = vadd.f32 %v432, %v465
    %v482 = vadd.f32 %v433, %v466
    %v483 = vadd.f32 %v434, %v467
    %v484 = vadd.f32 %v435, %v468
    %v485 = vadd.f32 %v436, %v469
    %v486 = vadd.f32 %v437, %v470
    %v487 = vadd.f32 %v438, %v471
    %v488 = vadd.f32 %v439, %v472
    %s489 = scalar_lea.vmem %s0, 512
    %v490 = vld [vmem:[%s489] sm:$0xf]
    %v491 = vld [vmem:[%s489 + $0x4] sm:$0xf]
    %v492 = vld [vmem:[%s489 + $0x8] sm:$0xf]
    %v493 = vld [vmem:[%s489 + $0xc] sm:$0xf]
    %v494 = vld [vmem:[%s489 + $0x10] sm:$0xf]
    %v495 = vld [vmem:[%s489 + $0x14] sm:$0xf]
    %v496 = vld [vmem:[%s489 + $0x18] sm:$0xf]
    %v497 = vld [vmem:[%s489 + $0x1c] sm:$0xf]
    %v498 = vld [vmem:[%s489 + $0x20] sm:$0xf]
    %v499 = vld [vmem:[%s489 + $0x24] sm:$0xf]
    %v500 = vld [vmem:[%s489 + $0x28] sm:$0xf]
    %v501 = vld [vmem:[%s489 + $0x2c] sm:$0xf]
    %v502 = vld [vmem:[%s489 + $0x30] sm:$0xf]
    %v503 = vld [vmem:[%s489 + $0x34] sm:$0xf]
    %v504 = vld [vmem:[%s489 + $0x38] sm:$0xf]
    %v505 = vld [vmem:[%s489 + $0x3c] sm:$0xf]
    %v506 = vunpack.c.l.bf16 %v490
    %v507 = vunpack.c.l.bf16 %v491
    %v508 = vunpack.c.l.bf16 %v492
    %v509 = vunpack.c.l.bf16 %v493
    %v510 = vunpack.c.l.bf16 %v494
    %v511 = vunpack.c.l.bf16 %v495
    %v512 = vunpack.c.l.bf16 %v496
    %v513 = vunpack.c.l.bf16 %v497
    %v514 = vunpack.c.l.bf16 %v498
    %v515 = vunpack.c.l.bf16 %v499
    %v516 = vunpack.c.l.bf16 %v500
    %v517 = vunpack.c.l.bf16 %v501
    %v518 = vunpack.c.l.bf16 %v502
    %v519 = vunpack.c.l.bf16 %v503
    %v520 = vunpack.c.l.bf16 %v504
    %v521 = vunpack.c.l.bf16 %v505
    %v522 = vadd.f32 %v473, %v506
    %v523 = vadd.f32 %v474, %v507
    %v524 = vadd.f32 %v475, %v508
    %v525 = vadd.f32 %v476, %v509
    %v526 = vadd.f32 %v477, %v510
    %v527 = vadd.f32 %v478, %v511
    %v528 = vadd.f32 %v479, %v512
    %v529 = vadd.f32 %v480, %v513
    %v530 = vadd.f32 %v481, %v514
    %v531 = vadd.f32 %v482, %v515
    %v532 = vadd.f32 %v483, %v516
    %v533 = vadd.f32 %v484, %v517
    %v534 = vadd.f32 %v485, %v518
    %v535 = vadd.f32 %v486, %v519
    %v536 = vadd.f32 %v487, %v520
    %v537 = vadd.f32 %v488, %v521
    %s538 = scalar_lea.vmem %s0, 576
    %v539 = vld [vmem:[%s538] sm:$0xf]
    %v540 = vld [vmem:[%s538 + $0x4] sm:$0xf]
    %v541 = vld [vmem:[%s538 + $0x8] sm:$0xf]
    %v542 = vld [vmem:[%s538 + $0xc] sm:$0xf]
    %v543 = vld [vmem:[%s538 + $0x10] sm:$0xf]
    %v544 = vld [vmem:[%s538 + $0x14] sm:$0xf]
    %v545 = vld [vmem:[%s538 + $0x18] sm:$0xf]
    %v546 = vld [vmem:[%s538 + $0x1c] sm:$0xf]
    %v547 = vld [vmem:[%s538 + $0x20] sm:$0xf]
    %v548 = vld [vmem:[%s538 + $0x24] sm:$0xf]
    %v549 = vld [vmem:[%s538 + $0x28] sm:$0xf]
    %v550 = vld [vmem:[%s538 + $0x2c] sm:$0xf]
    %v551 = vld [vmem:[%s538 + $0x30] sm:$0xf]
    %v552 = vld [vmem:[%s538 + $0x34] sm:$0xf]
    %v553 = vld [vmem:[%s538 + $0x38] sm:$0xf]
    %v554 = vld [vmem:[%s538 + $0x3c] sm:$0xf]
    %v555 = vunpack.c.l.bf16 %v539
    %v556 = vunpack.c.l.bf16 %v540
    %v557 = vunpack.c.l.bf16 %v541
    %v558 = vunpack.c.l.bf16 %v542
    %v559 = vunpack.c.l.bf16 %v543
    %v560 = vunpack.c.l.bf16 %v544
    %v561 = vunpack.c.l.bf16 %v545
    %v562 = vunpack.c.l.bf16 %v546
    %v563 = vunpack.c.l.bf16 %v547
    %v564 = vunpack.c.l.bf16 %v548
    %v565 = vunpack.c.l.bf16 %v549
    %v566 = vunpack.c.l.bf16 %v550
    %v567 = vunpack.c.l.bf16 %v551
    %v568 = vunpack.c.l.bf16 %v552
    %v569 = vunpack.c.l.bf16 %v553
    %v570 = vunpack.c.l.bf16 %v554
    %v571 = vadd.f32 %v522, %v555
    %v572 = vadd.f32 %v523, %v556
    %v573 = vadd.f32 %v524, %v557
    %v574 = vadd.f32 %v525, %v558
    %v575 = vadd.f32 %v526, %v559
    %v576 = vadd.f32 %v527, %v560
    %v577 = vadd.f32 %v528, %v561
    %v578 = vadd.f32 %v529, %v562
    %v579 = vadd.f32 %v530, %v563
    %v580 = vadd.f32 %v531, %v564
    %v581 = vadd.f32 %v532, %v565
    %v582 = vadd.f32 %v533, %v566
    %v583 = vadd.f32 %v534, %v567
    %v584 = vadd.f32 %v535, %v568
    %v585 = vadd.f32 %v536, %v569
    %v586 = vadd.f32 %v537, %v570
    %s587 = scalar_lea.vmem %s0, 640
    %v588 = vld [vmem:[%s587] sm:$0xf]
    %v589 = vld [vmem:[%s587 + $0x4] sm:$0xf]
    %v590 = vld [vmem:[%s587 + $0x8] sm:$0xf]
    %v591 = vld [vmem:[%s587 + $0xc] sm:$0xf]
    %v592 = vld [vmem:[%s587 + $0x10] sm:$0xf]
    %v593 = vld [vmem:[%s587 + $0x14] sm:$0xf]
    %v594 = vld [vmem:[%s587 + $0x18] sm:$0xf]
    %v595 = vld [vmem:[%s587 + $0x1c] sm:$0xf]
    %v596 = vld [vmem:[%s587 + $0x20] sm:$0xf]
    %v597 = vld [vmem:[%s587 + $0x24] sm:$0xf]
    %v598 = vld [vmem:[%s587 + $0x28] sm:$0xf]
    %v599 = vld [vmem:[%s587 + $0x2c] sm:$0xf]
    %v600 = vld [vmem:[%s587 + $0x30] sm:$0xf]
    %v601 = vld [vmem:[%s587 + $0x34] sm:$0xf]
    %v602 = vld [vmem:[%s587 + $0x38] sm:$0xf]
    %v603 = vld [vmem:[%s587 + $0x3c] sm:$0xf]
    %v604 = vunpack.c.l.bf16 %v588
    %v605 = vunpack.c.l.bf16 %v589
    %v606 = vunpack.c.l.bf16 %v590
    %v607 = vunpack.c.l.bf16 %v591
    %v608 = vunpack.c.l.bf16 %v592
    %v609 = vunpack.c.l.bf16 %v593
    %v610 = vunpack.c.l.bf16 %v594
    %v611 = vunpack.c.l.bf16 %v595
    %v612 = vunpack.c.l.bf16 %v596
    %v613 = vunpack.c.l.bf16 %v597
    %v614 = vunpack.c.l.bf16 %v598
    %v615 = vunpack.c.l.bf16 %v599
    %v616 = vunpack.c.l.bf16 %v600
    %v617 = vunpack.c.l.bf16 %v601
    %v618 = vunpack.c.l.bf16 %v602
    %v619 = vunpack.c.l.bf16 %v603
    %v620 = vadd.f32 %v571, %v604
    %v621 = vadd.f32 %v572, %v605
    %v622 = vadd.f32 %v573, %v606
    %v623 = vadd.f32 %v574, %v607
    %v624 = vadd.f32 %v575, %v608
    %v625 = vadd.f32 %v576, %v609
    %v626 = vadd.f32 %v577, %v610
    %v627 = vadd.f32 %v578, %v611
    %v628 = vadd.f32 %v579, %v612
    %v629 = vadd.f32 %v580, %v613
    %v630 = vadd.f32 %v581, %v614
    %v631 = vadd.f32 %v582, %v615
    %v632 = vadd.f32 %v583, %v616
    %v633 = vadd.f32 %v584, %v617
    %v634 = vadd.f32 %v585, %v618
    %v635 = vadd.f32 %v586, %v619
    %s636 = scalar_lea.vmem %s0, 704
    %v637 = vld [vmem:[%s636] sm:$0xf]
    %v638 = vld [vmem:[%s636 + $0x4] sm:$0xf]
    %v639 = vld [vmem:[%s636 + $0x8] sm:$0xf]
    %v640 = vld [vmem:[%s636 + $0xc] sm:$0xf]
    %v641 = vld [vmem:[%s636 + $0x10] sm:$0xf]
    %v642 = vld [vmem:[%s636 + $0x14] sm:$0xf]
    %v643 = vld [vmem:[%s636 + $0x18] sm:$0xf]
    %v644 = vld [vmem:[%s636 + $0x1c] sm:$0xf]
    %v645 = vld [vmem:[%s636 + $0x20] sm:$0xf]
    %v646 = vld [vmem:[%s636 + $0x24] sm:$0xf]
    %v647 = vld [vmem:[%s636 + $0x28] sm:$0xf]
    %v648 = vld [vmem:[%s636 + $0x2c] sm:$0xf]
    %v649 = vld [vmem:[%s636 + $0x30] sm:$0xf]
    %v650 = vld [vmem:[%s636 + $0x34] sm:$0xf]
    %v651 = vld [vmem:[%s636 + $0x38] sm:$0xf]
    %v652 = vld [vmem:[%s636 + $0x3c] sm:$0xf]
    %v653 = vunpack.c.l.bf16 %v637
    %v654 = vunpack.c.l.bf16 %v638
    %v655 = vunpack.c.l.bf16 %v639
    %v656 = vunpack.c.l.bf16 %v640
    %v657 = vunpack.c.l.bf16 %v641
    %v658 = vunpack.c.l.bf16 %v642
    %v659 = vunpack.c.l.bf16 %v643
    %v660 = vunpack.c.l.bf16 %v644
    %v661 = vunpack.c.l.bf16 %v645
    %v662 = vunpack.c.l.bf16 %v646
    %v663 = vunpack.c.l.bf16 %v647
    %v664 = vunpack.c.l.bf16 %v648
    %v665 = vunpack.c.l.bf16 %v649
    %v666 = vunpack.c.l.bf16 %v650
    %v667 = vunpack.c.l.bf16 %v651
    %v668 = vunpack.c.l.bf16 %v652
    %v669 = vadd.f32 %v620, %v653
    %v670 = vadd.f32 %v621, %v654
    %v671 = vadd.f32 %v622, %v655
    %v672 = vadd.f32 %v623, %v656
    %v673 = vadd.f32 %v624, %v657
    %v674 = vadd.f32 %v625, %v658
    %v675 = vadd.f32 %v626, %v659
    %v676 = vadd.f32 %v627, %v660
    %v677 = vadd.f32 %v628, %v661
    %v678 = vadd.f32 %v629, %v662
    %v679 = vadd.f32 %v630, %v663
    %v680 = vadd.f32 %v631, %v664
    %v681 = vadd.f32 %v632, %v665
    %v682 = vadd.f32 %v633, %v666
    %v683 = vadd.f32 %v634, %v667
    %v684 = vadd.f32 %v635, %v668
    %s685 = scalar_lea.vmem %s0, 768
    %v686 = vld [vmem:[%s685] sm:$0xf]
    %v687 = vld [vmem:[%s685 + $0x4] sm:$0xf]
    %v688 = vld [vmem:[%s685 + $0x8] sm:$0xf]
    %v689 = vld [vmem:[%s685 + $0xc] sm:$0xf]
    %v690 = vld [vmem:[%s685 + $0x10] sm:$0xf]
    %v691 = vld [vmem:[%s685 + $0x14] sm:$0xf]
    %v692 = vld [vmem:[%s685 + $0x18] sm:$0xf]
    %v693 = vld [vmem:[%s685 + $0x1c] sm:$0xf]
    %v694 = vld [vmem:[%s685 + $0x20] sm:$0xf]
    %v695 = vld [vmem:[%s685 + $0x24] sm:$0xf]
    %v696 = vld [vmem:[%s685 + $0x28] sm:$0xf]
    %v697 = vld [vmem:[%s685 + $0x2c] sm:$0xf]
    %v698 = vld [vmem:[%s685 + $0x30] sm:$0xf]
    %v699 = vld [vmem:[%s685 + $0x34] sm:$0xf]
    %v700 = vld [vmem:[%s685 + $0x38] sm:$0xf]
    %v701 = vld [vmem:[%s685 + $0x3c] sm:$0xf]
    %v702 = vunpack.c.l.bf16 %v686
    %v703 = vunpack.c.l.bf16 %v687
    %v704 = vunpack.c.l.bf16 %v688
    %v705 = vunpack.c.l.bf16 %v689
    %v706 = vunpack.c.l.bf16 %v690
    %v707 = vunpack.c.l.bf16 %v691
    %v708 = vunpack.c.l.bf16 %v692
    %v709 = vunpack.c.l.bf16 %v693
    %v710 = vunpack.c.l.bf16 %v694
    %v711 = vunpack.c.l.bf16 %v695
    %v712 = vunpack.c.l.bf16 %v696
    %v713 = vunpack.c.l.bf16 %v697
    %v714 = vunpack.c.l.bf16 %v698
    %v715 = vunpack.c.l.bf16 %v699
    %v716 = vunpack.c.l.bf16 %v700
    %v717 = vunpack.c.l.bf16 %v701
    %v718 = vadd.f32 %v669, %v702
    %v719 = vadd.f32 %v670, %v703
    %v720 = vadd.f32 %v671, %v704
    %v721 = vadd.f32 %v672, %v705
    %v722 = vadd.f32 %v673, %v706
    %v723 = vadd.f32 %v674, %v707
    %v724 = vadd.f32 %v675, %v708
    %v725 = vadd.f32 %v676, %v709
    %v726 = vadd.f32 %v677, %v710
    %v727 = vadd.f32 %v678, %v711
    %v728 = vadd.f32 %v679, %v712
    %v729 = vadd.f32 %v680, %v713
    %v730 = vadd.f32 %v681, %v714
    %v731 = vadd.f32 %v682, %v715
    %v732 = vadd.f32 %v683, %v716
    %v733 = vadd.f32 %v684, %v717
    %s734 = scalar_lea.vmem %s0, 832
    %v735 = vld [vmem:[%s734] sm:$0xf]
    %v736 = vld [vmem:[%s734 + $0x4] sm:$0xf]
    %v737 = vld [vmem:[%s734 + $0x8] sm:$0xf]
    %v738 = vld [vmem:[%s734 + $0xc] sm:$0xf]
    %v739 = vld [vmem:[%s734 + $0x10] sm:$0xf]
    %v740 = vld [vmem:[%s734 + $0x14] sm:$0xf]
    %v741 = vld [vmem:[%s734 + $0x18] sm:$0xf]
    %v742 = vld [vmem:[%s734 + $0x1c] sm:$0xf]
    %v743 = vld [vmem:[%s734 + $0x20] sm:$0xf]
    %v744 = vld [vmem:[%s734 + $0x24] sm:$0xf]
    %v745 = vld [vmem:[%s734 + $0x28] sm:$0xf]
    %v746 = vld [vmem:[%s734 + $0x2c] sm:$0xf]
    %v747 = vld [vmem:[%s734 + $0x30] sm:$0xf]
    %v748 = vld [vmem:[%s734 + $0x34] sm:$0xf]
    %v749 = vld [vmem:[%s734 + $0x38] sm:$0xf]
    %v750 = vld [vmem:[%s734 + $0x3c] sm:$0xf]
    %v751 = vunpack.c.l.bf16 %v735
    %v752 = vunpack.c.l.bf16 %v736
    %v753 = vunpack.c.l.bf16 %v737
    %v754 = vunpack.c.l.bf16 %v738
    %v755 = vunpack.c.l.bf16 %v739
    %v756 = vunpack.c.l.bf16 %v740
    %v757 = vunpack.c.l.bf16 %v741
    %v758 = vunpack.c.l.bf16 %v742
    %v759 = vunpack.c.l.bf16 %v743
    %v760 = vunpack.c.l.bf16 %v744
    %v761 = vunpack.c.l.bf16 %v745
    %v762 = vunpack.c.l.bf16 %v746
    %v763 = vunpack.c.l.bf16 %v747
    %v764 = vunpack.c.l.bf16 %v748
    %v765 = vunpack.c.l.bf16 %v749
    %v766 = vunpack.c.l.bf16 %v750
    %v767 = vadd.f32 %v718, %v751
    %v768 = vadd.f32 %v719, %v752
    %v769 = vadd.f32 %v720, %v753
    %v770 = vadd.f32 %v721, %v754
    %v771 = vadd.f32 %v722, %v755
    %v772 = vadd.f32 %v723, %v756
    %v773 = vadd.f32 %v724, %v757
    %v774 = vadd.f32 %v725, %v758
    %v775 = vadd.f32 %v726, %v759
    %v776 = vadd.f32 %v727, %v760
    %v777 = vadd.f32 %v728, %v761
    %v778 = vadd.f32 %v729, %v762
    %v779 = vadd.f32 %v730, %v763
    %v780 = vadd.f32 %v731, %v764
    %v781 = vadd.f32 %v732, %v765
    %v782 = vadd.f32 %v733, %v766
    %s783 = scalar_lea.vmem %s0, 896
    %v784 = vld [vmem:[%s783] sm:$0xf]
    %v785 = vld [vmem:[%s783 + $0x4] sm:$0xf]
    %v786 = vld [vmem:[%s783 + $0x8] sm:$0xf]
    %v787 = vld [vmem:[%s783 + $0xc] sm:$0xf]
    %v788 = vld [vmem:[%s783 + $0x10] sm:$0xf]
    %v789 = vld [vmem:[%s783 + $0x14] sm:$0xf]
    %v790 = vld [vmem:[%s783 + $0x18] sm:$0xf]
    %v791 = vld [vmem:[%s783 + $0x1c] sm:$0xf]
    %v792 = vld [vmem:[%s783 + $0x20] sm:$0xf]
    %v793 = vld [vmem:[%s783 + $0x24] sm:$0xf]
    %v794 = vld [vmem:[%s783 + $0x28] sm:$0xf]
    %v795 = vld [vmem:[%s783 + $0x2c] sm:$0xf]
    %v796 = vld [vmem:[%s783 + $0x30] sm:$0xf]
    %v797 = vld [vmem:[%s783 + $0x34] sm:$0xf]
    %v798 = vld [vmem:[%s783 + $0x38] sm:$0xf]
    %v799 = vld [vmem:[%s783 + $0x3c] sm:$0xf]
    %v800 = vunpack.c.l.bf16 %v784
    %v801 = vunpack.c.l.bf16 %v785
    %v802 = vunpack.c.l.bf16 %v786
    %v803 = vunpack.c.l.bf16 %v787
    %v804 = vunpack.c.l.bf16 %v788
    %v805 = vunpack.c.l.bf16 %v789
    %v806 = vunpack.c.l.bf16 %v790
    %v807 = vunpack.c.l.bf16 %v791
    %v808 = vunpack.c.l.bf16 %v792
    %v809 = vunpack.c.l.bf16 %v793
    %v810 = vunpack.c.l.bf16 %v794
    %v811 = vunpack.c.l.bf16 %v795
    %v812 = vunpack.c.l.bf16 %v796
    %v813 = vunpack.c.l.bf16 %v797
    %v814 = vunpack.c.l.bf16 %v798
    %v815 = vunpack.c.l.bf16 %v799
    %v816 = vadd.f32 %v767, %v800
    %v817 = vadd.f32 %v768, %v801
    %v818 = vadd.f32 %v769, %v802
    %v819 = vadd.f32 %v770, %v803
    %v820 = vadd.f32 %v771, %v804
    %v821 = vadd.f32 %v772, %v805
    %v822 = vadd.f32 %v773, %v806
    %v823 = vadd.f32 %v774, %v807
    %v824 = vadd.f32 %v775, %v808
    %v825 = vadd.f32 %v776, %v809
    %v826 = vadd.f32 %v777, %v810
    %v827 = vadd.f32 %v778, %v811
    %v828 = vadd.f32 %v779, %v812
    %v829 = vadd.f32 %v780, %v813
    %v830 = vadd.f32 %v781, %v814
    %v831 = vadd.f32 %v782, %v815
    %s832 = scalar_lea.vmem %s0, 960
    %v833 = vld [vmem:[%s832] sm:$0xf]
    %v834 = vld [vmem:[%s832 + $0x4] sm:$0xf]
    %v835 = vld [vmem:[%s832 + $0x8] sm:$0xf]
    %v836 = vld [vmem:[%s832 + $0xc] sm:$0xf]
    %v837 = vld [vmem:[%s832 + $0x10] sm:$0xf]
    %v838 = vld [vmem:[%s832 + $0x14] sm:$0xf]
    %v839 = vld [vmem:[%s832 + $0x18] sm:$0xf]
    %v840 = vld [vmem:[%s832 + $0x1c] sm:$0xf]
    %v841 = vld [vmem:[%s832 + $0x20] sm:$0xf]
    %v842 = vld [vmem:[%s832 + $0x24] sm:$0xf]
    %v843 = vld [vmem:[%s832 + $0x28] sm:$0xf]
    %v844 = vld [vmem:[%s832 + $0x2c] sm:$0xf]
    %v845 = vld [vmem:[%s832 + $0x30] sm:$0xf]
    %v846 = vld [vmem:[%s832 + $0x34] sm:$0xf]
    %v847 = vld [vmem:[%s832 + $0x38] sm:$0xf]
    %v848 = vld [vmem:[%s832 + $0x3c] sm:$0xf]
    %v849 = vunpack.c.l.bf16 %v833
    %v850 = vunpack.c.l.bf16 %v834
    %v851 = vunpack.c.l.bf16 %v835
    %v852 = vunpack.c.l.bf16 %v836
    %v853 = vunpack.c.l.bf16 %v837
    %v854 = vunpack.c.l.bf16 %v838
    %v855 = vunpack.c.l.bf16 %v839
    %v856 = vunpack.c.l.bf16 %v840
    %v857 = vunpack.c.l.bf16 %v841
    %v858 = vunpack.c.l.bf16 %v842
    %v859 = vunpack.c.l.bf16 %v843
    %v860 = vunpack.c.l.bf16 %v844
    %v861 = vunpack.c.l.bf16 %v845
    %v862 = vunpack.c.l.bf16 %v846
    %v863 = vunpack.c.l.bf16 %v847
    %v864 = vunpack.c.l.bf16 %v848
    %v865 = vadd.f32 %v816, %v849
    %v866 = vadd.f32 %v817, %v850
    %v867 = vadd.f32 %v818, %v851
    %v868 = vadd.f32 %v819, %v852
    %v869 = vadd.f32 %v820, %v853
    %v870 = vadd.f32 %v821, %v854
    %v871 = vadd.f32 %v822, %v855
    %v872 = vadd.f32 %v823, %v856
    %v873 = vadd.f32 %v824, %v857
    %v874 = vadd.f32 %v825, %v858
    %v875 = vadd.f32 %v826, %v859
    %v876 = vadd.f32 %v827, %v860
    %v877 = vadd.f32 %v828, %v861
    %v878 = vadd.f32 %v829, %v862
    %v879 = vadd.f32 %v830, %v863
    %v880 = vadd.f32 %v831, %v864
    %v881 = vpack.c.bf16 %v866, %v865
    %v882 = vpack.c.bf16 %v868, %v867
    %v883 = vpack.c.bf16 %v870, %v869
    %v884 = vpack.c.bf16 %v872, %v871
    %v885 = vpack.c.bf16 %v874, %v873
    %v886 = vpack.c.bf16 %v876, %v875
    %v887 = vpack.c.bf16 %v878, %v877
    %v888 = vpack.c.bf16 %v880, %v879
    %v889 = vld [vmem:[#allocation2] sm:$0xf]
    %v890 = vld [vmem:[#allocation5] sm:$0x1]
    %v892 = vperm.slane %v890, 0
    %vm894 = vcmask 64512
    %v896 = vsel %vm894, %v881, 0
    %v899 = vsel %vm894, %v882, 0
    %v902 = vsel %vm894, %v883, 0
    %v905 = vsel %vm894, %v884, 0
    %v908 = vsel %vm894, %v885, 0
    %v911 = vsel %vm894, %v886, 0
    %v914 = vsel %vm894, %v887, 0
    %v917 = vsel %vm894, %v888, 0
    %vm919 = vcmask 1043456
    %v921 = vsel %vm919, %v889, 0
    %923 = vmatpush.bf16.msra.mxu0 0
    %924 = vmatpush.bf16.msra.mxu0 0
    %925 = vmatpush.bf16.msra.mxu0 0
    %926 = vmatpush.bf16.msra.mxu0 0
    %927 = vmatpush.bf16.msra.mxu0 0
    %928 = vmatpush.bf16.msra.mxu0 0
    %929 = vmatpush.bf16.msra.mxu0 0
    %930 = vmatpush.bf16.msra.mxu0 %v921
    %931 = vmatmul.bf16.gmra.mxu0 %v896
    %v932 = vpop.f32.mrf.mxu0
    %v933 = vadd.f32 %v892, %v932
    %v934 = vpop.f32.mrf.mxu0
    %v935 = vadd.f32 %v892, %v934
    %936 = vmatmul.bf16.gmra.mxu0 %v899
    %v937 = vpop.f32.mrf.mxu0
    %v938 = vadd.f32 %v892, %v937
    %v939 = vpop.f32.mrf.mxu0
    %v940 = vadd.f32 %v892, %v939
    %941 = vmatmul.bf16.gmra.mxu0 %v902
    %v942 = vpop.f32.mrf.mxu0
    %v943 = vadd.f32 %v892, %v942
    %v944 = vpop.f32.mrf.mxu0
    %v945 = vadd.f32 %v892, %v944
    %946 = vmatmul.bf16.gmra.mxu0 %v905
    %v947 = vpop.f32.mrf.mxu0
    %v948 = vadd.f32 %v892, %v947
    %v949 = vpop.f32.mrf.mxu0
    %v950 = vadd.f32 %v892, %v949
    %951 = vmatmul.bf16.gmra.mxu0 %v908
    %v952 = vpop.f32.mrf.mxu0
    %v953 = vadd.f32 %v892, %v952
    %v954 = vpop.f32.mrf.mxu0
    %v955 = vadd.f32 %v892, %v954
    %956 = vmatmul.bf16.gmra.mxu0 %v911
    %v957 = vpop.f32.mrf.mxu0
    %v958 = vadd.f32 %v892, %v957
    %v959 = vpop.f32.mrf.mxu0
    %v960 = vadd.f32 %v892, %v959
    %961 = vmatmul.bf16.gmra.mxu0 %v914
    %v962 = vpop.f32.mrf.mxu0
    %v963 = vadd.f32 %v892, %v962
    %v964 = vpop.f32.mrf.mxu0
    %v965 = vadd.f32 %v892, %v964
    %966 = vmatmul.bf16.gmra.mxu0 %v917
    %v967 = vpop.f32.mrf.mxu0
    %v968 = vadd.f32 %v892, %v967
    %v969 = vpop.f32.mrf.mxu0
    %v970 = vadd.f32 %v892, %v969
    %971 = vdwg.mxu0
    %v972 = vmax.f32 %v933, 0.0
    %v973 = vmax.f32 %v935, 0.0
    %v974 = vmax.f32 %v938, 0.0
    %v975 = vmax.f32 %v940, 0.0
    %v976 = vmax.f32 %v943, 0.0
    %v977 = vmax.f32 %v945, 0.0
    %v978 = vmax.f32 %v948, 0.0
    %v979 = vmax.f32 %v950, 0.0
    %v980 = vmax.f32 %v953, 0.0
    %v981 = vmax.f32 %v955, 0.0
    %v982 = vmax.f32 %v958, 0.0
    %v983 = vmax.f32 %v960, 0.0
    %v984 = vmax.f32 %v963, 0.0
    %v985 = vmax.f32 %v965, 0.0
    %v986 = vmax.f32 %v968, 0.0
    %v987 = vmax.f32 %v970, 0.0
    %v988 = vpack.c.bf16 %v972, %v972
    %v989 = vpack.c.bf16 %v973, %v973
    %v990 = vpack.c.bf16 %v974, %v974
    %v991 = vpack.c.bf16 %v975, %v975
    %v992 = vpack.c.bf16 %v976, %v976
    %v993 = vpack.c.bf16 %v977, %v977
    %v994 = vpack.c.bf16 %v978, %v978
    %v995 = vpack.c.bf16 %v979, %v979
    %v996 = vpack.c.bf16 %v980, %v980
    %v997 = vpack.c.bf16 %v981, %v981
    %v998 = vpack.c.bf16 %v982, %v982
    %v999 = vpack.c.bf16 %v983, %v983
    %v1000 = vpack.c.bf16 %v984, %v984
    %v1001 = vpack.c.bf16 %v985, %v985
    %v1002 = vpack.c.bf16 %v986, %v986
    %v1003 = vpack.c.bf16 %v987, %v987
    %v1004 = vld [vmem:[#allocation7] sm:$0xff]
    %v1005 = vld [vmem:[#allocation7 + $0x8] sm:$0xff]
    %v1006 = vld [vmem:[#allocation7 + $0x10] sm:$0xff]
    %v1007 = vld [vmem:[#allocation7 + $0x18] sm:$0xff]
    %v1008 = vld [vmem:[#allocation7 + $0x20] sm:$0xff]
    %v1009 = vld [vmem:[#allocation7 + $0x28] sm:$0xff]
    %v1010 = vld [vmem:[#allocation7 + $0x30] sm:$0xff]
    %v1011 = vld [vmem:[#allocation7 + $0x38] sm:$0xff]
    %v1012 = vld [vmem:[#allocation7 + $0x40] sm:$0xff]
    %v1013 = vld [vmem:[#allocation7 + $0x48] sm:$0xff]
    %v1014 = vld [vmem:[#allocation7 + $0x50] sm:$0xff]
    %v1015 = vld [vmem:[#allocation7 + $0x58] sm:$0xff]
    %v1016 = vld [vmem:[#allocation7 + $0x60] sm:$0xff]
    %v1017 = vld [vmem:[#allocation7 + $0x68] sm:$0xff]
    %v1018 = vld [vmem:[#allocation7 + $0x70] sm:$0xff]
    %v1019 = vld [vmem:[#allocation7 + $0x78] sm:$0xff]
    %v1020 = vld [vmem:[#allocation7 + $0x80] sm:$0xff]
    %v1021 = vld [vmem:[#allocation7 + $0x88] sm:$0xff]
    %v1022 = vld [vmem:[#allocation7 + $0x90] sm:$0xff]
    %v1023 = vld [vmem:[#allocation7 + $0x98] sm:$0xff]
    %v1024 = vld [vmem:[#allocation7 + $0xa0] sm:$0xff]
    %v1025 = vld [vmem:[#allocation7 + $0xa8] sm:$0xff]
    %v1026 = vld [vmem:[#allocation7 + $0xb0] sm:$0xff]
    %v1027 = vld [vmem:[#allocation7 + $0xb8] sm:$0xff]
    %v1028 = vld [vmem:[#allocation7 + $0xc0] sm:$0xff]
    %v1029 = vld [vmem:[#allocation7 + $0xc8] sm:$0xff]
    %v1030 = vld [vmem:[#allocation7 + $0xd0] sm:$0xff]
    %v1031 = vld [vmem:[#allocation7 + $0xd8] sm:$0xff]
    %v1032 = vld [vmem:[#allocation7 + $0xe0] sm:$0xff]
    %v1033 = vld [vmem:[#allocation7 + $0xe8] sm:$0xff]
    %v1034 = vld [vmem:[#allocation7 + $0xf0] sm:$0xff]
    %v1035 = vld [vmem:[#allocation7 + $0xf8] sm:$0xff]
    %v1036 = vld [vmem:[#allocation7 + $0x100] sm:$0xff]
    %v1037 = vld [vmem:[#allocation7 + $0x108] sm:$0xff]
    %v1038 = vld [vmem:[#allocation7 + $0x110] sm:$0xff]
    %v1039 = vld [vmem:[#allocation7 + $0x118] sm:$0xff]
    %v1040 = vld [vmem:[#allocation7 + $0x120] sm:$0xff]
    %v1041 = vld [vmem:[#allocation7 + $0x128] sm:$0xff]
    %v1042 = vld [vmem:[#allocation7 + $0x130] sm:$0xff]
    %v1043 = vld [vmem:[#allocation7 + $0x138] sm:$0xff]
    %v1044 = vld [vmem:[#allocation7 + $0x140] sm:$0xff]
    %v1045 = vld [vmem:[#allocation7 + $0x148] sm:$0xff]
    %v1046 = vld [vmem:[#allocation7 + $0x150] sm:$0xff]
    %v1047 = vld [vmem:[#allocation7 + $0x158] sm:$0xff]
    %v1048 = vld [vmem:[#allocation7 + $0x160] sm:$0xff]
    %v1049 = vld [vmem:[#allocation7 + $0x168] sm:$0xff]
    %v1050 = vld [vmem:[#allocation7 + $0x170] sm:$0xff]
    %v1051 = vld [vmem:[#allocation7 + $0x178] sm:$0xff]
    %v1052 = vld [vmem:[#allocation7 + $0x180] sm:$0xff]
    %v1053 = vld [vmem:[#allocation7 + $0x188] sm:$0xff]
    %v1054 = vld [vmem:[#allocation7 + $0x190] sm:$0xff]
    %v1055 = vld [vmem:[#allocation7 + $0x198] sm:$0xff]
    %v1056 = vld [vmem:[#allocation7 + $0x1a0] sm:$0xff]
    %v1057 = vld [vmem:[#allocation7 + $0x1a8] sm:$0xff]
    %v1058 = vld [vmem:[#allocation7 + $0x1b0] sm:$0xff]
    %v1059 = vld [vmem:[#allocation7 + $0x1b8] sm:$0xff]
    %v1060 = vld [vmem:[#allocation7 + $0x1c0] sm:$0xff]
    %v1061 = vld [vmem:[#allocation7 + $0x1c8] sm:$0xff]
    %v1062 = vld [vmem:[#allocation7 + $0x1d0] sm:$0xff]
    %v1063 = vld [vmem:[#allocation7 + $0x1d8] sm:$0xff]
    %v1064 = vld [vmem:[#allocation7 + $0x1e0] sm:$0xff]
    %v1065 = vld [vmem:[#allocation7 + $0x1e8] sm:$0xff]
    %v1066 = vld [vmem:[#allocation7 + $0x1f0] sm:$0xff]
    %v1067 = vld [vmem:[#allocation7 + $0x1f8] sm:$0xff]
    %v1068 = vld [vmem:[#allocation7 + $0x200] sm:$0xff]
    %v1069 = vld [vmem:[#allocation7 + $0x208] sm:$0xff]
    %v1070 = vld [vmem:[#allocation7 + $0x210] sm:$0xff]
    %v1071 = vld [vmem:[#allocation7 + $0x218] sm:$0xff]
    %v1072 = vld [vmem:[#allocation7 + $0x220] sm:$0xff]
    %v1073 = vld [vmem:[#allocation7 + $0x228] sm:$0xff]
    %v1074 = vld [vmem:[#allocation7 + $0x230] sm:$0xff]
    %v1075 = vld [vmem:[#allocation7 + $0x238] sm:$0xff]
    %v1076 = vld [vmem:[#allocation7 + $0x240] sm:$0xff]
    %v1077 = vld [vmem:[#allocation7 + $0x248] sm:$0xff]
    %v1078 = vld [vmem:[#allocation7 + $0x250] sm:$0xff]
    %v1079 = vld [vmem:[#allocation7 + $0x258] sm:$0xff]
    %v1080 = vld [vmem:[#allocation7 + $0x260] sm:$0xff]
    %v1081 = vld [vmem:[#allocation7 + $0x268] sm:$0xff]
    %v1082 = vld [vmem:[#allocation7 + $0x270] sm:$0xff]
    %v1083 = vld [vmem:[#allocation7 + $0x278] sm:$0xff]
    %v1084 = vld [vmem:[#allocation7 + $0x280] sm:$0xff]
    %v1085 = vld [vmem:[#allocation7 + $0x288] sm:$0xff]
    %v1086 = vld [vmem:[#allocation7 + $0x290] sm:$0xff]
    %v1087 = vld [vmem:[#allocation7 + $0x298] sm:$0xff]
    %v1088 = vld [vmem:[#allocation7 + $0x2a0] sm:$0xff]
    %v1089 = vld [vmem:[#allocation7 + $0x2a8] sm:$0xff]
    %v1090 = vld [vmem:[#allocation7 + $0x2b0] sm:$0xff]
    %v1091 = vld [vmem:[#allocation7 + $0x2b8] sm:$0xff]
    %v1092 = vld [vmem:[#allocation7 + $0x2c0] sm:$0xff]
    %v1093 = vld [vmem:[#allocation7 + $0x2c8] sm:$0xff]
    %v1094 = vld [vmem:[#allocation7 + $0x2d0] sm:$0xff]
    %v1095 = vld [vmem:[#allocation7 + $0x2d8] sm:$0xff]
    %v1096 = vld [vmem:[#allocation7 + $0x2e0] sm:$0xff]
    %v1097 = vld [vmem:[#allocation7 + $0x2e8] sm:$0xff]
    %v1098 = vld [vmem:[#allocation7 + $0x2f0] sm:$0xff]
    %v1099 = vld [vmem:[#allocation7 + $0x2f8] sm:$0xff]
    %v1100 = vld [vmem:[#allocation7 + $0x300] sm:$0xff]
    %v1101 = vld [vmem:[#allocation7 + $0x308] sm:$0xff]
    %v1102 = vld [vmem:[#allocation7 + $0x310] sm:$0xff]
    %v1103 = vld [vmem:[#allocation7 + $0x318] sm:$0xff]
    %v1104 = vld [vmem:[#allocation7 + $0x320] sm:$0xff]
    %v1105 = vld [vmem:[#allocation7 + $0x328] sm:$0xff]
    %v1106 = vld [vmem:[#allocation7 + $0x330] sm:$0xff]
    %v1107 = vld [vmem:[#allocation7 + $0x338] sm:$0xff]
    %v1108 = vld [vmem:[#allocation7 + $0x340] sm:$0xff]
    %v1109 = vld [vmem:[#allocation7 + $0x348] sm:$0xff]
    %v1110 = vld [vmem:[#allocation7 + $0x350] sm:$0xff]
    %v1111 = vld [vmem:[#allocation7 + $0x358] sm:$0xff]
    %v1112 = vld [vmem:[#allocation7 + $0x360] sm:$0xff]
    %v1113 = vld [vmem:[#allocation7 + $0x368] sm:$0xff]
    %v1114 = vld [vmem:[#allocation7 + $0x370] sm:$0xff]
    %v1115 = vld [vmem:[#allocation7 + $0x378] sm:$0xff]
    %v1116 = vld [vmem:[#allocation7 + $0x380] sm:$0xff]
    %v1117 = vld [vmem:[#allocation7 + $0x388] sm:$0xff]
    %v1118 = vld [vmem:[#allocation7 + $0x390] sm:$0xff]
    %v1119 = vld [vmem:[#allocation7 + $0x398] sm:$0xff]
    %v1120 = vld [vmem:[#allocation7 + $0x3a0] sm:$0xff]
    %v1121 = vld [vmem:[#allocation7 + $0x3a8] sm:$0xff]
    %v1122 = vld [vmem:[#allocation7 + $0x3b0] sm:$0xff]
    %v1123 = vld [vmem:[#allocation7 + $0x3b8] sm:$0xff]
    %v1124 = vld [vmem:[#allocation7 + $0x3c0] sm:$0xff]
    %v1125 = vld [vmem:[#allocation7 + $0x3c8] sm:$0xff]
    %v1126 = vld [vmem:[#allocation7 + $0x3d0] sm:$0xff]
    %v1127 = vld [vmem:[#allocation7 + $0x3d8] sm:$0xff]
    %v1128 = vld [vmem:[#allocation7 + $0x3e0] sm:$0xff]
    %v1129 = vld [vmem:[#allocation7 + $0x3e8] sm:$0xff]
    %v1130 = vld [vmem:[#allocation7 + $0x3f0] sm:$0xff]
    %v1131 = vld [vmem:[#allocation7 + $0x3f8] sm:$0xff]
    %v1132 = vld [vmem:[#allocation7 + $0x400] sm:$0xff]
    %v1133 = vld [vmem:[#allocation7 + $0x408] sm:$0xff]
    %v1134 = vld [vmem:[#allocation7 + $0x410] sm:$0xff]
    %v1135 = vld [vmem:[#allocation7 + $0x418] sm:$0xff]
    %v1136 = vld [vmem:[#allocation7 + $0x420] sm:$0xff]
    %v1137 = vld [vmem:[#allocation7 + $0x428] sm:$0xff]
    %v1138 = vld [vmem:[#allocation7 + $0x430] sm:$0xff]
    %v1139 = vld [vmem:[#allocation7 + $0x438] sm:$0xff]
    %v1140 = vld [vmem:[#allocation7 + $0x440] sm:$0xff]
    %v1141 = vld [vmem:[#allocation7 + $0x448] sm:$0xff]
    %v1142 = vld [vmem:[#allocation7 + $0x450] sm:$0xff]
    %v1143 = vld [vmem:[#allocation7 + $0x458] sm:$0xff]
    %v1144 = vld [vmem:[#allocation7 + $0x460] sm:$0xff]
    %v1145 = vld [vmem:[#allocation7 + $0x468] sm:$0xff]
    %v1146 = vld [vmem:[#allocation7 + $0x470] sm:$0xff]
    %v1147 = vld [vmem:[#allocation7 + $0x478] sm:$0xff]
    %v1148 = vld [vmem:[#allocation7 + $0x480] sm:$0xff]
    %v1149 = vld [vmem:[#allocation7 + $0x488] sm:$0xff]
    %v1150 = vld [vmem:[#allocation7 + $0x490] sm:$0xff]
    %v1151 = vld [vmem:[#allocation7 + $0x498] sm:$0xff]
    %v1152 = vld [vmem:[#allocation7 + $0x4a0] sm:$0xff]
    %v1153 = vld [vmem:[#allocation7 + $0x4a8] sm:$0xff]
    %v1154 = vld [vmem:[#allocation7 + $0x4b0] sm:$0xff]
    %v1155 = vld [vmem:[#allocation7 + $0x4b8] sm:$0xff]
    %v1156 = vld [vmem:[#allocation7 + $0x4c0] sm:$0xff]
    %v1157 = vld [vmem:[#allocation7 + $0x4c8] sm:$0xff]
    %v1158 = vld [vmem:[#allocation7 + $0x4d0] sm:$0xff]
    %v1159 = vld [vmem:[#allocation7 + $0x4d8] sm:$0xff]
    %v1160 = vld [vmem:[#allocation7 + $0x4e0] sm:$0xff]
    %v1161 = vld [vmem:[#allocation7 + $0x4e8] sm:$0xff]
    %v1162 = vld [vmem:[#allocation7 + $0x4f0] sm:$0xff]
    %v1163 = vld [vmem:[#allocation7 + $0x4f8] sm:$0xff]
    %v1164 = vld [vmem:[#allocation7 + $0x500] sm:$0xff]
    %v1165 = vld [vmem:[#allocation7 + $0x508] sm:$0xff]
    %v1166 = vld [vmem:[#allocation7 + $0x510] sm:$0xff]
    %v1167 = vld [vmem:[#allocation7 + $0x518] sm:$0xff]
    %v1168 = vld [vmem:[#allocation7 + $0x520] sm:$0xff]
    %v1169 = vld [vmem:[#allocation7 + $0x528] sm:$0xff]
    %v1170 = vld [vmem:[#allocation7 + $0x530] sm:$0xff]
    %v1171 = vld [vmem:[#allocation7 + $0x538] sm:$0xff]
    %v1172 = vld [vmem:[#allocation7 + $0x540] sm:$0xff]
    %v1173 = vld [vmem:[#allocation7 + $0x548] sm:$0xff]
    %v1174 = vld [vmem:[#allocation7 + $0x550] sm:$0xff]
    %v1175 = vld [vmem:[#allocation7 + $0x558] sm:$0xff]
    %v1176 = vld [vmem:[#allocation7 + $0x560] sm:$0xff]
    %v1177 = vld [vmem:[#allocation7 + $0x568] sm:$0xff]
    %v1178 = vld [vmem:[#allocation7 + $0x570] sm:$0xff]
    %v1179 = vld [vmem:[#allocation7 + $0x578] sm:$0xff]
    %v1180 = vld [vmem:[#allocation7 + $0x580] sm:$0xff]
    %v1181 = vld [vmem:[#allocation7 + $0x588] sm:$0xff]
    %v1182 = vld [vmem:[#allocation7 + $0x590] sm:$0xff]
    %v1183 = vld [vmem:[#allocation7 + $0x598] sm:$0xff]
    %v1184 = vld [vmem:[#allocation7 + $0x5a0] sm:$0xff]
    %v1185 = vld [vmem:[#allocation7 + $0x5a8] sm:$0xff]
    %v1186 = vld [vmem:[#allocation7 + $0x5b0] sm:$0xff]
    %v1187 = vld [vmem:[#allocation7 + $0x5b8] sm:$0xff]
    %v1188 = vld [vmem:[#allocation7 + $0x5c0] sm:$0xff]
    %v1189 = vld [vmem:[#allocation7 + $0x5c8] sm:$0xff]
    %v1190 = vld [vmem:[#allocation7 + $0x5d0] sm:$0xff]
    %v1191 = vld [vmem:[#allocation7 + $0x5d8] sm:$0xff]
    %v1192 = vld [vmem:[#allocation7 + $0x5e0] sm:$0xff]
    %v1193 = vld [vmem:[#allocation7 + $0x5e8] sm:$0xff]
    %v1194 = vld [vmem:[#allocation7 + $0x5f0] sm:$0xff]
    %v1195 = vld [vmem:[#allocation7 + $0x5f8] sm:$0xff]
    %v1196 = vld [vmem:[#allocation7 + $0x600] sm:$0xff]
    %v1197 = vld [vmem:[#allocation7 + $0x608] sm:$0xff]
    %v1198 = vld [vmem:[#allocation7 + $0x610] sm:$0xff]
    %v1199 = vld [vmem:[#allocation7 + $0x618] sm:$0xff]
    %v1200 = vld [vmem:[#allocation7 + $0x620] sm:$0xff]
    %v1201 = vld [vmem:[#allocation7 + $0x628] sm:$0xff]
    %v1202 = vld [vmem:[#allocation7 + $0x630] sm:$0xff]
    %v1203 = vld [vmem:[#allocation7 + $0x638] sm:$0xff]
    %v1204 = vld [vmem:[#allocation7 + $0x640] sm:$0xff]
    %v1205 = vld [vmem:[#allocation7 + $0x648] sm:$0xff]
    %v1206 = vld [vmem:[#allocation7 + $0x650] sm:$0xff]
    %v1207 = vld [vmem:[#allocation7 + $0x658] sm:$0xff]
    %v1208 = vld [vmem:[#allocation7 + $0x660] sm:$0xff]
    %v1209 = vld [vmem:[#allocation7 + $0x668] sm:$0xff]
    %v1210 = vld [vmem:[#allocation7 + $0x670] sm:$0xff]
    %v1211 = vld [vmem:[#allocation7 + $0x678] sm:$0xff]
    %v1212 = vld [vmem:[#allocation7 + $0x680] sm:$0xff]
    %v1213 = vld [vmem:[#allocation7 + $0x688] sm:$0xff]
    %v1214 = vld [vmem:[#allocation7 + $0x690] sm:$0xff]
    %v1215 = vld [vmem:[#allocation7 + $0x698] sm:$0xff]
    %v1216 = vld [vmem:[#allocation7 + $0x6a0] sm:$0xff]
    %v1217 = vld [vmem:[#allocation7 + $0x6a8] sm:$0xff]
    %v1218 = vld [vmem:[#allocation7 + $0x6b0] sm:$0xff]
    %v1219 = vld [vmem:[#allocation7 + $0x6b8] sm:$0xff]
    %v1220 = vld [vmem:[#allocation7 + $0x6c0] sm:$0xff]
    %v1221 = vld [vmem:[#allocation7 + $0x6c8] sm:$0xff]
    %v1222 = vld [vmem:[#allocation7 + $0x6d0] sm:$0xff]
    %v1223 = vld [vmem:[#allocation7 + $0x6d8] sm:$0xff]
    %v1224 = vld [vmem:[#allocation7 + $0x6e0] sm:$0xff]
    %v1225 = vld [vmem:[#allocation7 + $0x6e8] sm:$0xff]
    %v1226 = vld [vmem:[#allocation7 + $0x6f0] sm:$0xff]
    %v1227 = vld [vmem:[#allocation7 + $0x6f8] sm:$0xff]
    %v1228 = vld [vmem:[#allocation7 + $0x700] sm:$0xff]
    %v1229 = vld [vmem:[#allocation7 + $0x708] sm:$0xff]
    %v1230 = vld [vmem:[#allocation7 + $0x710] sm:$0xff]
    %v1231 = vld [vmem:[#allocation7 + $0x718] sm:$0xff]
    %v1232 = vld [vmem:[#allocation7 + $0x720] sm:$0xff]
    %v1233 = vld [vmem:[#allocation7 + $0x728] sm:$0xff]
    %v1234 = vld [vmem:[#allocation7 + $0x730] sm:$0xff]
    %v1235 = vld [vmem:[#allocation7 + $0x738] sm:$0xff]
    %v1236 = vld [vmem:[#allocation7 + $0x740] sm:$0xff]
    %v1237 = vld [vmem:[#allocation7 + $0x748] sm:$0xff]
    %v1238 = vld [vmem:[#allocation7 + $0x750] sm:$0xff]
    %v1239 = vld [vmem:[#allocation7 + $0x758] sm:$0xff]
    %v1240 = vld [vmem:[#allocation7 + $0x760] sm:$0xff]
    %v1241 = vld [vmem:[#allocation7 + $0x768] sm:$0xff]
    %v1242 = vld [vmem:[#allocation7 + $0x770] sm:$0xff]
    %v1243 = vld [vmem:[#allocation7 + $0x778] sm:$0xff]
    %v1244 = vld [vmem:[#allocation7 + $0x780] sm:$0xff]
    %v1245 = vld [vmem:[#allocation7 + $0x788] sm:$0xff]
    %v1246 = vld [vmem:[#allocation7 + $0x790] sm:$0xff]
    %v1247 = vld [vmem:[#allocation7 + $0x798] sm:$0xff]
    %v1248 = vld [vmem:[#allocation7 + $0x7a0] sm:$0xff]
    %v1249 = vld [vmem:[#allocation7 + $0x7a8] sm:$0xff]
    %v1250 = vld [vmem:[#allocation7 + $0x7b0] sm:$0xff]
    %v1251 = vld [vmem:[#allocation7 + $0x7b8] sm:$0xff]
    %v1252 = vld [vmem:[#allocation7 + $0x7c0] sm:$0xff]
    %v1253 = vld [vmem:[#allocation7 + $0x7c8] sm:$0xff]
    %v1254 = vld [vmem:[#allocation7 + $0x7d0] sm:$0xff]
    %v1255 = vld [vmem:[#allocation7 + $0x7d8] sm:$0xff]
    %v1256 = vld [vmem:[#allocation7 + $0x7e0] sm:$0xff]
    %v1257 = vld [vmem:[#allocation7 + $0x7e8] sm:$0xff]
    %v1258 = vld [vmem:[#allocation7 + $0x7f0] sm:$0xff]
    %v1259 = vld [vmem:[#allocation7 + $0x7f8] sm:$0xff]
    %v1260 = vld [vmem:[#allocation7 + $0x800] sm:$0xff]
    %v1261 = vld [vmem:[#allocation7 + $0x808] sm:$0xff]
    %v1262 = vld [vmem:[#allocation7 + $0x810] sm:$0xff]
    %v1263 = vld [vmem:[#allocation7 + $0x818] sm:$0xff]
    %v1264 = vld [vmem:[#allocation7 + $0x820] sm:$0xff]
    %v1265 = vld [vmem:[#allocation7 + $0x828] sm:$0xff]
    %v1266 = vld [vmem:[#allocation7 + $0x830] sm:$0xff]
    %v1267 = vld [vmem:[#allocation7 + $0x838] sm:$0xff]
    %v1268 = vld [vmem:[#allocation7 + $0x840] sm:$0xff]
    %v1269 = vld [vmem:[#allocation7 + $0x848] sm:$0xff]
    %v1270 = vld [vmem:[#allocation7 + $0x850] sm:$0xff]
    %v1271 = vld [vmem:[#allocation7 + $0x858] sm:$0xff]
    %v1272 = vld [vmem:[#allocation7 + $0x860] sm:$0xff]
    %v1273 = vld [vmem:[#allocation7 + $0x868] sm:$0xff]
    %v1274 = vld [vmem:[#allocation7 + $0x870] sm:$0xff]
    %v1275 = vld [vmem:[#allocation7 + $0x878] sm:$0xff]
    %v1276 = vld [vmem:[#allocation7 + $0x880] sm:$0xff]
    %v1277 = vld [vmem:[#allocation7 + $0x888] sm:$0xff]
    %v1278 = vld [vmem:[#allocation7 + $0x890] sm:$0xff]
    %v1279 = vld [vmem:[#allocation7 + $0x898] sm:$0xff]
    %v1280 = vld [vmem:[#allocation7 + $0x8a0] sm:$0xff]
    %v1281 = vld [vmem:[#allocation7 + $0x8a8] sm:$0xff]
    %v1282 = vld [vmem:[#allocation7 + $0x8b0] sm:$0xff]
    %v1283 = vld [vmem:[#allocation7 + $0x8b8] sm:$0xff]
    %v1284 = vld [vmem:[#allocation7 + $0x8c0] sm:$0xff]
    %v1285 = vld [vmem:[#allocation7 + $0x8c8] sm:$0xff]
    %v1286 = vld [vmem:[#allocation7 + $0x8d0] sm:$0xff]
    %v1287 = vld [vmem:[#allocation7 + $0x8d8] sm:$0xff]
    %v1288 = vld [vmem:[#allocation7 + $0x8e0] sm:$0xff]
    %v1289 = vld [vmem:[#allocation7 + $0x8e8] sm:$0xff]
    %v1290 = vld [vmem:[#allocation7 + $0x8f0] sm:$0xff]
    %v1291 = vld [vmem:[#allocation7 + $0x8f8] sm:$0xff]
    %v1292 = vld [vmem:[#allocation7 + $0x900] sm:$0xff]
    %v1293 = vld [vmem:[#allocation7 + $0x908] sm:$0xff]
    %v1294 = vld [vmem:[#allocation7 + $0x910] sm:$0xff]
    %v1295 = vld [vmem:[#allocation7 + $0x918] sm:$0xff]
    %v1296 = vld [vmem:[#allocation7 + $0x920] sm:$0xff]
    %v1297 = vld [vmem:[#allocation7 + $0x928] sm:$0xff]
    %v1298 = vld [vmem:[#allocation7 + $0x930] sm:$0xff]
    %v1299 = vld [vmem:[#allocation7 + $0x938] sm:$0xff]
    %v1300 = vld [vmem:[#allocation7 + $0x940] sm:$0xff]
    %v1301 = vld [vmem:[#allocation7 + $0x948] sm:$0xff]
    %v1302 = vld [vmem:[#allocation7 + $0x950] sm:$0xff]
    %v1303 = vld [vmem:[#allocation7 + $0x958] sm:$0xff]
    %v1304 = vld [vmem:[#allocation7 + $0x960] sm:$0xff]
    %v1305 = vld [vmem:[#allocation7 + $0x968] sm:$0xff]
    %v1306 = vld [vmem:[#allocation7 + $0x970] sm:$0xff]
    %v1307 = vld [vmem:[#allocation7 + $0x978] sm:$0xff]
    %v1308 = vld [vmem:[#allocation7 + $0x980] sm:$0xff]
    %v1309 = vld [vmem:[#allocation7 + $0x988] sm:$0xff]
    %v1310 = vld [vmem:[#allocation7 + $0x990] sm:$0xff]
    %v1311 = vld [vmem:[#allocation7 + $0x998] sm:$0xff]
    %v1312 = vld [vmem:[#allocation7 + $0x9a0] sm:$0xff]
    %v1313 = vld [vmem:[#allocation7 + $0x9a8] sm:$0xff]
    %v1314 = vld [vmem:[#allocation7 + $0x9b0] sm:$0xff]
    %v1315 = vld [vmem:[#allocation7 + $0x9b8] sm:$0xff]
    %v1316 = vld [vmem:[#allocation7 + $0x9c0] sm:$0xff]
    %v1317 = vld [vmem:[#allocation7 + $0x9c8] sm:$0xff]
    %v1318 = vld [vmem:[#allocation7 + $0x9d0] sm:$0xff]
    %v1319 = vld [vmem:[#allocation7 + $0x9d8] sm:$0xff]
    %v1320 = vld [vmem:[#allocation7 + $0x9e0] sm:$0xff]
    %v1321 = vld [vmem:[#allocation7 + $0x9e8] sm:$0xff]
    %v1322 = vld [vmem:[#allocation7 + $0x9f0] sm:$0xff]
    %v1323 = vld [vmem:[#allocation7 + $0x9f8] sm:$0xff]
    %v1324 = vld [vmem:[#allocation7 + $0xa00] sm:$0xff]
    %v1325 = vld [vmem:[#allocation7 + $0xa08] sm:$0xff]
    %v1326 = vld [vmem:[#allocation7 + $0xa10] sm:$0xff]
    %v1327 = vld [vmem:[#allocation7 + $0xa18] sm:$0xff]
    %v1328 = vld [vmem:[#allocation7 + $0xa20] sm:$0xff]
    %v1329 = vld [vmem:[#allocation7 + $0xa28] sm:$0xff]
    %v1330 = vld [vmem:[#allocation7 + $0xa30] sm:$0xff]
    %v1331 = vld [vmem:[#allocation7 + $0xa38] sm:$0xff]
    %v1332 = vld [vmem:[#allocation7 + $0xa40] sm:$0xff]
    %v1333 = vld [vmem:[#allocation7 + $0xa48] sm:$0xff]
    %v1334 = vld [vmem:[#allocation7 + $0xa50] sm:$0xff]
    %v1335 = vld [vmem:[#allocation7 + $0xa58] sm:$0xff]
    %v1336 = vld [vmem:[#allocation7 + $0xa60] sm:$0xff]
    %v1337 = vld [vmem:[#allocation7 + $0xa68] sm:$0xff]
    %v1338 = vld [vmem:[#allocation7 + $0xa70] sm:$0xff]
    %v1339 = vld [vmem:[#allocation7 + $0xa78] sm:$0xff]
    %v1340 = vld [vmem:[#allocation7 + $0xa80] sm:$0xff]
    %v1341 = vld [vmem:[#allocation7 + $0xa88] sm:$0xff]
    %v1342 = vld [vmem:[#allocation7 + $0xa90] sm:$0xff]
    %v1343 = vld [vmem:[#allocation7 + $0xa98] sm:$0xff]
    %v1344 = vld [vmem:[#allocation7 + $0xaa0] sm:$0xff]
    %v1345 = vld [vmem:[#allocation7 + $0xaa8] sm:$0xff]
    %v1346 = vld [vmem:[#allocation7 + $0xab0] sm:$0xff]
    %v1347 = vld [vmem:[#allocation7 + $0xab8] sm:$0xff]
    %v1348 = vld [vmem:[#allocation7 + $0xac0] sm:$0xff]
    %v1349 = vld [vmem:[#allocation7 + $0xac8] sm:$0xff]
    %v1350 = vld [vmem:[#allocation7 + $0xad0] sm:$0xff]
    %v1351 = vld [vmem:[#allocation7 + $0xad8] sm:$0xff]
    %v1352 = vld [vmem:[#allocation7 + $0xae0] sm:$0xff]
    %v1353 = vld [vmem:[#allocation7 + $0xae8] sm:$0xff]
    %v1354 = vld [vmem:[#allocation7 + $0xaf0] sm:$0xff]
    %v1355 = vld [vmem:[#allocation7 + $0xaf8] sm:$0xff]
    %v1356 = vld [vmem:[#allocation7 + $0xb00] sm:$0xff]
    %v1357 = vld [vmem:[#allocation7 + $0xb08] sm:$0xff]
    %v1358 = vld [vmem:[#allocation7 + $0xb10] sm:$0xff]
    %v1359 = vld [vmem:[#allocation7 + $0xb18] sm:$0xff]
    %v1360 = vld [vmem:[#allocation7 + $0xb20] sm:$0xff]
    %v1361 = vld [vmem:[#allocation7 + $0xb28] sm:$0xff]
    %v1362 = vld [vmem:[#allocation7 + $0xb30] sm:$0xff]
    %v1363 = vld [vmem:[#allocation7 + $0xb38] sm:$0xff]
    %v1364 = vld [vmem:[#allocation7 + $0xb40] sm:$0xff]
    %v1365 = vld [vmem:[#allocation7 + $0xb48] sm:$0xff]
    %v1366 = vld [vmem:[#allocation7 + $0xb50] sm:$0xff]
    %v1367 = vld [vmem:[#allocation7 + $0xb58] sm:$0xff]
    %v1368 = vld [vmem:[#allocation7 + $0xb60] sm:$0xff]
    %v1369 = vld [vmem:[#allocation7 + $0xb68] sm:$0xff]
    %v1370 = vld [vmem:[#allocation7 + $0xb70] sm:$0xff]
    %v1371 = vld [vmem:[#allocation7 + $0xb78] sm:$0xff]
    %v1372 = vld [vmem:[#allocation7 + $0xb80] sm:$0xff]
    %v1373 = vld [vmem:[#allocation7 + $0xb88] sm:$0xff]
    %v1374 = vld [vmem:[#allocation7 + $0xb90] sm:$0xff]
    %v1375 = vld [vmem:[#allocation7 + $0xb98] sm:$0xff]
    %v1376 = vld [vmem:[#allocation7 + $0xba0] sm:$0xff]
    %v1377 = vld [vmem:[#allocation7 + $0xba8] sm:$0xff]
    %v1378 = vld [vmem:[#allocation7 + $0xbb0] sm:$0xff]
    %v1379 = vld [vmem:[#allocation7 + $0xbb8] sm:$0xff]
    %v1380 = vld [vmem:[#allocation7 + $0xbc0] sm:$0xff]
    %v1381 = vld [vmem:[#allocation7 + $0xbc8] sm:$0xff]
    %v1382 = vld [vmem:[#allocation7 + $0xbd0] sm:$0xff]
    %v1383 = vld [vmem:[#allocation7 + $0xbd8] sm:$0xff]
    %v1384 = vld [vmem:[#allocation7 + $0xbe0] sm:$0xff]
    %v1385 = vld [vmem:[#allocation7 + $0xbe8] sm:$0xff]
    %v1386 = vld [vmem:[#allocation7 + $0xbf0] sm:$0xff]
    %v1387 = vld [vmem:[#allocation7 + $0xbf8] sm:$0xff]
    %v1388 = vld [vmem:[#allocation7 + $0xc00] sm:$0xff]
    %v1389 = vld [vmem:[#allocation7 + $0xc08] sm:$0xff]
    %v1390 = vld [vmem:[#allocation7 + $0xc10] sm:$0xff]
    %v1391 = vld [vmem:[#allocation7 + $0xc18] sm:$0xff]
    %v1392 = vld [vmem:[#allocation7 + $0xc20] sm:$0xff]
    %v1393 = vld [vmem:[#allocation7 + $0xc28] sm:$0xff]
    %v1394 = vld [vmem:[#allocation7 + $0xc30] sm:$0xff]
    %v1395 = vld [vmem:[#allocation7 + $0xc38] sm:$0xff]
    %v1396 = vld [vmem:[#allocation7 + $0xc40] sm:$0xff]
    %v1397 = vld [vmem:[#allocation7 + $0xc48] sm:$0xff]
    %v1398 = vld [vmem:[#allocation7 + $0xc50] sm:$0xff]
    %v1399 = vld [vmem:[#allocation7 + $0xc58] sm:$0xff]
    %v1400 = vld [vmem:[#allocation7 + $0xc60] sm:$0xff]
    %v1401 = vld [vmem:[#allocation7 + $0xc68] sm:$0xff]
    %v1402 = vld [vmem:[#allocation7 + $0xc70] sm:$0xff]
    %v1403 = vld [vmem:[#allocation7 + $0xc78] sm:$0xff]
    %v1404 = vld [vmem:[#allocation7 + $0xc80] sm:$0xff]
    %v1405 = vld [vmem:[#allocation7 + $0xc88] sm:$0xff]
    %v1406 = vld [vmem:[#allocation7 + $0xc90] sm:$0xff]
    %v1407 = vld [vmem:[#allocation7 + $0xc98] sm:$0xff]
    %v1408 = vld [vmem:[#allocation7 + $0xca0] sm:$0xff]
    %v1409 = vld [vmem:[#allocation7 + $0xca8] sm:$0xff]
    %v1410 = vld [vmem:[#allocation7 + $0xcb0] sm:$0xff]
    %v1411 = vld [vmem:[#allocation7 + $0xcb8] sm:$0xff]
    %v1412 = vld [vmem:[#allocation7 + $0xcc0] sm:$0xff]
    %v1413 = vld [vmem:[#allocation7 + $0xcc8] sm:$0xff]
    %v1414 = vld [vmem:[#allocation7 + $0xcd0] sm:$0xff]
    %v1415 = vld [vmem:[#allocation7 + $0xcd8] sm:$0xff]
    %v1416 = vld [vmem:[#allocation7 + $0xce0] sm:$0xff]
    %v1417 = vld [vmem:[#allocation7 + $0xce8] sm:$0xff]
    %v1418 = vld [vmem:[#allocation7 + $0xcf0] sm:$0xff]
    %v1419 = vld [vmem:[#allocation7 + $0xcf8] sm:$0xff]
    %v1420 = vld [vmem:[#allocation7 + $0xd00] sm:$0xff]
    %v1421 = vld [vmem:[#allocation7 + $0xd08] sm:$0xff]
    %v1422 = vld [vmem:[#allocation7 + $0xd10] sm:$0xff]
    %v1423 = vld [vmem:[#allocation7 + $0xd18] sm:$0xff]
    %v1424 = vld [vmem:[#allocation7 + $0xd20] sm:$0xff]
    %v1425 = vld [vmem:[#allocation7 + $0xd28] sm:$0xff]
    %v1426 = vld [vmem:[#allocation7 + $0xd30] sm:$0xff]
    %v1427 = vld [vmem:[#allocation7 + $0xd38] sm:$0xff]
    %v1428 = vld [vmem:[#allocation7 + $0xd40] sm:$0xff]
    %v1429 = vld [vmem:[#allocation7 + $0xd48] sm:$0xff]
    %v1430 = vld [vmem:[#allocation7 + $0xd50] sm:$0xff]
    %v1431 = vld [vmem:[#allocation7 + $0xd58] sm:$0xff]
    %v1432 = vld [vmem:[#allocation7 + $0xd60] sm:$0xff]
    %v1433 = vld [vmem:[#allocation7 + $0xd68] sm:$0xff]
    %v1434 = vld [vmem:[#allocation7 + $0xd70] sm:$0xff]
    %v1435 = vld [vmem:[#allocation7 + $0xd78] sm:$0xff]
    %v1436 = vld [vmem:[#allocation7 + $0xd80] sm:$0xff]
    %v1437 = vld [vmem:[#allocation7 + $0xd88] sm:$0xff]
    %v1438 = vld [vmem:[#allocation7 + $0xd90] sm:$0xff]
    %v1439 = vld [vmem:[#allocation7 + $0xd98] sm:$0xff]
    %v1440 = vld [vmem:[#allocation7 + $0xda0] sm:$0xff]
    %v1441 = vld [vmem:[#allocation7 + $0xda8] sm:$0xff]
    %v1442 = vld [vmem:[#allocation7 + $0xdb0] sm:$0xff]
    %v1443 = vld [vmem:[#allocation7 + $0xdb8] sm:$0xff]
    %v1444 = vld [vmem:[#allocation7 + $0xdc0] sm:$0xff]
    %v1445 = vld [vmem:[#allocation7 + $0xdc8] sm:$0xff]
    %v1446 = vld [vmem:[#allocation7 + $0xdd0] sm:$0xff]
    %v1447 = vld [vmem:[#allocation7 + $0xdd8] sm:$0xff]
    %v1448 = vld [vmem:[#allocation7 + $0xde0] sm:$0xff]
    %v1449 = vld [vmem:[#allocation7 + $0xde8] sm:$0xff]
    %v1450 = vld [vmem:[#allocation7 + $0xdf0] sm:$0xff]
    %v1451 = vld [vmem:[#allocation7 + $0xdf8] sm:$0xff]
    %v1452 = vld [vmem:[#allocation7 + $0xe00] sm:$0xff]
    %v1453 = vld [vmem:[#allocation7 + $0xe08] sm:$0xff]
    %v1454 = vld [vmem:[#allocation7 + $0xe10] sm:$0xff]
    %v1455 = vld [vmem:[#allocation7 + $0xe18] sm:$0xff]
    %v1456 = vld [vmem:[#allocation7 + $0xe20] sm:$0xff]
    %v1457 = vld [vmem:[#allocation7 + $0xe28] sm:$0xff]
    %v1458 = vld [vmem:[#allocation7 + $0xe30] sm:$0xff]
    %v1459 = vld [vmem:[#allocation7 + $0xe38] sm:$0xff]
    %v1460 = vld [vmem:[#allocation7 + $0xe40] sm:$0xff]
    %v1461 = vld [vmem:[#allocation7 + $0xe48] sm:$0xff]
    %v1462 = vld [vmem:[#allocation7 + $0xe50] sm:$0xff]
    %v1463 = vld [vmem:[#allocation7 + $0xe58] sm:$0xff]
    %v1464 = vld [vmem:[#allocation7 + $0xe60] sm:$0xff]
    %v1465 = vld [vmem:[#allocation7 + $0xe68] sm:$0xff]
    %v1466 = vld [vmem:[#allocation7 + $0xe70] sm:$0xff]
    %v1467 = vld [vmem:[#allocation7 + $0xe78] sm:$0xff]
    %v1468 = vld [vmem:[#allocation7 + $0xe80] sm:$0xff]
    %v1469 = vld [vmem:[#allocation7 + $0xe88] sm:$0xff]
    %v1470 = vld [vmem:[#allocation7 + $0xe90] sm:$0xff]
    %v1471 = vld [vmem:[#allocation7 + $0xe98] sm:$0xff]
    %v1472 = vld [vmem:[#allocation7 + $0xea0] sm:$0xff]
    %v1473 = vld [vmem:[#allocation7 + $0xea8] sm:$0xff]
    %v1474 = vld [vmem:[#allocation7 + $0xeb0] sm:$0xff]
    %v1475 = vld [vmem:[#allocation7 + $0xeb8] sm:$0xff]
    %v1476 = vld [vmem:[#allocation7 + $0xec0] sm:$0xff]
    %v1477 = vld [vmem:[#allocation7 + $0xec8] sm:$0xff]
    %v1478 = vld [vmem:[#allocation7 + $0xed0] sm:$0xff]
    %v1479 = vld [vmem:[#allocation7 + $0xed8] sm:$0xff]
    %v1480 = vld [vmem:[#allocation7 + $0xee0] sm:$0xff]
    %v1481 = vld [vmem:[#allocation7 + $0xee8] sm:$0xff]
    %v1482 = vld [vmem:[#allocation7 + $0xef0] sm:$0xff]
    %v1483 = vld [vmem:[#allocation7 + $0xef8] sm:$0xff]
    %v1484 = vld [vmem:[#allocation7 + $0xf00] sm:$0xff]
    %v1485 = vld [vmem:[#allocation7 + $0xf08] sm:$0xff]
    %v1486 = vld [vmem:[#allocation7 + $0xf10] sm:$0xff]
    %v1487 = vld [vmem:[#allocation7 + $0xf18] sm:$0xff]
    %v1488 = vld [vmem:[#allocation7 + $0xf20] sm:$0xff]
    %v1489 = vld [vmem:[#allocation7 + $0xf28] sm:$0xff]
    %v1490 = vld [vmem:[#allocation7 + $0xf30] sm:$0xff]
    %v1491 = vld [vmem:[#allocation7 + $0xf38] sm:$0xff]
    %v1492 = vld [vmem:[#allocation7 + $0xf40] sm:$0xff]
    %v1493 = vld [vmem:[#allocation7 + $0xf48] sm:$0xff]
    %v1494 = vld [vmem:[#allocation7 + $0xf50] sm:$0xff]
    %v1495 = vld [vmem:[#allocation7 + $0xf58] sm:$0xff]
    %v1496 = vld [vmem:[#allocation7 + $0xf60] sm:$0xff]
    %v1497 = vld [vmem:[#allocation7 + $0xf68] sm:$0xff]
    %v1498 = vld [vmem:[#allocation7 + $0xf70] sm:$0xff]
    %v1499 = vld [vmem:[#allocation7 + $0xf78] sm:$0xff]
    %v1500 = vld [vmem:[#allocation7 + $0xf80] sm:$0xff]
    %v1501 = vld [vmem:[#allocation7 + $0xf88] sm:$0xff]
    %v1502 = vld [vmem:[#allocation7 + $0xf90] sm:$0xff]
    %v1503 = vld [vmem:[#allocation7 + $0xf98] sm:$0xff]
    %v1504 = vld [vmem:[#allocation7 + $0xfa0] sm:$0xff]
    %v1505 = vld [vmem:[#allocation7 + $0xfa8] sm:$0xff]
    %v1506 = vld [vmem:[#allocation7 + $0xfb0] sm:$0xff]
    %v1507 = vld [vmem:[#allocation7 + $0xfb8] sm:$0xff]
    %v1508 = vld [vmem:[#allocation7 + $0xfc0] sm:$0xff]
    %v1509 = vld [vmem:[#allocation7 + $0xfc8] sm:$0xff]
    %v1510 = vld [vmem:[#allocation7 + $0xfd0] sm:$0xff]
    %v1511 = vld [vmem:[#allocation7 + $0xfd8] sm:$0xff]
    %v1512 = vld [vmem:[#allocation7 + $0xfe0] sm:$0xff]
    %v1513 = vld [vmem:[#allocation7 + $0xfe8] sm:$0xff]
    %v1514 = vld [vmem:[#allocation7 + $0xff0] sm:$0xff]
    %v1515 = vld [vmem:[#allocation7 + $0xff8] sm:$0xff]
    %v1516 = vld [vmem:[#allocation7 + $0x1000] sm:$0xff]
    %v1517 = vld [vmem:[#allocation7 + $0x1008] sm:$0xff]
    %v1518 = vld [vmem:[#allocation7 + $0x1010] sm:$0xff]
    %v1519 = vld [vmem:[#allocation7 + $0x1018] sm:$0xff]
    %v1520 = vld [vmem:[#allocation7 + $0x1020] sm:$0xff]
    %v1521 = vld [vmem:[#allocation7 + $0x1028] sm:$0xff]
    %v1522 = vld [vmem:[#allocation7 + $0x1030] sm:$0xff]
    %v1523 = vld [vmem:[#allocation7 + $0x1038] sm:$0xff]
    %v1524 = vld [vmem:[#allocation7 + $0x1040] sm:$0xff]
    %v1525 = vld [vmem:[#allocation7 + $0x1048] sm:$0xff]
    %v1526 = vld [vmem:[#allocation7 + $0x1050] sm:$0xff]
    %v1527 = vld [vmem:[#allocation7 + $0x1058] sm:$0xff]
    %v1528 = vld [vmem:[#allocation7 + $0x1060] sm:$0xff]
    %v1529 = vld [vmem:[#allocation7 + $0x1068] sm:$0xff]
    %v1530 = vld [vmem:[#allocation7 + $0x1070] sm:$0xff]
    %v1531 = vld [vmem:[#allocation7 + $0x1078] sm:$0xff]
    %v1532 = vld [vmem:[#allocation7 + $0x1080] sm:$0xff]
    %v1533 = vld [vmem:[#allocation7 + $0x1088] sm:$0xff]
    %v1534 = vld [vmem:[#allocation7 + $0x1090] sm:$0xff]
    %v1535 = vld [vmem:[#allocation7 + $0x1098] sm:$0xff]
    %v1536 = vld [vmem:[#allocation7 + $0x10a0] sm:$0xff]
    %v1537 = vld [vmem:[#allocation7 + $0x10a8] sm:$0xff]
    %v1538 = vld [vmem:[#allocation7 + $0x10b0] sm:$0xff]
    %v1539 = vld [vmem:[#allocation7 + $0x10b8] sm:$0xff]
    %v1540 = vld [vmem:[#allocation7 + $0x10c0] sm:$0xff]
    %v1541 = vld [vmem:[#allocation7 + $0x10c8] sm:$0xff]
    %v1542 = vld [vmem:[#allocation7 + $0x10d0] sm:$0xff]
    %v1543 = vld [vmem:[#allocation7 + $0x10d8] sm:$0xff]
    %v1544 = vld [vmem:[#allocation7 + $0x10e0] sm:$0xff]
    %v1545 = vld [vmem:[#allocation7 + $0x10e8] sm:$0xff]
    %v1546 = vld [vmem:[#allocation7 + $0x10f0] sm:$0xff]
    %v1547 = vld [vmem:[#allocation7 + $0x10f8] sm:$0xff]
    %v1548 = vld [vmem:[#allocation7 + $0x1100] sm:$0xff]
    %v1549 = vld [vmem:[#allocation7 + $0x1108] sm:$0xff]
    %v1550 = vld [vmem:[#allocation7 + $0x1110] sm:$0xff]
    %v1551 = vld [vmem:[#allocation7 + $0x1118] sm:$0xff]
    %v1552 = vld [vmem:[#allocation7 + $0x1120] sm:$0xff]
    %v1553 = vld [vmem:[#allocation7 + $0x1128] sm:$0xff]
    %v1554 = vld [vmem:[#allocation7 + $0x1130] sm:$0xff]
    %v1555 = vld [vmem:[#allocation7 + $0x1138] sm:$0xff]
    %v1556 = vld [vmem:[#allocation7 + $0x1140] sm:$0xff]
    %v1557 = vld [vmem:[#allocation7 + $0x1148] sm:$0xff]
    %v1558 = vld [vmem:[#allocation7 + $0x1150] sm:$0xff]
    %v1559 = vld [vmem:[#allocation7 + $0x1158] sm:$0xff]
    %v1560 = vld [vmem:[#allocation7 + $0x1160] sm:$0xff]
    %v1561 = vld [vmem:[#allocation7 + $0x1168] sm:$0xff]
    %v1562 = vld [vmem:[#allocation7 + $0x1170] sm:$0xff]
    %v1563 = vld [vmem:[#allocation7 + $0x1178] sm:$0xff]
    %v1564 = vld [vmem:[#allocation7 + $0x1180] sm:$0xff]
    %v1565 = vld [vmem:[#allocation7 + $0x1188] sm:$0xff]
    %v1566 = vld [vmem:[#allocation7 + $0x1190] sm:$0xff]
    %v1567 = vld [vmem:[#allocation7 + $0x1198] sm:$0xff]
    %v1568 = vld [vmem:[#allocation7 + $0x11a0] sm:$0xff]
    %v1569 = vld [vmem:[#allocation7 + $0x11a8] sm:$0xff]
    %v1570 = vld [vmem:[#allocation7 + $0x11b0] sm:$0xff]
    %v1571 = vld [vmem:[#allocation7 + $0x11b8] sm:$0xff]
    %v1572 = vld [vmem:[#allocation7 + $0x11c0] sm:$0xff]
    %v1573 = vld [vmem:[#allocation7 + $0x11c8] sm:$0xff]
    %v1574 = vld [vmem:[#allocation7 + $0x11d0] sm:$0xff]
    %v1575 = vld [vmem:[#allocation7 + $0x11d8] sm:$0xff]
    %v1576 = vld [vmem:[#allocation7 + $0x11e0] sm:$0xff]
    %v1577 = vld [vmem:[#allocation7 + $0x11e8] sm:$0xff]
    %v1578 = vld [vmem:[#allocation7 + $0x11f0] sm:$0xff]
    %v1579 = vld [vmem:[#allocation7 + $0x11f8] sm:$0xff]
    %v1580 = vld [vmem:[#allocation7 + $0x1200] sm:$0xff]
    %v1581 = vld [vmem:[#allocation7 + $0x1208] sm:$0xff]
    %v1582 = vld [vmem:[#allocation7 + $0x1210] sm:$0xff]
    %v1583 = vld [vmem:[#allocation7 + $0x1218] sm:$0xff]
    %v1584 = vld [vmem:[#allocation7 + $0x1220] sm:$0xff]
    %v1585 = vld [vmem:[#allocation7 + $0x1228] sm:$0xff]
    %v1586 = vld [vmem:[#allocation7 + $0x1230] sm:$0xff]
    %v1587 = vld [vmem:[#allocation7 + $0x1238] sm:$0xff]
    %v1588 = vld [vmem:[#allocation7 + $0x1240] sm:$0xff]
    %v1589 = vld [vmem:[#allocation7 + $0x1248] sm:$0xff]
    %v1590 = vld [vmem:[#allocation7 + $0x1250] sm:$0xff]
    %v1591 = vld [vmem:[#allocation7 + $0x1258] sm:$0xff]
    %v1592 = vld [vmem:[#allocation7 + $0x1260] sm:$0xff]
    %v1593 = vld [vmem:[#allocation7 + $0x1268] sm:$0xff]
    %v1594 = vld [vmem:[#allocation7 + $0x1270] sm:$0xff]
    %v1595 = vld [vmem:[#allocation7 + $0x1278] sm:$0xff]
    %v1596 = vld [vmem:[#allocation7 + $0x1280] sm:$0xff]
    %v1597 = vld [vmem:[#allocation7 + $0x1288] sm:$0xff]
    %v1598 = vld [vmem:[#allocation7 + $0x1290] sm:$0xff]
    %v1599 = vld [vmem:[#allocation7 + $0x1298] sm:$0xff]
    %v1600 = vld [vmem:[#allocation7 + $0x12a0] sm:$0xff]
    %v1601 = vld [vmem:[#allocation7 + $0x12a8] sm:$0xff]
    %v1602 = vld [vmem:[#allocation7 + $0x12b0] sm:$0xff]
    %v1603 = vld [vmem:[#allocation7 + $0x12b8] sm:$0xff]
    %v1604 = vld [vmem:[#allocation7 + $0x12c0] sm:$0xff]
    %v1605 = vld [vmem:[#allocation7 + $0x12c8] sm:$0xff]
    %v1606 = vld [vmem:[#allocation7 + $0x12d0] sm:$0xff]
    %v1607 = vld [vmem:[#allocation7 + $0x12d8] sm:$0xff]
    %v1608 = vld [vmem:[#allocation7 + $0x12e0] sm:$0xff]
    %v1609 = vld [vmem:[#allocation7 + $0x12e8] sm:$0xff]
    %v1610 = vld [vmem:[#allocation7 + $0x12f0] sm:$0xff]
    %v1611 = vld [vmem:[#allocation7 + $0x12f8] sm:$0xff]
    %v1612 = vld [vmem:[#allocation7 + $0x1300] sm:$0xff]
    %v1613 = vld [vmem:[#allocation7 + $0x1308] sm:$0xff]
    %v1614 = vld [vmem:[#allocation7 + $0x1310] sm:$0xff]
    %v1615 = vld [vmem:[#allocation7 + $0x1318] sm:$0xff]
    %v1616 = vld [vmem:[#allocation7 + $0x1320] sm:$0xff]
    %v1617 = vld [vmem:[#allocation7 + $0x1328] sm:$0xff]
    %v1618 = vld [vmem:[#allocation7 + $0x1330] sm:$0xff]
    %v1619 = vld [vmem:[#allocation7 + $0x1338] sm:$0xff]
    %v1620 = vld [vmem:[#allocation7 + $0x1340] sm:$0xff]
    %v1621 = vld [vmem:[#allocation7 + $0x1348] sm:$0xff]
    %v1622 = vld [vmem:[#allocation7 + $0x1350] sm:$0xff]
    %v1623 = vld [vmem:[#allocation7 + $0x1358] sm:$0xff]
    %v1624 = vld [vmem:[#allocation7 + $0x1360] sm:$0xff]
    %v1625 = vld [vmem:[#allocation7 + $0x1368] sm:$0xff]
    %v1626 = vld [vmem:[#allocation7 + $0x1370] sm:$0xff]
    %v1627 = vld [vmem:[#allocation7 + $0x1378] sm:$0xff]
    %v1628 = vld [vmem:[#allocation7 + $0x1380] sm:$0xff]
    %v1629 = vld [vmem:[#allocation7 + $0x1388] sm:$0xff]
    %v1630 = vld [vmem:[#allocation7 + $0x1390] sm:$0xff]
    %v1631 = vld [vmem:[#allocation7 + $0x1398] sm:$0xff]
    %v1632 = vld [vmem:[#allocation7 + $0x13a0] sm:$0xff]
    %v1633 = vld [vmem:[#allocation7 + $0x13a8] sm:$0xff]
    %v1634 = vld [vmem:[#allocation7 + $0x13b0] sm:$0xff]
    %v1635 = vld [vmem:[#allocation7 + $0x13b8] sm:$0xff]
    %v1636 = vld [vmem:[#allocation7 + $0x13c0] sm:$0xff]
    %v1637 = vld [vmem:[#allocation7 + $0x13c8] sm:$0xff]
    %v1638 = vld [vmem:[#allocation7 + $0x13d0] sm:$0xff]
    %v1639 = vld [vmem:[#allocation7 + $0x13d8] sm:$0xff]
    %v1640 = vld [vmem:[#allocation7 + $0x13e0] sm:$0xff]
    %v1641 = vld [vmem:[#allocation7 + $0x13e8] sm:$0xff]
    %v1642 = vld [vmem:[#allocation7 + $0x13f0] sm:$0xff]
    %v1643 = vld [vmem:[#allocation7 + $0x13f8] sm:$0xff]
    %v1644 = vld [vmem:[#allocation7 + $0x1400] sm:$0xff]
    %v1645 = vld [vmem:[#allocation7 + $0x1408] sm:$0xff]
    %v1646 = vld [vmem:[#allocation7 + $0x1410] sm:$0xff]
    %v1647 = vld [vmem:[#allocation7 + $0x1418] sm:$0xff]
    %v1648 = vld [vmem:[#allocation7 + $0x1420] sm:$0xff]
    %v1649 = vld [vmem:[#allocation7 + $0x1428] sm:$0xff]
    %v1650 = vld [vmem:[#allocation7 + $0x1430] sm:$0xff]
    %v1651 = vld [vmem:[#allocation7 + $0x1438] sm:$0xff]
    %v1652 = vld [vmem:[#allocation7 + $0x1440] sm:$0xff]
    %v1653 = vld [vmem:[#allocation7 + $0x1448] sm:$0xff]
    %v1654 = vld [vmem:[#allocation7 + $0x1450] sm:$0xff]
    %v1655 = vld [vmem:[#allocation7 + $0x1458] sm:$0xff]
    %v1656 = vld [vmem:[#allocation7 + $0x1460] sm:$0xff]
    %v1657 = vld [vmem:[#allocation7 + $0x1468] sm:$0xff]
    %v1658 = vld [vmem:[#allocation7 + $0x1470] sm:$0xff]
    %v1659 = vld [vmem:[#allocation7 + $0x1478] sm:$0xff]
    %v1660 = vld [vmem:[#allocation7 + $0x1480] sm:$0xff]
    %v1661 = vld [vmem:[#allocation7 + $0x1488] sm:$0xff]
    %v1662 = vld [vmem:[#allocation7 + $0x1490] sm:$0xff]
    %v1663 = vld [vmem:[#allocation7 + $0x1498] sm:$0xff]
    %v1664 = vld [vmem:[#allocation7 + $0x14a0] sm:$0xff]
    %v1665 = vld [vmem:[#allocation7 + $0x14a8] sm:$0xff]
    %v1666 = vld [vmem:[#allocation7 + $0x14b0] sm:$0xff]
    %v1667 = vld [vmem:[#allocation7 + $0x14b8] sm:$0xff]
    %v1668 = vld [vmem:[#allocation7 + $0x14c0] sm:$0xff]
    %v1669 = vld [vmem:[#allocation7 + $0x14c8] sm:$0xff]
    %v1670 = vld [vmem:[#allocation7 + $0x14d0] sm:$0xff]
    %v1671 = vld [vmem:[#allocation7 + $0x14d8] sm:$0xff]
    %v1672 = vld [vmem:[#allocation7 + $0x14e0] sm:$0xff]
    %v1673 = vld [vmem:[#allocation7 + $0x14e8] sm:$0xff]
    %v1674 = vld [vmem:[#allocation7 + $0x14f0] sm:$0xff]
    %v1675 = vld [vmem:[#allocation7 + $0x14f8] sm:$0xff]
    %v1676 = vld [vmem:[#allocation7 + $0x1500] sm:$0xff]
    %v1677 = vld [vmem:[#allocation7 + $0x1508] sm:$0xff]
    %v1678 = vld [vmem:[#allocation7 + $0x1510] sm:$0xff]
    %v1679 = vld [vmem:[#allocation7 + $0x1518] sm:$0xff]
    %v1680 = vld [vmem:[#allocation7 + $0x1520] sm:$0xff]
    %v1681 = vld [vmem:[#allocation7 + $0x1528] sm:$0xff]
    %v1682 = vld [vmem:[#allocation7 + $0x1530] sm:$0xff]
    %v1683 = vld [vmem:[#allocation7 + $0x1538] sm:$0xff]
    %v1684 = vld [vmem:[#allocation7 + $0x1540] sm:$0xff]
    %v1685 = vld [vmem:[#allocation7 + $0x1548] sm:$0xff]
    %v1686 = vld [vmem:[#allocation7 + $0x1550] sm:$0xff]
    %v1687 = vld [vmem:[#allocation7 + $0x1558] sm:$0xff]
    %v1688 = vld [vmem:[#allocation7 + $0x1560] sm:$0xff]
    %v1689 = vld [vmem:[#allocation7 + $0x1568] sm:$0xff]
    %v1690 = vld [vmem:[#allocation7 + $0x1570] sm:$0xff]
    %v1691 = vld [vmem:[#allocation7 + $0x1578] sm:$0xff]
    %v1692 = vld [vmem:[#allocation7 + $0x1580] sm:$0xff]
    %v1693 = vld [vmem:[#allocation7 + $0x1588] sm:$0xff]
    %v1694 = vld [vmem:[#allocation7 + $0x1590] sm:$0xff]
    %v1695 = vld [vmem:[#allocation7 + $0x1598] sm:$0xff]
    %v1696 = vld [vmem:[#allocation7 + $0x15a0] sm:$0xff]
    %v1697 = vld [vmem:[#allocation7 + $0x15a8] sm:$0xff]
    %v1698 = vld [vmem:[#allocation7 + $0x15b0] sm:$0xff]
    %v1699 = vld [vmem:[#allocation7 + $0x15b8] sm:$0xff]
    %v1700 = vld [vmem:[#allocation7 + $0x15c0] sm:$0xff]
    %v1701 = vld [vmem:[#allocation7 + $0x15c8] sm:$0xff]
    %v1702 = vld [vmem:[#allocation7 + $0x15d0] sm:$0xff]
    %v1703 = vld [vmem:[#allocation7 + $0x15d8] sm:$0xff]
    %v1704 = vld [vmem:[#allocation7 + $0x15e0] sm:$0xff]
    %v1705 = vld [vmem:[#allocation7 + $0x15e8] sm:$0xff]
    %v1706 = vld [vmem:[#allocation7 + $0x15f0] sm:$0xff]
    %v1707 = vld [vmem:[#allocation7 + $0x15f8] sm:$0xff]
    %v1708 = vld [vmem:[#allocation7 + $0x1600] sm:$0xff]
    %v1709 = vld [vmem:[#allocation7 + $0x1608] sm:$0xff]
    %v1710 = vld [vmem:[#allocation7 + $0x1610] sm:$0xff]
    %v1711 = vld [vmem:[#allocation7 + $0x1618] sm:$0xff]
    %v1712 = vld [vmem:[#allocation7 + $0x1620] sm:$0xff]
    %v1713 = vld [vmem:[#allocation7 + $0x1628] sm:$0xff]
    %v1714 = vld [vmem:[#allocation7 + $0x1630] sm:$0xff]
    %v1715 = vld [vmem:[#allocation7 + $0x1638] sm:$0xff]
    %v1716 = vld [vmem:[#allocation7 + $0x1640] sm:$0xff]
    %v1717 = vld [vmem:[#allocation7 + $0x1648] sm:$0xff]
    %v1718 = vld [vmem:[#allocation7 + $0x1650] sm:$0xff]
    %v1719 = vld [vmem:[#allocation7 + $0x1658] sm:$0xff]
    %v1720 = vld [vmem:[#allocation7 + $0x1660] sm:$0xff]
    %v1721 = vld [vmem:[#allocation7 + $0x1668] sm:$0xff]
    %v1722 = vld [vmem:[#allocation7 + $0x1670] sm:$0xff]
    %v1723 = vld [vmem:[#allocation7 + $0x1678] sm:$0xff]
    %v1724 = vld [vmem:[#allocation7 + $0x1680] sm:$0xff]
    %v1725 = vld [vmem:[#allocation7 + $0x1688] sm:$0xff]
    %v1726 = vld [vmem:[#allocation7 + $0x1690] sm:$0xff]
    %v1727 = vld [vmem:[#allocation7 + $0x1698] sm:$0xff]
    %v1728 = vld [vmem:[#allocation7 + $0x16a0] sm:$0xff]
    %v1729 = vld [vmem:[#allocation7 + $0x16a8] sm:$0xff]
    %v1730 = vld [vmem:[#allocation7 + $0x16b0] sm:$0xff]
    %v1731 = vld [vmem:[#allocation7 + $0x16b8] sm:$0xff]
    %v1732 = vld [vmem:[#allocation7 + $0x16c0] sm:$0xff]
    %v1733 = vld [vmem:[#allocation7 + $0x16c8] sm:$0xff]
    %v1734 = vld [vmem:[#allocation7 + $0x16d0] sm:$0xff]
    %v1735 = vld [vmem:[#allocation7 + $0x16d8] sm:$0xff]
    %v1736 = vld [vmem:[#allocation7 + $0x16e0] sm:$0xff]
    %v1737 = vld [vmem:[#allocation7 + $0x16e8] sm:$0xff]
    %v1738 = vld [vmem:[#allocation7 + $0x16f0] sm:$0xff]
    %v1739 = vld [vmem:[#allocation7 + $0x16f8] sm:$0xff]
    %v1740 = vld [vmem:[#allocation7 + $0x1700] sm:$0xff]
    %v1741 = vld [vmem:[#allocation7 + $0x1708] sm:$0xff]
    %v1742 = vld [vmem:[#allocation7 + $0x1710] sm:$0xff]
    %v1743 = vld [vmem:[#allocation7 + $0x1718] sm:$0xff]
    %v1744 = vld [vmem:[#allocation7 + $0x1720] sm:$0xff]
    %v1745 = vld [vmem:[#allocation7 + $0x1728] sm:$0xff]
    %v1746 = vld [vmem:[#allocation7 + $0x1730] sm:$0xff]
    %v1747 = vld [vmem:[#allocation7 + $0x1738] sm:$0xff]
    %v1748 = vld [vmem:[#allocation7 + $0x1740] sm:$0xff]
    %v1749 = vld [vmem:[#allocation7 + $0x1748] sm:$0xff]
    %v1750 = vld [vmem:[#allocation7 + $0x1750] sm:$0xff]
    %v1751 = vld [vmem:[#allocation7 + $0x1758] sm:$0xff]
    %v1752 = vld [vmem:[#allocation7 + $0x1760] sm:$0xff]
    %v1753 = vld [vmem:[#allocation7 + $0x1768] sm:$0xff]
    %v1754 = vld [vmem:[#allocation7 + $0x1770] sm:$0xff]
    %v1755 = vld [vmem:[#allocation7 + $0x1778] sm:$0xff]
    %v1756 = vld [vmem:[#allocation7 + $0x1780] sm:$0xff]
    %v1757 = vld [vmem:[#allocation7 + $0x1788] sm:$0xff]
    %v1758 = vld [vmem:[#allocation7 + $0x1790] sm:$0xff]
    %v1759 = vld [vmem:[#allocation7 + $0x1798] sm:$0xff]
    %v1760 = vld [vmem:[#allocation7 + $0x17a0] sm:$0xff]
    %v1761 = vld [vmem:[#allocation7 + $0x17a8] sm:$0xff]
    %v1762 = vld [vmem:[#allocation7 + $0x17b0] sm:$0xff]
    %v1763 = vld [vmem:[#allocation7 + $0x17b8] sm:$0xff]
    %v1764 = vld [vmem:[#allocation7 + $0x17c0] sm:$0xff]
    %v1765 = vld [vmem:[#allocation7 + $0x17c8] sm:$0xff]
    %v1766 = vld [vmem:[#allocation7 + $0x17d0] sm:$0xff]
    %v1767 = vld [vmem:[#allocation7 + $0x17d8] sm:$0xff]
    %v1768 = vld [vmem:[#allocation7 + $0x17e0] sm:$0xff]
    %v1769 = vld [vmem:[#allocation7 + $0x17e8] sm:$0xff]
    %v1770 = vld [vmem:[#allocation7 + $0x17f0] sm:$0xff]
    %v1771 = vld [vmem:[#allocation7 + $0x17f8] sm:$0xff]
    %v1772 = vld [vmem:[#allocation7 + $0x1800] sm:$0xff]
    %v1773 = vld [vmem:[#allocation7 + $0x1808] sm:$0xff]
    %v1774 = vld [vmem:[#allocation7 + $0x1810] sm:$0xff]
    %v1775 = vld [vmem:[#allocation7 + $0x1818] sm:$0xff]
    %v1776 = vld [vmem:[#allocation7 + $0x1820] sm:$0xff]
    %v1777 = vld [vmem:[#allocation7 + $0x1828] sm:$0xff]
    %v1778 = vld [vmem:[#allocation7 + $0x1830] sm:$0xff]
    %v1779 = vld [vmem:[#allocation7 + $0x1838] sm:$0xff]
    %v1780 = vld [vmem:[#allocation7 + $0x1840] sm:$0xff]
    %v1781 = vld [vmem:[#allocation7 + $0x1848] sm:$0xff]
    %v1782 = vld [vmem:[#allocation7 + $0x1850] sm:$0xff]
    %v1783 = vld [vmem:[#allocation7 + $0x1858] sm:$0xff]
    %v1784 = vld [vmem:[#allocation7 + $0x1860] sm:$0xff]
    %v1785 = vld [vmem:[#allocation7 + $0x1868] sm:$0xff]
    %v1786 = vld [vmem:[#allocation7 + $0x1870] sm:$0xff]
    %v1787 = vld [vmem:[#allocation7 + $0x1878] sm:$0xff]
    %v1788 = vld [vmem:[#allocation7 + $0x1880] sm:$0xff]
    %v1789 = vld [vmem:[#allocation7 + $0x1888] sm:$0xff]
    %v1790 = vld [vmem:[#allocation7 + $0x1890] sm:$0xff]
    %v1791 = vld [vmem:[#allocation7 + $0x1898] sm:$0xff]
    %v1792 = vld [vmem:[#allocation7 + $0x18a0] sm:$0xff]
    %v1793 = vld [vmem:[#allocation7 + $0x18a8] sm:$0xff]
    %v1794 = vld [vmem:[#allocation7 + $0x18b0] sm:$0xff]
    %v1795 = vld [vmem:[#allocation7 + $0x18b8] sm:$0xff]
    %v1796 = vld [vmem:[#allocation7 + $0x18c0] sm:$0xff]
    %v1797 = vld [vmem:[#allocation7 + $0x18c8] sm:$0xff]
    %v1798 = vld [vmem:[#allocation7 + $0x18d0] sm:$0xff]
    %v1799 = vld [vmem:[#allocation7 + $0x18d8] sm:$0xff]
    %v1800 = vld [vmem:[#allocation7 + $0x18e0] sm:$0xff]
    %v1801 = vld [vmem:[#allocation7 + $0x18e8] sm:$0xff]
    %v1802 = vld [vmem:[#allocation7 + $0x18f0] sm:$0xff]
    %v1803 = vld [vmem:[#allocation7 + $0x18f8] sm:$0xff]
    %v1804 = vld [vmem:[#allocation7 + $0x1900] sm:$0xff]
    %v1805 = vld [vmem:[#allocation7 + $0x1908] sm:$0xff]
    %v1806 = vld [vmem:[#allocation7 + $0x1910] sm:$0xff]
    %v1807 = vld [vmem:[#allocation7 + $0x1918] sm:$0xff]
    %v1808 = vld [vmem:[#allocation7 + $0x1920] sm:$0xff]
    %v1809 = vld [vmem:[#allocation7 + $0x1928] sm:$0xff]
    %v1810 = vld [vmem:[#allocation7 + $0x1930] sm:$0xff]
    %v1811 = vld [vmem:[#allocation7 + $0x1938] sm:$0xff]
    %v1812 = vld [vmem:[#allocation7 + $0x1940] sm:$0xff]
    %v1813 = vld [vmem:[#allocation7 + $0x1948] sm:$0xff]
    %v1814 = vld [vmem:[#allocation7 + $0x1950] sm:$0xff]
    %v1815 = vld [vmem:[#allocation7 + $0x1958] sm:$0xff]
    %v1816 = vld [vmem:[#allocation7 + $0x1960] sm:$0xff]
    %v1817 = vld [vmem:[#allocation7 + $0x1968] sm:$0xff]
    %v1818 = vld [vmem:[#allocation7 + $0x1970] sm:$0xff]
    %v1819 = vld [vmem:[#allocation7 + $0x1978] sm:$0xff]
    %v1820 = vld [vmem:[#allocation7 + $0x1980] sm:$0xff]
    %v1821 = vld [vmem:[#allocation7 + $0x1988] sm:$0xff]
    %v1822 = vld [vmem:[#allocation7 + $0x1990] sm:$0xff]
    %v1823 = vld [vmem:[#allocation7 + $0x1998] sm:$0xff]
    %v1824 = vld [vmem:[#allocation7 + $0x19a0] sm:$0xff]
    %v1825 = vld [vmem:[#allocation7 + $0x19a8] sm:$0xff]
    %v1826 = vld [vmem:[#allocation7 + $0x19b0] sm:$0xff]
    %v1827 = vld [vmem:[#allocation7 + $0x19b8] sm:$0xff]
    %v1828 = vld [vmem:[#allocation7 + $0x19c0] sm:$0xff]
    %v1829 = vld [vmem:[#allocation7 + $0x19c8] sm:$0xff]
    %v1830 = vld [vmem:[#allocation7 + $0x19d0] sm:$0xff]
    %v1831 = vld [vmem:[#allocation7 + $0x19d8] sm:$0xff]
    %v1832 = vld [vmem:[#allocation7 + $0x19e0] sm:$0xff]
    %v1833 = vld [vmem:[#allocation7 + $0x19e8] sm:$0xff]
    %v1834 = vld [vmem:[#allocation7 + $0x19f0] sm:$0xff]
    %v1835 = vld [vmem:[#allocation7 + $0x19f8] sm:$0xff]
    %v1836 = vld [vmem:[#allocation7 + $0x1a00] sm:$0xff]
    %v1837 = vld [vmem:[#allocation7 + $0x1a08] sm:$0xff]
    %v1838 = vld [vmem:[#allocation7 + $0x1a10] sm:$0xff]
    %v1839 = vld [vmem:[#allocation7 + $0x1a18] sm:$0xff]
    %v1840 = vld [vmem:[#allocation7 + $0x1a20] sm:$0xff]
    %v1841 = vld [vmem:[#allocation7 + $0x1a28] sm:$0xff]
    %v1842 = vld [vmem:[#allocation7 + $0x1a30] sm:$0xff]
    %v1843 = vld [vmem:[#allocation7 + $0x1a38] sm:$0xff]
    %v1844 = vld [vmem:[#allocation7 + $0x1a40] sm:$0xff]
    %v1845 = vld [vmem:[#allocation7 + $0x1a48] sm:$0xff]
    %v1846 = vld [vmem:[#allocation7 + $0x1a50] sm:$0xff]
    %v1847 = vld [vmem:[#allocation7 + $0x1a58] sm:$0xff]
    %v1848 = vld [vmem:[#allocation7 + $0x1a60] sm:$0xff]
    %v1849 = vld [vmem:[#allocation7 + $0x1a68] sm:$0xff]
    %v1850 = vld [vmem:[#allocation7 + $0x1a70] sm:$0xff]
    %v1851 = vld [vmem:[#allocation7 + $0x1a78] sm:$0xff]
    %v1852 = vld [vmem:[#allocation7 + $0x1a80] sm:$0xff]
    %v1853 = vld [vmem:[#allocation7 + $0x1a88] sm:$0xff]
    %v1854 = vld [vmem:[#allocation7 + $0x1a90] sm:$0xff]
    %v1855 = vld [vmem:[#allocation7 + $0x1a98] sm:$0xff]
    %v1856 = vld [vmem:[#allocation7 + $0x1aa0] sm:$0xff]
    %v1857 = vld [vmem:[#allocation7 + $0x1aa8] sm:$0xff]
    %v1858 = vld [vmem:[#allocation7 + $0x1ab0] sm:$0xff]
    %v1859 = vld [vmem:[#allocation7 + $0x1ab8] sm:$0xff]
    %v1860 = vld [vmem:[#allocation7 + $0x1ac0] sm:$0xff]
    %v1861 = vld [vmem:[#allocation7 + $0x1ac8] sm:$0xff]
    %v1862 = vld [vmem:[#allocation7 + $0x1ad0] sm:$0xff]
    %v1863 = vld [vmem:[#allocation7 + $0x1ad8] sm:$0xff]
    %v1864 = vld [vmem:[#allocation7 + $0x1ae0] sm:$0xff]
    %v1865 = vld [vmem:[#allocation7 + $0x1ae8] sm:$0xff]
    %v1866 = vld [vmem:[#allocation7 + $0x1af0] sm:$0xff]
    %v1867 = vld [vmem:[#allocation7 + $0x1af8] sm:$0xff]
    %v1868 = vld [vmem:[#allocation7 + $0x1b00] sm:$0xff]
    %v1869 = vld [vmem:[#allocation7 + $0x1b08] sm:$0xff]
    %v1870 = vld [vmem:[#allocation7 + $0x1b10] sm:$0xff]
    %v1871 = vld [vmem:[#allocation7 + $0x1b18] sm:$0xff]
    %v1872 = vld [vmem:[#allocation7 + $0x1b20] sm:$0xff]
    %v1873 = vld [vmem:[#allocation7 + $0x1b28] sm:$0xff]
    %v1874 = vld [vmem:[#allocation7 + $0x1b30] sm:$0xff]
    %v1875 = vld [vmem:[#allocation7 + $0x1b38] sm:$0xff]
    %v1876 = vld [vmem:[#allocation7 + $0x1b40] sm:$0xff]
    %v1877 = vld [vmem:[#allocation7 + $0x1b48] sm:$0xff]
    %v1878 = vld [vmem:[#allocation7 + $0x1b50] sm:$0xff]
    %v1879 = vld [vmem:[#allocation7 + $0x1b58] sm:$0xff]
    %v1880 = vld [vmem:[#allocation7 + $0x1b60] sm:$0xff]
    %v1881 = vld [vmem:[#allocation7 + $0x1b68] sm:$0xff]
    %v1882 = vld [vmem:[#allocation7 + $0x1b70] sm:$0xff]
    %v1883 = vld [vmem:[#allocation7 + $0x1b78] sm:$0xff]
    %v1884 = vld [vmem:[#allocation7 + $0x1b80] sm:$0xff]
    %v1885 = vld [vmem:[#allocation7 + $0x1b88] sm:$0xff]
    %v1886 = vld [vmem:[#allocation7 + $0x1b90] sm:$0xff]
    %v1887 = vld [vmem:[#allocation7 + $0x1b98] sm:$0xff]
    %v1888 = vld [vmem:[#allocation7 + $0x1ba0] sm:$0xff]
    %v1889 = vld [vmem:[#allocation7 + $0x1ba8] sm:$0xff]
    %v1890 = vld [vmem:[#allocation7 + $0x1bb0] sm:$0xff]
    %v1891 = vld [vmem:[#allocation7 + $0x1bb8] sm:$0xff]
    %v1892 = vld [vmem:[#allocation7 + $0x1bc0] sm:$0xff]
    %v1893 = vld [vmem:[#allocation7 + $0x1bc8] sm:$0xff]
    %v1894 = vld [vmem:[#allocation7 + $0x1bd0] sm:$0xff]
    %v1895 = vld [vmem:[#allocation7 + $0x1bd8] sm:$0xff]
    %v1896 = vld [vmem:[#allocation7 + $0x1be0] sm:$0xff]
    %v1897 = vld [vmem:[#allocation7 + $0x1be8] sm:$0xff]
    %v1898 = vld [vmem:[#allocation7 + $0x1bf0] sm:$0xff]
    %v1899 = vld [vmem:[#allocation7 + $0x1bf8] sm:$0xff]
    %v1900 = vld [vmem:[#allocation7 + $0x1c00] sm:$0xff]
    %v1901 = vld [vmem:[#allocation7 + $0x1c08] sm:$0xff]
    %v1902 = vld [vmem:[#allocation7 + $0x1c10] sm:$0xff]
    %v1903 = vld [vmem:[#allocation7 + $0x1c18] sm:$0xff]
    %v1904 = vld [vmem:[#allocation7 + $0x1c20] sm:$0xff]
    %v1905 = vld [vmem:[#allocation7 + $0x1c28] sm:$0xff]
    %v1906 = vld [vmem:[#allocation7 + $0x1c30] sm:$0xff]
    %v1907 = vld [vmem:[#allocation7 + $0x1c38] sm:$0xff]
    %v1908 = vld [vmem:[#allocation7 + $0x1c40] sm:$0xff]
    %v1909 = vld [vmem:[#allocation7 + $0x1c48] sm:$0xff]
    %v1910 = vld [vmem:[#allocation7 + $0x1c50] sm:$0xff]
    %v1911 = vld [vmem:[#allocation7 + $0x1c58] sm:$0xff]
    %v1912 = vld [vmem:[#allocation7 + $0x1c60] sm:$0xff]
    %v1913 = vld [vmem:[#allocation7 + $0x1c68] sm:$0xff]
    %v1914 = vld [vmem:[#allocation7 + $0x1c70] sm:$0xff]
    %v1915 = vld [vmem:[#allocation7 + $0x1c78] sm:$0xff]
    %v1916 = vld [vmem:[#allocation7 + $0x1c80] sm:$0xff]
    %v1917 = vld [vmem:[#allocation7 + $0x1c88] sm:$0xff]
    %v1918 = vld [vmem:[#allocation7 + $0x1c90] sm:$0xff]
    %v1919 = vld [vmem:[#allocation7 + $0x1c98] sm:$0xff]
    %v1920 = vld [vmem:[#allocation7 + $0x1ca0] sm:$0xff]
    %v1921 = vld [vmem:[#allocation7 + $0x1ca8] sm:$0xff]
    %v1922 = vld [vmem:[#allocation7 + $0x1cb0] sm:$0xff]
    %v1923 = vld [vmem:[#allocation7 + $0x1cb8] sm:$0xff]
    %v1924 = vld [vmem:[#allocation7 + $0x1cc0] sm:$0xff]
    %v1925 = vld [vmem:[#allocation7 + $0x1cc8] sm:$0xff]
    %v1926 = vld [vmem:[#allocation7 + $0x1cd0] sm:$0xff]
    %v1927 = vld [vmem:[#allocation7 + $0x1cd8] sm:$0xff]
    %v1928 = vld [vmem:[#allocation7 + $0x1ce0] sm:$0xff]
    %v1929 = vld [vmem:[#allocation7 + $0x1ce8] sm:$0xff]
    %v1930 = vld [vmem:[#allocation7 + $0x1cf0] sm:$0xff]
    %v1931 = vld [vmem:[#allocation7 + $0x1cf8] sm:$0xff]
    %v1932 = vld [vmem:[#allocation7 + $0x1d00] sm:$0xff]
    %v1933 = vld [vmem:[#allocation7 + $0x1d08] sm:$0xff]
    %v1934 = vld [vmem:[#allocation7 + $0x1d10] sm:$0xff]
    %v1935 = vld [vmem:[#allocation7 + $0x1d18] sm:$0xff]
    %v1936 = vld [vmem:[#allocation7 + $0x1d20] sm:$0xff]
    %v1937 = vld [vmem:[#allocation7 + $0x1d28] sm:$0xff]
    %v1938 = vld [vmem:[#allocation7 + $0x1d30] sm:$0xff]
    %v1939 = vld [vmem:[#allocation7 + $0x1d38] sm:$0xff]
    %v1940 = vld [vmem:[#allocation7 + $0x1d40] sm:$0xff]
    %v1941 = vld [vmem:[#allocation7 + $0x1d48] sm:$0xff]
    %v1942 = vld [vmem:[#allocation7 + $0x1d50] sm:$0xff]
    %v1943 = vld [vmem:[#allocation7 + $0x1d58] sm:$0xff]
    %v1944 = vld [vmem:[#allocation7 + $0x1d60] sm:$0xff]
    %v1945 = vld [vmem:[#allocation7 + $0x1d68] sm:$0xff]
    %v1946 = vld [vmem:[#allocation7 + $0x1d70] sm:$0xff]
    %v1947 = vld [vmem:[#allocation7 + $0x1d78] sm:$0xff]
    %v1948 = vld [vmem:[#allocation7 + $0x1d80] sm:$0xff]
    %v1949 = vld [vmem:[#allocation7 + $0x1d88] sm:$0xff]
    %v1950 = vld [vmem:[#allocation7 + $0x1d90] sm:$0xff]
    %v1951 = vld [vmem:[#allocation7 + $0x1d98] sm:$0xff]
    %v1952 = vld [vmem:[#allocation7 + $0x1da0] sm:$0xff]
    %v1953 = vld [vmem:[#allocation7 + $0x1da8] sm:$0xff]
    %v1954 = vld [vmem:[#allocation7 + $0x1db0] sm:$0xff]
    %v1955 = vld [vmem:[#allocation7 + $0x1db8] sm:$0xff]
    %v1956 = vld [vmem:[#allocation7 + $0x1dc0] sm:$0xff]
    %v1957 = vld [vmem:[#allocation7 + $0x1dc8] sm:$0xff]
    %v1958 = vld [vmem:[#allocation7 + $0x1dd0] sm:$0xff]
    %v1959 = vld [vmem:[#allocation7 + $0x1dd8] sm:$0xff]
    %v1960 = vld [vmem:[#allocation7 + $0x1de0] sm:$0xff]
    %v1961 = vld [vmem:[#allocation7 + $0x1de8] sm:$0xff]
    %v1962 = vld [vmem:[#allocation7 + $0x1df0] sm:$0xff]
    %v1963 = vld [vmem:[#allocation7 + $0x1df8] sm:$0xff]
    %v1964 = vld [vmem:[#allocation7 + $0x1e00] sm:$0xff]
    %v1965 = vld [vmem:[#allocation7 + $0x1e08] sm:$0xff]
    %v1966 = vld [vmem:[#allocation7 + $0x1e10] sm:$0xff]
    %v1967 = vld [vmem:[#allocation7 + $0x1e18] sm:$0xff]
    %v1968 = vld [vmem:[#allocation7 + $0x1e20] sm:$0xff]
    %v1969 = vld [vmem:[#allocation7 + $0x1e28] sm:$0xff]
    %v1970 = vld [vmem:[#allocation7 + $0x1e30] sm:$0xff]
    %v1971 = vld [vmem:[#allocation7 + $0x1e38] sm:$0xff]
    %v1972 = vld [vmem:[#allocation7 + $0x1e40] sm:$0xff]
    %v1973 = vld [vmem:[#allocation7 + $0x1e48] sm:$0xff]
    %v1974 = vld [vmem:[#allocation7 + $0x1e50] sm:$0xff]
    %v1975 = vld [vmem:[#allocation7 + $0x1e58] sm:$0xff]
    %v1976 = vld [vmem:[#allocation7 + $0x1e60] sm:$0xff]
    %v1977 = vld [vmem:[#allocation7 + $0x1e68] sm:$0xff]
    %v1978 = vld [vmem:[#allocation7 + $0x1e70] sm:$0xff]
    %v1979 = vld [vmem:[#allocation7 + $0x1e78] sm:$0xff]
    %v1980 = vld [vmem:[#allocation7 + $0x1e80] sm:$0xff]
    %v1981 = vld [vmem:[#allocation7 + $0x1e88] sm:$0xff]
    %v1982 = vld [vmem:[#allocation7 + $0x1e90] sm:$0xff]
    %v1983 = vld [vmem:[#allocation7 + $0x1e98] sm:$0xff]
    %v1984 = vld [vmem:[#allocation7 + $0x1ea0] sm:$0xff]
    %v1985 = vld [vmem:[#allocation7 + $0x1ea8] sm:$0xff]
    %v1986 = vld [vmem:[#allocation7 + $0x1eb0] sm:$0xff]
    %v1987 = vld [vmem:[#allocation7 + $0x1eb8] sm:$0xff]
    %v1988 = vld [vmem:[#allocation7 + $0x1ec0] sm:$0xff]
    %v1989 = vld [vmem:[#allocation7 + $0x1ec8] sm:$0xff]
    %v1990 = vld [vmem:[#allocation7 + $0x1ed0] sm:$0xff]
    %v1991 = vld [vmem:[#allocation7 + $0x1ed8] sm:$0xff]
    %v1992 = vld [vmem:[#allocation7 + $0x1ee0] sm:$0xff]
    %v1993 = vld [vmem:[#allocation7 + $0x1ee8] sm:$0xff]
    %v1994 = vld [vmem:[#allocation7 + $0x1ef0] sm:$0xff]
    %v1995 = vld [vmem:[#allocation7 + $0x1ef8] sm:$0xff]
    %v1996 = vld [vmem:[#allocation7 + $0x1f00] sm:$0xff]
    %v1997 = vld [vmem:[#allocation7 + $0x1f08] sm:$0xff]
    %v1998 = vld [vmem:[#allocation7 + $0x1f10] sm:$0xff]
    %v1999 = vld [vmem:[#allocation7 + $0x1f18] sm:$0xff]
    %v2000 = vld [vmem:[#allocation7 + $0x1f20] sm:$0xff]
    %v2001 = vld [vmem:[#allocation7 + $0x1f28] sm:$0xff]
    %v2002 = vld [vmem:[#allocation7 + $0x1f30] sm:$0xff]
    %v2003 = vld [vmem:[#allocation7 + $0x1f38] sm:$0xff]
    %v2004 = vld [vmem:[#allocation7 + $0x1f40] sm:$0xff]
    %v2005 = vld [vmem:[#allocation7 + $0x1f48] sm:$0xff]
    %v2006 = vld [vmem:[#allocation7 + $0x1f50] sm:$0xff]
    %v2007 = vld [vmem:[#allocation7 + $0x1f58] sm:$0xff]
    %v2008 = vld [vmem:[#allocation7 + $0x1f60] sm:$0xff]
    %v2009 = vld [vmem:[#allocation7 + $0x1f68] sm:$0xff]
    %v2010 = vld [vmem:[#allocation7 + $0x1f70] sm:$0xff]
    %v2011 = vld [vmem:[#allocation7 + $0x1f78] sm:$0xff]
    %v2012 = vld [vmem:[#allocation7 + $0x1f80] sm:$0xff]
    %v2013 = vld [vmem:[#allocation7 + $0x1f88] sm:$0xff]
    %v2014 = vld [vmem:[#allocation7 + $0x1f90] sm:$0xff]
    %v2015 = vld [vmem:[#allocation7 + $0x1f98] sm:$0xff]
    %v2016 = vld [vmem:[#allocation7 + $0x1fa0] sm:$0xff]
    %v2017 = vld [vmem:[#allocation7 + $0x1fa8] sm:$0xff]
    %v2018 = vld [vmem:[#allocation7 + $0x1fb0] sm:$0xff]
    %v2019 = vld [vmem:[#allocation7 + $0x1fb8] sm:$0xff]
    %v2020 = vld [vmem:[#allocation7 + $0x1fc0] sm:$0xff]
    %v2021 = vld [vmem:[#allocation7 + $0x1fc8] sm:$0xff]
    %v2022 = vld [vmem:[#allocation7 + $0x1fd0] sm:$0xff]
    %v2023 = vld [vmem:[#allocation7 + $0x1fd8] sm:$0xff]
    %v2024 = vld [vmem:[#allocation7 + $0x1fe0] sm:$0xff]
    %v2025 = vld [vmem:[#allocation7 + $0x1fe8] sm:$0xff]
    %v2026 = vld [vmem:[#allocation7 + $0x1ff0] sm:$0xff]
    %v2027 = vld [vmem:[#allocation7 + $0x1ff8] sm:$0xff]
    %v2028 = vld [vmem:[#allocation8] sm:$0xff]
    %v2030 = vperm.slane %v2028, 0
    %v2031 = vperm.slane %v2028, 1
    %v2032 = vperm.slane %v2028, 2
    %v2033 = vperm.slane %v2028, 3
    %v2034 = vperm.slane %v2028, 4
    %v2035 = vperm.slane %v2028, 5
    %v2036 = vperm.slane %v2028, 6
    %v2037 = vperm.slane %v2028, 7
    %v3070 = vunpack.c.l.b16 %v1004
    %v3071 = vunpack.c.h.b16 %v1004
    %v3072 = vunpack.c.l.b16 %v1005
    %v3073 = vunpack.c.h.b16 %v1005
    %v3074 = vunpack.c.l.b16 %v1006
    %v3075 = vunpack.c.h.b16 %v1006
    %v3076 = vunpack.c.l.b16 %v1007
    %v3077 = vunpack.c.h.b16 %v1007
    %v3078 = vunpack.c.l.b16 %v1008
    %v3079 = vunpack.c.h.b16 %v1008
    %v3080 = vunpack.c.l.b16 %v1009
    %v3081 = vunpack.c.h.b16 %v1009
    %v3082 = vunpack.c.l.b16 %v1010
    %v3083 = vunpack.c.h.b16 %v1010
    %v3084 = vunpack.c.l.b16 %v1011
    %v3085 = vunpack.c.h.b16 %v1011
    %v3086 = vunpack.c.l.b16 %v1012
    %v3087 = vunpack.c.h.b16 %v1012
    %v3088 = vunpack.c.l.b16 %v1013
    %v3089 = vunpack.c.h.b16 %v1013
    %v3090 = vunpack.c.l.b16 %v1014
    %v3091 = vunpack.c.h.b16 %v1014
    %v3092 = vunpack.c.l.b16 %v1015
    %v3093 = vunpack.c.h.b16 %v1015
    %v3094 = vunpack.c.l.b16 %v1016
    %v3095 = vunpack.c.h.b16 %v1016
    %v3096 = vunpack.c.l.b16 %v1017
    %v3097 = vunpack.c.h.b16 %v1017
    %v3098 = vunpack.c.l.b16 %v1018
    %v3099 = vunpack.c.h.b16 %v1018
    %v3100 = vunpack.c.l.b16 %v1019
    %v3101 = vunpack.c.h.b16 %v1019
    %v3102 = vunpack.c.l.b16 %v1020
    %v3103 = vunpack.c.h.b16 %v1020
    %v3104 = vunpack.c.l.b16 %v1021
    %v3105 = vunpack.c.h.b16 %v1021
    %v3106 = vunpack.c.l.b16 %v1022
    %v3107 = vunpack.c.h.b16 %v1022
    %v3108 = vunpack.c.l.b16 %v1023
    %v3109 = vunpack.c.h.b16 %v1023
    %v3110 = vunpack.c.l.b16 %v1024
    %v3111 = vunpack.c.h.b16 %v1024
    %v3112 = vunpack.c.l.b16 %v1025
    %v3113 = vunpack.c.h.b16 %v1025
    %v3114 = vunpack.c.l.b16 %v1026
    %v3115 = vunpack.c.h.b16 %v1026
    %v3116 = vunpack.c.l.b16 %v1027
    %v3117 = vunpack.c.h.b16 %v1027
    %v3118 = vunpack.c.l.b16 %v1028
    %v3119 = vunpack.c.h.b16 %v1028
    %v3120 = vunpack.c.l.b16 %v1029
    %v3121 = vunpack.c.h.b16 %v1029
    %v3122 = vunpack.c.l.b16 %v1030
    %v3123 = vunpack.c.h.b16 %v1030
    %v3124 = vunpack.c.l.b16 %v1031
    %v3125 = vunpack.c.h.b16 %v1031
    %v3126 = vunpack.c.l.b16 %v1032
    %v3127 = vunpack.c.h.b16 %v1032
    %v3128 = vunpack.c.l.b16 %v1033
    %v3129 = vunpack.c.h.b16 %v1033
    %v3130 = vunpack.c.l.b16 %v1034
    %v3131 = vunpack.c.h.b16 %v1034
    %v3132 = vunpack.c.l.b16 %v1035
    %v3133 = vunpack.c.h.b16 %v1035
    %v3134 = vunpack.c.l.b16 %v1036
    %v3135 = vunpack.c.h.b16 %v1036
    %v3136 = vunpack.c.l.b16 %v1037
    %v3137 = vunpack.c.h.b16 %v1037
    %v3138 = vunpack.c.l.b16 %v1038
    %v3139 = vunpack.c.h.b16 %v1038
    %v3140 = vunpack.c.l.b16 %v1039
    %v3141 = vunpack.c.h.b16 %v1039
    %v3142 = vunpack.c.l.b16 %v1040
    %v3143 = vunpack.c.h.b16 %v1040
    %v3144 = vunpack.c.l.b16 %v1041
    %v3145 = vunpack.c.h.b16 %v1041
    %v3146 = vunpack.c.l.b16 %v1042
    %v3147 = vunpack.c.h.b16 %v1042
    %v3148 = vunpack.c.l.b16 %v1043
    %v3149 = vunpack.c.h.b16 %v1043
    %v3150 = vunpack.c.l.b16 %v1044
    %v3151 = vunpack.c.h.b16 %v1044
    %v3152 = vunpack.c.l.b16 %v1045
    %v3153 = vunpack.c.h.b16 %v1045
    %v3154 = vunpack.c.l.b16 %v1046
    %v3155 = vunpack.c.h.b16 %v1046
    %v3156 = vunpack.c.l.b16 %v1047
    %v3157 = vunpack.c.h.b16 %v1047
    %v3158 = vunpack.c.l.b16 %v1048
    %v3159 = vunpack.c.h.b16 %v1048
    %v3160 = vunpack.c.l.b16 %v1049
    %v3161 = vunpack.c.h.b16 %v1049
    %v3162 = vunpack.c.l.b16 %v1050
    %v3163 = vunpack.c.h.b16 %v1050
    %v3164 = vunpack.c.l.b16 %v1051
    %v3165 = vunpack.c.h.b16 %v1051
    %v3166 = vunpack.c.l.b16 %v1052
    %v3167 = vunpack.c.h.b16 %v1052
    %v3168 = vunpack.c.l.b16 %v1053
    %v3169 = vunpack.c.h.b16 %v1053
    %v3170 = vunpack.c.l.b16 %v1054
    %v3171 = vunpack.c.h.b16 %v1054
    %v3172 = vunpack.c.l.b16 %v1055
    %v3173 = vunpack.c.h.b16 %v1055
    %v3174 = vunpack.c.l.b16 %v1056
    %v3175 = vunpack.c.h.b16 %v1056
    %v3176 = vunpack.c.l.b16 %v1057
    %v3177 = vunpack.c.h.b16 %v1057
    %v3178 = vunpack.c.l.b16 %v1058
    %v3179 = vunpack.c.h.b16 %v1058
    %v3180 = vunpack.c.l.b16 %v1059
    %v3181 = vunpack.c.h.b16 %v1059
    %v3182 = vunpack.c.l.b16 %v1060
    %v3183 = vunpack.c.h.b16 %v1060
    %v3184 = vunpack.c.l.b16 %v1061
    %v3185 = vunpack.c.h.b16 %v1061
    %v3186 = vunpack.c.l.b16 %v1062
    %v3187 = vunpack.c.h.b16 %v1062
    %v3188 = vunpack.c.l.b16 %v1063
    %v3189 = vunpack.c.h.b16 %v1063
    %v3190 = vunpack.c.l.b16 %v1064
    %v3191 = vunpack.c.h.b16 %v1064
    %v3192 = vunpack.c.l.b16 %v1065
    %v3193 = vunpack.c.h.b16 %v1065
    %v3194 = vunpack.c.l.b16 %v1066
    %v3195 = vunpack.c.h.b16 %v1066
    %v3196 = vunpack.c.l.b16 %v1067
    %v3197 = vunpack.c.h.b16 %v1067
    %v3198 = vunpack.c.l.b16 %v1068
    %v3199 = vunpack.c.h.b16 %v1068
    %v3200 = vunpack.c.l.b16 %v1069
    %v3201 = vunpack.c.h.b16 %v1069
    %v3202 = vunpack.c.l.b16 %v1070
    %v3203 = vunpack.c.h.b16 %v1070
    %v3204 = vunpack.c.l.b16 %v1071
    %v3205 = vunpack.c.h.b16 %v1071
    %v3206 = vunpack.c.l.b16 %v1072
    %v3207 = vunpack.c.h.b16 %v1072
    %v3208 = vunpack.c.l.b16 %v1073
    %v3209 = vunpack.c.h.b16 %v1073
    %v3210 = vunpack.c.l.b16 %v1074
    %v3211 = vunpack.c.h.b16 %v1074
    %v3212 = vunpack.c.l.b16 %v1075
    %v3213 = vunpack.c.h.b16 %v1075
    %v3214 = vunpack.c.l.b16 %v1076
    %v3215 = vunpack.c.h.b16 %v1076
    %v3216 = vunpack.c.l.b16 %v1077
    %v3217 = vunpack.c.h.b16 %v1077
    %v3218 = vunpack.c.l.b16 %v1078
    %v3219 = vunpack.c.h.b16 %v1078
    %v3220 = vunpack.c.l.b16 %v1079
    %v3221 = vunpack.c.h.b16 %v1079
    %v3222 = vunpack.c.l.b16 %v1080
    %v3223 = vunpack.c.h.b16 %v1080
    %v3224 = vunpack.c.l.b16 %v1081
    %v3225 = vunpack.c.h.b16 %v1081
    %v3226 = vunpack.c.l.b16 %v1082
    %v3227 = vunpack.c.h.b16 %v1082
    %v3228 = vunpack.c.l.b16 %v1083
    %v3229 = vunpack.c.h.b16 %v1083
    %v3230 = vunpack.c.l.b16 %v1084
    %v3231 = vunpack.c.h.b16 %v1084
    %v3232 = vunpack.c.l.b16 %v1085
    %v3233 = vunpack.c.h.b16 %v1085
    %v3234 = vunpack.c.l.b16 %v1086
    %v3235 = vunpack.c.h.b16 %v1086
    %v3236 = vunpack.c.l.b16 %v1087
    %v3237 = vunpack.c.h.b16 %v1087
    %v3238 = vunpack.c.l.b16 %v1088
    %v3239 = vunpack.c.h.b16 %v1088
    %v3240 = vunpack.c.l.b16 %v1089
    %v3241 = vunpack.c.h.b16 %v1089
    %v3242 = vunpack.c.l.b16 %v1090
    %v3243 = vunpack.c.h.b16 %v1090
    %v3244 = vunpack.c.l.b16 %v1091
    %v3245 = vunpack.c.h.b16 %v1091
    %v3246 = vunpack.c.l.b16 %v1092
    %v3247 = vunpack.c.h.b16 %v1092
    %v3248 = vunpack.c.l.b16 %v1093
    %v3249 = vunpack.c.h.b16 %v1093
    %v3250 = vunpack.c.l.b16 %v1094
    %v3251 = vunpack.c.h.b16 %v1094
    %v3252 = vunpack.c.l.b16 %v1095
    %v3253 = vunpack.c.h.b16 %v1095
    %v3254 = vunpack.c.l.b16 %v1096
    %v3255 = vunpack.c.h.b16 %v1096
    %v3256 = vunpack.c.l.b16 %v1097
    %v3257 = vunpack.c.h.b16 %v1097
    %v3258 = vunpack.c.l.b16 %v1098
    %v3259 = vunpack.c.h.b16 %v1098
    %v3260 = vunpack.c.l.b16 %v1099
    %v3261 = vunpack.c.h.b16 %v1099
    %v3262 = vunpack.c.l.b16 %v1100
    %v3263 = vunpack.c.h.b16 %v1100
    %v3264 = vunpack.c.l.b16 %v1101
    %v3265 = vunpack.c.h.b16 %v1101
    %v3266 = vunpack.c.l.b16 %v1102
    %v3267 = vunpack.c.h.b16 %v1102
    %v3268 = vunpack.c.l.b16 %v1103
    %v3269 = vunpack.c.h.b16 %v1103
    %v3270 = vunpack.c.l.b16 %v1104
    %v3271 = vunpack.c.h.b16 %v1104
    %v3272 = vunpack.c.l.b16 %v1105
    %v3273 = vunpack.c.h.b16 %v1105
    %v3274 = vunpack.c.l.b16 %v1106
    %v3275 = vunpack.c.h.b16 %v1106
    %v3276 = vunpack.c.l.b16 %v1107
    %v3277 = vunpack.c.h.b16 %v1107
    %v3278 = vunpack.c.l.b16 %v1108
    %v3279 = vunpack.c.h.b16 %v1108
    %v3280 = vunpack.c.l.b16 %v1109
    %v3281 = vunpack.c.h.b16 %v1109
    %v3282 = vunpack.c.l.b16 %v1110
    %v3283 = vunpack.c.h.b16 %v1110
    %v3284 = vunpack.c.l.b16 %v1111
    %v3285 = vunpack.c.h.b16 %v1111
    %v3286 = vunpack.c.l.b16 %v1112
    %v3287 = vunpack.c.h.b16 %v1112
    %v3288 = vunpack.c.l.b16 %v1113
    %v3289 = vunpack.c.h.b16 %v1113
    %v3290 = vunpack.c.l.b16 %v1114
    %v3291 = vunpack.c.h.b16 %v1114
    %v3292 = vunpack.c.l.b16 %v1115
    %v3293 = vunpack.c.h.b16 %v1115
    %v3294 = vunpack.c.l.b16 %v1116
    %v3295 = vunpack.c.h.b16 %v1116
    %v3296 = vunpack.c.l.b16 %v1117
    %v3297 = vunpack.c.h.b16 %v1117
    %v3298 = vunpack.c.l.b16 %v1118
    %v3299 = vunpack.c.h.b16 %v1118
    %v3300 = vunpack.c.l.b16 %v1119
    %v3301 = vunpack.c.h.b16 %v1119
    %v3302 = vunpack.c.l.b16 %v1120
    %v3303 = vunpack.c.h.b16 %v1120
    %v3304 = vunpack.c.l.b16 %v1121
    %v3305 = vunpack.c.h.b16 %v1121
    %v3306 = vunpack.c.l.b16 %v1122
    %v3307 = vunpack.c.h.b16 %v1122
    %v3308 = vunpack.c.l.b16 %v1123
    %v3309 = vunpack.c.h.b16 %v1123
    %v3310 = vunpack.c.l.b16 %v1124
    %v3311 = vunpack.c.h.b16 %v1124
    %v3312 = vunpack.c.l.b16 %v1125
    %v3313 = vunpack.c.h.b16 %v1125
    %v3314 = vunpack.c.l.b16 %v1126
    %v3315 = vunpack.c.h.b16 %v1126
    %v3316 = vunpack.c.l.b16 %v1127
    %v3317 = vunpack.c.h.b16 %v1127
    %v3318 = vunpack.c.l.b16 %v1128
    %v3319 = vunpack.c.h.b16 %v1128
    %v3320 = vunpack.c.l.b16 %v1129
    %v3321 = vunpack.c.h.b16 %v1129
    %v3322 = vunpack.c.l.b16 %v1130
    %v3323 = vunpack.c.h.b16 %v1130
    %v3324 = vunpack.c.l.b16 %v1131
    %v3325 = vunpack.c.h.b16 %v1131
    %v3326 = vunpack.c.l.b16 %v1132
    %v3327 = vunpack.c.h.b16 %v1132
    %v3328 = vunpack.c.l.b16 %v1133
    %v3329 = vunpack.c.h.b16 %v1133
    %v3330 = vunpack.c.l.b16 %v1134
    %v3331 = vunpack.c.h.b16 %v1134
    %v3332 = vunpack.c.l.b16 %v1135
    %v3333 = vunpack.c.h.b16 %v1135
    %v3334 = vunpack.c.l.b16 %v1136
    %v3335 = vunpack.c.h.b16 %v1136
    %v3336 = vunpack.c.l.b16 %v1137
    %v3337 = vunpack.c.h.b16 %v1137
    %v3338 = vunpack.c.l.b16 %v1138
    %v3339 = vunpack.c.h.b16 %v1138
    %v3340 = vunpack.c.l.b16 %v1139
    %v3341 = vunpack.c.h.b16 %v1139
    %v3342 = vunpack.c.l.b16 %v1140
    %v3343 = vunpack.c.h.b16 %v1140
    %v3344 = vunpack.c.l.b16 %v1141
    %v3345 = vunpack.c.h.b16 %v1141
    %v3346 = vunpack.c.l.b16 %v1142
    %v3347 = vunpack.c.h.b16 %v1142
    %v3348 = vunpack.c.l.b16 %v1143
    %v3349 = vunpack.c.h.b16 %v1143
    %v3350 = vunpack.c.l.b16 %v1144
    %v3351 = vunpack.c.h.b16 %v1144
    %v3352 = vunpack.c.l.b16 %v1145
    %v3353 = vunpack.c.h.b16 %v1145
    %v3354 = vunpack.c.l.b16 %v1146
    %v3355 = vunpack.c.h.b16 %v1146
    %v3356 = vunpack.c.l.b16 %v1147
    %v3357 = vunpack.c.h.b16 %v1147
    %v3358 = vunpack.c.l.b16 %v1148
    %v3359 = vunpack.c.h.b16 %v1148
    %v3360 = vunpack.c.l.b16 %v1149
    %v3361 = vunpack.c.h.b16 %v1149
    %v3362 = vunpack.c.l.b16 %v1150
    %v3363 = vunpack.c.h.b16 %v1150
    %v3364 = vunpack.c.l.b16 %v1151
    %v3365 = vunpack.c.h.b16 %v1151
    %v3366 = vunpack.c.l.b16 %v1152
    %v3367 = vunpack.c.h.b16 %v1152
    %v3368 = vunpack.c.l.b16 %v1153
    %v3369 = vunpack.c.h.b16 %v1153
    %v3370 = vunpack.c.l.b16 %v1154
    %v3371 = vunpack.c.h.b16 %v1154
    %v3372 = vunpack.c.l.b16 %v1155
    %v3373 = vunpack.c.h.b16 %v1155
    %v3374 = vunpack.c.l.b16 %v1156
    %v3375 = vunpack.c.h.b16 %v1156
    %v3376 = vunpack.c.l.b16 %v1157
    %v3377 = vunpack.c.h.b16 %v1157
    %v3378 = vunpack.c.l.b16 %v1158
    %v3379 = vunpack.c.h.b16 %v1158
    %v3380 = vunpack.c.l.b16 %v1159
    %v3381 = vunpack.c.h.b16 %v1159
    %v3382 = vunpack.c.l.b16 %v1160
    %v3383 = vunpack.c.h.b16 %v1160
    %v3384 = vunpack.c.l.b16 %v1161
    %v3385 = vunpack.c.h.b16 %v1161
    %v3386 = vunpack.c.l.b16 %v1162
    %v3387 = vunpack.c.h.b16 %v1162
    %v3388 = vunpack.c.l.b16 %v1163
    %v3389 = vunpack.c.h.b16 %v1163
    %v3390 = vunpack.c.l.b16 %v1164
    %v3391 = vunpack.c.h.b16 %v1164
    %v3392 = vunpack.c.l.b16 %v1165
    %v3393 = vunpack.c.h.b16 %v1165
    %v3394 = vunpack.c.l.b16 %v1166
    %v3395 = vunpack.c.h.b16 %v1166
    %v3396 = vunpack.c.l.b16 %v1167
    %v3397 = vunpack.c.h.b16 %v1167
    %v3398 = vunpack.c.l.b16 %v1168
    %v3399 = vunpack.c.h.b16 %v1168
    %v3400 = vunpack.c.l.b16 %v1169
    %v3401 = vunpack.c.h.b16 %v1169
    %v3402 = vunpack.c.l.b16 %v1170
    %v3403 = vunpack.c.h.b16 %v1170
    %v3404 = vunpack.c.l.b16 %v1171
    %v3405 = vunpack.c.h.b16 %v1171
    %v3406 = vunpack.c.l.b16 %v1172
    %v3407 = vunpack.c.h.b16 %v1172
    %v3408 = vunpack.c.l.b16 %v1173
    %v3409 = vunpack.c.h.b16 %v1173
    %v3410 = vunpack.c.l.b16 %v1174
    %v3411 = vunpack.c.h.b16 %v1174
    %v3412 = vunpack.c.l.b16 %v1175
    %v3413 = vunpack.c.h.b16 %v1175
    %v3414 = vunpack.c.l.b16 %v1176
    %v3415 = vunpack.c.h.b16 %v1176
    %v3416 = vunpack.c.l.b16 %v1177
    %v3417 = vunpack.c.h.b16 %v1177
    %v3418 = vunpack.c.l.b16 %v1178
    %v3419 = vunpack.c.h.b16 %v1178
    %v3420 = vunpack.c.l.b16 %v1179
    %v3421 = vunpack.c.h.b16 %v1179
    %v3422 = vunpack.c.l.b16 %v1180
    %v3423 = vunpack.c.h.b16 %v1180
    %v3424 = vunpack.c.l.b16 %v1181
    %v3425 = vunpack.c.h.b16 %v1181
    %v3426 = vunpack.c.l.b16 %v1182
    %v3427 = vunpack.c.h.b16 %v1182
    %v3428 = vunpack.c.l.b16 %v1183
    %v3429 = vunpack.c.h.b16 %v1183
    %v3430 = vunpack.c.l.b16 %v1184
    %v3431 = vunpack.c.h.b16 %v1184
    %v3432 = vunpack.c.l.b16 %v1185
    %v3433 = vunpack.c.h.b16 %v1185
    %v3434 = vunpack.c.l.b16 %v1186
    %v3435 = vunpack.c.h.b16 %v1186
    %v3436 = vunpack.c.l.b16 %v1187
    %v3437 = vunpack.c.h.b16 %v1187
    %v3438 = vunpack.c.l.b16 %v1188
    %v3439 = vunpack.c.h.b16 %v1188
    %v3440 = vunpack.c.l.b16 %v1189
    %v3441 = vunpack.c.h.b16 %v1189
    %v3442 = vunpack.c.l.b16 %v1190
    %v3443 = vunpack.c.h.b16 %v1190
    %v3444 = vunpack.c.l.b16 %v1191
    %v3445 = vunpack.c.h.b16 %v1191
    %v3446 = vunpack.c.l.b16 %v1192
    %v3447 = vunpack.c.h.b16 %v1192
    %v3448 = vunpack.c.l.b16 %v1193
    %v3449 = vunpack.c.h.b16 %v1193
    %v3450 = vunpack.c.l.b16 %v1194
    %v3451 = vunpack.c.h.b16 %v1194
    %v3452 = vunpack.c.l.b16 %v1195
    %v3453 = vunpack.c.h.b16 %v1195
    %v3454 = vunpack.c.l.b16 %v1196
    %v3455 = vunpack.c.h.b16 %v1196
    %v3456 = vunpack.c.l.b16 %v1197
    %v3457 = vunpack.c.h.b16 %v1197
    %v3458 = vunpack.c.l.b16 %v1198
    %v3459 = vunpack.c.h.b16 %v1198
    %v3460 = vunpack.c.l.b16 %v1199
    %v3461 = vunpack.c.h.b16 %v1199
    %v3462 = vunpack.c.l.b16 %v1200
    %v3463 = vunpack.c.h.b16 %v1200
    %v3464 = vunpack.c.l.b16 %v1201
    %v3465 = vunpack.c.h.b16 %v1201
    %v3466 = vunpack.c.l.b16 %v1202
    %v3467 = vunpack.c.h.b16 %v1202
    %v3468 = vunpack.c.l.b16 %v1203
    %v3469 = vunpack.c.h.b16 %v1203
    %v3470 = vunpack.c.l.b16 %v1204
    %v3471 = vunpack.c.h.b16 %v1204
    %v3472 = vunpack.c.l.b16 %v1205
    %v3473 = vunpack.c.h.b16 %v1205
    %v3474 = vunpack.c.l.b16 %v1206
    %v3475 = vunpack.c.h.b16 %v1206
    %v3476 = vunpack.c.l.b16 %v1207
    %v3477 = vunpack.c.h.b16 %v1207
    %v3478 = vunpack.c.l.b16 %v1208
    %v3479 = vunpack.c.h.b16 %v1208
    %v3480 = vunpack.c.l.b16 %v1209
    %v3481 = vunpack.c.h.b16 %v1209
    %v3482 = vunpack.c.l.b16 %v1210
    %v3483 = vunpack.c.h.b16 %v1210
    %v3484 = vunpack.c.l.b16 %v1211
    %v3485 = vunpack.c.h.b16 %v1211
    %v3486 = vunpack.c.l.b16 %v1212
    %v3487 = vunpack.c.h.b16 %v1212
    %v3488 = vunpack.c.l.b16 %v1213
    %v3489 = vunpack.c.h.b16 %v1213
    %v3490 = vunpack.c.l.b16 %v1214
    %v3491 = vunpack.c.h.b16 %v1214
    %v3492 = vunpack.c.l.b16 %v1215
    %v3493 = vunpack.c.h.b16 %v1215
    %v3494 = vunpack.c.l.b16 %v1216
    %v3495 = vunpack.c.h.b16 %v1216
    %v3496 = vunpack.c.l.b16 %v1217
    %v3497 = vunpack.c.h.b16 %v1217
    %v3498 = vunpack.c.l.b16 %v1218
    %v3499 = vunpack.c.h.b16 %v1218
    %v3500 = vunpack.c.l.b16 %v1219
    %v3501 = vunpack.c.h.b16 %v1219
    %v3502 = vunpack.c.l.b16 %v1220
    %v3503 = vunpack.c.h.b16 %v1220
    %v3504 = vunpack.c.l.b16 %v1221
    %v3505 = vunpack.c.h.b16 %v1221
    %v3506 = vunpack.c.l.b16 %v1222
    %v3507 = vunpack.c.h.b16 %v1222
    %v3508 = vunpack.c.l.b16 %v1223
    %v3509 = vunpack.c.h.b16 %v1223
    %v3510 = vunpack.c.l.b16 %v1224
    %v3511 = vunpack.c.h.b16 %v1224
    %v3512 = vunpack.c.l.b16 %v1225
    %v3513 = vunpack.c.h.b16 %v1225
    %v3514 = vunpack.c.l.b16 %v1226
    %v3515 = vunpack.c.h.b16 %v1226
    %v3516 = vunpack.c.l.b16 %v1227
    %v3517 = vunpack.c.h.b16 %v1227
    %v3518 = vunpack.c.l.b16 %v1228
    %v3519 = vunpack.c.h.b16 %v1228
    %v3520 = vunpack.c.l.b16 %v1229
    %v3521 = vunpack.c.h.b16 %v1229
    %v3522 = vunpack.c.l.b16 %v1230
    %v3523 = vunpack.c.h.b16 %v1230
    %v3524 = vunpack.c.l.b16 %v1231
    %v3525 = vunpack.c.h.b16 %v1231
    %v3526 = vunpack.c.l.b16 %v1232
    %v3527 = vunpack.c.h.b16 %v1232
    %v3528 = vunpack.c.l.b16 %v1233
    %v3529 = vunpack.c.h.b16 %v1233
    %v3530 = vunpack.c.l.b16 %v1234
    %v3531 = vunpack.c.h.b16 %v1234
    %v3532 = vunpack.c.l.b16 %v1235
    %v3533 = vunpack.c.h.b16 %v1235
    %v3534 = vunpack.c.l.b16 %v1236
    %v3535 = vunpack.c.h.b16 %v1236
    %v3536 = vunpack.c.l.b16 %v1237
    %v3537 = vunpack.c.h.b16 %v1237
    %v3538 = vunpack.c.l.b16 %v1238
    %v3539 = vunpack.c.h.b16 %v1238
    %v3540 = vunpack.c.l.b16 %v1239
    %v3541 = vunpack.c.h.b16 %v1239
    %v3542 = vunpack.c.l.b16 %v1240
    %v3543 = vunpack.c.h.b16 %v1240
    %v3544 = vunpack.c.l.b16 %v1241
    %v3545 = vunpack.c.h.b16 %v1241
    %v3546 = vunpack.c.l.b16 %v1242
    %v3547 = vunpack.c.h.b16 %v1242
    %v3548 = vunpack.c.l.b16 %v1243
    %v3549 = vunpack.c.h.b16 %v1243
    %v3550 = vunpack.c.l.b16 %v1244
    %v3551 = vunpack.c.h.b16 %v1244
    %v3552 = vunpack.c.l.b16 %v1245
    %v3553 = vunpack.c.h.b16 %v1245
    %v3554 = vunpack.c.l.b16 %v1246
    %v3555 = vunpack.c.h.b16 %v1246
    %v3556 = vunpack.c.l.b16 %v1247
    %v3557 = vunpack.c.h.b16 %v1247
    %v3558 = vunpack.c.l.b16 %v1248
    %v3559 = vunpack.c.h.b16 %v1248
    %v3560 = vunpack.c.l.b16 %v1249
    %v3561 = vunpack.c.h.b16 %v1249
    %v3562 = vunpack.c.l.b16 %v1250
    %v3563 = vunpack.c.h.b16 %v1250
    %v3564 = vunpack.c.l.b16 %v1251
    %v3565 = vunpack.c.h.b16 %v1251
    %v3566 = vunpack.c.l.b16 %v1252
    %v3567 = vunpack.c.h.b16 %v1252
    %v3568 = vunpack.c.l.b16 %v1253
    %v3569 = vunpack.c.h.b16 %v1253
    %v3570 = vunpack.c.l.b16 %v1254
    %v3571 = vunpack.c.h.b16 %v1254
    %v3572 = vunpack.c.l.b16 %v1255
    %v3573 = vunpack.c.h.b16 %v1255
    %v3574 = vunpack.c.l.b16 %v1256
    %v3575 = vunpack.c.h.b16 %v1256
    %v3576 = vunpack.c.l.b16 %v1257
    %v3577 = vunpack.c.h.b16 %v1257
    %v3578 = vunpack.c.l.b16 %v1258
    %v3579 = vunpack.c.h.b16 %v1258
    %v3580 = vunpack.c.l.b16 %v1259
    %v3581 = vunpack.c.h.b16 %v1259
    %v3582 = vunpack.c.l.b16 %v1260
    %v3583 = vunpack.c.h.b16 %v1260
    %v3584 = vunpack.c.l.b16 %v1261
    %v3585 = vunpack.c.h.b16 %v1261
    %v3586 = vunpack.c.l.b16 %v1262
    %v3587 = vunpack.c.h.b16 %v1262
    %v3588 = vunpack.c.l.b16 %v1263
    %v3589 = vunpack.c.h.b16 %v1263
    %v3590 = vunpack.c.l.b16 %v1264
    %v3591 = vunpack.c.h.b16 %v1264
    %v3592 = vunpack.c.l.b16 %v1265
    %v3593 = vunpack.c.h.b16 %v1265
    %v3594 = vunpack.c.l.b16 %v1266
    %v3595 = vunpack.c.h.b16 %v1266
    %v3596 = vunpack.c.l.b16 %v1267
    %v3597 = vunpack.c.h.b16 %v1267
    %v3598 = vunpack.c.l.b16 %v1268
    %v3599 = vunpack.c.h.b16 %v1268
    %v3600 = vunpack.c.l.b16 %v1269
    %v3601 = vunpack.c.h.b16 %v1269
    %v3602 = vunpack.c.l.b16 %v1270
    %v3603 = vunpack.c.h.b16 %v1270
    %v3604 = vunpack.c.l.b16 %v1271
    %v3605 = vunpack.c.h.b16 %v1271
    %v3606 = vunpack.c.l.b16 %v1272
    %v3607 = vunpack.c.h.b16 %v1272
    %v3608 = vunpack.c.l.b16 %v1273
    %v3609 = vunpack.c.h.b16 %v1273
    %v3610 = vunpack.c.l.b16 %v1274
    %v3611 = vunpack.c.h.b16 %v1274
    %v3612 = vunpack.c.l.b16 %v1275
    %v3613 = vunpack.c.h.b16 %v1275
    %v3614 = vunpack.c.l.b16 %v1276
    %v3615 = vunpack.c.h.b16 %v1276
    %v3616 = vunpack.c.l.b16 %v1277
    %v3617 = vunpack.c.h.b16 %v1277
    %v3618 = vunpack.c.l.b16 %v1278
    %v3619 = vunpack.c.h.b16 %v1278
    %v3620 = vunpack.c.l.b16 %v1279
    %v3621 = vunpack.c.h.b16 %v1279
    %v3622 = vunpack.c.l.b16 %v1280
    %v3623 = vunpack.c.h.b16 %v1280
    %v3624 = vunpack.c.l.b16 %v1281
    %v3625 = vunpack.c.h.b16 %v1281
    %v3626 = vunpack.c.l.b16 %v1282
    %v3627 = vunpack.c.h.b16 %v1282
    %v3628 = vunpack.c.l.b16 %v1283
    %v3629 = vunpack.c.h.b16 %v1283
    %v3630 = vunpack.c.l.b16 %v1284
    %v3631 = vunpack.c.h.b16 %v1284
    %v3632 = vunpack.c.l.b16 %v1285
    %v3633 = vunpack.c.h.b16 %v1285
    %v3634 = vunpack.c.l.b16 %v1286
    %v3635 = vunpack.c.h.b16 %v1286
    %v3636 = vunpack.c.l.b16 %v1287
    %v3637 = vunpack.c.h.b16 %v1287
    %v3638 = vunpack.c.l.b16 %v1288
    %v3639 = vunpack.c.h.b16 %v1288
    %v3640 = vunpack.c.l.b16 %v1289
    %v3641 = vunpack.c.h.b16 %v1289
    %v3642 = vunpack.c.l.b16 %v1290
    %v3643 = vunpack.c.h.b16 %v1290
    %v3644 = vunpack.c.l.b16 %v1291
    %v3645 = vunpack.c.h.b16 %v1291
    %v3646 = vunpack.c.l.b16 %v1292
    %v3647 = vunpack.c.h.b16 %v1292
    %v3648 = vunpack.c.l.b16 %v1293
    %v3649 = vunpack.c.h.b16 %v1293
    %v3650 = vunpack.c.l.b16 %v1294
    %v3651 = vunpack.c.h.b16 %v1294
    %v3652 = vunpack.c.l.b16 %v1295
    %v3653 = vunpack.c.h.b16 %v1295
    %v3654 = vunpack.c.l.b16 %v1296
    %v3655 = vunpack.c.h.b16 %v1296
    %v3656 = vunpack.c.l.b16 %v1297
    %v3657 = vunpack.c.h.b16 %v1297
    %v3658 = vunpack.c.l.b16 %v1298
    %v3659 = vunpack.c.h.b16 %v1298
    %v3660 = vunpack.c.l.b16 %v1299
    %v3661 = vunpack.c.h.b16 %v1299
    %v3662 = vunpack.c.l.b16 %v1300
    %v3663 = vunpack.c.h.b16 %v1300
    %v3664 = vunpack.c.l.b16 %v1301
    %v3665 = vunpack.c.h.b16 %v1301
    %v3666 = vunpack.c.l.b16 %v1302
    %v3667 = vunpack.c.h.b16 %v1302
    %v3668 = vunpack.c.l.b16 %v1303
    %v3669 = vunpack.c.h.b16 %v1303
    %v3670 = vunpack.c.l.b16 %v1304
    %v3671 = vunpack.c.h.b16 %v1304
    %v3672 = vunpack.c.l.b16 %v1305
    %v3673 = vunpack.c.h.b16 %v1305
    %v3674 = vunpack.c.l.b16 %v1306
    %v3675 = vunpack.c.h.b16 %v1306
    %v3676 = vunpack.c.l.b16 %v1307
    %v3677 = vunpack.c.h.b16 %v1307
    %v3678 = vunpack.c.l.b16 %v1308
    %v3679 = vunpack.c.h.b16 %v1308
    %v3680 = vunpack.c.l.b16 %v1309
    %v3681 = vunpack.c.h.b16 %v1309
    %v3682 = vunpack.c.l.b16 %v1310
    %v3683 = vunpack.c.h.b16 %v1310
    %v3684 = vunpack.c.l.b16 %v1311
    %v3685 = vunpack.c.h.b16 %v1311
    %v3686 = vunpack.c.l.b16 %v1312
    %v3687 = vunpack.c.h.b16 %v1312
    %v3688 = vunpack.c.l.b16 %v1313
    %v3689 = vunpack.c.h.b16 %v1313
    %v3690 = vunpack.c.l.b16 %v1314
    %v3691 = vunpack.c.h.b16 %v1314
    %v3692 = vunpack.c.l.b16 %v1315
    %v3693 = vunpack.c.h.b16 %v1315
    %v3694 = vunpack.c.l.b16 %v1316
    %v3695 = vunpack.c.h.b16 %v1316
    %v3696 = vunpack.c.l.b16 %v1317
    %v3697 = vunpack.c.h.b16 %v1317
    %v3698 = vunpack.c.l.b16 %v1318
    %v3699 = vunpack.c.h.b16 %v1318
    %v3700 = vunpack.c.l.b16 %v1319
    %v3701 = vunpack.c.h.b16 %v1319
    %v3702 = vunpack.c.l.b16 %v1320
    %v3703 = vunpack.c.h.b16 %v1320
    %v3704 = vunpack.c.l.b16 %v1321
    %v3705 = vunpack.c.h.b16 %v1321
    %v3706 = vunpack.c.l.b16 %v1322
    %v3707 = vunpack.c.h.b16 %v1322
    %v3708 = vunpack.c.l.b16 %v1323
    %v3709 = vunpack.c.h.b16 %v1323
    %v3710 = vunpack.c.l.b16 %v1324
    %v3711 = vunpack.c.h.b16 %v1324
    %v3712 = vunpack.c.l.b16 %v1325
    %v3713 = vunpack.c.h.b16 %v1325
    %v3714 = vunpack.c.l.b16 %v1326
    %v3715 = vunpack.c.h.b16 %v1326
    %v3716 = vunpack.c.l.b16 %v1327
    %v3717 = vunpack.c.h.b16 %v1327
    %v3718 = vunpack.c.l.b16 %v1328
    %v3719 = vunpack.c.h.b16 %v1328
    %v3720 = vunpack.c.l.b16 %v1329
    %v3721 = vunpack.c.h.b16 %v1329
    %v3722 = vunpack.c.l.b16 %v1330
    %v3723 = vunpack.c.h.b16 %v1330
    %v3724 = vunpack.c.l.b16 %v1331
    %v3725 = vunpack.c.h.b16 %v1331
    %v3726 = vunpack.c.l.b16 %v1332
    %v3727 = vunpack.c.h.b16 %v1332
    %v3728 = vunpack.c.l.b16 %v1333
    %v3729 = vunpack.c.h.b16 %v1333
    %v3730 = vunpack.c.l.b16 %v1334
    %v3731 = vunpack.c.h.b16 %v1334
    %v3732 = vunpack.c.l.b16 %v1335
    %v3733 = vunpack.c.h.b16 %v1335
    %v3734 = vunpack.c.l.b16 %v1336
    %v3735 = vunpack.c.h.b16 %v1336
    %v3736 = vunpack.c.l.b16 %v1337
    %v3737 = vunpack.c.h.b16 %v1337
    %v3738 = vunpack.c.l.b16 %v1338
    %v3739 = vunpack.c.h.b16 %v1338
    %v3740 = vunpack.c.l.b16 %v1339
    %v3741 = vunpack.c.h.b16 %v1339
    %v3742 = vunpack.c.l.b16 %v1340
    %v3743 = vunpack.c.h.b16 %v1340
    %v3744 = vunpack.c.l.b16 %v1341
    %v3745 = vunpack.c.h.b16 %v1341
    %v3746 = vunpack.c.l.b16 %v1342
    %v3747 = vunpack.c.h.b16 %v1342
    %v3748 = vunpack.c.l.b16 %v1343
    %v3749 = vunpack.c.h.b16 %v1343
    %v3750 = vunpack.c.l.b16 %v1344
    %v3751 = vunpack.c.h.b16 %v1344
    %v3752 = vunpack.c.l.b16 %v1345
    %v3753 = vunpack.c.h.b16 %v1345
    %v3754 = vunpack.c.l.b16 %v1346
    %v3755 = vunpack.c.h.b16 %v1346
    %v3756 = vunpack.c.l.b16 %v1347
    %v3757 = vunpack.c.h.b16 %v1347
    %v3758 = vunpack.c.l.b16 %v1348
    %v3759 = vunpack.c.h.b16 %v1348
    %v3760 = vunpack.c.l.b16 %v1349
    %v3761 = vunpack.c.h.b16 %v1349
    %v3762 = vunpack.c.l.b16 %v1350
    %v3763 = vunpack.c.h.b16 %v1350
    %v3764 = vunpack.c.l.b16 %v1351
    %v3765 = vunpack.c.h.b16 %v1351
    %v3766 = vunpack.c.l.b16 %v1352
    %v3767 = vunpack.c.h.b16 %v1352
    %v3768 = vunpack.c.l.b16 %v1353
    %v3769 = vunpack.c.h.b16 %v1353
    %v3770 = vunpack.c.l.b16 %v1354
    %v3771 = vunpack.c.h.b16 %v1354
    %v3772 = vunpack.c.l.b16 %v1355
    %v3773 = vunpack.c.h.b16 %v1355
    %v3774 = vunpack.c.l.b16 %v1356
    %v3775 = vunpack.c.h.b16 %v1356
    %v3776 = vunpack.c.l.b16 %v1357
    %v3777 = vunpack.c.h.b16 %v1357
    %v3778 = vunpack.c.l.b16 %v1358
    %v3779 = vunpack.c.h.b16 %v1358
    %v3780 = vunpack.c.l.b16 %v1359
    %v3781 = vunpack.c.h.b16 %v1359
    %v3782 = vunpack.c.l.b16 %v1360
    %v3783 = vunpack.c.h.b16 %v1360
    %v3784 = vunpack.c.l.b16 %v1361
    %v3785 = vunpack.c.h.b16 %v1361
    %v3786 = vunpack.c.l.b16 %v1362
    %v3787 = vunpack.c.h.b16 %v1362
    %v3788 = vunpack.c.l.b16 %v1363
    %v3789 = vunpack.c.h.b16 %v1363
    %v3790 = vunpack.c.l.b16 %v1364
    %v3791 = vunpack.c.h.b16 %v1364
    %v3792 = vunpack.c.l.b16 %v1365
    %v3793 = vunpack.c.h.b16 %v1365
    %v3794 = vunpack.c.l.b16 %v1366
    %v3795 = vunpack.c.h.b16 %v1366
    %v3796 = vunpack.c.l.b16 %v1367
    %v3797 = vunpack.c.h.b16 %v1367
    %v3798 = vunpack.c.l.b16 %v1368
    %v3799 = vunpack.c.h.b16 %v1368
    %v3800 = vunpack.c.l.b16 %v1369
    %v3801 = vunpack.c.h.b16 %v1369
    %v3802 = vunpack.c.l.b16 %v1370
    %v3803 = vunpack.c.h.b16 %v1370
    %v3804 = vunpack.c.l.b16 %v1371
    %v3805 = vunpack.c.h.b16 %v1371
    %v3806 = vunpack.c.l.b16 %v1372
    %v3807 = vunpack.c.h.b16 %v1372
    %v3808 = vunpack.c.l.b16 %v1373
    %v3809 = vunpack.c.h.b16 %v1373
    %v3810 = vunpack.c.l.b16 %v1374
    %v3811 = vunpack.c.h.b16 %v1374
    %v3812 = vunpack.c.l.b16 %v1375
    %v3813 = vunpack.c.h.b16 %v1375
    %v3814 = vunpack.c.l.b16 %v1376
    %v3815 = vunpack.c.h.b16 %v1376
    %v3816 = vunpack.c.l.b16 %v1377
    %v3817 = vunpack.c.h.b16 %v1377
    %v3818 = vunpack.c.l.b16 %v1378
    %v3819 = vunpack.c.h.b16 %v1378
    %v3820 = vunpack.c.l.b16 %v1379
    %v3821 = vunpack.c.h.b16 %v1379
    %v3822 = vunpack.c.l.b16 %v1380
    %v3823 = vunpack.c.h.b16 %v1380
    %v3824 = vunpack.c.l.b16 %v1381
    %v3825 = vunpack.c.h.b16 %v1381
    %v3826 = vunpack.c.l.b16 %v1382
    %v3827 = vunpack.c.h.b16 %v1382
    %v3828 = vunpack.c.l.b16 %v1383
    %v3829 = vunpack.c.h.b16 %v1383
    %v3830 = vunpack.c.l.b16 %v1384
    %v3831 = vunpack.c.h.b16 %v1384
    %v3832 = vunpack.c.l.b16 %v1385
    %v3833 = vunpack.c.h.b16 %v1385
    %v3834 = vunpack.c.l.b16 %v1386
    %v3835 = vunpack.c.h.b16 %v1386
    %v3836 = vunpack.c.l.b16 %v1387
    %v3837 = vunpack.c.h.b16 %v1387
    %v3838 = vunpack.c.l.b16 %v1388
    %v3839 = vunpack.c.h.b16 %v1388
    %v3840 = vunpack.c.l.b16 %v1389
    %v3841 = vunpack.c.h.b16 %v1389
    %v3842 = vunpack.c.l.b16 %v1390
    %v3843 = vunpack.c.h.b16 %v1390
    %v3844 = vunpack.c.l.b16 %v1391
    %v3845 = vunpack.c.h.b16 %v1391
    %v3846 = vunpack.c.l.b16 %v1392
    %v3847 = vunpack.c.h.b16 %v1392
    %v3848 = vunpack.c.l.b16 %v1393
    %v3849 = vunpack.c.h.b16 %v1393
    %v3850 = vunpack.c.l.b16 %v1394
    %v3851 = vunpack.c.h.b16 %v1394
    %v3852 = vunpack.c.l.b16 %v1395
    %v3853 = vunpack.c.h.b16 %v1395
    %v3854 = vunpack.c.l.b16 %v1396
    %v3855 = vunpack.c.h.b16 %v1396
    %v3856 = vunpack.c.l.b16 %v1397
    %v3857 = vunpack.c.h.b16 %v1397
    %v3858 = vunpack.c.l.b16 %v1398
    %v3859 = vunpack.c.h.b16 %v1398
    %v3860 = vunpack.c.l.b16 %v1399
    %v3861 = vunpack.c.h.b16 %v1399
    %v3862 = vunpack.c.l.b16 %v1400
    %v3863 = vunpack.c.h.b16 %v1400
    %v3864 = vunpack.c.l.b16 %v1401
    %v3865 = vunpack.c.h.b16 %v1401
    %v3866 = vunpack.c.l.b16 %v1402
    %v3867 = vunpack.c.h.b16 %v1402
    %v3868 = vunpack.c.l.b16 %v1403
    %v3869 = vunpack.c.h.b16 %v1403
    %v3870 = vunpack.c.l.b16 %v1404
    %v3871 = vunpack.c.h.b16 %v1404
    %v3872 = vunpack.c.l.b16 %v1405
    %v3873 = vunpack.c.h.b16 %v1405
    %v3874 = vunpack.c.l.b16 %v1406
    %v3875 = vunpack.c.h.b16 %v1406
    %v3876 = vunpack.c.l.b16 %v1407
    %v3877 = vunpack.c.h.b16 %v1407
    %v3878 = vunpack.c.l.b16 %v1408
    %v3879 = vunpack.c.h.b16 %v1408
    %v3880 = vunpack.c.l.b16 %v1409
    %v3881 = vunpack.c.h.b16 %v1409
    %v3882 = vunpack.c.l.b16 %v1410
    %v3883 = vunpack.c.h.b16 %v1410
    %v3884 = vunpack.c.l.b16 %v1411
    %v3885 = vunpack.c.h.b16 %v1411
    %v3886 = vunpack.c.l.b16 %v1412
    %v3887 = vunpack.c.h.b16 %v1412
    %v3888 = vunpack.c.l.b16 %v1413
    %v3889 = vunpack.c.h.b16 %v1413
    %v3890 = vunpack.c.l.b16 %v1414
    %v3891 = vunpack.c.h.b16 %v1414
    %v3892 = vunpack.c.l.b16 %v1415
    %v3893 = vunpack.c.h.b16 %v1415
    %v3894 = vunpack.c.l.b16 %v1416
    %v3895 = vunpack.c.h.b16 %v1416
    %v3896 = vunpack.c.l.b16 %v1417
    %v3897 = vunpack.c.h.b16 %v1417
    %v3898 = vunpack.c.l.b16 %v1418
    %v3899 = vunpack.c.h.b16 %v1418
    %v3900 = vunpack.c.l.b16 %v1419
    %v3901 = vunpack.c.h.b16 %v1419
    %v3902 = vunpack.c.l.b16 %v1420
    %v3903 = vunpack.c.h.b16 %v1420
    %v3904 = vunpack.c.l.b16 %v1421
    %v3905 = vunpack.c.h.b16 %v1421
    %v3906 = vunpack.c.l.b16 %v1422
    %v3907 = vunpack.c.h.b16 %v1422
    %v3908 = vunpack.c.l.b16 %v1423
    %v3909 = vunpack.c.h.b16 %v1423
    %v3910 = vunpack.c.l.b16 %v1424
    %v3911 = vunpack.c.h.b16 %v1424
    %v3912 = vunpack.c.l.b16 %v1425
    %v3913 = vunpack.c.h.b16 %v1425
    %v3914 = vunpack.c.l.b16 %v1426
    %v3915 = vunpack.c.h.b16 %v1426
    %v3916 = vunpack.c.l.b16 %v1427
    %v3917 = vunpack.c.h.b16 %v1427
    %v3918 = vunpack.c.l.b16 %v1428
    %v3919 = vunpack.c.h.b16 %v1428
    %v3920 = vunpack.c.l.b16 %v1429
    %v3921 = vunpack.c.h.b16 %v1429
    %v3922 = vunpack.c.l.b16 %v1430
    %v3923 = vunpack.c.h.b16 %v1430
    %v3924 = vunpack.c.l.b16 %v1431
    %v3925 = vunpack.c.h.b16 %v1431
    %v3926 = vunpack.c.l.b16 %v1432
    %v3927 = vunpack.c.h.b16 %v1432
    %v3928 = vunpack.c.l.b16 %v1433
    %v3929 = vunpack.c.h.b16 %v1433
    %v3930 = vunpack.c.l.b16 %v1434
    %v3931 = vunpack.c.h.b16 %v1434
    %v3932 = vunpack.c.l.b16 %v1435
    %v3933 = vunpack.c.h.b16 %v1435
    %v3934 = vunpack.c.l.b16 %v1436
    %v3935 = vunpack.c.h.b16 %v1436
    %v3936 = vunpack.c.l.b16 %v1437
    %v3937 = vunpack.c.h.b16 %v1437
    %v3938 = vunpack.c.l.b16 %v1438
    %v3939 = vunpack.c.h.b16 %v1438
    %v3940 = vunpack.c.l.b16 %v1439
    %v3941 = vunpack.c.h.b16 %v1439
    %v3942 = vunpack.c.l.b16 %v1440
    %v3943 = vunpack.c.h.b16 %v1440
    %v3944 = vunpack.c.l.b16 %v1441
    %v3945 = vunpack.c.h.b16 %v1441
    %v3946 = vunpack.c.l.b16 %v1442
    %v3947 = vunpack.c.h.b16 %v1442
    %v3948 = vunpack.c.l.b16 %v1443
    %v3949 = vunpack.c.h.b16 %v1443
    %v3950 = vunpack.c.l.b16 %v1444
    %v3951 = vunpack.c.h.b16 %v1444
    %v3952 = vunpack.c.l.b16 %v1445
    %v3953 = vunpack.c.h.b16 %v1445
    %v3954 = vunpack.c.l.b16 %v1446
    %v3955 = vunpack.c.h.b16 %v1446
    %v3956 = vunpack.c.l.b16 %v1447
    %v3957 = vunpack.c.h.b16 %v1447
    %v3958 = vunpack.c.l.b16 %v1448
    %v3959 = vunpack.c.h.b16 %v1448
    %v3960 = vunpack.c.l.b16 %v1449
    %v3961 = vunpack.c.h.b16 %v1449
    %v3962 = vunpack.c.l.b16 %v1450
    %v3963 = vunpack.c.h.b16 %v1450
    %v3964 = vunpack.c.l.b16 %v1451
    %v3965 = vunpack.c.h.b16 %v1451
    %v3966 = vunpack.c.l.b16 %v1452
    %v3967 = vunpack.c.h.b16 %v1452
    %v3968 = vunpack.c.l.b16 %v1453
    %v3969 = vunpack.c.h.b16 %v1453
    %v3970 = vunpack.c.l.b16 %v1454
    %v3971 = vunpack.c.h.b16 %v1454
    %v3972 = vunpack.c.l.b16 %v1455
    %v3973 = vunpack.c.h.b16 %v1455
    %v3974 = vunpack.c.l.b16 %v1456
    %v3975 = vunpack.c.h.b16 %v1456
    %v3976 = vunpack.c.l.b16 %v1457
    %v3977 = vunpack.c.h.b16 %v1457
    %v3978 = vunpack.c.l.b16 %v1458
    %v3979 = vunpack.c.h.b16 %v1458
    %v3980 = vunpack.c.l.b16 %v1459
    %v3981 = vunpack.c.h.b16 %v1459
    %v3982 = vunpack.c.l.b16 %v1460
    %v3983 = vunpack.c.h.b16 %v1460
    %v3984 = vunpack.c.l.b16 %v1461
    %v3985 = vunpack.c.h.b16 %v1461
    %v3986 = vunpack.c.l.b16 %v1462
    %v3987 = vunpack.c.h.b16 %v1462
    %v3988 = vunpack.c.l.b16 %v1463
    %v3989 = vunpack.c.h.b16 %v1463
    %v3990 = vunpack.c.l.b16 %v1464
    %v3991 = vunpack.c.h.b16 %v1464
    %v3992 = vunpack.c.l.b16 %v1465
    %v3993 = vunpack.c.h.b16 %v1465
    %v3994 = vunpack.c.l.b16 %v1466
    %v3995 = vunpack.c.h.b16 %v1466
    %v3996 = vunpack.c.l.b16 %v1467
    %v3997 = vunpack.c.h.b16 %v1467
    %v3998 = vunpack.c.l.b16 %v1468
    %v3999 = vunpack.c.h.b16 %v1468
    %v4000 = vunpack.c.l.b16 %v1469
    %v4001 = vunpack.c.h.b16 %v1469
    %v4002 = vunpack.c.l.b16 %v1470
    %v4003 = vunpack.c.h.b16 %v1470
    %v4004 = vunpack.c.l.b16 %v1471
    %v4005 = vunpack.c.h.b16 %v1471
    %v4006 = vunpack.c.l.b16 %v1472
    %v4007 = vunpack.c.h.b16 %v1472
    %v4008 = vunpack.c.l.b16 %v1473
    %v4009 = vunpack.c.h.b16 %v1473
    %v4010 = vunpack.c.l.b16 %v1474
    %v4011 = vunpack.c.h.b16 %v1474
    %v4012 = vunpack.c.l.b16 %v1475
    %v4013 = vunpack.c.h.b16 %v1475
    %v4014 = vunpack.c.l.b16 %v1476
    %v4015 = vunpack.c.h.b16 %v1476
    %v4016 = vunpack.c.l.b16 %v1477
    %v4017 = vunpack.c.h.b16 %v1477
    %v4018 = vunpack.c.l.b16 %v1478
    %v4019 = vunpack.c.h.b16 %v1478
    %v4020 = vunpack.c.l.b16 %v1479
    %v4021 = vunpack.c.h.b16 %v1479
    %v4022 = vunpack.c.l.b16 %v1480
    %v4023 = vunpack.c.h.b16 %v1480
    %v4024 = vunpack.c.l.b16 %v1481
    %v4025 = vunpack.c.h.b16 %v1481
    %v4026 = vunpack.c.l.b16 %v1482
    %v4027 = vunpack.c.h.b16 %v1482
    %v4028 = vunpack.c.l.b16 %v1483
    %v4029 = vunpack.c.h.b16 %v1483
    %v4030 = vunpack.c.l.b16 %v1484
    %v4031 = vunpack.c.h.b16 %v1484
    %v4032 = vunpack.c.l.b16 %v1485
    %v4033 = vunpack.c.h.b16 %v1485
    %v4034 = vunpack.c.l.b16 %v1486
    %v4035 = vunpack.c.h.b16 %v1486
    %v4036 = vunpack.c.l.b16 %v1487
    %v4037 = vunpack.c.h.b16 %v1487
    %v4038 = vunpack.c.l.b16 %v1488
    %v4039 = vunpack.c.h.b16 %v1488
    %v4040 = vunpack.c.l.b16 %v1489
    %v4041 = vunpack.c.h.b16 %v1489
    %v4042 = vunpack.c.l.b16 %v1490
    %v4043 = vunpack.c.h.b16 %v1490
    %v4044 = vunpack.c.l.b16 %v1491
    %v4045 = vunpack.c.h.b16 %v1491
    %v4046 = vunpack.c.l.b16 %v1492
    %v4047 = vunpack.c.h.b16 %v1492
    %v4048 = vunpack.c.l.b16 %v1493
    %v4049 = vunpack.c.h.b16 %v1493
    %v4050 = vunpack.c.l.b16 %v1494
    %v4051 = vunpack.c.h.b16 %v1494
    %v4052 = vunpack.c.l.b16 %v1495
    %v4053 = vunpack.c.h.b16 %v1495
    %v4054 = vunpack.c.l.b16 %v1496
    %v4055 = vunpack.c.h.b16 %v1496
    %v4056 = vunpack.c.l.b16 %v1497
    %v4057 = vunpack.c.h.b16 %v1497
    %v4058 = vunpack.c.l.b16 %v1498
    %v4059 = vunpack.c.h.b16 %v1498
    %v4060 = vunpack.c.l.b16 %v1499
    %v4061 = vunpack.c.h.b16 %v1499
    %v4062 = vunpack.c.l.b16 %v1500
    %v4063 = vunpack.c.h.b16 %v1500
    %v4064 = vunpack.c.l.b16 %v1501
    %v4065 = vunpack.c.h.b16 %v1501
    %v4066 = vunpack.c.l.b16 %v1502
    %v4067 = vunpack.c.h.b16 %v1502
    %v4068 = vunpack.c.l.b16 %v1503
    %v4069 = vunpack.c.h.b16 %v1503
    %v4070 = vunpack.c.l.b16 %v1504
    %v4071 = vunpack.c.h.b16 %v1504
    %v4072 = vunpack.c.l.b16 %v1505
    %v4073 = vunpack.c.h.b16 %v1505
    %v4074 = vunpack.c.l.b16 %v1506
    %v4075 = vunpack.c.h.b16 %v1506
    %v4076 = vunpack.c.l.b16 %v1507
    %v4077 = vunpack.c.h.b16 %v1507
    %v4078 = vunpack.c.l.b16 %v1508
    %v4079 = vunpack.c.h.b16 %v1508
    %v4080 = vunpack.c.l.b16 %v1509
    %v4081 = vunpack.c.h.b16 %v1509
    %v4082 = vunpack.c.l.b16 %v1510
    %v4083 = vunpack.c.h.b16 %v1510
    %v4084 = vunpack.c.l.b16 %v1511
    %v4085 = vunpack.c.h.b16 %v1511
    %v4086 = vunpack.c.l.b16 %v1512
    %v4087 = vunpack.c.h.b16 %v1512
    %v4088 = vunpack.c.l.b16 %v1513
    %v4089 = vunpack.c.h.b16 %v1513
    %v4090 = vunpack.c.l.b16 %v1514
    %v4091 = vunpack.c.h.b16 %v1514
    %v4092 = vunpack.c.l.b16 %v1515
    %v4093 = vunpack.c.h.b16 %v1515
    %v4094 = vunpack.c.l.b16 %v1516
    %v4095 = vunpack.c.h.b16 %v1516
    %v4096 = vunpack.c.l.b16 %v1517
    %v4097 = vunpack.c.h.b16 %v1517
    %v4098 = vunpack.c.l.b16 %v1518
    %v4099 = vunpack.c.h.b16 %v1518
    %v4100 = vunpack.c.l.b16 %v1519
    %v4101 = vunpack.c.h.b16 %v1519
    %v4102 = vunpack.c.l.b16 %v1520
    %v4103 = vunpack.c.h.b16 %v1520
    %v4104 = vunpack.c.l.b16 %v1521
    %v4105 = vunpack.c.h.b16 %v1521
    %v4106 = vunpack.c.l.b16 %v1522
    %v4107 = vunpack.c.h.b16 %v1522
    %v4108 = vunpack.c.l.b16 %v1523
    %v4109 = vunpack.c.h.b16 %v1523
    %v4110 = vunpack.c.l.b16 %v1524
    %v4111 = vunpack.c.h.b16 %v1524
    %v4112 = vunpack.c.l.b16 %v1525
    %v4113 = vunpack.c.h.b16 %v1525
    %v4114 = vunpack.c.l.b16 %v1526
    %v4115 = vunpack.c.h.b16 %v1526
    %v4116 = vunpack.c.l.b16 %v1527
    %v4117 = vunpack.c.h.b16 %v1527
    %v4118 = vunpack.c.l.b16 %v1528
    %v4119 = vunpack.c.h.b16 %v1528
    %v4120 = vunpack.c.l.b16 %v1529
    %v4121 = vunpack.c.h.b16 %v1529
    %v4122 = vunpack.c.l.b16 %v1530
    %v4123 = vunpack.c.h.b16 %v1530
    %v4124 = vunpack.c.l.b16 %v1531
    %v4125 = vunpack.c.h.b16 %v1531
    %v4126 = vunpack.c.l.b16 %v1532
    %v4127 = vunpack.c.h.b16 %v1532
    %v4128 = vunpack.c.l.b16 %v1533
    %v4129 = vunpack.c.h.b16 %v1533
    %v4130 = vunpack.c.l.b16 %v1534
    %v4131 = vunpack.c.h.b16 %v1534
    %v4132 = vunpack.c.l.b16 %v1535
    %v4133 = vunpack.c.h.b16 %v1535
    %v4134 = vunpack.c.l.b16 %v1536
    %v4135 = vunpack.c.h.b16 %v1536
    %v4136 = vunpack.c.l.b16 %v1537
    %v4137 = vunpack.c.h.b16 %v1537
    %v4138 = vunpack.c.l.b16 %v1538
    %v4139 = vunpack.c.h.b16 %v1538
    %v4140 = vunpack.c.l.b16 %v1539
    %v4141 = vunpack.c.h.b16 %v1539
    %v4142 = vunpack.c.l.b16 %v1540
    %v4143 = vunpack.c.h.b16 %v1540
    %v4144 = vunpack.c.l.b16 %v1541
    %v4145 = vunpack.c.h.b16 %v1541
    %v4146 = vunpack.c.l.b16 %v1542
    %v4147 = vunpack.c.h.b16 %v1542
    %v4148 = vunpack.c.l.b16 %v1543
    %v4149 = vunpack.c.h.b16 %v1543
    %v4150 = vunpack.c.l.b16 %v1544
    %v4151 = vunpack.c.h.b16 %v1544
    %v4152 = vunpack.c.l.b16 %v1545
    %v4153 = vunpack.c.h.b16 %v1545
    %v4154 = vunpack.c.l.b16 %v1546
    %v4155 = vunpack.c.h.b16 %v1546
    %v4156 = vunpack.c.l.b16 %v1547
    %v4157 = vunpack.c.h.b16 %v1547
    %v4158 = vunpack.c.l.b16 %v1548
    %v4159 = vunpack.c.h.b16 %v1548
    %v4160 = vunpack.c.l.b16 %v1549
    %v4161 = vunpack.c.h.b16 %v1549
    %v4162 = vunpack.c.l.b16 %v1550
    %v4163 = vunpack.c.h.b16 %v1550
    %v4164 = vunpack.c.l.b16 %v1551
    %v4165 = vunpack.c.h.b16 %v1551
    %v4166 = vunpack.c.l.b16 %v1552
    %v4167 = vunpack.c.h.b16 %v1552
    %v4168 = vunpack.c.l.b16 %v1553
    %v4169 = vunpack.c.h.b16 %v1553
    %v4170 = vunpack.c.l.b16 %v1554
    %v4171 = vunpack.c.h.b16 %v1554
    %v4172 = vunpack.c.l.b16 %v1555
    %v4173 = vunpack.c.h.b16 %v1555
    %v4174 = vunpack.c.l.b16 %v1556
    %v4175 = vunpack.c.h.b16 %v1556
    %v4176 = vunpack.c.l.b16 %v1557
    %v4177 = vunpack.c.h.b16 %v1557
    %v4178 = vunpack.c.l.b16 %v1558
    %v4179 = vunpack.c.h.b16 %v1558
    %v4180 = vunpack.c.l.b16 %v1559
    %v4181 = vunpack.c.h.b16 %v1559
    %v4182 = vunpack.c.l.b16 %v1560
    %v4183 = vunpack.c.h.b16 %v1560
    %v4184 = vunpack.c.l.b16 %v1561
    %v4185 = vunpack.c.h.b16 %v1561
    %v4186 = vunpack.c.l.b16 %v1562
    %v4187 = vunpack.c.h.b16 %v1562
    %v4188 = vunpack.c.l.b16 %v1563
    %v4189 = vunpack.c.h.b16 %v1563
    %v4190 = vunpack.c.l.b16 %v1564
    %v4191 = vunpack.c.h.b16 %v1564
    %v4192 = vunpack.c.l.b16 %v1565
    %v4193 = vunpack.c.h.b16 %v1565
    %v4194 = vunpack.c.l.b16 %v1566
    %v4195 = vunpack.c.h.b16 %v1566
    %v4196 = vunpack.c.l.b16 %v1567
    %v4197 = vunpack.c.h.b16 %v1567
    %v4198 = vunpack.c.l.b16 %v1568
    %v4199 = vunpack.c.h.b16 %v1568
    %v4200 = vunpack.c.l.b16 %v1569
    %v4201 = vunpack.c.h.b16 %v1569
    %v4202 = vunpack.c.l.b16 %v1570
    %v4203 = vunpack.c.h.b16 %v1570
    %v4204 = vunpack.c.l.b16 %v1571
    %v4205 = vunpack.c.h.b16 %v1571
    %v4206 = vunpack.c.l.b16 %v1572
    %v4207 = vunpack.c.h.b16 %v1572
    %v4208 = vunpack.c.l.b16 %v1573
    %v4209 = vunpack.c.h.b16 %v1573
    %v4210 = vunpack.c.l.b16 %v1574
    %v4211 = vunpack.c.h.b16 %v1574
    %v4212 = vunpack.c.l.b16 %v1575
    %v4213 = vunpack.c.h.b16 %v1575
    %v4214 = vunpack.c.l.b16 %v1576
    %v4215 = vunpack.c.h.b16 %v1576
    %v4216 = vunpack.c.l.b16 %v1577
    %v4217 = vunpack.c.h.b16 %v1577
    %v4218 = vunpack.c.l.b16 %v1578
    %v4219 = vunpack.c.h.b16 %v1578
    %v4220 = vunpack.c.l.b16 %v1579
    %v4221 = vunpack.c.h.b16 %v1579
    %v4222 = vunpack.c.l.b16 %v1580
    %v4223 = vunpack.c.h.b16 %v1580
    %v4224 = vunpack.c.l.b16 %v1581
    %v4225 = vunpack.c.h.b16 %v1581
    %v4226 = vunpack.c.l.b16 %v1582
    %v4227 = vunpack.c.h.b16 %v1582
    %v4228 = vunpack.c.l.b16 %v1583
    %v4229 = vunpack.c.h.b16 %v1583
    %v4230 = vunpack.c.l.b16 %v1584
    %v4231 = vunpack.c.h.b16 %v1584
    %v4232 = vunpack.c.l.b16 %v1585
    %v4233 = vunpack.c.h.b16 %v1585
    %v4234 = vunpack.c.l.b16 %v1586
    %v4235 = vunpack.c.h.b16 %v1586
    %v4236 = vunpack.c.l.b16 %v1587
    %v4237 = vunpack.c.h.b16 %v1587
    %v4238 = vunpack.c.l.b16 %v1588
    %v4239 = vunpack.c.h.b16 %v1588
    %v4240 = vunpack.c.l.b16 %v1589
    %v4241 = vunpack.c.h.b16 %v1589
    %v4242 = vunpack.c.l.b16 %v1590
    %v4243 = vunpack.c.h.b16 %v1590
    %v4244 = vunpack.c.l.b16 %v1591
    %v4245 = vunpack.c.h.b16 %v1591
    %v4246 = vunpack.c.l.b16 %v1592
    %v4247 = vunpack.c.h.b16 %v1592
    %v4248 = vunpack.c.l.b16 %v1593
    %v4249 = vunpack.c.h.b16 %v1593
    %v4250 = vunpack.c.l.b16 %v1594
    %v4251 = vunpack.c.h.b16 %v1594
    %v4252 = vunpack.c.l.b16 %v1595
    %v4253 = vunpack.c.h.b16 %v1595
    %v4254 = vunpack.c.l.b16 %v1596
    %v4255 = vunpack.c.h.b16 %v1596
    %v4256 = vunpack.c.l.b16 %v1597
    %v4257 = vunpack.c.h.b16 %v1597
    %v4258 = vunpack.c.l.b16 %v1598
    %v4259 = vunpack.c.h.b16 %v1598
    %v4260 = vunpack.c.l.b16 %v1599
    %v4261 = vunpack.c.h.b16 %v1599
    %v4262 = vunpack.c.l.b16 %v1600
    %v4263 = vunpack.c.h.b16 %v1600
    %v4264 = vunpack.c.l.b16 %v1601
    %v4265 = vunpack.c.h.b16 %v1601
    %v4266 = vunpack.c.l.b16 %v1602
    %v4267 = vunpack.c.h.b16 %v1602
    %v4268 = vunpack.c.l.b16 %v1603
    %v4269 = vunpack.c.h.b16 %v1603
    %v4270 = vunpack.c.l.b16 %v1604
    %v4271 = vunpack.c.h.b16 %v1604
    %v4272 = vunpack.c.l.b16 %v1605
    %v4273 = vunpack.c.h.b16 %v1605
    %v4274 = vunpack.c.l.b16 %v1606
    %v4275 = vunpack.c.h.b16 %v1606
    %v4276 = vunpack.c.l.b16 %v1607
    %v4277 = vunpack.c.h.b16 %v1607
    %v4278 = vunpack.c.l.b16 %v1608
    %v4279 = vunpack.c.h.b16 %v1608
    %v4280 = vunpack.c.l.b16 %v1609
    %v4281 = vunpack.c.h.b16 %v1609
    %v4282 = vunpack.c.l.b16 %v1610
    %v4283 = vunpack.c.h.b16 %v1610
    %v4284 = vunpack.c.l.b16 %v1611
    %v4285 = vunpack.c.h.b16 %v1611
    %v4286 = vunpack.c.l.b16 %v1612
    %v4287 = vunpack.c.h.b16 %v1612
    %v4288 = vunpack.c.l.b16 %v1613
    %v4289 = vunpack.c.h.b16 %v1613
    %v4290 = vunpack.c.l.b16 %v1614
    %v4291 = vunpack.c.h.b16 %v1614
    %v4292 = vunpack.c.l.b16 %v1615
    %v4293 = vunpack.c.h.b16 %v1615
    %v4294 = vunpack.c.l.b16 %v1616
    %v4295 = vunpack.c.h.b16 %v1616
    %v4296 = vunpack.c.l.b16 %v1617
    %v4297 = vunpack.c.h.b16 %v1617
    %v4298 = vunpack.c.l.b16 %v1618
    %v4299 = vunpack.c.h.b16 %v1618
    %v4300 = vunpack.c.l.b16 %v1619
    %v4301 = vunpack.c.h.b16 %v1619
    %v4302 = vunpack.c.l.b16 %v1620
    %v4303 = vunpack.c.h.b16 %v1620
    %v4304 = vunpack.c.l.b16 %v1621
    %v4305 = vunpack.c.h.b16 %v1621
    %v4306 = vunpack.c.l.b16 %v1622
    %v4307 = vunpack.c.h.b16 %v1622
    %v4308 = vunpack.c.l.b16 %v1623
    %v4309 = vunpack.c.h.b16 %v1623
    %v4310 = vunpack.c.l.b16 %v1624
    %v4311 = vunpack.c.h.b16 %v1624
    %v4312 = vunpack.c.l.b16 %v1625
    %v4313 = vunpack.c.h.b16 %v1625
    %v4314 = vunpack.c.l.b16 %v1626
    %v4315 = vunpack.c.h.b16 %v1626
    %v4316 = vunpack.c.l.b16 %v1627
    %v4317 = vunpack.c.h.b16 %v1627
    %v4318 = vunpack.c.l.b16 %v1628
    %v4319 = vunpack.c.h.b16 %v1628
    %v4320 = vunpack.c.l.b16 %v1629
    %v4321 = vunpack.c.h.b16 %v1629
    %v4322 = vunpack.c.l.b16 %v1630
    %v4323 = vunpack.c.h.b16 %v1630
    %v4324 = vunpack.c.l.b16 %v1631
    %v4325 = vunpack.c.h.b16 %v1631
    %v4326 = vunpack.c.l.b16 %v1632
    %v4327 = vunpack.c.h.b16 %v1632
    %v4328 = vunpack.c.l.b16 %v1633
    %v4329 = vunpack.c.h.b16 %v1633
    %v4330 = vunpack.c.l.b16 %v1634
    %v4331 = vunpack.c.h.b16 %v1634
    %v4332 = vunpack.c.l.b16 %v1635
    %v4333 = vunpack.c.h.b16 %v1635
    %v4334 = vunpack.c.l.b16 %v1636
    %v4335 = vunpack.c.h.b16 %v1636
    %v4336 = vunpack.c.l.b16 %v1637
    %v4337 = vunpack.c.h.b16 %v1637
    %v4338 = vunpack.c.l.b16 %v1638
    %v4339 = vunpack.c.h.b16 %v1638
    %v4340 = vunpack.c.l.b16 %v1639
    %v4341 = vunpack.c.h.b16 %v1639
    %v4342 = vunpack.c.l.b16 %v1640
    %v4343 = vunpack.c.h.b16 %v1640
    %v4344 = vunpack.c.l.b16 %v1641
    %v4345 = vunpack.c.h.b16 %v1641
    %v4346 = vunpack.c.l.b16 %v1642
    %v4347 = vunpack.c.h.b16 %v1642
    %v4348 = vunpack.c.l.b16 %v1643
    %v4349 = vunpack.c.h.b16 %v1643
    %v4350 = vunpack.c.l.b16 %v1644
    %v4351 = vunpack.c.h.b16 %v1644
    %v4352 = vunpack.c.l.b16 %v1645
    %v4353 = vunpack.c.h.b16 %v1645
    %v4354 = vunpack.c.l.b16 %v1646
    %v4355 = vunpack.c.h.b16 %v1646
    %v4356 = vunpack.c.l.b16 %v1647
    %v4357 = vunpack.c.h.b16 %v1647
    %v4358 = vunpack.c.l.b16 %v1648
    %v4359 = vunpack.c.h.b16 %v1648
    %v4360 = vunpack.c.l.b16 %v1649
    %v4361 = vunpack.c.h.b16 %v1649
    %v4362 = vunpack.c.l.b16 %v1650
    %v4363 = vunpack.c.h.b16 %v1650
    %v4364 = vunpack.c.l.b16 %v1651
    %v4365 = vunpack.c.h.b16 %v1651
    %v4366 = vunpack.c.l.b16 %v1652
    %v4367 = vunpack.c.h.b16 %v1652
    %v4368 = vunpack.c.l.b16 %v1653
    %v4369 = vunpack.c.h.b16 %v1653
    %v4370 = vunpack.c.l.b16 %v1654
    %v4371 = vunpack.c.h.b16 %v1654
    %v4372 = vunpack.c.l.b16 %v1655
    %v4373 = vunpack.c.h.b16 %v1655
    %v4374 = vunpack.c.l.b16 %v1656
    %v4375 = vunpack.c.h.b16 %v1656
    %v4376 = vunpack.c.l.b16 %v1657
    %v4377 = vunpack.c.h.b16 %v1657
    %v4378 = vunpack.c.l.b16 %v1658
    %v4379 = vunpack.c.h.b16 %v1658
    %v4380 = vunpack.c.l.b16 %v1659
    %v4381 = vunpack.c.h.b16 %v1659
    %v4382 = vunpack.c.l.b16 %v1660
    %v4383 = vunpack.c.h.b16 %v1660
    %v4384 = vunpack.c.l.b16 %v1661
    %v4385 = vunpack.c.h.b16 %v1661
    %v4386 = vunpack.c.l.b16 %v1662
    %v4387 = vunpack.c.h.b16 %v1662
    %v4388 = vunpack.c.l.b16 %v1663
    %v4389 = vunpack.c.h.b16 %v1663
    %v4390 = vunpack.c.l.b16 %v1664
    %v4391 = vunpack.c.h.b16 %v1664
    %v4392 = vunpack.c.l.b16 %v1665
    %v4393 = vunpack.c.h.b16 %v1665
    %v4394 = vunpack.c.l.b16 %v1666
    %v4395 = vunpack.c.h.b16 %v1666
    %v4396 = vunpack.c.l.b16 %v1667
    %v4397 = vunpack.c.h.b16 %v1667
    %v4398 = vunpack.c.l.b16 %v1668
    %v4399 = vunpack.c.h.b16 %v1668
    %v4400 = vunpack.c.l.b16 %v1669
    %v4401 = vunpack.c.h.b16 %v1669
    %v4402 = vunpack.c.l.b16 %v1670
    %v4403 = vunpack.c.h.b16 %v1670
    %v4404 = vunpack.c.l.b16 %v1671
    %v4405 = vunpack.c.h.b16 %v1671
    %v4406 = vunpack.c.l.b16 %v1672
    %v4407 = vunpack.c.h.b16 %v1672
    %v4408 = vunpack.c.l.b16 %v1673
    %v4409 = vunpack.c.h.b16 %v1673
    %v4410 = vunpack.c.l.b16 %v1674
    %v4411 = vunpack.c.h.b16 %v1674
    %v4412 = vunpack.c.l.b16 %v1675
    %v4413 = vunpack.c.h.b16 %v1675
    %v4414 = vunpack.c.l.b16 %v1676
    %v4415 = vunpack.c.h.b16 %v1676
    %v4416 = vunpack.c.l.b16 %v1677
    %v4417 = vunpack.c.h.b16 %v1677
    %v4418 = vunpack.c.l.b16 %v1678
    %v4419 = vunpack.c.h.b16 %v1678
    %v4420 = vunpack.c.l.b16 %v1679
    %v4421 = vunpack.c.h.b16 %v1679
    %v4422 = vunpack.c.l.b16 %v1680
    %v4423 = vunpack.c.h.b16 %v1680
    %v4424 = vunpack.c.l.b16 %v1681
    %v4425 = vunpack.c.h.b16 %v1681
    %v4426 = vunpack.c.l.b16 %v1682
    %v4427 = vunpack.c.h.b16 %v1682
    %v4428 = vunpack.c.l.b16 %v1683
    %v4429 = vunpack.c.h.b16 %v1683
    %v4430 = vunpack.c.l.b16 %v1684
    %v4431 = vunpack.c.h.b16 %v1684
    %v4432 = vunpack.c.l.b16 %v1685
    %v4433 = vunpack.c.h.b16 %v1685
    %v4434 = vunpack.c.l.b16 %v1686
    %v4435 = vunpack.c.h.b16 %v1686
    %v4436 = vunpack.c.l.b16 %v1687
    %v4437 = vunpack.c.h.b16 %v1687
    %v4438 = vunpack.c.l.b16 %v1688
    %v4439 = vunpack.c.h.b16 %v1688
    %v4440 = vunpack.c.l.b16 %v1689
    %v4441 = vunpack.c.h.b16 %v1689
    %v4442 = vunpack.c.l.b16 %v1690
    %v4443 = vunpack.c.h.b16 %v1690
    %v4444 = vunpack.c.l.b16 %v1691
    %v4445 = vunpack.c.h.b16 %v1691
    %v4446 = vunpack.c.l.b16 %v1692
    %v4447 = vunpack.c.h.b16 %v1692
    %v4448 = vunpack.c.l.b16 %v1693
    %v4449 = vunpack.c.h.b16 %v1693
    %v4450 = vunpack.c.l.b16 %v1694
    %v4451 = vunpack.c.h.b16 %v1694
    %v4452 = vunpack.c.l.b16 %v1695
    %v4453 = vunpack.c.h.b16 %v1695
    %v4454 = vunpack.c.l.b16 %v1696
    %v4455 = vunpack.c.h.b16 %v1696
    %v4456 = vunpack.c.l.b16 %v1697
    %v4457 = vunpack.c.h.b16 %v1697
    %v4458 = vunpack.c.l.b16 %v1698
    %v4459 = vunpack.c.h.b16 %v1698
    %v4460 = vunpack.c.l.b16 %v1699
    %v4461 = vunpack.c.h.b16 %v1699
    %v4462 = vunpack.c.l.b16 %v1700
    %v4463 = vunpack.c.h.b16 %v1700
    %v4464 = vunpack.c.l.b16 %v1701
    %v4465 = vunpack.c.h.b16 %v1701
    %v4466 = vunpack.c.l.b16 %v1702
    %v4467 = vunpack.c.h.b16 %v1702
    %v4468 = vunpack.c.l.b16 %v1703
    %v4469 = vunpack.c.h.b16 %v1703
    %v4470 = vunpack.c.l.b16 %v1704
    %v4471 = vunpack.c.h.b16 %v1704
    %v4472 = vunpack.c.l.b16 %v1705
    %v4473 = vunpack.c.h.b16 %v1705
    %v4474 = vunpack.c.l.b16 %v1706
    %v4475 = vunpack.c.h.b16 %v1706
    %v4476 = vunpack.c.l.b16 %v1707
    %v4477 = vunpack.c.h.b16 %v1707
    %v4478 = vunpack.c.l.b16 %v1708
    %v4479 = vunpack.c.h.b16 %v1708
    %v4480 = vunpack.c.l.b16 %v1709
    %v4481 = vunpack.c.h.b16 %v1709
    %v4482 = vunpack.c.l.b16 %v1710
    %v4483 = vunpack.c.h.b16 %v1710
    %v4484 = vunpack.c.l.b16 %v1711
    %v4485 = vunpack.c.h.b16 %v1711
    %v4486 = vunpack.c.l.b16 %v1712
    %v4487 = vunpack.c.h.b16 %v1712
    %v4488 = vunpack.c.l.b16 %v1713
    %v4489 = vunpack.c.h.b16 %v1713
    %v4490 = vunpack.c.l.b16 %v1714
    %v4491 = vunpack.c.h.b16 %v1714
    %v4492 = vunpack.c.l.b16 %v1715
    %v4493 = vunpack.c.h.b16 %v1715
    %v4494 = vunpack.c.l.b16 %v1716
    %v4495 = vunpack.c.h.b16 %v1716
    %v4496 = vunpack.c.l.b16 %v1717
    %v4497 = vunpack.c.h.b16 %v1717
    %v4498 = vunpack.c.l.b16 %v1718
    %v4499 = vunpack.c.h.b16 %v1718
    %v4500 = vunpack.c.l.b16 %v1719
    %v4501 = vunpack.c.h.b16 %v1719
    %v4502 = vunpack.c.l.b16 %v1720
    %v4503 = vunpack.c.h.b16 %v1720
    %v4504 = vunpack.c.l.b16 %v1721
    %v4505 = vunpack.c.h.b16 %v1721
    %v4506 = vunpack.c.l.b16 %v1722
    %v4507 = vunpack.c.h.b16 %v1722
    %v4508 = vunpack.c.l.b16 %v1723
    %v4509 = vunpack.c.h.b16 %v1723
    %v4510 = vunpack.c.l.b16 %v1724
    %v4511 = vunpack.c.h.b16 %v1724
    %v4512 = vunpack.c.l.b16 %v1725
    %v4513 = vunpack.c.h.b16 %v1725
    %v4514 = vunpack.c.l.b16 %v1726
    %v4515 = vunpack.c.h.b16 %v1726
    %v4516 = vunpack.c.l.b16 %v1727
    %v4517 = vunpack.c.h.b16 %v1727
    %v4518 = vunpack.c.l.b16 %v1728
    %v4519 = vunpack.c.h.b16 %v1728
    %v4520 = vunpack.c.l.b16 %v1729
    %v4521 = vunpack.c.h.b16 %v1729
    %v4522 = vunpack.c.l.b16 %v1730
    %v4523 = vunpack.c.h.b16 %v1730
    %v4524 = vunpack.c.l.b16 %v1731
    %v4525 = vunpack.c.h.b16 %v1731
    %v4526 = vunpack.c.l.b16 %v1732
    %v4527 = vunpack.c.h.b16 %v1732
    %v4528 = vunpack.c.l.b16 %v1733
    %v4529 = vunpack.c.h.b16 %v1733
    %v4530 = vunpack.c.l.b16 %v1734
    %v4531 = vunpack.c.h.b16 %v1734
    %v4532 = vunpack.c.l.b16 %v1735
    %v4533 = vunpack.c.h.b16 %v1735
    %v4534 = vunpack.c.l.b16 %v1736
    %v4535 = vunpack.c.h.b16 %v1736
    %v4536 = vunpack.c.l.b16 %v1737
    %v4537 = vunpack.c.h.b16 %v1737
    %v4538 = vunpack.c.l.b16 %v1738
    %v4539 = vunpack.c.h.b16 %v1738
    %v4540 = vunpack.c.l.b16 %v1739
    %v4541 = vunpack.c.h.b16 %v1739
    %v4542 = vunpack.c.l.b16 %v1740
    %v4543 = vunpack.c.h.b16 %v1740
    %v4544 = vunpack.c.l.b16 %v1741
    %v4545 = vunpack.c.h.b16 %v1741
    %v4546 = vunpack.c.l.b16 %v1742
    %v4547 = vunpack.c.h.b16 %v1742
    %v4548 = vunpack.c.l.b16 %v1743
    %v4549 = vunpack.c.h.b16 %v1743
    %v4550 = vunpack.c.l.b16 %v1744
    %v4551 = vunpack.c.h.b16 %v1744
    %v4552 = vunpack.c.l.b16 %v1745
    %v4553 = vunpack.c.h.b16 %v1745
    %v4554 = vunpack.c.l.b16 %v1746
    %v4555 = vunpack.c.h.b16 %v1746
    %v4556 = vunpack.c.l.b16 %v1747
    %v4557 = vunpack.c.h.b16 %v1747
    %v4558 = vunpack.c.l.b16 %v1748
    %v4559 = vunpack.c.h.b16 %v1748
    %v4560 = vunpack.c.l.b16 %v1749
    %v4561 = vunpack.c.h.b16 %v1749
    %v4562 = vunpack.c.l.b16 %v1750
    %v4563 = vunpack.c.h.b16 %v1750
    %v4564 = vunpack.c.l.b16 %v1751
    %v4565 = vunpack.c.h.b16 %v1751
    %v4566 = vunpack.c.l.b16 %v1752
    %v4567 = vunpack.c.h.b16 %v1752
    %v4568 = vunpack.c.l.b16 %v1753
    %v4569 = vunpack.c.h.b16 %v1753
    %v4570 = vunpack.c.l.b16 %v1754
    %v4571 = vunpack.c.h.b16 %v1754
    %v4572 = vunpack.c.l.b16 %v1755
    %v4573 = vunpack.c.h.b16 %v1755
    %v4574 = vunpack.c.l.b16 %v1756
    %v4575 = vunpack.c.h.b16 %v1756
    %v4576 = vunpack.c.l.b16 %v1757
    %v4577 = vunpack.c.h.b16 %v1757
    %v4578 = vunpack.c.l.b16 %v1758
    %v4579 = vunpack.c.h.b16 %v1758
    %v4580 = vunpack.c.l.b16 %v1759
    %v4581 = vunpack.c.h.b16 %v1759
    %v4582 = vunpack.c.l.b16 %v1760
    %v4583 = vunpack.c.h.b16 %v1760
    %v4584 = vunpack.c.l.b16 %v1761
    %v4585 = vunpack.c.h.b16 %v1761
    %v4586 = vunpack.c.l.b16 %v1762
    %v4587 = vunpack.c.h.b16 %v1762
    %v4588 = vunpack.c.l.b16 %v1763
    %v4589 = vunpack.c.h.b16 %v1763
    %v4590 = vunpack.c.l.b16 %v1764
    %v4591 = vunpack.c.h.b16 %v1764
    %v4592 = vunpack.c.l.b16 %v1765
    %v4593 = vunpack.c.h.b16 %v1765
    %v4594 = vunpack.c.l.b16 %v1766
    %v4595 = vunpack.c.h.b16 %v1766
    %v4596 = vunpack.c.l.b16 %v1767
    %v4597 = vunpack.c.h.b16 %v1767
    %v4598 = vunpack.c.l.b16 %v1768
    %v4599 = vunpack.c.h.b16 %v1768
    %v4600 = vunpack.c.l.b16 %v1769
    %v4601 = vunpack.c.h.b16 %v1769
    %v4602 = vunpack.c.l.b16 %v1770
    %v4603 = vunpack.c.h.b16 %v1770
    %v4604 = vunpack.c.l.b16 %v1771
    %v4605 = vunpack.c.h.b16 %v1771
    %v4606 = vunpack.c.l.b16 %v1772
    %v4607 = vunpack.c.h.b16 %v1772
    %v4608 = vunpack.c.l.b16 %v1773
    %v4609 = vunpack.c.h.b16 %v1773
    %v4610 = vunpack.c.l.b16 %v1774
    %v4611 = vunpack.c.h.b16 %v1774
    %v4612 = vunpack.c.l.b16 %v1775
    %v4613 = vunpack.c.h.b16 %v1775
    %v4614 = vunpack.c.l.b16 %v1776
    %v4615 = vunpack.c.h.b16 %v1776
    %v4616 = vunpack.c.l.b16 %v1777
    %v4617 = vunpack.c.h.b16 %v1777
    %v4618 = vunpack.c.l.b16 %v1778
    %v4619 = vunpack.c.h.b16 %v1778
    %v4620 = vunpack.c.l.b16 %v1779
    %v4621 = vunpack.c.h.b16 %v1779
    %v4622 = vunpack.c.l.b16 %v1780
    %v4623 = vunpack.c.h.b16 %v1780
    %v4624 = vunpack.c.l.b16 %v1781
    %v4625 = vunpack.c.h.b16 %v1781
    %v4626 = vunpack.c.l.b16 %v1782
    %v4627 = vunpack.c.h.b16 %v1782
    %v4628 = vunpack.c.l.b16 %v1783
    %v4629 = vunpack.c.h.b16 %v1783
    %v4630 = vunpack.c.l.b16 %v1784
    %v4631 = vunpack.c.h.b16 %v1784
    %v4632 = vunpack.c.l.b16 %v1785
    %v4633 = vunpack.c.h.b16 %v1785
    %v4634 = vunpack.c.l.b16 %v1786
    %v4635 = vunpack.c.h.b16 %v1786
    %v4636 = vunpack.c.l.b16 %v1787
    %v4637 = vunpack.c.h.b16 %v1787
    %v4638 = vunpack.c.l.b16 %v1788
    %v4639 = vunpack.c.h.b16 %v1788
    %v4640 = vunpack.c.l.b16 %v1789
    %v4641 = vunpack.c.h.b16 %v1789
    %v4642 = vunpack.c.l.b16 %v1790
    %v4643 = vunpack.c.h.b16 %v1790
    %v4644 = vunpack.c.l.b16 %v1791
    %v4645 = vunpack.c.h.b16 %v1791
    %v4646 = vunpack.c.l.b16 %v1792
    %v4647 = vunpack.c.h.b16 %v1792
    %v4648 = vunpack.c.l.b16 %v1793
    %v4649 = vunpack.c.h.b16 %v1793
    %v4650 = vunpack.c.l.b16 %v1794
    %v4651 = vunpack.c.h.b16 %v1794
    %v4652 = vunpack.c.l.b16 %v1795
    %v4653 = vunpack.c.h.b16 %v1795
    %v4654 = vunpack.c.l.b16 %v1796
    %v4655 = vunpack.c.h.b16 %v1796
    %v4656 = vunpack.c.l.b16 %v1797
    %v4657 = vunpack.c.h.b16 %v1797
    %v4658 = vunpack.c.l.b16 %v1798
    %v4659 = vunpack.c.h.b16 %v1798
    %v4660 = vunpack.c.l.b16 %v1799
    %v4661 = vunpack.c.h.b16 %v1799
    %v4662 = vunpack.c.l.b16 %v1800
    %v4663 = vunpack.c.h.b16 %v1800
    %v4664 = vunpack.c.l.b16 %v1801
    %v4665 = vunpack.c.h.b16 %v1801
    %v4666 = vunpack.c.l.b16 %v1802
    %v4667 = vunpack.c.h.b16 %v1802
    %v4668 = vunpack.c.l.b16 %v1803
    %v4669 = vunpack.c.h.b16 %v1803
    %v4670 = vunpack.c.l.b16 %v1804
    %v4671 = vunpack.c.h.b16 %v1804
    %v4672 = vunpack.c.l.b16 %v1805
    %v4673 = vunpack.c.h.b16 %v1805
    %v4674 = vunpack.c.l.b16 %v1806
    %v4675 = vunpack.c.h.b16 %v1806
    %v4676 = vunpack.c.l.b16 %v1807
    %v4677 = vunpack.c.h.b16 %v1807
    %v4678 = vunpack.c.l.b16 %v1808
    %v4679 = vunpack.c.h.b16 %v1808
    %v4680 = vunpack.c.l.b16 %v1809
    %v4681 = vunpack.c.h.b16 %v1809
    %v4682 = vunpack.c.l.b16 %v1810
    %v4683 = vunpack.c.h.b16 %v1810
    %v4684 = vunpack.c.l.b16 %v1811
    %v4685 = vunpack.c.h.b16 %v1811
    %v4686 = vunpack.c.l.b16 %v1812
    %v4687 = vunpack.c.h.b16 %v1812
    %v4688 = vunpack.c.l.b16 %v1813
    %v4689 = vunpack.c.h.b16 %v1813
    %v4690 = vunpack.c.l.b16 %v1814
    %v4691 = vunpack.c.h.b16 %v1814
    %v4692 = vunpack.c.l.b16 %v1815
    %v4693 = vunpack.c.h.b16 %v1815
    %v4694 = vunpack.c.l.b16 %v1816
    %v4695 = vunpack.c.h.b16 %v1816
    %v4696 = vunpack.c.l.b16 %v1817
    %v4697 = vunpack.c.h.b16 %v1817
    %v4698 = vunpack.c.l.b16 %v1818
    %v4699 = vunpack.c.h.b16 %v1818
    %v4700 = vunpack.c.l.b16 %v1819
    %v4701 = vunpack.c.h.b16 %v1819
    %v4702 = vunpack.c.l.b16 %v1820
    %v4703 = vunpack.c.h.b16 %v1820
    %v4704 = vunpack.c.l.b16 %v1821
    %v4705 = vunpack.c.h.b16 %v1821
    %v4706 = vunpack.c.l.b16 %v1822
    %v4707 = vunpack.c.h.b16 %v1822
    %v4708 = vunpack.c.l.b16 %v1823
    %v4709 = vunpack.c.h.b16 %v1823
    %v4710 = vunpack.c.l.b16 %v1824
    %v4711 = vunpack.c.h.b16 %v1824
    %v4712 = vunpack.c.l.b16 %v1825
    %v4713 = vunpack.c.h.b16 %v1825
    %v4714 = vunpack.c.l.b16 %v1826
    %v4715 = vunpack.c.h.b16 %v1826
    %v4716 = vunpack.c.l.b16 %v1827
    %v4717 = vunpack.c.h.b16 %v1827
    %v4718 = vunpack.c.l.b16 %v1828
    %v4719 = vunpack.c.h.b16 %v1828
    %v4720 = vunpack.c.l.b16 %v1829
    %v4721 = vunpack.c.h.b16 %v1829
    %v4722 = vunpack.c.l.b16 %v1830
    %v4723 = vunpack.c.h.b16 %v1830
    %v4724 = vunpack.c.l.b16 %v1831
    %v4725 = vunpack.c.h.b16 %v1831
    %v4726 = vunpack.c.l.b16 %v1832
    %v4727 = vunpack.c.h.b16 %v1832
    %v4728 = vunpack.c.l.b16 %v1833
    %v4729 = vunpack.c.h.b16 %v1833
    %v4730 = vunpack.c.l.b16 %v1834
    %v4731 = vunpack.c.h.b16 %v1834
    %v4732 = vunpack.c.l.b16 %v1835
    %v4733 = vunpack.c.h.b16 %v1835
    %v4734 = vunpack.c.l.b16 %v1836
    %v4735 = vunpack.c.h.b16 %v1836
    %v4736 = vunpack.c.l.b16 %v1837
    %v4737 = vunpack.c.h.b16 %v1837
    %v4738 = vunpack.c.l.b16 %v1838
    %v4739 = vunpack.c.h.b16 %v1838
    %v4740 = vunpack.c.l.b16 %v1839
    %v4741 = vunpack.c.h.b16 %v1839
    %v4742 = vunpack.c.l.b16 %v1840
    %v4743 = vunpack.c.h.b16 %v1840
    %v4744 = vunpack.c.l.b16 %v1841
    %v4745 = vunpack.c.h.b16 %v1841
    %v4746 = vunpack.c.l.b16 %v1842
    %v4747 = vunpack.c.h.b16 %v1842
    %v4748 = vunpack.c.l.b16 %v1843
    %v4749 = vunpack.c.h.b16 %v1843
    %v4750 = vunpack.c.l.b16 %v1844
    %v4751 = vunpack.c.h.b16 %v1844
    %v4752 = vunpack.c.l.b16 %v1845
    %v4753 = vunpack.c.h.b16 %v1845
    %v4754 = vunpack.c.l.b16 %v1846
    %v4755 = vunpack.c.h.b16 %v1846
    %v4756 = vunpack.c.l.b16 %v1847
    %v4757 = vunpack.c.h.b16 %v1847
    %v4758 = vunpack.c.l.b16 %v1848
    %v4759 = vunpack.c.h.b16 %v1848
    %v4760 = vunpack.c.l.b16 %v1849
    %v4761 = vunpack.c.h.b16 %v1849
    %v4762 = vunpack.c.l.b16 %v1850
    %v4763 = vunpack.c.h.b16 %v1850
    %v4764 = vunpack.c.l.b16 %v1851
    %v4765 = vunpack.c.h.b16 %v1851
    %v4766 = vunpack.c.l.b16 %v1852
    %v4767 = vunpack.c.h.b16 %v1852
    %v4768 = vunpack.c.l.b16 %v1853
    %v4769 = vunpack.c.h.b16 %v1853
    %v4770 = vunpack.c.l.b16 %v1854
    %v4771 = vunpack.c.h.b16 %v1854
    %v4772 = vunpack.c.l.b16 %v1855
    %v4773 = vunpack.c.h.b16 %v1855
    %v4774 = vunpack.c.l.b16 %v1856
    %v4775 = vunpack.c.h.b16 %v1856
    %v4776 = vunpack.c.l.b16 %v1857
    %v4777 = vunpack.c.h.b16 %v1857
    %v4778 = vunpack.c.l.b16 %v1858
    %v4779 = vunpack.c.h.b16 %v1858
    %v4780 = vunpack.c.l.b16 %v1859
    %v4781 = vunpack.c.h.b16 %v1859
    %v4782 = vunpack.c.l.b16 %v1860
    %v4783 = vunpack.c.h.b16 %v1860
    %v4784 = vunpack.c.l.b16 %v1861
    %v4785 = vunpack.c.h.b16 %v1861
    %v4786 = vunpack.c.l.b16 %v1862
    %v4787 = vunpack.c.h.b16 %v1862
    %v4788 = vunpack.c.l.b16 %v1863
    %v4789 = vunpack.c.h.b16 %v1863
    %v4790 = vunpack.c.l.b16 %v1864
    %v4791 = vunpack.c.h.b16 %v1864
    %v4792 = vunpack.c.l.b16 %v1865
    %v4793 = vunpack.c.h.b16 %v1865
    %v4794 = vunpack.c.l.b16 %v1866
    %v4795 = vunpack.c.h.b16 %v1866
    %v4796 = vunpack.c.l.b16 %v1867
    %v4797 = vunpack.c.h.b16 %v1867
    %v4798 = vunpack.c.l.b16 %v1868
    %v4799 = vunpack.c.h.b16 %v1868
    %v4800 = vunpack.c.l.b16 %v1869
    %v4801 = vunpack.c.h.b16 %v1869
    %v4802 = vunpack.c.l.b16 %v1870
    %v4803 = vunpack.c.h.b16 %v1870
    %v4804 = vunpack.c.l.b16 %v1871
    %v4805 = vunpack.c.h.b16 %v1871
    %v4806 = vunpack.c.l.b16 %v1872
    %v4807 = vunpack.c.h.b16 %v1872
    %v4808 = vunpack.c.l.b16 %v1873
    %v4809 = vunpack.c.h.b16 %v1873
    %v4810 = vunpack.c.l.b16 %v1874
    %v4811 = vunpack.c.h.b16 %v1874
    %v4812 = vunpack.c.l.b16 %v1875
    %v4813 = vunpack.c.h.b16 %v1875
    %v4814 = vunpack.c.l.b16 %v1876
    %v4815 = vunpack.c.h.b16 %v1876
    %v4816 = vunpack.c.l.b16 %v1877
    %v4817 = vunpack.c.h.b16 %v1877
    %v4818 = vunpack.c.l.b16 %v1878
    %v4819 = vunpack.c.h.b16 %v1878
    %v4820 = vunpack.c.l.b16 %v1879
    %v4821 = vunpack.c.h.b16 %v1879
    %v4822 = vunpack.c.l.b16 %v1880
    %v4823 = vunpack.c.h.b16 %v1880
    %v4824 = vunpack.c.l.b16 %v1881
    %v4825 = vunpack.c.h.b16 %v1881
    %v4826 = vunpack.c.l.b16 %v1882
    %v4827 = vunpack.c.h.b16 %v1882
    %v4828 = vunpack.c.l.b16 %v1883
    %v4829 = vunpack.c.h.b16 %v1883
    %v4830 = vunpack.c.l.b16 %v1884
    %v4831 = vunpack.c.h.b16 %v1884
    %v4832 = vunpack.c.l.b16 %v1885
    %v4833 = vunpack.c.h.b16 %v1885
    %v4834 = vunpack.c.l.b16 %v1886
    %v4835 = vunpack.c.h.b16 %v1886
    %v4836 = vunpack.c.l.b16 %v1887
    %v4837 = vunpack.c.h.b16 %v1887
    %v4838 = vunpack.c.l.b16 %v1888
    %v4839 = vunpack.c.h.b16 %v1888
    %v4840 = vunpack.c.l.b16 %v1889
    %v4841 = vunpack.c.h.b16 %v1889
    %v4842 = vunpack.c.l.b16 %v1890
    %v4843 = vunpack.c.h.b16 %v1890
    %v4844 = vunpack.c.l.b16 %v1891
    %v4845 = vunpack.c.h.b16 %v1891
    %v4846 = vunpack.c.l.b16 %v1892
    %v4847 = vunpack.c.h.b16 %v1892
    %v4848 = vunpack.c.l.b16 %v1893
    %v4849 = vunpack.c.h.b16 %v1893
    %v4850 = vunpack.c.l.b16 %v1894
    %v4851 = vunpack.c.h.b16 %v1894
    %v4852 = vunpack.c.l.b16 %v1895
    %v4853 = vunpack.c.h.b16 %v1895
    %v4854 = vunpack.c.l.b16 %v1896
    %v4855 = vunpack.c.h.b16 %v1896
    %v4856 = vunpack.c.l.b16 %v1897
    %v4857 = vunpack.c.h.b16 %v1897
    %v4858 = vunpack.c.l.b16 %v1898
    %v4859 = vunpack.c.h.b16 %v1898
    %v4860 = vunpack.c.l.b16 %v1899
    %v4861 = vunpack.c.h.b16 %v1899
    %v4862 = vunpack.c.l.b16 %v1900
    %v4863 = vunpack.c.h.b16 %v1900
    %v4864 = vunpack.c.l.b16 %v1901
    %v4865 = vunpack.c.h.b16 %v1901
    %v4866 = vunpack.c.l.b16 %v1902
    %v4867 = vunpack.c.h.b16 %v1902
    %v4868 = vunpack.c.l.b16 %v1903
    %v4869 = vunpack.c.h.b16 %v1903
    %v4870 = vunpack.c.l.b16 %v1904
    %v4871 = vunpack.c.h.b16 %v1904
    %v4872 = vunpack.c.l.b16 %v1905
    %v4873 = vunpack.c.h.b16 %v1905
    %v4874 = vunpack.c.l.b16 %v1906
    %v4875 = vunpack.c.h.b16 %v1906
    %v4876 = vunpack.c.l.b16 %v1907
    %v4877 = vunpack.c.h.b16 %v1907
    %v4878 = vunpack.c.l.b16 %v1908
    %v4879 = vunpack.c.h.b16 %v1908
    %v4880 = vunpack.c.l.b16 %v1909
    %v4881 = vunpack.c.h.b16 %v1909
    %v4882 = vunpack.c.l.b16 %v1910
    %v4883 = vunpack.c.h.b16 %v1910
    %v4884 = vunpack.c.l.b16 %v1911
    %v4885 = vunpack.c.h.b16 %v1911
    %v4886 = vunpack.c.l.b16 %v1912
    %v4887 = vunpack.c.h.b16 %v1912
    %v4888 = vunpack.c.l.b16 %v1913
    %v4889 = vunpack.c.h.b16 %v1913
    %v4890 = vunpack.c.l.b16 %v1914
    %v4891 = vunpack.c.h.b16 %v1914
    %v4892 = vunpack.c.l.b16 %v1915
    %v4893 = vunpack.c.h.b16 %v1915
    %v4894 = vunpack.c.l.b16 %v1916
    %v4895 = vunpack.c.h.b16 %v1916
    %v4896 = vunpack.c.l.b16 %v1917
    %v4897 = vunpack.c.h.b16 %v1917
    %v4898 = vunpack.c.l.b16 %v1918
    %v4899 = vunpack.c.h.b16 %v1918
    %v4900 = vunpack.c.l.b16 %v1919
    %v4901 = vunpack.c.h.b16 %v1919
    %v4902 = vunpack.c.l.b16 %v1920
    %v4903 = vunpack.c.h.b16 %v1920
    %v4904 = vunpack.c.l.b16 %v1921
    %v4905 = vunpack.c.h.b16 %v1921
    %v4906 = vunpack.c.l.b16 %v1922
    %v4907 = vunpack.c.h.b16 %v1922
    %v4908 = vunpack.c.l.b16 %v1923
    %v4909 = vunpack.c.h.b16 %v1923
    %v4910 = vunpack.c.l.b16 %v1924
    %v4911 = vunpack.c.h.b16 %v1924
    %v4912 = vunpack.c.l.b16 %v1925
    %v4913 = vunpack.c.h.b16 %v1925
    %v4914 = vunpack.c.l.b16 %v1926
    %v4915 = vunpack.c.h.b16 %v1926
    %v4916 = vunpack.c.l.b16 %v1927
    %v4917 = vunpack.c.h.b16 %v1927
    %v4918 = vunpack.c.l.b16 %v1928
    %v4919 = vunpack.c.h.b16 %v1928
    %v4920 = vunpack.c.l.b16 %v1929
    %v4921 = vunpack.c.h.b16 %v1929
    %v4922 = vunpack.c.l.b16 %v1930
    %v4923 = vunpack.c.h.b16 %v1930
    %v4924 = vunpack.c.l.b16 %v1931
    %v4925 = vunpack.c.h.b16 %v1931
    %v4926 = vunpack.c.l.b16 %v1932
    %v4927 = vunpack.c.h.b16 %v1932
    %v4928 = vunpack.c.l.b16 %v1933
    %v4929 = vunpack.c.h.b16 %v1933
    %v4930 = vunpack.c.l.b16 %v1934
    %v4931 = vunpack.c.h.b16 %v1934
    %v4932 = vunpack.c.l.b16 %v1935
    %v4933 = vunpack.c.h.b16 %v1935
    %v4934 = vunpack.c.l.b16 %v1936
    %v4935 = vunpack.c.h.b16 %v1936
    %v4936 = vunpack.c.l.b16 %v1937
    %v4937 = vunpack.c.h.b16 %v1937
    %v4938 = vunpack.c.l.b16 %v1938
    %v4939 = vunpack.c.h.b16 %v1938
    %v4940 = vunpack.c.l.b16 %v1939
    %v4941 = vunpack.c.h.b16 %v1939
    %v4942 = vunpack.c.l.b16 %v1940
    %v4943 = vunpack.c.h.b16 %v1940
    %v4944 = vunpack.c.l.b16 %v1941
    %v4945 = vunpack.c.h.b16 %v1941
    %v4946 = vunpack.c.l.b16 %v1942
    %v4947 = vunpack.c.h.b16 %v1942
    %v4948 = vunpack.c.l.b16 %v1943
    %v4949 = vunpack.c.h.b16 %v1943
    %v4950 = vunpack.c.l.b16 %v1944
    %v4951 = vunpack.c.h.b16 %v1944
    %v4952 = vunpack.c.l.b16 %v1945
    %v4953 = vunpack.c.h.b16 %v1945
    %v4954 = vunpack.c.l.b16 %v1946
    %v4955 = vunpack.c.h.b16 %v1946
    %v4956 = vunpack.c.l.b16 %v1947
    %v4957 = vunpack.c.h.b16 %v1947
    %v4958 = vunpack.c.l.b16 %v1948
    %v4959 = vunpack.c.h.b16 %v1948
    %v4960 = vunpack.c.l.b16 %v1949
    %v4961 = vunpack.c.h.b16 %v1949
    %v4962 = vunpack.c.l.b16 %v1950
    %v4963 = vunpack.c.h.b16 %v1950
    %v4964 = vunpack.c.l.b16 %v1951
    %v4965 = vunpack.c.h.b16 %v1951
    %v4966 = vunpack.c.l.b16 %v1952
    %v4967 = vunpack.c.h.b16 %v1952
    %v4968 = vunpack.c.l.b16 %v1953
    %v4969 = vunpack.c.h.b16 %v1953
    %v4970 = vunpack.c.l.b16 %v1954
    %v4971 = vunpack.c.h.b16 %v1954
    %v4972 = vunpack.c.l.b16 %v1955
    %v4973 = vunpack.c.h.b16 %v1955
    %v4974 = vunpack.c.l.b16 %v1956
    %v4975 = vunpack.c.h.b16 %v1956
    %v4976 = vunpack.c.l.b16 %v1957
    %v4977 = vunpack.c.h.b16 %v1957
    %v4978 = vunpack.c.l.b16 %v1958
    %v4979 = vunpack.c.h.b16 %v1958
    %v4980 = vunpack.c.l.b16 %v1959
    %v4981 = vunpack.c.h.b16 %v1959
    %v4982 = vunpack.c.l.b16 %v1960
    %v4983 = vunpack.c.h.b16 %v1960
    %v4984 = vunpack.c.l.b16 %v1961
    %v4985 = vunpack.c.h.b16 %v1961
    %v4986 = vunpack.c.l.b16 %v1962
    %v4987 = vunpack.c.h.b16 %v1962
    %v4988 = vunpack.c.l.b16 %v1963
    %v4989 = vunpack.c.h.b16 %v1963
    %v4990 = vunpack.c.l.b16 %v1964
    %v4991 = vunpack.c.h.b16 %v1964
    %v4992 = vunpack.c.l.b16 %v1965
    %v4993 = vunpack.c.h.b16 %v1965
    %v4994 = vunpack.c.l.b16 %v1966
    %v4995 = vunpack.c.h.b16 %v1966
    %v4996 = vunpack.c.l.b16 %v1967
    %v4997 = vunpack.c.h.b16 %v1967
    %v4998 = vunpack.c.l.b16 %v1968
    %v4999 = vunpack.c.h.b16 %v1968
    %v5000 = vunpack.c.l.b16 %v1969
    %v5001 = vunpack.c.h.b16 %v1969
    %v5002 = vunpack.c.l.b16 %v1970
    %v5003 = vunpack.c.h.b16 %v1970
    %v5004 = vunpack.c.l.b16 %v1971
    %v5005 = vunpack.c.h.b16 %v1971
    %v5006 = vunpack.c.l.b16 %v1972
    %v5007 = vunpack.c.h.b16 %v1972
    %v5008 = vunpack.c.l.b16 %v1973
    %v5009 = vunpack.c.h.b16 %v1973
    %v5010 = vunpack.c.l.b16 %v1974
    %v5011 = vunpack.c.h.b16 %v1974
    %v5012 = vunpack.c.l.b16 %v1975
    %v5013 = vunpack.c.h.b16 %v1975
    %v5014 = vunpack.c.l.b16 %v1976
    %v5015 = vunpack.c.h.b16 %v1976
    %v5016 = vunpack.c.l.b16 %v1977
    %v5017 = vunpack.c.h.b16 %v1977
    %v5018 = vunpack.c.l.b16 %v1978
    %v5019 = vunpack.c.h.b16 %v1978
    %v5020 = vunpack.c.l.b16 %v1979
    %v5021 = vunpack.c.h.b16 %v1979
    %v5022 = vunpack.c.l.b16 %v1980
    %v5023 = vunpack.c.h.b16 %v1980
    %v5024 = vunpack.c.l.b16 %v1981
    %v5025 = vunpack.c.h.b16 %v1981
    %v5026 = vunpack.c.l.b16 %v1982
    %v5027 = vunpack.c.h.b16 %v1982
    %v5028 = vunpack.c.l.b16 %v1983
    %v5029 = vunpack.c.h.b16 %v1983
    %v5030 = vunpack.c.l.b16 %v1984
    %v5031 = vunpack.c.h.b16 %v1984
    %v5032 = vunpack.c.l.b16 %v1985
    %v5033 = vunpack.c.h.b16 %v1985
    %v5034 = vunpack.c.l.b16 %v1986
    %v5035 = vunpack.c.h.b16 %v1986
    %v5036 = vunpack.c.l.b16 %v1987
    %v5037 = vunpack.c.h.b16 %v1987
    %v5038 = vunpack.c.l.b16 %v1988
    %v5039 = vunpack.c.h.b16 %v1988
    %v5040 = vunpack.c.l.b16 %v1989
    %v5041 = vunpack.c.h.b16 %v1989
    %v5042 = vunpack.c.l.b16 %v1990
    %v5043 = vunpack.c.h.b16 %v1990
    %v5044 = vunpack.c.l.b16 %v1991
    %v5045 = vunpack.c.h.b16 %v1991
    %v5046 = vunpack.c.l.b16 %v1992
    %v5047 = vunpack.c.h.b16 %v1992
    %v5048 = vunpack.c.l.b16 %v1993
    %v5049 = vunpack.c.h.b16 %v1993
    %v5050 = vunpack.c.l.b16 %v1994
    %v5051 = vunpack.c.h.b16 %v1994
    %v5052 = vunpack.c.l.b16 %v1995
    %v5053 = vunpack.c.h.b16 %v1995
    %v5054 = vunpack.c.l.b16 %v1996
    %v5055 = vunpack.c.h.b16 %v1996
    %v5056 = vunpack.c.l.b16 %v1997
    %v5057 = vunpack.c.h.b16 %v1997
    %v5058 = vunpack.c.l.b16 %v1998
    %v5059 = vunpack.c.h.b16 %v1998
    %v5060 = vunpack.c.l.b16 %v1999
    %v5061 = vunpack.c.h.b16 %v1999
    %v5062 = vunpack.c.l.b16 %v2000
    %v5063 = vunpack.c.h.b16 %v2000
    %v5064 = vunpack.c.l.b16 %v2001
    %v5065 = vunpack.c.h.b16 %v2001
    %v5066 = vunpack.c.l.b16 %v2002
    %v5067 = vunpack.c.h.b16 %v2002
    %v5068 = vunpack.c.l.b16 %v2003
    %v5069 = vunpack.c.h.b16 %v2003
    %v5070 = vunpack.c.l.b16 %v2004
    %v5071 = vunpack.c.h.b16 %v2004
    %v5072 = vunpack.c.l.b16 %v2005
    %v5073 = vunpack.c.h.b16 %v2005
    %v5074 = vunpack.c.l.b16 %v2006
    %v5075 = vunpack.c.h.b16 %v2006
    %v5076 = vunpack.c.l.b16 %v2007
    %v5077 = vunpack.c.h.b16 %v2007
    %v5078 = vunpack.c.l.b16 %v2008
    %v5079 = vunpack.c.h.b16 %v2008
    %v5080 = vunpack.c.l.b16 %v2009
    %v5081 = vunpack.c.h.b16 %v2009
    %v5082 = vunpack.c.l.b16 %v2010
    %v5083 = vunpack.c.h.b16 %v2010
    %v5084 = vunpack.c.l.b16 %v2011
    %v5085 = vunpack.c.h.b16 %v2011
    %v5086 = vunpack.c.l.b16 %v2012
    %v5087 = vunpack.c.h.b16 %v2012
    %v5088 = vunpack.c.l.b16 %v2013
    %v5089 = vunpack.c.h.b16 %v2013
    %v5090 = vunpack.c.l.b16 %v2014
    %v5091 = vunpack.c.h.b16 %v2014
    %v5092 = vunpack.c.l.b16 %v2015
    %v5093 = vunpack.c.h.b16 %v2015
    %v5094 = vunpack.c.l.b16 %v2016
    %v5095 = vunpack.c.h.b16 %v2016
    %v5096 = vunpack.c.l.b16 %v2017
    %v5097 = vunpack.c.h.b16 %v2017
    %v5098 = vunpack.c.l.b16 %v2018
    %v5099 = vunpack.c.h.b16 %v2018
    %v5100 = vunpack.c.l.b16 %v2019
    %v5101 = vunpack.c.h.b16 %v2019
    %v5102 = vunpack.c.l.b16 %v2020
    %v5103 = vunpack.c.h.b16 %v2020
    %v5104 = vunpack.c.l.b16 %v2021
    %v5105 = vunpack.c.h.b16 %v2021
    %v5106 = vunpack.c.l.b16 %v2022
    %v5107 = vunpack.c.h.b16 %v2022
    %v5108 = vunpack.c.l.b16 %v2023
    %v5109 = vunpack.c.h.b16 %v2023
    %v5110 = vunpack.c.l.b16 %v2024
    %v5111 = vunpack.c.h.b16 %v2024
    %v5112 = vunpack.c.l.b16 %v2025
    %v5113 = vunpack.c.h.b16 %v2025
    %v5114 = vunpack.c.l.b16 %v2026
    %v5115 = vunpack.c.h.b16 %v2026
    %v5116 = vunpack.c.l.b16 %v2027
    %v5117 = vunpack.c.h.b16 %v2027
    %v5118 = vpack.c.b16 %v3078, %v3070
    %v5119 = vpack.c.b16 %v3079, %v3071
    %v5120 = vpack.c.b16 %v3080, %v3072
    %v5121 = vpack.c.b16 %v3081, %v3073
    %v5122 = vpack.c.b16 %v3082, %v3074
    %v5123 = vpack.c.b16 %v3083, %v3075
    %v5124 = vpack.c.b16 %v3084, %v3076
    %v5125 = vpack.c.b16 %v3085, %v3077
    %v5126 = vpack.c.b16 %v3094, %v3086
    %v5127 = vpack.c.b16 %v3095, %v3087
    %v5128 = vpack.c.b16 %v3096, %v3088
    %v5129 = vpack.c.b16 %v3097, %v3089
    %v5130 = vpack.c.b16 %v3098, %v3090
    %v5131 = vpack.c.b16 %v3099, %v3091
    %v5132 = vpack.c.b16 %v3100, %v3092
    %v5133 = vpack.c.b16 %v3101, %v3093
    %v5134 = vpack.c.b16 %v3110, %v3102
    %v5135 = vpack.c.b16 %v3111, %v3103
    %v5136 = vpack.c.b16 %v3112, %v3104
    %v5137 = vpack.c.b16 %v3113, %v3105
    %v5138 = vpack.c.b16 %v3114, %v3106
    %v5139 = vpack.c.b16 %v3115, %v3107
    %v5140 = vpack.c.b16 %v3116, %v3108
    %v5141 = vpack.c.b16 %v3117, %v3109
    %v5142 = vpack.c.b16 %v3126, %v3118
    %v5143 = vpack.c.b16 %v3127, %v3119
    %v5144 = vpack.c.b16 %v3128, %v3120
    %v5145 = vpack.c.b16 %v3129, %v3121
    %v5146 = vpack.c.b16 %v3130, %v3122
    %v5147 = vpack.c.b16 %v3131, %v3123
    %v5148 = vpack.c.b16 %v3132, %v3124
    %v5149 = vpack.c.b16 %v3133, %v3125
    %v5150 = vpack.c.b16 %v3142, %v3134
    %v5151 = vpack.c.b16 %v3143, %v3135
    %v5152 = vpack.c.b16 %v3144, %v3136
    %v5153 = vpack.c.b16 %v3145, %v3137
    %v5154 = vpack.c.b16 %v3146, %v3138
    %v5155 = vpack.c.b16 %v3147, %v3139
    %v5156 = vpack.c.b16 %v3148, %v3140
    %v5157 = vpack.c.b16 %v3149, %v3141
    %v5158 = vpack.c.b16 %v3158, %v3150
    %v5159 = vpack.c.b16 %v3159, %v3151
    %v5160 = vpack.c.b16 %v3160, %v3152
    %v5161 = vpack.c.b16 %v3161, %v3153
    %v5162 = vpack.c.b16 %v3162, %v3154
    %v5163 = vpack.c.b16 %v3163, %v3155
    %v5164 = vpack.c.b16 %v3164, %v3156
    %v5165 = vpack.c.b16 %v3165, %v3157
    %v5166 = vpack.c.b16 %v3174, %v3166
    %v5167 = vpack.c.b16 %v3175, %v3167
    %v5168 = vpack.c.b16 %v3176, %v3168
    %v5169 = vpack.c.b16 %v3177, %v3169
    %v5170 = vpack.c.b16 %v3178, %v3170
    %v5171 = vpack.c.b16 %v3179, %v3171
    %v5172 = vpack.c.b16 %v3180, %v3172
    %v5173 = vpack.c.b16 %v3181, %v3173
    %v5174 = vpack.c.b16 %v3190, %v3182
    %v5175 = vpack.c.b16 %v3191, %v3183
    %v5176 = vpack.c.b16 %v3192, %v3184
    %v5177 = vpack.c.b16 %v3193, %v3185
    %v5178 = vpack.c.b16 %v3194, %v3186
    %v5179 = vpack.c.b16 %v3195, %v3187
    %v5180 = vpack.c.b16 %v3196, %v3188
    %v5181 = vpack.c.b16 %v3197, %v3189
    %v5182 = vpack.c.b16 %v3206, %v3198
    %v5183 = vpack.c.b16 %v3207, %v3199
    %v5184 = vpack.c.b16 %v3208, %v3200
    %v5185 = vpack.c.b16 %v3209, %v3201
    %v5186 = vpack.c.b16 %v3210, %v3202
    %v5187 = vpack.c.b16 %v3211, %v3203
    %v5188 = vpack.c.b16 %v3212, %v3204
    %v5189 = vpack.c.b16 %v3213, %v3205
    %v5190 = vpack.c.b16 %v3222, %v3214
    %v5191 = vpack.c.b16 %v3223, %v3215
    %v5192 = vpack.c.b16 %v3224, %v3216
    %v5193 = vpack.c.b16 %v3225, %v3217
    %v5194 = vpack.c.b16 %v3226, %v3218
    %v5195 = vpack.c.b16 %v3227, %v3219
    %v5196 = vpack.c.b16 %v3228, %v3220
    %v5197 = vpack.c.b16 %v3229, %v3221
    %v5198 = vpack.c.b16 %v3238, %v3230
    %v5199 = vpack.c.b16 %v3239, %v3231
    %v5200 = vpack.c.b16 %v3240, %v3232
    %v5201 = vpack.c.b16 %v3241, %v3233
    %v5202 = vpack.c.b16 %v3242, %v3234
    %v5203 = vpack.c.b16 %v3243, %v3235
    %v5204 = vpack.c.b16 %v3244, %v3236
    %v5205 = vpack.c.b16 %v3245, %v3237
    %v5206 = vpack.c.b16 %v3254, %v3246
    %v5207 = vpack.c.b16 %v3255, %v3247
    %v5208 = vpack.c.b16 %v3256, %v3248
    %v5209 = vpack.c.b16 %v3257, %v3249
    %v5210 = vpack.c.b16 %v3258, %v3250
    %v5211 = vpack.c.b16 %v3259, %v3251
    %v5212 = vpack.c.b16 %v3260, %v3252
    %v5213 = vpack.c.b16 %v3261, %v3253
    %v5214 = vpack.c.b16 %v3270, %v3262
    %v5215 = vpack.c.b16 %v3271, %v3263
    %v5216 = vpack.c.b16 %v3272, %v3264
    %v5217 = vpack.c.b16 %v3273, %v3265
    %v5218 = vpack.c.b16 %v3274, %v3266
    %v5219 = vpack.c.b16 %v3275, %v3267
    %v5220 = vpack.c.b16 %v3276, %v3268
    %v5221 = vpack.c.b16 %v3277, %v3269
    %v5222 = vpack.c.b16 %v3286, %v3278
    %v5223 = vpack.c.b16 %v3287, %v3279
    %v5224 = vpack.c.b16 %v3288, %v3280
    %v5225 = vpack.c.b16 %v3289, %v3281
    %v5226 = vpack.c.b16 %v3290, %v3282
    %v5227 = vpack.c.b16 %v3291, %v3283
    %v5228 = vpack.c.b16 %v3292, %v3284
    %v5229 = vpack.c.b16 %v3293, %v3285
    %v5230 = vpack.c.b16 %v3302, %v3294
    %v5231 = vpack.c.b16 %v3303, %v3295
    %v5232 = vpack.c.b16 %v3304, %v3296
    %v5233 = vpack.c.b16 %v3305, %v3297
    %v5234 = vpack.c.b16 %v3306, %v3298
    %v5235 = vpack.c.b16 %v3307, %v3299
    %v5236 = vpack.c.b16 %v3308, %v3300
    %v5237 = vpack.c.b16 %v3309, %v3301
    %v5238 = vpack.c.b16 %v3318, %v3310
    %v5239 = vpack.c.b16 %v3319, %v3311
    %v5240 = vpack.c.b16 %v3320, %v3312
    %v5241 = vpack.c.b16 %v3321, %v3313
    %v5242 = vpack.c.b16 %v3322, %v3314
    %v5243 = vpack.c.b16 %v3323, %v3315
    %v5244 = vpack.c.b16 %v3324, %v3316
    %v5245 = vpack.c.b16 %v3325, %v3317
    %v5246 = vpack.c.b16 %v3334, %v3326
    %v5247 = vpack.c.b16 %v3335, %v3327
    %v5248 = vpack.c.b16 %v3336, %v3328
    %v5249 = vpack.c.b16 %v3337, %v3329
    %v5250 = vpack.c.b16 %v3338, %v3330
    %v5251 = vpack.c.b16 %v3339, %v3331
    %v5252 = vpack.c.b16 %v3340, %v3332
    %v5253 = vpack.c.b16 %v3341, %v3333
    %v5254 = vpack.c.b16 %v3350, %v3342
    %v5255 = vpack.c.b16 %v3351, %v3343
    %v5256 = vpack.c.b16 %v3352, %v3344
    %v5257 = vpack.c.b16 %v3353, %v3345
    %v5258 = vpack.c.b16 %v3354, %v3346
    %v5259 = vpack.c.b16 %v3355, %v3347
    %v5260 = vpack.c.b16 %v3356, %v3348
    %v5261 = vpack.c.b16 %v3357, %v3349
    %v5262 = vpack.c.b16 %v3366, %v3358
    %v5263 = vpack.c.b16 %v3367, %v3359
    %v5264 = vpack.c.b16 %v3368, %v3360
    %v5265 = vpack.c.b16 %v3369, %v3361
    %v5266 = vpack.c.b16 %v3370, %v3362
    %v5267 = vpack.c.b16 %v3371, %v3363
    %v5268 = vpack.c.b16 %v3372, %v3364
    %v5269 = vpack.c.b16 %v3373, %v3365
    %v5270 = vpack.c.b16 %v3382, %v3374
    %v5271 = vpack.c.b16 %v3383, %v3375
    %v5272 = vpack.c.b16 %v3384, %v3376
    %v5273 = vpack.c.b16 %v3385, %v3377
    %v5274 = vpack.c.b16 %v3386, %v3378
    %v5275 = vpack.c.b16 %v3387, %v3379
    %v5276 = vpack.c.b16 %v3388, %v3380
    %v5277 = vpack.c.b16 %v3389, %v3381
    %v5278 = vpack.c.b16 %v3398, %v3390
    %v5279 = vpack.c.b16 %v3399, %v3391
    %v5280 = vpack.c.b16 %v3400, %v3392
    %v5281 = vpack.c.b16 %v3401, %v3393
    %v5282 = vpack.c.b16 %v3402, %v3394
    %v5283 = vpack.c.b16 %v3403, %v3395
    %v5284 = vpack.c.b16 %v3404, %v3396
    %v5285 = vpack.c.b16 %v3405, %v3397
    %v5286 = vpack.c.b16 %v3414, %v3406
    %v5287 = vpack.c.b16 %v3415, %v3407
    %v5288 = vpack.c.b16 %v3416, %v3408
    %v5289 = vpack.c.b16 %v3417, %v3409
    %v5290 = vpack.c.b16 %v3418, %v3410
    %v5291 = vpack.c.b16 %v3419, %v3411
    %v5292 = vpack.c.b16 %v3420, %v3412
    %v5293 = vpack.c.b16 %v3421, %v3413
    %v5294 = vpack.c.b16 %v3430, %v3422
    %v5295 = vpack.c.b16 %v3431, %v3423
    %v5296 = vpack.c.b16 %v3432, %v3424
    %v5297 = vpack.c.b16 %v3433, %v3425
    %v5298 = vpack.c.b16 %v3434, %v3426
    %v5299 = vpack.c.b16 %v3435, %v3427
    %v5300 = vpack.c.b16 %v3436, %v3428
    %v5301 = vpack.c.b16 %v3437, %v3429
    %v5302 = vpack.c.b16 %v3446, %v3438
    %v5303 = vpack.c.b16 %v3447, %v3439
    %v5304 = vpack.c.b16 %v3448, %v3440
    %v5305 = vpack.c.b16 %v3449, %v3441
    %v5306 = vpack.c.b16 %v3450, %v3442
    %v5307 = vpack.c.b16 %v3451, %v3443
    %v5308 = vpack.c.b16 %v3452, %v3444
    %v5309 = vpack.c.b16 %v3453, %v3445
    %v5310 = vpack.c.b16 %v3462, %v3454
    %v5311 = vpack.c.b16 %v3463, %v3455
    %v5312 = vpack.c.b16 %v3464, %v3456
    %v5313 = vpack.c.b16 %v3465, %v3457
    %v5314 = vpack.c.b16 %v3466, %v3458
    %v5315 = vpack.c.b16 %v3467, %v3459
    %v5316 = vpack.c.b16 %v3468, %v3460
    %v5317 = vpack.c.b16 %v3469, %v3461
    %v5318 = vpack.c.b16 %v3478, %v3470
    %v5319 = vpack.c.b16 %v3479, %v3471
    %v5320 = vpack.c.b16 %v3480, %v3472
    %v5321 = vpack.c.b16 %v3481, %v3473
    %v5322 = vpack.c.b16 %v3482, %v3474
    %v5323 = vpack.c.b16 %v3483, %v3475
    %v5324 = vpack.c.b16 %v3484, %v3476
    %v5325 = vpack.c.b16 %v3485, %v3477
    %v5326 = vpack.c.b16 %v3494, %v3486
    %v5327 = vpack.c.b16 %v3495, %v3487
    %v5328 = vpack.c.b16 %v3496, %v3488
    %v5329 = vpack.c.b16 %v3497, %v3489
    %v5330 = vpack.c.b16 %v3498, %v3490
    %v5331 = vpack.c.b16 %v3499, %v3491
    %v5332 = vpack.c.b16 %v3500, %v3492
    %v5333 = vpack.c.b16 %v3501, %v3493
    %v5334 = vpack.c.b16 %v3510, %v3502
    %v5335 = vpack.c.b16 %v3511, %v3503
    %v5336 = vpack.c.b16 %v3512, %v3504
    %v5337 = vpack.c.b16 %v3513, %v3505
    %v5338 = vpack.c.b16 %v3514, %v3506
    %v5339 = vpack.c.b16 %v3515, %v3507
    %v5340 = vpack.c.b16 %v3516, %v3508
    %v5341 = vpack.c.b16 %v3517, %v3509
    %v5342 = vpack.c.b16 %v3526, %v3518
    %v5343 = vpack.c.b16 %v3527, %v3519
    %v5344 = vpack.c.b16 %v3528, %v3520
    %v5345 = vpack.c.b16 %v3529, %v3521
    %v5346 = vpack.c.b16 %v3530, %v3522
    %v5347 = vpack.c.b16 %v3531, %v3523
    %v5348 = vpack.c.b16 %v3532, %v3524
    %v5349 = vpack.c.b16 %v3533, %v3525
    %v5350 = vpack.c.b16 %v3542, %v3534
    %v5351 = vpack.c.b16 %v3543, %v3535
    %v5352 = vpack.c.b16 %v3544, %v3536
    %v5353 = vpack.c.b16 %v3545, %v3537
    %v5354 = vpack.c.b16 %v3546, %v3538
    %v5355 = vpack.c.b16 %v3547, %v3539
    %v5356 = vpack.c.b16 %v3548, %v3540
    %v5357 = vpack.c.b16 %v3549, %v3541
    %v5358 = vpack.c.b16 %v3558, %v3550
    %v5359 = vpack.c.b16 %v3559, %v3551
    %v5360 = vpack.c.b16 %v3560, %v3552
    %v5361 = vpack.c.b16 %v3561, %v3553
    %v5362 = vpack.c.b16 %v3562, %v3554
    %v5363 = vpack.c.b16 %v3563, %v3555
    %v5364 = vpack.c.b16 %v3564, %v3556
    %v5365 = vpack.c.b16 %v3565, %v3557
    %v5366 = vpack.c.b16 %v3574, %v3566
    %v5367 = vpack.c.b16 %v3575, %v3567
    %v5368 = vpack.c.b16 %v3576, %v3568
    %v5369 = vpack.c.b16 %v3577, %v3569
    %v5370 = vpack.c.b16 %v3578, %v3570
    %v5371 = vpack.c.b16 %v3579, %v3571
    %v5372 = vpack.c.b16 %v3580, %v3572
    %v5373 = vpack.c.b16 %v3581, %v3573
    %v5374 = vpack.c.b16 %v3590, %v3582
    %v5375 = vpack.c.b16 %v3591, %v3583
    %v5376 = vpack.c.b16 %v3592, %v3584
    %v5377 = vpack.c.b16 %v3593, %v3585
    %v5378 = vpack.c.b16 %v3594, %v3586
    %v5379 = vpack.c.b16 %v3595, %v3587
    %v5380 = vpack.c.b16 %v3596, %v3588
    %v5381 = vpack.c.b16 %v3597, %v3589
    %v5382 = vpack.c.b16 %v3606, %v3598
    %v5383 = vpack.c.b16 %v3607, %v3599
    %v5384 = vpack.c.b16 %v3608, %v3600
    %v5385 = vpack.c.b16 %v3609, %v3601
    %v5386 = vpack.c.b16 %v3610, %v3602
    %v5387 = vpack.c.b16 %v3611, %v3603
    %v5388 = vpack.c.b16 %v3612, %v3604
    %v5389 = vpack.c.b16 %v3613, %v3605
    %v5390 = vpack.c.b16 %v3622, %v3614
    %v5391 = vpack.c.b16 %v3623, %v3615
    %v5392 = vpack.c.b16 %v3624, %v3616
    %v5393 = vpack.c.b16 %v3625, %v3617
    %v5394 = vpack.c.b16 %v3626, %v3618
    %v5395 = vpack.c.b16 %v3627, %v3619
    %v5396 = vpack.c.b16 %v3628, %v3620
    %v5397 = vpack.c.b16 %v3629, %v3621
    %v5398 = vpack.c.b16 %v3638, %v3630
    %v5399 = vpack.c.b16 %v3639, %v3631
    %v5400 = vpack.c.b16 %v3640, %v3632
    %v5401 = vpack.c.b16 %v3641, %v3633
    %v5402 = vpack.c.b16 %v3642, %v3634
    %v5403 = vpack.c.b16 %v3643, %v3635
    %v5404 = vpack.c.b16 %v3644, %v3636
    %v5405 = vpack.c.b16 %v3645, %v3637
    %v5406 = vpack.c.b16 %v3654, %v3646
    %v5407 = vpack.c.b16 %v3655, %v3647
    %v5408 = vpack.c.b16 %v3656, %v3648
    %v5409 = vpack.c.b16 %v3657, %v3649
    %v5410 = vpack.c.b16 %v3658, %v3650
    %v5411 = vpack.c.b16 %v3659, %v3651
    %v5412 = vpack.c.b16 %v3660, %v3652
    %v5413 = vpack.c.b16 %v3661, %v3653
    %v5414 = vpack.c.b16 %v3670, %v3662
    %v5415 = vpack.c.b16 %v3671, %v3663
    %v5416 = vpack.c.b16 %v3672, %v3664
    %v5417 = vpack.c.b16 %v3673, %v3665
    %v5418 = vpack.c.b16 %v3674, %v3666
    %v5419 = vpack.c.b16 %v3675, %v3667
    %v5420 = vpack.c.b16 %v3676, %v3668
    %v5421 = vpack.c.b16 %v3677, %v3669
    %v5422 = vpack.c.b16 %v3686, %v3678
    %v5423 = vpack.c.b16 %v3687, %v3679
    %v5424 = vpack.c.b16 %v3688, %v3680
    %v5425 = vpack.c.b16 %v3689, %v3681
    %v5426 = vpack.c.b16 %v3690, %v3682
    %v5427 = vpack.c.b16 %v3691, %v3683
    %v5428 = vpack.c.b16 %v3692, %v3684
    %v5429 = vpack.c.b16 %v3693, %v3685
    %v5430 = vpack.c.b16 %v3702, %v3694
    %v5431 = vpack.c.b16 %v3703, %v3695
    %v5432 = vpack.c.b16 %v3704, %v3696
    %v5433 = vpack.c.b16 %v3705, %v3697
    %v5434 = vpack.c.b16 %v3706, %v3698
    %v5435 = vpack.c.b16 %v3707, %v3699
    %v5436 = vpack.c.b16 %v3708, %v3700
    %v5437 = vpack.c.b16 %v3709, %v3701
    %v5438 = vpack.c.b16 %v3718, %v3710
    %v5439 = vpack.c.b16 %v3719, %v3711
    %v5440 = vpack.c.b16 %v3720, %v3712
    %v5441 = vpack.c.b16 %v3721, %v3713
    %v5442 = vpack.c.b16 %v3722, %v3714
    %v5443 = vpack.c.b16 %v3723, %v3715
    %v5444 = vpack.c.b16 %v3724, %v3716
    %v5445 = vpack.c.b16 %v3725, %v3717
    %v5446 = vpack.c.b16 %v3734, %v3726
    %v5447 = vpack.c.b16 %v3735, %v3727
    %v5448 = vpack.c.b16 %v3736, %v3728
    %v5449 = vpack.c.b16 %v3737, %v3729
    %v5450 = vpack.c.b16 %v3738, %v3730
    %v5451 = vpack.c.b16 %v3739, %v3731
    %v5452 = vpack.c.b16 %v3740, %v3732
    %v5453 = vpack.c.b16 %v3741, %v3733
    %v5454 = vpack.c.b16 %v3750, %v3742
    %v5455 = vpack.c.b16 %v3751, %v3743
    %v5456 = vpack.c.b16 %v3752, %v3744
    %v5457 = vpack.c.b16 %v3753, %v3745
    %v5458 = vpack.c.b16 %v3754, %v3746
    %v5459 = vpack.c.b16 %v3755, %v3747
    %v5460 = vpack.c.b16 %v3756, %v3748
    %v5461 = vpack.c.b16 %v3757, %v3749
    %v5462 = vpack.c.b16 %v3766, %v3758
    %v5463 = vpack.c.b16 %v3767, %v3759
    %v5464 = vpack.c.b16 %v3768, %v3760
    %v5465 = vpack.c.b16 %v3769, %v3761
    %v5466 = vpack.c.b16 %v3770, %v3762
    %v5467 = vpack.c.b16 %v3771, %v3763
    %v5468 = vpack.c.b16 %v3772, %v3764
    %v5469 = vpack.c.b16 %v3773, %v3765
    %v5470 = vpack.c.b16 %v3782, %v3774
    %v5471 = vpack.c.b16 %v3783, %v3775
    %v5472 = vpack.c.b16 %v3784, %v3776
    %v5473 = vpack.c.b16 %v3785, %v3777
    %v5474 = vpack.c.b16 %v3786, %v3778
    %v5475 = vpack.c.b16 %v3787, %v3779
    %v5476 = vpack.c.b16 %v3788, %v3780
    %v5477 = vpack.c.b16 %v3789, %v3781
    %v5478 = vpack.c.b16 %v3798, %v3790
    %v5479 = vpack.c.b16 %v3799, %v3791
    %v5480 = vpack.c.b16 %v3800, %v3792
    %v5481 = vpack.c.b16 %v3801, %v3793
    %v5482 = vpack.c.b16 %v3802, %v3794
    %v5483 = vpack.c.b16 %v3803, %v3795
    %v5484 = vpack.c.b16 %v3804, %v3796
    %v5485 = vpack.c.b16 %v3805, %v3797
    %v5486 = vpack.c.b16 %v3814, %v3806
    %v5487 = vpack.c.b16 %v3815, %v3807
    %v5488 = vpack.c.b16 %v3816, %v3808
    %v5489 = vpack.c.b16 %v3817, %v3809
    %v5490 = vpack.c.b16 %v3818, %v3810
    %v5491 = vpack.c.b16 %v3819, %v3811
    %v5492 = vpack.c.b16 %v3820, %v3812
    %v5493 = vpack.c.b16 %v3821, %v3813
    %v5494 = vpack.c.b16 %v3830, %v3822
    %v5495 = vpack.c.b16 %v3831, %v3823
    %v5496 = vpack.c.b16 %v3832, %v3824
    %v5497 = vpack.c.b16 %v3833, %v3825
    %v5498 = vpack.c.b16 %v3834, %v3826
    %v5499 = vpack.c.b16 %v3835, %v3827
    %v5500 = vpack.c.b16 %v3836, %v3828
    %v5501 = vpack.c.b16 %v3837, %v3829
    %v5502 = vpack.c.b16 %v3846, %v3838
    %v5503 = vpack.c.b16 %v3847, %v3839
    %v5504 = vpack.c.b16 %v3848, %v3840
    %v5505 = vpack.c.b16 %v3849, %v3841
    %v5506 = vpack.c.b16 %v3850, %v3842
    %v5507 = vpack.c.b16 %v3851, %v3843
    %v5508 = vpack.c.b16 %v3852, %v3844
    %v5509 = vpack.c.b16 %v3853, %v3845
    %v5510 = vpack.c.b16 %v3862, %v3854
    %v5511 = vpack.c.b16 %v3863, %v3855
    %v5512 = vpack.c.b16 %v3864, %v3856
    %v5513 = vpack.c.b16 %v3865, %v3857
    %v5514 = vpack.c.b16 %v3866, %v3858
    %v5515 = vpack.c.b16 %v3867, %v3859
    %v5516 = vpack.c.b16 %v3868, %v3860
    %v5517 = vpack.c.b16 %v3869, %v3861
    %v5518 = vpack.c.b16 %v3878, %v3870
    %v5519 = vpack.c.b16 %v3879, %v3871
    %v5520 = vpack.c.b16 %v3880, %v3872
    %v5521 = vpack.c.b16 %v3881, %v3873
    %v5522 = vpack.c.b16 %v3882, %v3874
    %v5523 = vpack.c.b16 %v3883, %v3875
    %v5524 = vpack.c.b16 %v3884, %v3876
    %v5525 = vpack.c.b16 %v3885, %v3877
    %v5526 = vpack.c.b16 %v3894, %v3886
    %v5527 = vpack.c.b16 %v3895, %v3887
    %v5528 = vpack.c.b16 %v3896, %v3888
    %v5529 = vpack.c.b16 %v3897, %v3889
    %v5530 = vpack.c.b16 %v3898, %v3890
    %v5531 = vpack.c.b16 %v3899, %v3891
    %v5532 = vpack.c.b16 %v3900, %v3892
    %v5533 = vpack.c.b16 %v3901, %v3893
    %v5534 = vpack.c.b16 %v3910, %v3902
    %v5535 = vpack.c.b16 %v3911, %v3903
    %v5536 = vpack.c.b16 %v3912, %v3904
    %v5537 = vpack.c.b16 %v3913, %v3905
    %v5538 = vpack.c.b16 %v3914, %v3906
    %v5539 = vpack.c.b16 %v3915, %v3907
    %v5540 = vpack.c.b16 %v3916, %v3908
    %v5541 = vpack.c.b16 %v3917, %v3909
    %v5542 = vpack.c.b16 %v3926, %v3918
    %v5543 = vpack.c.b16 %v3927, %v3919
    %v5544 = vpack.c.b16 %v3928, %v3920
    %v5545 = vpack.c.b16 %v3929, %v3921
    %v5546 = vpack.c.b16 %v3930, %v3922
    %v5547 = vpack.c.b16 %v3931, %v3923
    %v5548 = vpack.c.b16 %v3932, %v3924
    %v5549 = vpack.c.b16 %v3933, %v3925
    %v5550 = vpack.c.b16 %v3942, %v3934
    %v5551 = vpack.c.b16 %v3943, %v3935
    %v5552 = vpack.c.b16 %v3944, %v3936
    %v5553 = vpack.c.b16 %v3945, %v3937
    %v5554 = vpack.c.b16 %v3946, %v3938
    %v5555 = vpack.c.b16 %v3947, %v3939
    %v5556 = vpack.c.b16 %v3948, %v3940
    %v5557 = vpack.c.b16 %v3949, %v3941
    %v5558 = vpack.c.b16 %v3958, %v3950
    %v5559 = vpack.c.b16 %v3959, %v3951
    %v5560 = vpack.c.b16 %v3960, %v3952
    %v5561 = vpack.c.b16 %v3961, %v3953
    %v5562 = vpack.c.b16 %v3962, %v3954
    %v5563 = vpack.c.b16 %v3963, %v3955
    %v5564 = vpack.c.b16 %v3964, %v3956
    %v5565 = vpack.c.b16 %v3965, %v3957
    %v5566 = vpack.c.b16 %v3974, %v3966
    %v5567 = vpack.c.b16 %v3975, %v3967
    %v5568 = vpack.c.b16 %v3976, %v3968
    %v5569 = vpack.c.b16 %v3977, %v3969
    %v5570 = vpack.c.b16 %v3978, %v3970
    %v5571 = vpack.c.b16 %v3979, %v3971
    %v5572 = vpack.c.b16 %v3980, %v3972
    %v5573 = vpack.c.b16 %v3981, %v3973
    %v5574 = vpack.c.b16 %v3990, %v3982
    %v5575 = vpack.c.b16 %v3991, %v3983
    %v5576 = vpack.c.b16 %v3992, %v3984
    %v5577 = vpack.c.b16 %v3993, %v3985
    %v5578 = vpack.c.b16 %v3994, %v3986
    %v5579 = vpack.c.b16 %v3995, %v3987
    %v5580 = vpack.c.b16 %v3996, %v3988
    %v5581 = vpack.c.b16 %v3997, %v3989
    %v5582 = vpack.c.b16 %v4006, %v3998
    %v5583 = vpack.c.b16 %v4007, %v3999
    %v5584 = vpack.c.b16 %v4008, %v4000
    %v5585 = vpack.c.b16 %v4009, %v4001
    %v5586 = vpack.c.b16 %v4010, %v4002
    %v5587 = vpack.c.b16 %v4011, %v4003
    %v5588 = vpack.c.b16 %v4012, %v4004
    %v5589 = vpack.c.b16 %v4013, %v4005
    %v5590 = vpack.c.b16 %v4022, %v4014
    %v5591 = vpack.c.b16 %v4023, %v4015
    %v5592 = vpack.c.b16 %v4024, %v4016
    %v5593 = vpack.c.b16 %v4025, %v4017
    %v5594 = vpack.c.b16 %v4026, %v4018
    %v5595 = vpack.c.b16 %v4027, %v4019
    %v5596 = vpack.c.b16 %v4028, %v4020
    %v5597 = vpack.c.b16 %v4029, %v4021
    %v5598 = vpack.c.b16 %v4038, %v4030
    %v5599 = vpack.c.b16 %v4039, %v4031
    %v5600 = vpack.c.b16 %v4040, %v4032
    %v5601 = vpack.c.b16 %v4041, %v4033
    %v5602 = vpack.c.b16 %v4042, %v4034
    %v5603 = vpack.c.b16 %v4043, %v4035
    %v5604 = vpack.c.b16 %v4044, %v4036
    %v5605 = vpack.c.b16 %v4045, %v4037
    %v5606 = vpack.c.b16 %v4054, %v4046
    %v5607 = vpack.c.b16 %v4055, %v4047
    %v5608 = vpack.c.b16 %v4056, %v4048
    %v5609 = vpack.c.b16 %v4057, %v4049
    %v5610 = vpack.c.b16 %v4058, %v4050
    %v5611 = vpack.c.b16 %v4059, %v4051
    %v5612 = vpack.c.b16 %v4060, %v4052
    %v5613 = vpack.c.b16 %v4061, %v4053
    %v5614 = vpack.c.b16 %v4070, %v4062
    %v5615 = vpack.c.b16 %v4071, %v4063
    %v5616 = vpack.c.b16 %v4072, %v4064
    %v5617 = vpack.c.b16 %v4073, %v4065
    %v5618 = vpack.c.b16 %v4074, %v4066
    %v5619 = vpack.c.b16 %v4075, %v4067
    %v5620 = vpack.c.b16 %v4076, %v4068
    %v5621 = vpack.c.b16 %v4077, %v4069
    %v5622 = vpack.c.b16 %v4086, %v4078
    %v5623 = vpack.c.b16 %v4087, %v4079
    %v5624 = vpack.c.b16 %v4088, %v4080
    %v5625 = vpack.c.b16 %v4089, %v4081
    %v5626 = vpack.c.b16 %v4090, %v4082
    %v5627 = vpack.c.b16 %v4091, %v4083
    %v5628 = vpack.c.b16 %v4092, %v4084
    %v5629 = vpack.c.b16 %v4093, %v4085
    %v5630 = vpack.c.b16 %v4102, %v4094
    %v5631 = vpack.c.b16 %v4103, %v4095
    %v5632 = vpack.c.b16 %v4104, %v4096
    %v5633 = vpack.c.b16 %v4105, %v4097
    %v5634 = vpack.c.b16 %v4106, %v4098
    %v5635 = vpack.c.b16 %v4107, %v4099
    %v5636 = vpack.c.b16 %v4108, %v4100
    %v5637 = vpack.c.b16 %v4109, %v4101
    %v5638 = vpack.c.b16 %v4118, %v4110
    %v5639 = vpack.c.b16 %v4119, %v4111
    %v5640 = vpack.c.b16 %v4120, %v4112
    %v5641 = vpack.c.b16 %v4121, %v4113
    %v5642 = vpack.c.b16 %v4122, %v4114
    %v5643 = vpack.c.b16 %v4123, %v4115
    %v5644 = vpack.c.b16 %v4124, %v4116
    %v5645 = vpack.c.b16 %v4125, %v4117
    %v5646 = vpack.c.b16 %v4134, %v4126
    %v5647 = vpack.c.b16 %v4135, %v4127
    %v5648 = vpack.c.b16 %v4136, %v4128
    %v5649 = vpack.c.b16 %v4137, %v4129
    %v5650 = vpack.c.b16 %v4138, %v4130
    %v5651 = vpack.c.b16 %v4139, %v4131
    %v5652 = vpack.c.b16 %v4140, %v4132
    %v5653 = vpack.c.b16 %v4141, %v4133
    %v5654 = vpack.c.b16 %v4150, %v4142
    %v5655 = vpack.c.b16 %v4151, %v4143
    %v5656 = vpack.c.b16 %v4152, %v4144
    %v5657 = vpack.c.b16 %v4153, %v4145
    %v5658 = vpack.c.b16 %v4154, %v4146
    %v5659 = vpack.c.b16 %v4155, %v4147
    %v5660 = vpack.c.b16 %v4156, %v4148
    %v5661 = vpack.c.b16 %v4157, %v4149
    %v5662 = vpack.c.b16 %v4166, %v4158
    %v5663 = vpack.c.b16 %v4167, %v4159
    %v5664 = vpack.c.b16 %v4168, %v4160
    %v5665 = vpack.c.b16 %v4169, %v4161
    %v5666 = vpack.c.b16 %v4170, %v4162
    %v5667 = vpack.c.b16 %v4171, %v4163
    %v5668 = vpack.c.b16 %v4172, %v4164
    %v5669 = vpack.c.b16 %v4173, %v4165
    %v5670 = vpack.c.b16 %v4182, %v4174
    %v5671 = vpack.c.b16 %v4183, %v4175
    %v5672 = vpack.c.b16 %v4184, %v4176
    %v5673 = vpack.c.b16 %v4185, %v4177
    %v5674 = vpack.c.b16 %v4186, %v4178
    %v5675 = vpack.c.b16 %v4187, %v4179
    %v5676 = vpack.c.b16 %v4188, %v4180
    %v5677 = vpack.c.b16 %v4189, %v4181
    %v5678 = vpack.c.b16 %v4198, %v4190
    %v5679 = vpack.c.b16 %v4199, %v4191
    %v5680 = vpack.c.b16 %v4200, %v4192
    %v5681 = vpack.c.b16 %v4201, %v4193
    %v5682 = vpack.c.b16 %v4202, %v4194
    %v5683 = vpack.c.b16 %v4203, %v4195
    %v5684 = vpack.c.b16 %v4204, %v4196
    %v5685 = vpack.c.b16 %v4205, %v4197
    %v5686 = vpack.c.b16 %v4214, %v4206
    %v5687 = vpack.c.b16 %v4215, %v4207
    %v5688 = vpack.c.b16 %v4216, %v4208
    %v5689 = vpack.c.b16 %v4217, %v4209
    %v5690 = vpack.c.b16 %v4218, %v4210
    %v5691 = vpack.c.b16 %v4219, %v4211
    %v5692 = vpack.c.b16 %v4220, %v4212
    %v5693 = vpack.c.b16 %v4221, %v4213
    %v5694 = vpack.c.b16 %v4230, %v4222
    %v5695 = vpack.c.b16 %v4231, %v4223
    %v5696 = vpack.c.b16 %v4232, %v4224
    %v5697 = vpack.c.b16 %v4233, %v4225
    %v5698 = vpack.c.b16 %v4234, %v4226
    %v5699 = vpack.c.b16 %v4235, %v4227
    %v5700 = vpack.c.b16 %v4236, %v4228
    %v5701 = vpack.c.b16 %v4237, %v4229
    %v5702 = vpack.c.b16 %v4246, %v4238
    %v5703 = vpack.c.b16 %v4247, %v4239
    %v5704 = vpack.c.b16 %v4248, %v4240
    %v5705 = vpack.c.b16 %v4249, %v4241
    %v5706 = vpack.c.b16 %v4250, %v4242
    %v5707 = vpack.c.b16 %v4251, %v4243
    %v5708 = vpack.c.b16 %v4252, %v4244
    %v5709 = vpack.c.b16 %v4253, %v4245
    %v5710 = vpack.c.b16 %v4262, %v4254
    %v5711 = vpack.c.b16 %v4263, %v4255
    %v5712 = vpack.c.b16 %v4264, %v4256
    %v5713 = vpack.c.b16 %v4265, %v4257
    %v5714 = vpack.c.b16 %v4266, %v4258
    %v5715 = vpack.c.b16 %v4267, %v4259
    %v5716 = vpack.c.b16 %v4268, %v4260
    %v5717 = vpack.c.b16 %v4269, %v4261
    %v5718 = vpack.c.b16 %v4278, %v4270
    %v5719 = vpack.c.b16 %v4279, %v4271
    %v5720 = vpack.c.b16 %v4280, %v4272
    %v5721 = vpack.c.b16 %v4281, %v4273
    %v5722 = vpack.c.b16 %v4282, %v4274
    %v5723 = vpack.c.b16 %v4283, %v4275
    %v5724 = vpack.c.b16 %v4284, %v4276
    %v5725 = vpack.c.b16 %v4285, %v4277
    %v5726 = vpack.c.b16 %v4294, %v4286
    %v5727 = vpack.c.b16 %v4295, %v4287
    %v5728 = vpack.c.b16 %v4296, %v4288
    %v5729 = vpack.c.b16 %v4297, %v4289
    %v5730 = vpack.c.b16 %v4298, %v4290
    %v5731 = vpack.c.b16 %v4299, %v4291
    %v5732 = vpack.c.b16 %v4300, %v4292
    %v5733 = vpack.c.b16 %v4301, %v4293
    %v5734 = vpack.c.b16 %v4310, %v4302
    %v5735 = vpack.c.b16 %v4311, %v4303
    %v5736 = vpack.c.b16 %v4312, %v4304
    %v5737 = vpack.c.b16 %v4313, %v4305
    %v5738 = vpack.c.b16 %v4314, %v4306
    %v5739 = vpack.c.b16 %v4315, %v4307
    %v5740 = vpack.c.b16 %v4316, %v4308
    %v5741 = vpack.c.b16 %v4317, %v4309
    %v5742 = vpack.c.b16 %v4326, %v4318
    %v5743 = vpack.c.b16 %v4327, %v4319
    %v5744 = vpack.c.b16 %v4328, %v4320
    %v5745 = vpack.c.b16 %v4329, %v4321
    %v5746 = vpack.c.b16 %v4330, %v4322
    %v5747 = vpack.c.b16 %v4331, %v4323
    %v5748 = vpack.c.b16 %v4332, %v4324
    %v5749 = vpack.c.b16 %v4333, %v4325
    %v5750 = vpack.c.b16 %v4342, %v4334
    %v5751 = vpack.c.b16 %v4343, %v4335
    %v5752 = vpack.c.b16 %v4344, %v4336
    %v5753 = vpack.c.b16 %v4345, %v4337
    %v5754 = vpack.c.b16 %v4346, %v4338
    %v5755 = vpack.c.b16 %v4347, %v4339
    %v5756 = vpack.c.b16 %v4348, %v4340
    %v5757 = vpack.c.b16 %v4349, %v4341
    %v5758 = vpack.c.b16 %v4358, %v4350
    %v5759 = vpack.c.b16 %v4359, %v4351
    %v5760 = vpack.c.b16 %v4360, %v4352
    %v5761 = vpack.c.b16 %v4361, %v4353
    %v5762 = vpack.c.b16 %v4362, %v4354
    %v5763 = vpack.c.b16 %v4363, %v4355
    %v5764 = vpack.c.b16 %v4364, %v4356
    %v5765 = vpack.c.b16 %v4365, %v4357
    %v5766 = vpack.c.b16 %v4374, %v4366
    %v5767 = vpack.c.b16 %v4375, %v4367
    %v5768 = vpack.c.b16 %v4376, %v4368
    %v5769 = vpack.c.b16 %v4377, %v4369
    %v5770 = vpack.c.b16 %v4378, %v4370
    %v5771 = vpack.c.b16 %v4379, %v4371
    %v5772 = vpack.c.b16 %v4380, %v4372
    %v5773 = vpack.c.b16 %v4381, %v4373
    %v5774 = vpack.c.b16 %v4390, %v4382
    %v5775 = vpack.c.b16 %v4391, %v4383
    %v5776 = vpack.c.b16 %v4392, %v4384
    %v5777 = vpack.c.b16 %v4393, %v4385
    %v5778 = vpack.c.b16 %v4394, %v4386
    %v5779 = vpack.c.b16 %v4395, %v4387
    %v5780 = vpack.c.b16 %v4396, %v4388
    %v5781 = vpack.c.b16 %v4397, %v4389
    %v5782 = vpack.c.b16 %v4406, %v4398
    %v5783 = vpack.c.b16 %v4407, %v4399
    %v5784 = vpack.c.b16 %v4408, %v4400
    %v5785 = vpack.c.b16 %v4409, %v4401
    %v5786 = vpack.c.b16 %v4410, %v4402
    %v5787 = vpack.c.b16 %v4411, %v4403
    %v5788 = vpack.c.b16 %v4412, %v4404
    %v5789 = vpack.c.b16 %v4413, %v4405
    %v5790 = vpack.c.b16 %v4422, %v4414
    %v5791 = vpack.c.b16 %v4423, %v4415
    %v5792 = vpack.c.b16 %v4424, %v4416
    %v5793 = vpack.c.b16 %v4425, %v4417
    %v5794 = vpack.c.b16 %v4426, %v4418
    %v5795 = vpack.c.b16 %v4427, %v4419
    %v5796 = vpack.c.b16 %v4428, %v4420
    %v5797 = vpack.c.b16 %v4429, %v4421
    %v5798 = vpack.c.b16 %v4438, %v4430
    %v5799 = vpack.c.b16 %v4439, %v4431
    %v5800 = vpack.c.b16 %v4440, %v4432
    %v5801 = vpack.c.b16 %v4441, %v4433
    %v5802 = vpack.c.b16 %v4442, %v4434
    %v5803 = vpack.c.b16 %v4443, %v4435
    %v5804 = vpack.c.b16 %v4444, %v4436
    %v5805 = vpack.c.b16 %v4445, %v4437
    %v5806 = vpack.c.b16 %v4454, %v4446
    %v5807 = vpack.c.b16 %v4455, %v4447
    %v5808 = vpack.c.b16 %v4456, %v4448
    %v5809 = vpack.c.b16 %v4457, %v4449
    %v5810 = vpack.c.b16 %v4458, %v4450
    %v5811 = vpack.c.b16 %v4459, %v4451
    %v5812 = vpack.c.b16 %v4460, %v4452
    %v5813 = vpack.c.b16 %v4461, %v4453
    %v5814 = vpack.c.b16 %v4470, %v4462
    %v5815 = vpack.c.b16 %v4471, %v4463
    %v5816 = vpack.c.b16 %v4472, %v4464
    %v5817 = vpack.c.b16 %v4473, %v4465
    %v5818 = vpack.c.b16 %v4474, %v4466
    %v5819 = vpack.c.b16 %v4475, %v4467
    %v5820 = vpack.c.b16 %v4476, %v4468
    %v5821 = vpack.c.b16 %v4477, %v4469
    %v5822 = vpack.c.b16 %v4486, %v4478
    %v5823 = vpack.c.b16 %v4487, %v4479
    %v5824 = vpack.c.b16 %v4488, %v4480
    %v5825 = vpack.c.b16 %v4489, %v4481
    %v5826 = vpack.c.b16 %v4490, %v4482
    %v5827 = vpack.c.b16 %v4491, %v4483
    %v5828 = vpack.c.b16 %v4492, %v4484
    %v5829 = vpack.c.b16 %v4493, %v4485
    %v5830 = vpack.c.b16 %v4502, %v4494
    %v5831 = vpack.c.b16 %v4503, %v4495
    %v5832 = vpack.c.b16 %v4504, %v4496
    %v5833 = vpack.c.b16 %v4505, %v4497
    %v5834 = vpack.c.b16 %v4506, %v4498
    %v5835 = vpack.c.b16 %v4507, %v4499
    %v5836 = vpack.c.b16 %v4508, %v4500
    %v5837 = vpack.c.b16 %v4509, %v4501
    %v5838 = vpack.c.b16 %v4518, %v4510
    %v5839 = vpack.c.b16 %v4519, %v4511
    %v5840 = vpack.c.b16 %v4520, %v4512
    %v5841 = vpack.c.b16 %v4521, %v4513
    %v5842 = vpack.c.b16 %v4522, %v4514
    %v5843 = vpack.c.b16 %v4523, %v4515
    %v5844 = vpack.c.b16 %v4524, %v4516
    %v5845 = vpack.c.b16 %v4525, %v4517
    %v5846 = vpack.c.b16 %v4534, %v4526
    %v5847 = vpack.c.b16 %v4535, %v4527
    %v5848 = vpack.c.b16 %v4536, %v4528
    %v5849 = vpack.c.b16 %v4537, %v4529
    %v5850 = vpack.c.b16 %v4538, %v4530
    %v5851 = vpack.c.b16 %v4539, %v4531
    %v5852 = vpack.c.b16 %v4540, %v4532
    %v5853 = vpack.c.b16 %v4541, %v4533
    %v5854 = vpack.c.b16 %v4550, %v4542
    %v5855 = vpack.c.b16 %v4551, %v4543
    %v5856 = vpack.c.b16 %v4552, %v4544
    %v5857 = vpack.c.b16 %v4553, %v4545
    %v5858 = vpack.c.b16 %v4554, %v4546
    %v5859 = vpack.c.b16 %v4555, %v4547
    %v5860 = vpack.c.b16 %v4556, %v4548
    %v5861 = vpack.c.b16 %v4557, %v4549
    %v5862 = vpack.c.b16 %v4566, %v4558
    %v5863 = vpack.c.b16 %v4567, %v4559
    %v5864 = vpack.c.b16 %v4568, %v4560
    %v5865 = vpack.c.b16 %v4569, %v4561
    %v5866 = vpack.c.b16 %v4570, %v4562
    %v5867 = vpack.c.b16 %v4571, %v4563
    %v5868 = vpack.c.b16 %v4572, %v4564
    %v5869 = vpack.c.b16 %v4573, %v4565
    %v5870 = vpack.c.b16 %v4582, %v4574
    %v5871 = vpack.c.b16 %v4583, %v4575
    %v5872 = vpack.c.b16 %v4584, %v4576
    %v5873 = vpack.c.b16 %v4585, %v4577
    %v5874 = vpack.c.b16 %v4586, %v4578
    %v5875 = vpack.c.b16 %v4587, %v4579
    %v5876 = vpack.c.b16 %v4588, %v4580
    %v5877 = vpack.c.b16 %v4589, %v4581
    %v5878 = vpack.c.b16 %v4598, %v4590
    %v5879 = vpack.c.b16 %v4599, %v4591
    %v5880 = vpack.c.b16 %v4600, %v4592
    %v5881 = vpack.c.b16 %v4601, %v4593
    %v5882 = vpack.c.b16 %v4602, %v4594
    %v5883 = vpack.c.b16 %v4603, %v4595
    %v5884 = vpack.c.b16 %v4604, %v4596
    %v5885 = vpack.c.b16 %v4605, %v4597
    %v5886 = vpack.c.b16 %v4614, %v4606
    %v5887 = vpack.c.b16 %v4615, %v4607
    %v5888 = vpack.c.b16 %v4616, %v4608
    %v5889 = vpack.c.b16 %v4617, %v4609
    %v5890 = vpack.c.b16 %v4618, %v4610
    %v5891 = vpack.c.b16 %v4619, %v4611
    %v5892 = vpack.c.b16 %v4620, %v4612
    %v5893 = vpack.c.b16 %v4621, %v4613
    %v5894 = vpack.c.b16 %v4630, %v4622
    %v5895 = vpack.c.b16 %v4631, %v4623
    %v5896 = vpack.c.b16 %v4632, %v4624
    %v5897 = vpack.c.b16 %v4633, %v4625
    %v5898 = vpack.c.b16 %v4634, %v4626
    %v5899 = vpack.c.b16 %v4635, %v4627
    %v5900 = vpack.c.b16 %v4636, %v4628
    %v5901 = vpack.c.b16 %v4637, %v4629
    %v5902 = vpack.c.b16 %v4646, %v4638
    %v5903 = vpack.c.b16 %v4647, %v4639
    %v5904 = vpack.c.b16 %v4648, %v4640
    %v5905 = vpack.c.b16 %v4649, %v4641
    %v5906 = vpack.c.b16 %v4650, %v4642
    %v5907 = vpack.c.b16 %v4651, %v4643
    %v5908 = vpack.c.b16 %v4652, %v4644
    %v5909 = vpack.c.b16 %v4653, %v4645
    %v5910 = vpack.c.b16 %v4662, %v4654
    %v5911 = vpack.c.b16 %v4663, %v4655
    %v5912 = vpack.c.b16 %v4664, %v4656
    %v5913 = vpack.c.b16 %v4665, %v4657
    %v5914 = vpack.c.b16 %v4666, %v4658
    %v5915 = vpack.c.b16 %v4667, %v4659
    %v5916 = vpack.c.b16 %v4668, %v4660
    %v5917 = vpack.c.b16 %v4669, %v4661
    %v5918 = vpack.c.b16 %v4678, %v4670
    %v5919 = vpack.c.b16 %v4679, %v4671
    %v5920 = vpack.c.b16 %v4680, %v4672
    %v5921 = vpack.c.b16 %v4681, %v4673
    %v5922 = vpack.c.b16 %v4682, %v4674
    %v5923 = vpack.c.b16 %v4683, %v4675
    %v5924 = vpack.c.b16 %v4684, %v4676
    %v5925 = vpack.c.b16 %v4685, %v4677
    %v5926 = vpack.c.b16 %v4694, %v4686
    %v5927 = vpack.c.b16 %v4695, %v4687
    %v5928 = vpack.c.b16 %v4696, %v4688
    %v5929 = vpack.c.b16 %v4697, %v4689
    %v5930 = vpack.c.b16 %v4698, %v4690
    %v5931 = vpack.c.b16 %v4699, %v4691
    %v5932 = vpack.c.b16 %v4700, %v4692
    %v5933 = vpack.c.b16 %v4701, %v4693
    %v5934 = vpack.c.b16 %v4710, %v4702
    %v5935 = vpack.c.b16 %v4711, %v4703
    %v5936 = vpack.c.b16 %v4712, %v4704
    %v5937 = vpack.c.b16 %v4713, %v4705
    %v5938 = vpack.c.b16 %v4714, %v4706
    %v5939 = vpack.c.b16 %v4715, %v4707
    %v5940 = vpack.c.b16 %v4716, %v4708
    %v5941 = vpack.c.b16 %v4717, %v4709
    %v5942 = vpack.c.b16 %v4726, %v4718
    %v5943 = vpack.c.b16 %v4727, %v4719
    %v5944 = vpack.c.b16 %v4728, %v4720
    %v5945 = vpack.c.b16 %v4729, %v4721
    %v5946 = vpack.c.b16 %v4730, %v4722
    %v5947 = vpack.c.b16 %v4731, %v4723
    %v5948 = vpack.c.b16 %v4732, %v4724
    %v5949 = vpack.c.b16 %v4733, %v4725
    %v5950 = vpack.c.b16 %v4742, %v4734
    %v5951 = vpack.c.b16 %v4743, %v4735
    %v5952 = vpack.c.b16 %v4744, %v4736
    %v5953 = vpack.c.b16 %v4745, %v4737
    %v5954 = vpack.c.b16 %v4746, %v4738
    %v5955 = vpack.c.b16 %v4747, %v4739
    %v5956 = vpack.c.b16 %v4748, %v4740
    %v5957 = vpack.c.b16 %v4749, %v4741
    %v5958 = vpack.c.b16 %v4758, %v4750
    %v5959 = vpack.c.b16 %v4759, %v4751
    %v5960 = vpack.c.b16 %v4760, %v4752
    %v5961 = vpack.c.b16 %v4761, %v4753
    %v5962 = vpack.c.b16 %v4762, %v4754
    %v5963 = vpack.c.b16 %v4763, %v4755
    %v5964 = vpack.c.b16 %v4764, %v4756
    %v5965 = vpack.c.b16 %v4765, %v4757
    %v5966 = vpack.c.b16 %v4774, %v4766
    %v5967 = vpack.c.b16 %v4775, %v4767
    %v5968 = vpack.c.b16 %v4776, %v4768
    %v5969 = vpack.c.b16 %v4777, %v4769
    %v5970 = vpack.c.b16 %v4778, %v4770
    %v5971 = vpack.c.b16 %v4779, %v4771
    %v5972 = vpack.c.b16 %v4780, %v4772
    %v5973 = vpack.c.b16 %v4781, %v4773
    %v5974 = vpack.c.b16 %v4790, %v4782
    %v5975 = vpack.c.b16 %v4791, %v4783
    %v5976 = vpack.c.b16 %v4792, %v4784
    %v5977 = vpack.c.b16 %v4793, %v4785
    %v5978 = vpack.c.b16 %v4794, %v4786
    %v5979 = vpack.c.b16 %v4795, %v4787
    %v5980 = vpack.c.b16 %v4796, %v4788
    %v5981 = vpack.c.b16 %v4797, %v4789
    %v5982 = vpack.c.b16 %v4806, %v4798
    %v5983 = vpack.c.b16 %v4807, %v4799
    %v5984 = vpack.c.b16 %v4808, %v4800
    %v5985 = vpack.c.b16 %v4809, %v4801
    %v5986 = vpack.c.b16 %v4810, %v4802
    %v5987 = vpack.c.b16 %v4811, %v4803
    %v5988 = vpack.c.b16 %v4812, %v4804
    %v5989 = vpack.c.b16 %v4813, %v4805
    %v5990 = vpack.c.b16 %v4822, %v4814
    %v5991 = vpack.c.b16 %v4823, %v4815
    %v5992 = vpack.c.b16 %v4824, %v4816
    %v5993 = vpack.c.b16 %v4825, %v4817
    %v5994 = vpack.c.b16 %v4826, %v4818
    %v5995 = vpack.c.b16 %v4827, %v4819
    %v5996 = vpack.c.b16 %v4828, %v4820
    %v5997 = vpack.c.b16 %v4829, %v4821
    %v5998 = vpack.c.b16 %v4838, %v4830
    %v5999 = vpack.c.b16 %v4839, %v4831
    %v6000 = vpack.c.b16 %v4840, %v4832
    %v6001 = vpack.c.b16 %v4841, %v4833
    %v6002 = vpack.c.b16 %v4842, %v4834
    %v6003 = vpack.c.b16 %v4843, %v4835
    %v6004 = vpack.c.b16 %v4844, %v4836
    %v6005 = vpack.c.b16 %v4845, %v4837
    %v6006 = vpack.c.b16 %v4854, %v4846
    %v6007 = vpack.c.b16 %v4855, %v4847
    %v6008 = vpack.c.b16 %v4856, %v4848
    %v6009 = vpack.c.b16 %v4857, %v4849
    %v6010 = vpack.c.b16 %v4858, %v4850
    %v6011 = vpack.c.b16 %v4859, %v4851
    %v6012 = vpack.c.b16 %v4860, %v4852
    %v6013 = vpack.c.b16 %v4861, %v4853
    %v6014 = vpack.c.b16 %v4870, %v4862
    %v6015 = vpack.c.b16 %v4871, %v4863
    %v6016 = vpack.c.b16 %v4872, %v4864
    %v6017 = vpack.c.b16 %v4873, %v4865
    %v6018 = vpack.c.b16 %v4874, %v4866
    %v6019 = vpack.c.b16 %v4875, %v4867
    %v6020 = vpack.c.b16 %v4876, %v4868
    %v6021 = vpack.c.b16 %v4877, %v4869
    %v6022 = vpack.c.b16 %v4886, %v4878
    %v6023 = vpack.c.b16 %v4887, %v4879
    %v6024 = vpack.c.b16 %v4888, %v4880
    %v6025 = vpack.c.b16 %v4889, %v4881
    %v6026 = vpack.c.b16 %v4890, %v4882
    %v6027 = vpack.c.b16 %v4891, %v4883
    %v6028 = vpack.c.b16 %v4892, %v4884
    %v6029 = vpack.c.b16 %v4893, %v4885
    %v6030 = vpack.c.b16 %v4902, %v4894
    %v6031 = vpack.c.b16 %v4903, %v4895
    %v6032 = vpack.c.b16 %v4904, %v4896
    %v6033 = vpack.c.b16 %v4905, %v4897
    %v6034 = vpack.c.b16 %v4906, %v4898
    %v6035 = vpack.c.b16 %v4907, %v4899
    %v6036 = vpack.c.b16 %v4908, %v4900
    %v6037 = vpack.c.b16 %v4909, %v4901
    %v6038 = vpack.c.b16 %v4918, %v4910
    %v6039 = vpack.c.b16 %v4919, %v4911
    %v6040 = vpack.c.b16 %v4920, %v4912
    %v6041 = vpack.c.b16 %v4921, %v4913
    %v6042 = vpack.c.b16 %v4922, %v4914
    %v6043 = vpack.c.b16 %v4923, %v4915
    %v6044 = vpack.c.b16 %v4924, %v4916
    %v6045 = vpack.c.b16 %v4925, %v4917
    %v6046 = vpack.c.b16 %v4934, %v4926
    %v6047 = vpack.c.b16 %v4935, %v4927
    %v6048 = vpack.c.b16 %v4936, %v4928
    %v6049 = vpack.c.b16 %v4937, %v4929
    %v6050 = vpack.c.b16 %v4938, %v4930
    %v6051 = vpack.c.b16 %v4939, %v4931
    %v6052 = vpack.c.b16 %v4940, %v4932
    %v6053 = vpack.c.b16 %v4941, %v4933
    %v6054 = vpack.c.b16 %v4950, %v4942
    %v6055 = vpack.c.b16 %v4951, %v4943
    %v6056 = vpack.c.b16 %v4952, %v4944
    %v6057 = vpack.c.b16 %v4953, %v4945
    %v6058 = vpack.c.b16 %v4954, %v4946
    %v6059 = vpack.c.b16 %v4955, %v4947
    %v6060 = vpack.c.b16 %v4956, %v4948
    %v6061 = vpack.c.b16 %v4957, %v4949
    %v6062 = vpack.c.b16 %v4966, %v4958
    %v6063 = vpack.c.b16 %v4967, %v4959
    %v6064 = vpack.c.b16 %v4968, %v4960
    %v6065 = vpack.c.b16 %v4969, %v4961
    %v6066 = vpack.c.b16 %v4970, %v4962
    %v6067 = vpack.c.b16 %v4971, %v4963
    %v6068 = vpack.c.b16 %v4972, %v4964
    %v6069 = vpack.c.b16 %v4973, %v4965
    %v6070 = vpack.c.b16 %v4982, %v4974
    %v6071 = vpack.c.b16 %v4983, %v4975
    %v6072 = vpack.c.b16 %v4984, %v4976
    %v6073 = vpack.c.b16 %v4985, %v4977
    %v6074 = vpack.c.b16 %v4986, %v4978
    %v6075 = vpack.c.b16 %v4987, %v4979
    %v6076 = vpack.c.b16 %v4988, %v4980
    %v6077 = vpack.c.b16 %v4989, %v4981
    %v6078 = vpack.c.b16 %v4998, %v4990
    %v6079 = vpack.c.b16 %v4999, %v4991
    %v6080 = vpack.c.b16 %v5000, %v4992
    %v6081 = vpack.c.b16 %v5001, %v4993
    %v6082 = vpack.c.b16 %v5002, %v4994
    %v6083 = vpack.c.b16 %v5003, %v4995
    %v6084 = vpack.c.b16 %v5004, %v4996
    %v6085 = vpack.c.b16 %v5005, %v4997
    %v6086 = vpack.c.b16 %v5014, %v5006
    %v6087 = vpack.c.b16 %v5015, %v5007
    %v6088 = vpack.c.b16 %v5016, %v5008
    %v6089 = vpack.c.b16 %v5017, %v5009
    %v6090 = vpack.c.b16 %v5018, %v5010
    %v6091 = vpack.c.b16 %v5019, %v5011
    %v6092 = vpack.c.b16 %v5020, %v5012
    %v6093 = vpack.c.b16 %v5021, %v5013
    %v6094 = vpack.c.b16 %v5030, %v5022
    %v6095 = vpack.c.b16 %v5031, %v5023
    %v6096 = vpack.c.b16 %v5032, %v5024
    %v6097 = vpack.c.b16 %v5033, %v5025
    %v6098 = vpack.c.b16 %v5034, %v5026
    %v6099 = vpack.c.b16 %v5035, %v5027
    %v6100 = vpack.c.b16 %v5036, %v5028
    %v6101 = vpack.c.b16 %v5037, %v5029
    %v6102 = vpack.c.b16 %v5046, %v5038
    %v6103 = vpack.c.b16 %v5047, %v5039
    %v6104 = vpack.c.b16 %v5048, %v5040
    %v6105 = vpack.c.b16 %v5049, %v5041
    %v6106 = vpack.c.b16 %v5050, %v5042
    %v6107 = vpack.c.b16 %v5051, %v5043
    %v6108 = vpack.c.b16 %v5052, %v5044
    %v6109 = vpack.c.b16 %v5053, %v5045
    %v6110 = vpack.c.b16 %v5062, %v5054
    %v6111 = vpack.c.b16 %v5063, %v5055
    %v6112 = vpack.c.b16 %v5064, %v5056
    %v6113 = vpack.c.b16 %v5065, %v5057
    %v6114 = vpack.c.b16 %v5066, %v5058
    %v6115 = vpack.c.b16 %v5067, %v5059
    %v6116 = vpack.c.b16 %v5068, %v5060
    %v6117 = vpack.c.b16 %v5069, %v5061
    %v6118 = vpack.c.b16 %v5078, %v5070
    %v6119 = vpack.c.b16 %v5079, %v5071
    %v6120 = vpack.c.b16 %v5080, %v5072
    %v6121 = vpack.c.b16 %v5081, %v5073
    %v6122 = vpack.c.b16 %v5082, %v5074
    %v6123 = vpack.c.b16 %v5083, %v5075
    %v6124 = vpack.c.b16 %v5084, %v5076
    %v6125 = vpack.c.b16 %v5085, %v5077
    %v6126 = vpack.c.b16 %v5094, %v5086
    %v6127 = vpack.c.b16 %v5095, %v5087
    %v6128 = vpack.c.b16 %v5096, %v5088
    %v6129 = vpack.c.b16 %v5097, %v5089
    %v6130 = vpack.c.b16 %v5098, %v5090
    %v6131 = vpack.c.b16 %v5099, %v5091
    %v6132 = vpack.c.b16 %v5100, %v5092
    %v6133 = vpack.c.b16 %v5101, %v5093
    %v6134 = vpack.c.b16 %v5110, %v5102
    %v6135 = vpack.c.b16 %v5111, %v5103
    %v6136 = vpack.c.b16 %v5112, %v5104
    %v6137 = vpack.c.b16 %v5113, %v5105
    %v6138 = vpack.c.b16 %v5114, %v5106
    %v6139 = vpack.c.b16 %v5115, %v5107
    %v6140 = vpack.c.b16 %v5116, %v5108
    %v6141 = vpack.c.b16 %v5117, %v5109
    %7166 = vmatpush.bf16.msra.mxu0 %v5174
    %7167 = vmatpush.bf16.msra.mxu0 %v5166
    %7168 = vmatpush.bf16.msra.mxu0 %v5158
    %7169 = vmatpush.bf16.msra.mxu0 %v5150
    %7170 = vmatpush.bf16.msra.mxu0 %v5142
    %7171 = vmatpush.bf16.msra.mxu0 %v5134
    %7172 = vmatpush.bf16.msra.mxu0 %v5126
    %7173 = vmatpush.bf16.msra.mxu0 %v5118
    %7174 = vmatmul.bf16.gmra.mxu0 %v988
    %v7175 = vpop.f32.mrf.mxu0
    %v7176 = vadd.f32 %v2030, %v7175
    %v7177 = vpop.f32.mrf.mxu0
    %7178 = vdwg.mxu0
    %7179 = vmatpush.bf16.msra.mxu0 %v5238
    %7180 = vmatpush.bf16.msra.mxu0 %v5230
    %7181 = vmatpush.bf16.msra.mxu0 %v5222
    %7182 = vmatpush.bf16.msra.mxu0 %v5214
    %7183 = vmatpush.bf16.msra.mxu0 %v5206
    %7184 = vmatpush.bf16.msra.mxu0 %v5198
    %7185 = vmatpush.bf16.msra.mxu0 %v5190
    %7186 = vmatpush.bf16.msra.mxu0 %v5182
    %7187 = vmatmul.bf16.gmra.mxu0 %v989
    %v7188 = vpop.f32.mrf.mxu0
    %v7189 = vadd.f32 %v7176, %v7188
    %v7190 = vpop.f32.mrf.mxu0
    %7191 = vdwg.mxu0
    %7192 = vmatpush.bf16.msra.mxu0 %v5302
    %7193 = vmatpush.bf16.msra.mxu0 %v5294
    %7194 = vmatpush.bf16.msra.mxu0 %v5286
    %7195 = vmatpush.bf16.msra.mxu0 %v5278
    %7196 = vmatpush.bf16.msra.mxu0 %v5270
    %7197 = vmatpush.bf16.msra.mxu0 %v5262
    %7198 = vmatpush.bf16.msra.mxu0 %v5254
    %7199 = vmatpush.bf16.msra.mxu0 %v5246
    %7200 = vmatmul.bf16.gmra.mxu0 %v990
    %v7201 = vpop.f32.mrf.mxu0
    %v7202 = vadd.f32 %v7189, %v7201
    %v7203 = vpop.f32.mrf.mxu0
    %7204 = vdwg.mxu0
    %7205 = vmatpush.bf16.msra.mxu0 %v5366
    %7206 = vmatpush.bf16.msra.mxu0 %v5358
    %7207 = vmatpush.bf16.msra.mxu0 %v5350
    %7208 = vmatpush.bf16.msra.mxu0 %v5342
    %7209 = vmatpush.bf16.msra.mxu0 %v5334
    %7210 = vmatpush.bf16.msra.mxu0 %v5326
    %7211 = vmatpush.bf16.msra.mxu0 %v5318
    %7212 = vmatpush.bf16.msra.mxu0 %v5310
    %7213 = vmatmul.bf16.gmra.mxu0 %v991
    %v7214 = vpop.f32.mrf.mxu0
    %v7215 = vadd.f32 %v7202, %v7214
    %v7216 = vpop.f32.mrf.mxu0
    %7217 = vdwg.mxu0
    %7218 = vmatpush.bf16.msra.mxu0 %v5430
    %7219 = vmatpush.bf16.msra.mxu0 %v5422
    %7220 = vmatpush.bf16.msra.mxu0 %v5414
    %7221 = vmatpush.bf16.msra.mxu0 %v5406
    %7222 = vmatpush.bf16.msra.mxu0 %v5398
    %7223 = vmatpush.bf16.msra.mxu0 %v5390
    %7224 = vmatpush.bf16.msra.mxu0 %v5382
    %7225 = vmatpush.bf16.msra.mxu0 %v5374
    %7226 = vmatmul.bf16.gmra.mxu0 %v992
    %v7227 = vpop.f32.mrf.mxu0
    %v7228 = vadd.f32 %v7215, %v7227
    %v7229 = vpop.f32.mrf.mxu0
    %7230 = vdwg.mxu0
    %7231 = vmatpush.bf16.msra.mxu0 %v5494
    %7232 = vmatpush.bf16.msra.mxu0 %v5486
    %7233 = vmatpush.bf16.msra.mxu0 %v5478
    %7234 = vmatpush.bf16.msra.mxu0 %v5470
    %7235 = vmatpush.bf16.msra.mxu0 %v5462
    %7236 = vmatpush.bf16.msra.mxu0 %v5454
    %7237 = vmatpush.bf16.msra.mxu0 %v5446
    %7238 = vmatpush.bf16.msra.mxu0 %v5438
    %7239 = vmatmul.bf16.gmra.mxu0 %v993
    %v7240 = vpop.f32.mrf.mxu0
    %v7241 = vadd.f32 %v7228, %v7240
    %v7242 = vpop.f32.mrf.mxu0
    %7243 = vdwg.mxu0
    %7244 = vmatpush.bf16.msra.mxu0 %v5558
    %7245 = vmatpush.bf16.msra.mxu0 %v5550
    %7246 = vmatpush.bf16.msra.mxu0 %v5542
    %7247 = vmatpush.bf16.msra.mxu0 %v5534
    %7248 = vmatpush.bf16.msra.mxu0 %v5526
    %7249 = vmatpush.bf16.msra.mxu0 %v5518
    %7250 = vmatpush.bf16.msra.mxu0 %v5510
    %7251 = vmatpush.bf16.msra.mxu0 %v5502
    %7252 = vmatmul.bf16.gmra.mxu0 %v994
    %v7253 = vpop.f32.mrf.mxu0
    %v7254 = vadd.f32 %v7241, %v7253
    %v7255 = vpop.f32.mrf.mxu0
    %7256 = vdwg.mxu0
    %7257 = vmatpush.bf16.msra.mxu0 %v5622
    %7258 = vmatpush.bf16.msra.mxu0 %v5614
    %7259 = vmatpush.bf16.msra.mxu0 %v5606
    %7260 = vmatpush.bf16.msra.mxu0 %v5598
    %7261 = vmatpush.bf16.msra.mxu0 %v5590
    %7262 = vmatpush.bf16.msra.mxu0 %v5582
    %7263 = vmatpush.bf16.msra.mxu0 %v5574
    %7264 = vmatpush.bf16.msra.mxu0 %v5566
    %7265 = vmatmul.bf16.gmra.mxu0 %v995
    %v7266 = vpop.f32.mrf.mxu0
    %v7267 = vadd.f32 %v7254, %v7266
    %v7268 = vpop.f32.mrf.mxu0
    %7269 = vdwg.mxu0
    %7270 = vmatpush.bf16.msra.mxu0 %v5686
    %7271 = vmatpush.bf16.msra.mxu0 %v5678
    %7272 = vmatpush.bf16.msra.mxu0 %v5670
    %7273 = vmatpush.bf16.msra.mxu0 %v5662
    %7274 = vmatpush.bf16.msra.mxu0 %v5654
    %7275 = vmatpush.bf16.msra.mxu0 %v5646
    %7276 = vmatpush.bf16.msra.mxu0 %v5638
    %7277 = vmatpush.bf16.msra.mxu0 %v5630
    %7278 = vmatmul.bf16.gmra.mxu0 %v996
    %v7279 = vpop.f32.mrf.mxu0
    %v7280 = vadd.f32 %v7267, %v7279
    %v7281 = vpop.f32.mrf.mxu0
    %7282 = vdwg.mxu0
    %7283 = vmatpush.bf16.msra.mxu0 %v5750
    %7284 = vmatpush.bf16.msra.mxu0 %v5742
    %7285 = vmatpush.bf16.msra.mxu0 %v5734
    %7286 = vmatpush.bf16.msra.mxu0 %v5726
    %7287 = vmatpush.bf16.msra.mxu0 %v5718
    %7288 = vmatpush.bf16.msra.mxu0 %v5710
    %7289 = vmatpush.bf16.msra.mxu0 %v5702
    %7290 = vmatpush.bf16.msra.mxu0 %v5694
    %7291 = vmatmul.bf16.gmra.mxu0 %v997
    %v7292 = vpop.f32.mrf.mxu0
    %v7293 = vadd.f32 %v7280, %v7292
    %v7294 = vpop.f32.mrf.mxu0
    %7295 = vdwg.mxu0
    %7296 = vmatpush.bf16.msra.mxu0 %v5814
    %7297 = vmatpush.bf16.msra.mxu0 %v5806
    %7298 = vmatpush.bf16.msra.mxu0 %v5798
    %7299 = vmatpush.bf16.msra.mxu0 %v5790
    %7300 = vmatpush.bf16.msra.mxu0 %v5782
    %7301 = vmatpush.bf16.msra.mxu0 %v5774
    %7302 = vmatpush.bf16.msra.mxu0 %v5766
    %7303 = vmatpush.bf16.msra.mxu0 %v5758
    %7304 = vmatmul.bf16.gmra.mxu0 %v998
    %v7305 = vpop.f32.mrf.mxu0
    %v7306 = vadd.f32 %v7293, %v7305
    %v7307 = vpop.f32.mrf.mxu0
    %7308 = vdwg.mxu0
    %7309 = vmatpush.bf16.msra.mxu0 %v5878
    %7310 = vmatpush.bf16.msra.mxu0 %v5870
    %7311 = vmatpush.bf16.msra.mxu0 %v5862
    %7312 = vmatpush.bf16.msra.mxu0 %v5854
    %7313 = vmatpush.bf16.msra.mxu0 %v5846
    %7314 = vmatpush.bf16.msra.mxu0 %v5838
    %7315 = vmatpush.bf16.msra.mxu0 %v5830
    %7316 = vmatpush.bf16.msra.mxu0 %v5822
    %7317 = vmatmul.bf16.gmra.mxu0 %v999
    %v7318 = vpop.f32.mrf.mxu0
    %v7319 = vadd.f32 %v7306, %v7318
    %v7320 = vpop.f32.mrf.mxu0
    %7321 = vdwg.mxu0
    %7322 = vmatpush.bf16.msra.mxu0 %v5942
    %7323 = vmatpush.bf16.msra.mxu0 %v5934
    %7324 = vmatpush.bf16.msra.mxu0 %v5926
    %7325 = vmatpush.bf16.msra.mxu0 %v5918
    %7326 = vmatpush.bf16.msra.mxu0 %v5910
    %7327 = vmatpush.bf16.msra.mxu0 %v5902
    %7328 = vmatpush.bf16.msra.mxu0 %v5894
    %7329 = vmatpush.bf16.msra.mxu0 %v5886
    %7330 = vmatmul.bf16.gmra.mxu0 %v1000
    %v7331 = vpop.f32.mrf.mxu0
    %v7332 = vadd.f32 %v7319, %v7331
    %v7333 = vpop.f32.mrf.mxu0
    %7334 = vdwg.mxu0
    %7335 = vmatpush.bf16.msra.mxu0 %v6006
    %7336 = vmatpush.bf16.msra.mxu0 %v5998
    %7337 = vmatpush.bf16.msra.mxu0 %v5990
    %7338 = vmatpush.bf16.msra.mxu0 %v5982
    %7339 = vmatpush.bf16.msra.mxu0 %v5974
    %7340 = vmatpush.bf16.msra.mxu0 %v5966
    %7341 = vmatpush.bf16.msra.mxu0 %v5958
    %7342 = vmatpush.bf16.msra.mxu0 %v5950
    %7343 = vmatmul.bf16.gmra.mxu0 %v1001
    %v7344 = vpop.f32.mrf.mxu0
    %v7345 = vadd.f32 %v7332, %v7344
    %v7346 = vpop.f32.mrf.mxu0
    %7347 = vdwg.mxu0
    %7348 = vmatpush.bf16.msra.mxu0 %v6070
    %7349 = vmatpush.bf16.msra.mxu0 %v6062
    %7350 = vmatpush.bf16.msra.mxu0 %v6054
    %7351 = vmatpush.bf16.msra.mxu0 %v6046
    %7352 = vmatpush.bf16.msra.mxu0 %v6038
    %7353 = vmatpush.bf16.msra.mxu0 %v6030
    %7354 = vmatpush.bf16.msra.mxu0 %v6022
    %7355 = vmatpush.bf16.msra.mxu0 %v6014
    %7356 = vmatmul.bf16.gmra.mxu0 %v1002
    %v7357 = vpop.f32.mrf.mxu0
    %v7358 = vadd.f32 %v7345, %v7357
    %v7359 = vpop.f32.mrf.mxu0
    %7360 = vdwg.mxu0
    %7361 = vmatpush.bf16.msra.mxu0 %v6134
    %7362 = vmatpush.bf16.msra.mxu0 %v6126
    %7363 = vmatpush.bf16.msra.mxu0 %v6118
    %7364 = vmatpush.bf16.msra.mxu0 %v6110
    %7365 = vmatpush.bf16.msra.mxu0 %v6102
    %7366 = vmatpush.bf16.msra.mxu0 %v6094
    %7367 = vmatpush.bf16.msra.mxu0 %v6086
    %7368 = vmatpush.bf16.msra.mxu0 %v6078
    %7369 = vmatmul.bf16.gmra.mxu0 %v1003
    %v7370 = vpop.f32.mrf.mxu0
    %v7371 = vadd.f32 %v7358, %v7370
    %v7372 = vpop.f32.mrf.mxu0
    %7373 = vdwg.mxu0
    %7374 = vmatpush.bf16.msra.mxu0 %v5175
    %7375 = vmatpush.bf16.msra.mxu0 %v5167
    %7376 = vmatpush.bf16.msra.mxu0 %v5159
    %7377 = vmatpush.bf16.msra.mxu0 %v5151
    %7378 = vmatpush.bf16.msra.mxu0 %v5143
    %7379 = vmatpush.bf16.msra.mxu0 %v5135
    %7380 = vmatpush.bf16.msra.mxu0 %v5127
    %7381 = vmatpush.bf16.msra.mxu0 %v5119
    %7382 = vmatmul.bf16.gmra.mxu0 %v988
    %v7383 = vpop.f32.mrf.mxu0
    %v7384 = vadd.f32 %v2031, %v7383
    %v7385 = vpop.f32.mrf.mxu0
    %7386 = vdwg.mxu0
    %7387 = vmatpush.bf16.msra.mxu0 %v5239
    %7388 = vmatpush.bf16.msra.mxu0 %v5231
    %7389 = vmatpush.bf16.msra.mxu0 %v5223
    %7390 = vmatpush.bf16.msra.mxu0 %v5215
    %7391 = vmatpush.bf16.msra.mxu0 %v5207
    %7392 = vmatpush.bf16.msra.mxu0 %v5199
    %7393 = vmatpush.bf16.msra.mxu0 %v5191
    %7394 = vmatpush.bf16.msra.mxu0 %v5183
    %7395 = vmatmul.bf16.gmra.mxu0 %v989
    %v7396 = vpop.f32.mrf.mxu0
    %v7397 = vadd.f32 %v7384, %v7396
    %v7398 = vpop.f32.mrf.mxu0
    %7399 = vdwg.mxu0
    %7400 = vmatpush.bf16.msra.mxu0 %v5303
    %7401 = vmatpush.bf16.msra.mxu0 %v5295
    %7402 = vmatpush.bf16.msra.mxu0 %v5287
    %7403 = vmatpush.bf16.msra.mxu0 %v5279
    %7404 = vmatpush.bf16.msra.mxu0 %v5271
    %7405 = vmatpush.bf16.msra.mxu0 %v5263
    %7406 = vmatpush.bf16.msra.mxu0 %v5255
    %7407 = vmatpush.bf16.msra.mxu0 %v5247
    %7408 = vmatmul.bf16.gmra.mxu0 %v990
    %v7409 = vpop.f32.mrf.mxu0
    %v7410 = vadd.f32 %v7397, %v7409
    %v7411 = vpop.f32.mrf.mxu0
    %7412 = vdwg.mxu0
    %7413 = vmatpush.bf16.msra.mxu0 %v5367
    %7414 = vmatpush.bf16.msra.mxu0 %v5359
    %7415 = vmatpush.bf16.msra.mxu0 %v5351
    %7416 = vmatpush.bf16.msra.mxu0 %v5343
    %7417 = vmatpush.bf16.msra.mxu0 %v5335
    %7418 = vmatpush.bf16.msra.mxu0 %v5327
    %7419 = vmatpush.bf16.msra.mxu0 %v5319
    %7420 = vmatpush.bf16.msra.mxu0 %v5311
    %7421 = vmatmul.bf16.gmra.mxu0 %v991
    %v7422 = vpop.f32.mrf.mxu0
    %v7423 = vadd.f32 %v7410, %v7422
    %v7424 = vpop.f32.mrf.mxu0
    %7425 = vdwg.mxu0
    %7426 = vmatpush.bf16.msra.mxu0 %v5431
    %7427 = vmatpush.bf16.msra.mxu0 %v5423
    %7428 = vmatpush.bf16.msra.mxu0 %v5415
    %7429 = vmatpush.bf16.msra.mxu0 %v5407
    %7430 = vmatpush.bf16.msra.mxu0 %v5399
    %7431 = vmatpush.bf16.msra.mxu0 %v5391
    %7432 = vmatpush.bf16.msra.mxu0 %v5383
    %7433 = vmatpush.bf16.msra.mxu0 %v5375
    %7434 = vmatmul.bf16.gmra.mxu0 %v992
    %v7435 = vpop.f32.mrf.mxu0
    %v7436 = vadd.f32 %v7423, %v7435
    %v7437 = vpop.f32.mrf.mxu0
    %7438 = vdwg.mxu0
    %7439 = vmatpush.bf16.msra.mxu0 %v5495
    %7440 = vmatpush.bf16.msra.mxu0 %v5487
    %7441 = vmatpush.bf16.msra.mxu0 %v5479
    %7442 = vmatpush.bf16.msra.mxu0 %v5471
    %7443 = vmatpush.bf16.msra.mxu0 %v5463
    %7444 = vmatpush.bf16.msra.mxu0 %v5455
    %7445 = vmatpush.bf16.msra.mxu0 %v5447
    %7446 = vmatpush.bf16.msra.mxu0 %v5439
    %7447 = vmatmul.bf16.gmra.mxu0 %v993
    %v7448 = vpop.f32.mrf.mxu0
    %v7449 = vadd.f32 %v7436, %v7448
    %v7450 = vpop.f32.mrf.mxu0
    %7451 = vdwg.mxu0
    %7452 = vmatpush.bf16.msra.mxu0 %v5559
    %7453 = vmatpush.bf16.msra.mxu0 %v5551
    %7454 = vmatpush.bf16.msra.mxu0 %v5543
    %7455 = vmatpush.bf16.msra.mxu0 %v5535
    %7456 = vmatpush.bf16.msra.mxu0 %v5527
    %7457 = vmatpush.bf16.msra.mxu0 %v5519
    %7458 = vmatpush.bf16.msra.mxu0 %v5511
    %7459 = vmatpush.bf16.msra.mxu0 %v5503
    %7460 = vmatmul.bf16.gmra.mxu0 %v994
    %v7461 = vpop.f32.mrf.mxu0
    %v7462 = vadd.f32 %v7449, %v7461
    %v7463 = vpop.f32.mrf.mxu0
    %7464 = vdwg.mxu0
    %7465 = vmatpush.bf16.msra.mxu0 %v5623
    %7466 = vmatpush.bf16.msra.mxu0 %v5615
    %7467 = vmatpush.bf16.msra.mxu0 %v5607
    %7468 = vmatpush.bf16.msra.mxu0 %v5599
    %7469 = vmatpush.bf16.msra.mxu0 %v5591
    %7470 = vmatpush.bf16.msra.mxu0 %v5583
    %7471 = vmatpush.bf16.msra.mxu0 %v5575
    %7472 = vmatpush.bf16.msra.mxu0 %v5567
    %7473 = vmatmul.bf16.gmra.mxu0 %v995
    %v7474 = vpop.f32.mrf.mxu0
    %v7475 = vadd.f32 %v7462, %v7474
    %v7476 = vpop.f32.mrf.mxu0
    %7477 = vdwg.mxu0
    %7478 = vmatpush.bf16.msra.mxu0 %v5687
    %7479 = vmatpush.bf16.msra.mxu0 %v5679
    %7480 = vmatpush.bf16.msra.mxu0 %v5671
    %7481 = vmatpush.bf16.msra.mxu0 %v5663
    %7482 = vmatpush.bf16.msra.mxu0 %v5655
    %7483 = vmatpush.bf16.msra.mxu0 %v5647
    %7484 = vmatpush.bf16.msra.mxu0 %v5639
    %7485 = vmatpush.bf16.msra.mxu0 %v5631
    %7486 = vmatmul.bf16.gmra.mxu0 %v996
    %v7487 = vpop.f32.mrf.mxu0
    %v7488 = vadd.f32 %v7475, %v7487
    %v7489 = vpop.f32.mrf.mxu0
    %7490 = vdwg.mxu0
    %7491 = vmatpush.bf16.msra.mxu0 %v5751
    %7492 = vmatpush.bf16.msra.mxu0 %v5743
    %7493 = vmatpush.bf16.msra.mxu0 %v5735
    %7494 = vmatpush.bf16.msra.mxu0 %v5727
    %7495 = vmatpush.bf16.msra.mxu0 %v5719
    %7496 = vmatpush.bf16.msra.mxu0 %v5711
    %7497 = vmatpush.bf16.msra.mxu0 %v5703
    %7498 = vmatpush.bf16.msra.mxu0 %v5695
    %7499 = vmatmul.bf16.gmra.mxu0 %v997
    %v7500 = vpop.f32.mrf.mxu0
    %v7501 = vadd.f32 %v7488, %v7500
    %v7502 = vpop.f32.mrf.mxu0
    %7503 = vdwg.mxu0
    %7504 = vmatpush.bf16.msra.mxu0 %v5815
    %7505 = vmatpush.bf16.msra.mxu0 %v5807
    %7506 = vmatpush.bf16.msra.mxu0 %v5799
    %7507 = vmatpush.bf16.msra.mxu0 %v5791
    %7508 = vmatpush.bf16.msra.mxu0 %v5783
    %7509 = vmatpush.bf16.msra.mxu0 %v5775
    %7510 = vmatpush.bf16.msra.mxu0 %v5767
    %7511 = vmatpush.bf16.msra.mxu0 %v5759
    %7512 = vmatmul.bf16.gmra.mxu0 %v998
    %v7513 = vpop.f32.mrf.mxu0
    %v7514 = vadd.f32 %v7501, %v7513
    %v7515 = vpop.f32.mrf.mxu0
    %7516 = vdwg.mxu0
    %7517 = vmatpush.bf16.msra.mxu0 %v5879
    %7518 = vmatpush.bf16.msra.mxu0 %v5871
    %7519 = vmatpush.bf16.msra.mxu0 %v5863
    %7520 = vmatpush.bf16.msra.mxu0 %v5855
    %7521 = vmatpush.bf16.msra.mxu0 %v5847
    %7522 = vmatpush.bf16.msra.mxu0 %v5839
    %7523 = vmatpush.bf16.msra.mxu0 %v5831
    %7524 = vmatpush.bf16.msra.mxu0 %v5823
    %7525 = vmatmul.bf16.gmra.mxu0 %v999
    %v7526 = vpop.f32.mrf.mxu0
    %v7527 = vadd.f32 %v7514, %v7526
    %v7528 = vpop.f32.mrf.mxu0
    %7529 = vdwg.mxu0
    %7530 = vmatpush.bf16.msra.mxu0 %v5943
    %7531 = vmatpush.bf16.msra.mxu0 %v5935
    %7532 = vmatpush.bf16.msra.mxu0 %v5927
    %7533 = vmatpush.bf16.msra.mxu0 %v5919
    %7534 = vmatpush.bf16.msra.mxu0 %v5911
    %7535 = vmatpush.bf16.msra.mxu0 %v5903
    %7536 = vmatpush.bf16.msra.mxu0 %v5895
    %7537 = vmatpush.bf16.msra.mxu0 %v5887
    %7538 = vmatmul.bf16.gmra.mxu0 %v1000
    %v7539 = vpop.f32.mrf.mxu0
    %v7540 = vadd.f32 %v7527, %v7539
    %v7541 = vpop.f32.mrf.mxu0
    %7542 = vdwg.mxu0
    %7543 = vmatpush.bf16.msra.mxu0 %v6007
    %7544 = vmatpush.bf16.msra.mxu0 %v5999
    %7545 = vmatpush.bf16.msra.mxu0 %v5991
    %7546 = vmatpush.bf16.msra.mxu0 %v5983
    %7547 = vmatpush.bf16.msra.mxu0 %v5975
    %7548 = vmatpush.bf16.msra.mxu0 %v5967
    %7549 = vmatpush.bf16.msra.mxu0 %v5959
    %7550 = vmatpush.bf16.msra.mxu0 %v5951
    %7551 = vmatmul.bf16.gmra.mxu0 %v1001
    %v7552 = vpop.f32.mrf.mxu0
    %v7553 = vadd.f32 %v7540, %v7552
    %v7554 = vpop.f32.mrf.mxu0
    %7555 = vdwg.mxu0
    %7556 = vmatpush.bf16.msra.mxu0 %v6071
    %7557 = vmatpush.bf16.msra.mxu0 %v6063
    %7558 = vmatpush.bf16.msra.mxu0 %v6055
    %7559 = vmatpush.bf16.msra.mxu0 %v6047
    %7560 = vmatpush.bf16.msra.mxu0 %v6039
    %7561 = vmatpush.bf16.msra.mxu0 %v6031
    %7562 = vmatpush.bf16.msra.mxu0 %v6023
    %7563 = vmatpush.bf16.msra.mxu0 %v6015
    %7564 = vmatmul.bf16.gmra.mxu0 %v1002
    %v7565 = vpop.f32.mrf.mxu0
    %v7566 = vadd.f32 %v7553, %v7565
    %v7567 = vpop.f32.mrf.mxu0
    %7568 = vdwg.mxu0
    %7569 = vmatpush.bf16.msra.mxu0 %v6135
    %7570 = vmatpush.bf16.msra.mxu0 %v6127
    %7571 = vmatpush.bf16.msra.mxu0 %v6119
    %7572 = vmatpush.bf16.msra.mxu0 %v6111
    %7573 = vmatpush.bf16.msra.mxu0 %v6103
    %7574 = vmatpush.bf16.msra.mxu0 %v6095
    %7575 = vmatpush.bf16.msra.mxu0 %v6087
    %7576 = vmatpush.bf16.msra.mxu0 %v6079
    %7577 = vmatmul.bf16.gmra.mxu0 %v1003
    %v7578 = vpop.f32.mrf.mxu0
    %v7579 = vadd.f32 %v7566, %v7578
    %v7580 = vpop.f32.mrf.mxu0
    %7581 = vdwg.mxu0
    %7582 = vmatpush.bf16.msra.mxu0 %v5176
    %7583 = vmatpush.bf16.msra.mxu0 %v5168
    %7584 = vmatpush.bf16.msra.mxu0 %v5160
    %7585 = vmatpush.bf16.msra.mxu0 %v5152
    %7586 = vmatpush.bf16.msra.mxu0 %v5144
    %7587 = vmatpush.bf16.msra.mxu0 %v5136
    %7588 = vmatpush.bf16.msra.mxu0 %v5128
    %7589 = vmatpush.bf16.msra.mxu0 %v5120
    %7590 = vmatmul.bf16.gmra.mxu0 %v988
    %v7591 = vpop.f32.mrf.mxu0
    %v7592 = vadd.f32 %v2032, %v7591
    %v7593 = vpop.f32.mrf.mxu0
    %7594 = vdwg.mxu0
    %7595 = vmatpush.bf16.msra.mxu0 %v5240
    %7596 = vmatpush.bf16.msra.mxu0 %v5232
    %7597 = vmatpush.bf16.msra.mxu0 %v5224
    %7598 = vmatpush.bf16.msra.mxu0 %v5216
    %7599 = vmatpush.bf16.msra.mxu0 %v5208
    %7600 = vmatpush.bf16.msra.mxu0 %v5200
    %7601 = vmatpush.bf16.msra.mxu0 %v5192
    %7602 = vmatpush.bf16.msra.mxu0 %v5184
    %7603 = vmatmul.bf16.gmra.mxu0 %v989
    %v7604 = vpop.f32.mrf.mxu0
    %v7605 = vadd.f32 %v7592, %v7604
    %v7606 = vpop.f32.mrf.mxu0
    %7607 = vdwg.mxu0
    %7608 = vmatpush.bf16.msra.mxu0 %v5304
    %7609 = vmatpush.bf16.msra.mxu0 %v5296
    %7610 = vmatpush.bf16.msra.mxu0 %v5288
    %7611 = vmatpush.bf16.msra.mxu0 %v5280
    %7612 = vmatpush.bf16.msra.mxu0 %v5272
    %7613 = vmatpush.bf16.msra.mxu0 %v5264
    %7614 = vmatpush.bf16.msra.mxu0 %v5256
    %7615 = vmatpush.bf16.msra.mxu0 %v5248
    %7616 = vmatmul.bf16.gmra.mxu0 %v990
    %v7617 = vpop.f32.mrf.mxu0
    %v7618 = vadd.f32 %v7605, %v7617
    %v7619 = vpop.f32.mrf.mxu0
    %7620 = vdwg.mxu0
    %7621 = vmatpush.bf16.msra.mxu0 %v5368
    %7622 = vmatpush.bf16.msra.mxu0 %v5360
    %7623 = vmatpush.bf16.msra.mxu0 %v5352
    %7624 = vmatpush.bf16.msra.mxu0 %v5344
    %7625 = vmatpush.bf16.msra.mxu0 %v5336
    %7626 = vmatpush.bf16.msra.mxu0 %v5328
    %7627 = vmatpush.bf16.msra.mxu0 %v5320
    %7628 = vmatpush.bf16.msra.mxu0 %v5312
    %7629 = vmatmul.bf16.gmra.mxu0 %v991
    %v7630 = vpop.f32.mrf.mxu0
    %v7631 = vadd.f32 %v7618, %v7630
    %v7632 = vpop.f32.mrf.mxu0
    %7633 = vdwg.mxu0
    %7634 = vmatpush.bf16.msra.mxu0 %v5432
    %7635 = vmatpush.bf16.msra.mxu0 %v5424
    %7636 = vmatpush.bf16.msra.mxu0 %v5416
    %7637 = vmatpush.bf16.msra.mxu0 %v5408
    %7638 = vmatpush.bf16.msra.mxu0 %v5400
    %7639 = vmatpush.bf16.msra.mxu0 %v5392
    %7640 = vmatpush.bf16.msra.mxu0 %v5384
    %7641 = vmatpush.bf16.msra.mxu0 %v5376
    %7642 = vmatmul.bf16.gmra.mxu0 %v992
    %v7643 = vpop.f32.mrf.mxu0
    %v7644 = vadd.f32 %v7631, %v7643
    %v7645 = vpop.f32.mrf.mxu0
    %7646 = vdwg.mxu0
    %7647 = vmatpush.bf16.msra.mxu0 %v5496
    %7648 = vmatpush.bf16.msra.mxu0 %v5488
    %7649 = vmatpush.bf16.msra.mxu0 %v5480
    %7650 = vmatpush.bf16.msra.mxu0 %v5472
    %7651 = vmatpush.bf16.msra.mxu0 %v5464
    %7652 = vmatpush.bf16.msra.mxu0 %v5456
    %7653 = vmatpush.bf16.msra.mxu0 %v5448
    %7654 = vmatpush.bf16.msra.mxu0 %v5440
    %7655 = vmatmul.bf16.gmra.mxu0 %v993
    %v7656 = vpop.f32.mrf.mxu0
    %v7657 = vadd.f32 %v7644, %v7656
    %v7658 = vpop.f32.mrf.mxu0
    %7659 = vdwg.mxu0
    %7660 = vmatpush.bf16.msra.mxu0 %v5560
    %7661 = vmatpush.bf16.msra.mxu0 %v5552
    %7662 = vmatpush.bf16.msra.mxu0 %v5544
    %7663 = vmatpush.bf16.msra.mxu0 %v5536
    %7664 = vmatpush.bf16.msra.mxu0 %v5528
    %7665 = vmatpush.bf16.msra.mxu0 %v5520
    %7666 = vmatpush.bf16.msra.mxu0 %v5512
    %7667 = vmatpush.bf16.msra.mxu0 %v5504
    %7668 = vmatmul.bf16.gmra.mxu0 %v994
    %v7669 = vpop.f32.mrf.mxu0
    %v7670 = vadd.f32 %v7657, %v7669
    %v7671 = vpop.f32.mrf.mxu0
    %7672 = vdwg.mxu0
    %7673 = vmatpush.bf16.msra.mxu0 %v5624
    %7674 = vmatpush.bf16.msra.mxu0 %v5616
    %7675 = vmatpush.bf16.msra.mxu0 %v5608
    %7676 = vmatpush.bf16.msra.mxu0 %v5600
    %7677 = vmatpush.bf16.msra.mxu0 %v5592
    %7678 = vmatpush.bf16.msra.mxu0 %v5584
    %7679 = vmatpush.bf16.msra.mxu0 %v5576
    %7680 = vmatpush.bf16.msra.mxu0 %v5568
    %7681 = vmatmul.bf16.gmra.mxu0 %v995
    %v7682 = vpop.f32.mrf.mxu0
    %v7683 = vadd.f32 %v7670, %v7682
    %v7684 = vpop.f32.mrf.mxu0
    %7685 = vdwg.mxu0
    %7686 = vmatpush.bf16.msra.mxu0 %v5688
    %7687 = vmatpush.bf16.msra.mxu0 %v5680
    %7688 = vmatpush.bf16.msra.mxu0 %v5672
    %7689 = vmatpush.bf16.msra.mxu0 %v5664
    %7690 = vmatpush.bf16.msra.mxu0 %v5656
    %7691 = vmatpush.bf16.msra.mxu0 %v5648
    %7692 = vmatpush.bf16.msra.mxu0 %v5640
    %7693 = vmatpush.bf16.msra.mxu0 %v5632
    %7694 = vmatmul.bf16.gmra.mxu0 %v996
    %v7695 = vpop.f32.mrf.mxu0
    %v7696 = vadd.f32 %v7683, %v7695
    %v7697 = vpop.f32.mrf.mxu0
    %7698 = vdwg.mxu0
    %7699 = vmatpush.bf16.msra.mxu0 %v5752
    %7700 = vmatpush.bf16.msra.mxu0 %v5744
    %7701 = vmatpush.bf16.msra.mxu0 %v5736
    %7702 = vmatpush.bf16.msra.mxu0 %v5728
    %7703 = vmatpush.bf16.msra.mxu0 %v5720
    %7704 = vmatpush.bf16.msra.mxu0 %v5712
    %7705 = vmatpush.bf16.msra.mxu0 %v5704
    %7706 = vmatpush.bf16.msra.mxu0 %v5696
    %7707 = vmatmul.bf16.gmra.mxu0 %v997
    %v7708 = vpop.f32.mrf.mxu0
    %v7709 = vadd.f32 %v7696, %v7708
    %v7710 = vpop.f32.mrf.mxu0
    %7711 = vdwg.mxu0
    %7712 = vmatpush.bf16.msra.mxu0 %v5816
    %7713 = vmatpush.bf16.msra.mxu0 %v5808
    %7714 = vmatpush.bf16.msra.mxu0 %v5800
    %7715 = vmatpush.bf16.msra.mxu0 %v5792
    %7716 = vmatpush.bf16.msra.mxu0 %v5784
    %7717 = vmatpush.bf16.msra.mxu0 %v5776
    %7718 = vmatpush.bf16.msra.mxu0 %v5768
    %7719 = vmatpush.bf16.msra.mxu0 %v5760
    %7720 = vmatmul.bf16.gmra.mxu0 %v998
    %v7721 = vpop.f32.mrf.mxu0
    %v7722 = vadd.f32 %v7709, %v7721
    %v7723 = vpop.f32.mrf.mxu0
    %7724 = vdwg.mxu0
    %7725 = vmatpush.bf16.msra.mxu0 %v5880
    %7726 = vmatpush.bf16.msra.mxu0 %v5872
    %7727 = vmatpush.bf16.msra.mxu0 %v5864
    %7728 = vmatpush.bf16.msra.mxu0 %v5856
    %7729 = vmatpush.bf16.msra.mxu0 %v5848
    %7730 = vmatpush.bf16.msra.mxu0 %v5840
    %7731 = vmatpush.bf16.msra.mxu0 %v5832
    %7732 = vmatpush.bf16.msra.mxu0 %v5824
    %7733 = vmatmul.bf16.gmra.mxu0 %v999
    %v7734 = vpop.f32.mrf.mxu0
    %v7735 = vadd.f32 %v7722, %v7734
    %v7736 = vpop.f32.mrf.mxu0
    %7737 = vdwg.mxu0
    %7738 = vmatpush.bf16.msra.mxu0 %v5944
    %7739 = vmatpush.bf16.msra.mxu0 %v5936
    %7740 = vmatpush.bf16.msra.mxu0 %v5928
    %7741 = vmatpush.bf16.msra.mxu0 %v5920
    %7742 = vmatpush.bf16.msra.mxu0 %v5912
    %7743 = vmatpush.bf16.msra.mxu0 %v5904
    %7744 = vmatpush.bf16.msra.mxu0 %v5896
    %7745 = vmatpush.bf16.msra.mxu0 %v5888
    %7746 = vmatmul.bf16.gmra.mxu0 %v1000
    %v7747 = vpop.f32.mrf.mxu0
    %v7748 = vadd.f32 %v7735, %v7747
    %v7749 = vpop.f32.mrf.mxu0
    %7750 = vdwg.mxu0
    %7751 = vmatpush.bf16.msra.mxu0 %v6008
    %7752 = vmatpush.bf16.msra.mxu0 %v6000
    %7753 = vmatpush.bf16.msra.mxu0 %v5992
    %7754 = vmatpush.bf16.msra.mxu0 %v5984
    %7755 = vmatpush.bf16.msra.mxu0 %v5976
    %7756 = vmatpush.bf16.msra.mxu0 %v5968
    %7757 = vmatpush.bf16.msra.mxu0 %v5960
    %7758 = vmatpush.bf16.msra.mxu0 %v5952
    %7759 = vmatmul.bf16.gmra.mxu0 %v1001
    %v7760 = vpop.f32.mrf.mxu0
    %v7761 = vadd.f32 %v7748, %v7760
    %v7762 = vpop.f32.mrf.mxu0
    %7763 = vdwg.mxu0
    %7764 = vmatpush.bf16.msra.mxu0 %v6072
    %7765 = vmatpush.bf16.msra.mxu0 %v6064
    %7766 = vmatpush.bf16.msra.mxu0 %v6056
    %7767 = vmatpush.bf16.msra.mxu0 %v6048
    %7768 = vmatpush.bf16.msra.mxu0 %v6040
    %7769 = vmatpush.bf16.msra.mxu0 %v6032
    %7770 = vmatpush.bf16.msra.mxu0 %v6024
    %7771 = vmatpush.bf16.msra.mxu0 %v6016
    %7772 = vmatmul.bf16.gmra.mxu0 %v1002
    %v7773 = vpop.f32.mrf.mxu0
    %v7774 = vadd.f32 %v7761, %v7773
    %v7775 = vpop.f32.mrf.mxu0
    %7776 = vdwg.mxu0
    %7777 = vmatpush.bf16.msra.mxu0 %v6136
    %7778 = vmatpush.bf16.msra.mxu0 %v6128
    %7779 = vmatpush.bf16.msra.mxu0 %v6120
    %7780 = vmatpush.bf16.msra.mxu0 %v6112
    %7781 = vmatpush.bf16.msra.mxu0 %v6104
    %7782 = vmatpush.bf16.msra.mxu0 %v6096
    %7783 = vmatpush.bf16.msra.mxu0 %v6088
    %7784 = vmatpush.bf16.msra.mxu0 %v6080
    %7785 = vmatmul.bf16.gmra.mxu0 %v1003
    %v7786 = vpop.f32.mrf.mxu0
    %v7787 = vadd.f32 %v7774, %v7786
    %v7788 = vpop.f32.mrf.mxu0
    %7789 = vdwg.mxu0
    %7790 = vmatpush.bf16.msra.mxu0 %v5177
    %7791 = vmatpush.bf16.msra.mxu0 %v5169
    %7792 = vmatpush.bf16.msra.mxu0 %v5161
    %7793 = vmatpush.bf16.msra.mxu0 %v5153
    %7794 = vmatpush.bf16.msra.mxu0 %v5145
    %7795 = vmatpush.bf16.msra.mxu0 %v5137
    %7796 = vmatpush.bf16.msra.mxu0 %v5129
    %7797 = vmatpush.bf16.msra.mxu0 %v5121
    %7798 = vmatmul.bf16.gmra.mxu0 %v988
    %v7799 = vpop.f32.mrf.mxu0
    %v7800 = vadd.f32 %v2033, %v7799
    %v7801 = vpop.f32.mrf.mxu0
    %7802 = vdwg.mxu0
    %7803 = vmatpush.bf16.msra.mxu0 %v5241
    %7804 = vmatpush.bf16.msra.mxu0 %v5233
    %7805 = vmatpush.bf16.msra.mxu0 %v5225
    %7806 = vmatpush.bf16.msra.mxu0 %v5217
    %7807 = vmatpush.bf16.msra.mxu0 %v5209
    %7808 = vmatpush.bf16.msra.mxu0 %v5201
    %7809 = vmatpush.bf16.msra.mxu0 %v5193
    %7810 = vmatpush.bf16.msra.mxu0 %v5185
    %7811 = vmatmul.bf16.gmra.mxu0 %v989
    %v7812 = vpop.f32.mrf.mxu0
    %v7813 = vadd.f32 %v7800, %v7812
    %v7814 = vpop.f32.mrf.mxu0
    %7815 = vdwg.mxu0
    %7816 = vmatpush.bf16.msra.mxu0 %v5305
    %7817 = vmatpush.bf16.msra.mxu0 %v5297
    %7818 = vmatpush.bf16.msra.mxu0 %v5289
    %7819 = vmatpush.bf16.msra.mxu0 %v5281
    %7820 = vmatpush.bf16.msra.mxu0 %v5273
    %7821 = vmatpush.bf16.msra.mxu0 %v5265
    %7822 = vmatpush.bf16.msra.mxu0 %v5257
    %7823 = vmatpush.bf16.msra.mxu0 %v5249
    %7824 = vmatmul.bf16.gmra.mxu0 %v990
    %v7825 = vpop.f32.mrf.mxu0
    %v7826 = vadd.f32 %v7813, %v7825
    %v7827 = vpop.f32.mrf.mxu0
    %7828 = vdwg.mxu0
    %7829 = vmatpush.bf16.msra.mxu0 %v5369
    %7830 = vmatpush.bf16.msra.mxu0 %v5361
    %7831 = vmatpush.bf16.msra.mxu0 %v5353
    %7832 = vmatpush.bf16.msra.mxu0 %v5345
    %7833 = vmatpush.bf16.msra.mxu0 %v5337
    %7834 = vmatpush.bf16.msra.mxu0 %v5329
    %7835 = vmatpush.bf16.msra.mxu0 %v5321
    %7836 = vmatpush.bf16.msra.mxu0 %v5313
    %7837 = vmatmul.bf16.gmra.mxu0 %v991
    %v7838 = vpop.f32.mrf.mxu0
    %v7839 = vadd.f32 %v7826, %v7838
    %v7840 = vpop.f32.mrf.mxu0
    %7841 = vdwg.mxu0
    %7842 = vmatpush.bf16.msra.mxu0 %v5433
    %7843 = vmatpush.bf16.msra.mxu0 %v5425
    %7844 = vmatpush.bf16.msra.mxu0 %v5417
    %7845 = vmatpush.bf16.msra.mxu0 %v5409
    %7846 = vmatpush.bf16.msra.mxu0 %v5401
    %7847 = vmatpush.bf16.msra.mxu0 %v5393
    %7848 = vmatpush.bf16.msra.mxu0 %v5385
    %7849 = vmatpush.bf16.msra.mxu0 %v5377
    %7850 = vmatmul.bf16.gmra.mxu0 %v992
    %v7851 = vpop.f32.mrf.mxu0
    %v7852 = vadd.f32 %v7839, %v7851
    %v7853 = vpop.f32.mrf.mxu0
    %7854 = vdwg.mxu0
    %7855 = vmatpush.bf16.msra.mxu0 %v5497
    %7856 = vmatpush.bf16.msra.mxu0 %v5489
    %7857 = vmatpush.bf16.msra.mxu0 %v5481
    %7858 = vmatpush.bf16.msra.mxu0 %v5473
    %7859 = vmatpush.bf16.msra.mxu0 %v5465
    %7860 = vmatpush.bf16.msra.mxu0 %v5457
    %7861 = vmatpush.bf16.msra.mxu0 %v5449
    %7862 = vmatpush.bf16.msra.mxu0 %v5441
    %7863 = vmatmul.bf16.gmra.mxu0 %v993
    %v7864 = vpop.f32.mrf.mxu0
    %v7865 = vadd.f32 %v7852, %v7864
    %v7866 = vpop.f32.mrf.mxu0
    %7867 = vdwg.mxu0
    %7868 = vmatpush.bf16.msra.mxu0 %v5561
    %7869 = vmatpush.bf16.msra.mxu0 %v5553
    %7870 = vmatpush.bf16.msra.mxu0 %v5545
    %7871 = vmatpush.bf16.msra.mxu0 %v5537
    %7872 = vmatpush.bf16.msra.mxu0 %v5529
    %7873 = vmatpush.bf16.msra.mxu0 %v5521
    %7874 = vmatpush.bf16.msra.mxu0 %v5513
    %7875 = vmatpush.bf16.msra.mxu0 %v5505
    %7876 = vmatmul.bf16.gmra.mxu0 %v994
    %v7877 = vpop.f32.mrf.mxu0
    %v7878 = vadd.f32 %v7865, %v7877
    %v7879 = vpop.f32.mrf.mxu0
    %7880 = vdwg.mxu0
    %7881 = vmatpush.bf16.msra.mxu0 %v5625
    %7882 = vmatpush.bf16.msra.mxu0 %v5617
    %7883 = vmatpush.bf16.msra.mxu0 %v5609
    %7884 = vmatpush.bf16.msra.mxu0 %v5601
    %7885 = vmatpush.bf16.msra.mxu0 %v5593
    %7886 = vmatpush.bf16.msra.mxu0 %v5585
    %7887 = vmatpush.bf16.msra.mxu0 %v5577
    %7888 = vmatpush.bf16.msra.mxu0 %v5569
    %7889 = vmatmul.bf16.gmra.mxu0 %v995
    %v7890 = vpop.f32.mrf.mxu0
    %v7891 = vadd.f32 %v7878, %v7890
    %v7892 = vpop.f32.mrf.mxu0
    %7893 = vdwg.mxu0
    %7894 = vmatpush.bf16.msra.mxu0 %v5689
    %7895 = vmatpush.bf16.msra.mxu0 %v5681
    %7896 = vmatpush.bf16.msra.mxu0 %v5673
    %7897 = vmatpush.bf16.msra.mxu0 %v5665
    %7898 = vmatpush.bf16.msra.mxu0 %v5657
    %7899 = vmatpush.bf16.msra.mxu0 %v5649
    %7900 = vmatpush.bf16.msra.mxu0 %v5641
    %7901 = vmatpush.bf16.msra.mxu0 %v5633
    %7902 = vmatmul.bf16.gmra.mxu0 %v996
    %v7903 = vpop.f32.mrf.mxu0
    %v7904 = vadd.f32 %v7891, %v7903
    %v7905 = vpop.f32.mrf.mxu0
    %7906 = vdwg.mxu0
    %7907 = vmatpush.bf16.msra.mxu0 %v5753
    %7908 = vmatpush.bf16.msra.mxu0 %v5745
    %7909 = vmatpush.bf16.msra.mxu0 %v5737
    %7910 = vmatpush.bf16.msra.mxu0 %v5729
    %7911 = vmatpush.bf16.msra.mxu0 %v5721
    %7912 = vmatpush.bf16.msra.mxu0 %v5713
    %7913 = vmatpush.bf16.msra.mxu0 %v5705
    %7914 = vmatpush.bf16.msra.mxu0 %v5697
    %7915 = vmatmul.bf16.gmra.mxu0 %v997
    %v7916 = vpop.f32.mrf.mxu0
    %v7917 = vadd.f32 %v7904, %v7916
    %v7918 = vpop.f32.mrf.mxu0
    %7919 = vdwg.mxu0
    %7920 = vmatpush.bf16.msra.mxu0 %v5817
    %7921 = vmatpush.bf16.msra.mxu0 %v5809
    %7922 = vmatpush.bf16.msra.mxu0 %v5801
    %7923 = vmatpush.bf16.msra.mxu0 %v5793
    %7924 = vmatpush.bf16.msra.mxu0 %v5785
    %7925 = vmatpush.bf16.msra.mxu0 %v5777
    %7926 = vmatpush.bf16.msra.mxu0 %v5769
    %7927 = vmatpush.bf16.msra.mxu0 %v5761
    %7928 = vmatmul.bf16.gmra.mxu0 %v998
    %v7929 = vpop.f32.mrf.mxu0
    %v7930 = vadd.f32 %v7917, %v7929
    %v7931 = vpop.f32.mrf.mxu0
    %7932 = vdwg.mxu0
    %7933 = vmatpush.bf16.msra.mxu0 %v5881
    %7934 = vmatpush.bf16.msra.mxu0 %v5873
    %7935 = vmatpush.bf16.msra.mxu0 %v5865
    %7936 = vmatpush.bf16.msra.mxu0 %v5857
    %7937 = vmatpush.bf16.msra.mxu0 %v5849
    %7938 = vmatpush.bf16.msra.mxu0 %v5841
    %7939 = vmatpush.bf16.msra.mxu0 %v5833
    %7940 = vmatpush.bf16.msra.mxu0 %v5825
    %7941 = vmatmul.bf16.gmra.mxu0 %v999
    %v7942 = vpop.f32.mrf.mxu0
    %v7943 = vadd.f32 %v7930, %v7942
    %v7944 = vpop.f32.mrf.mxu0
    %7945 = vdwg.mxu0
    %7946 = vmatpush.bf16.msra.mxu0 %v5945
    %7947 = vmatpush.bf16.msra.mxu0 %v5937
    %7948 = vmatpush.bf16.msra.mxu0 %v5929
    %7949 = vmatpush.bf16.msra.mxu0 %v5921
    %7950 = vmatpush.bf16.msra.mxu0 %v5913
    %7951 = vmatpush.bf16.msra.mxu0 %v5905
    %7952 = vmatpush.bf16.msra.mxu0 %v5897
    %7953 = vmatpush.bf16.msra.mxu0 %v5889
    %7954 = vmatmul.bf16.gmra.mxu0 %v1000
    %v7955 = vpop.f32.mrf.mxu0
    %v7956 = vadd.f32 %v7943, %v7955
    %v7957 = vpop.f32.mrf.mxu0
    %7958 = vdwg.mxu0
    %7959 = vmatpush.bf16.msra.mxu0 %v6009
    %7960 = vmatpush.bf16.msra.mxu0 %v6001
    %7961 = vmatpush.bf16.msra.mxu0 %v5993
    %7962 = vmatpush.bf16.msra.mxu0 %v5985
    %7963 = vmatpush.bf16.msra.mxu0 %v5977
    %7964 = vmatpush.bf16.msra.mxu0 %v5969
    %7965 = vmatpush.bf16.msra.mxu0 %v5961
    %7966 = vmatpush.bf16.msra.mxu0 %v5953
    %7967 = vmatmul.bf16.gmra.mxu0 %v1001
    %v7968 = vpop.f32.mrf.mxu0
    %v7969 = vadd.f32 %v7956, %v7968
    %v7970 = vpop.f32.mrf.mxu0
    %7971 = vdwg.mxu0
    %7972 = vmatpush.bf16.msra.mxu0 %v6073
    %7973 = vmatpush.bf16.msra.mxu0 %v6065
    %7974 = vmatpush.bf16.msra.mxu0 %v6057
    %7975 = vmatpush.bf16.msra.mxu0 %v6049
    %7976 = vmatpush.bf16.msra.mxu0 %v6041
    %7977 = vmatpush.bf16.msra.mxu0 %v6033
    %7978 = vmatpush.bf16.msra.mxu0 %v6025
    %7979 = vmatpush.bf16.msra.mxu0 %v6017
    %7980 = vmatmul.bf16.gmra.mxu0 %v1002
    %v7981 = vpop.f32.mrf.mxu0
    %v7982 = vadd.f32 %v7969, %v7981
    %v7983 = vpop.f32.mrf.mxu0
    %7984 = vdwg.mxu0
    %7985 = vmatpush.bf16.msra.mxu0 %v6137
    %7986 = vmatpush.bf16.msra.mxu0 %v6129
    %7987 = vmatpush.bf16.msra.mxu0 %v6121
    %7988 = vmatpush.bf16.msra.mxu0 %v6113
    %7989 = vmatpush.bf16.msra.mxu0 %v6105
    %7990 = vmatpush.bf16.msra.mxu0 %v6097
    %7991 = vmatpush.bf16.msra.mxu0 %v6089
    %7992 = vmatpush.bf16.msra.mxu0 %v6081
    %7993 = vmatmul.bf16.gmra.mxu0 %v1003
    %v7994 = vpop.f32.mrf.mxu0
    %v7995 = vadd.f32 %v7982, %v7994
    %v7996 = vpop.f32.mrf.mxu0
    %7997 = vdwg.mxu0
    %7998 = vmatpush.bf16.msra.mxu0 %v5178
    %7999 = vmatpush.bf16.msra.mxu0 %v5170
    %8000 = vmatpush.bf16.msra.mxu0 %v5162
    %8001 = vmatpush.bf16.msra.mxu0 %v5154
    %8002 = vmatpush.bf16.msra.mxu0 %v5146
    %8003 = vmatpush.bf16.msra.mxu0 %v5138
    %8004 = vmatpush.bf16.msra.mxu0 %v5130
    %8005 = vmatpush.bf16.msra.mxu0 %v5122
    %8006 = vmatmul.bf16.gmra.mxu0 %v988
    %v8007 = vpop.f32.mrf.mxu0
    %v8008 = vadd.f32 %v2034, %v8007
    %v8009 = vpop.f32.mrf.mxu0
    %8010 = vdwg.mxu0
    %8011 = vmatpush.bf16.msra.mxu0 %v5242
    %8012 = vmatpush.bf16.msra.mxu0 %v5234
    %8013 = vmatpush.bf16.msra.mxu0 %v5226
    %8014 = vmatpush.bf16.msra.mxu0 %v5218
    %8015 = vmatpush.bf16.msra.mxu0 %v5210
    %8016 = vmatpush.bf16.msra.mxu0 %v5202
    %8017 = vmatpush.bf16.msra.mxu0 %v5194
    %8018 = vmatpush.bf16.msra.mxu0 %v5186
    %8019 = vmatmul.bf16.gmra.mxu0 %v989
    %v8020 = vpop.f32.mrf.mxu0
    %v8021 = vadd.f32 %v8008, %v8020
    %v8022 = vpop.f32.mrf.mxu0
    %8023 = vdwg.mxu0
    %8024 = vmatpush.bf16.msra.mxu0 %v5306
    %8025 = vmatpush.bf16.msra.mxu0 %v5298
    %8026 = vmatpush.bf16.msra.mxu0 %v5290
    %8027 = vmatpush.bf16.msra.mxu0 %v5282
    %8028 = vmatpush.bf16.msra.mxu0 %v5274
    %8029 = vmatpush.bf16.msra.mxu0 %v5266
    %8030 = vmatpush.bf16.msra.mxu0 %v5258
    %8031 = vmatpush.bf16.msra.mxu0 %v5250
    %8032 = vmatmul.bf16.gmra.mxu0 %v990
    %v8033 = vpop.f32.mrf.mxu0
    %v8034 = vadd.f32 %v8021, %v8033
    %v8035 = vpop.f32.mrf.mxu0
    %8036 = vdwg.mxu0
    %8037 = vmatpush.bf16.msra.mxu0 %v5370
    %8038 = vmatpush.bf16.msra.mxu0 %v5362
    %8039 = vmatpush.bf16.msra.mxu0 %v5354
    %8040 = vmatpush.bf16.msra.mxu0 %v5346
    %8041 = vmatpush.bf16.msra.mxu0 %v5338
    %8042 = vmatpush.bf16.msra.mxu0 %v5330
    %8043 = vmatpush.bf16.msra.mxu0 %v5322
    %8044 = vmatpush.bf16.msra.mxu0 %v5314
    %8045 = vmatmul.bf16.gmra.mxu0 %v991
    %v8046 = vpop.f32.mrf.mxu0
    %v8047 = vadd.f32 %v8034, %v8046
    %v8048 = vpop.f32.mrf.mxu0
    %8049 = vdwg.mxu0
    %8050 = vmatpush.bf16.msra.mxu0 %v5434
    %8051 = vmatpush.bf16.msra.mxu0 %v5426
    %8052 = vmatpush.bf16.msra.mxu0 %v5418
    %8053 = vmatpush.bf16.msra.mxu0 %v5410
    %8054 = vmatpush.bf16.msra.mxu0 %v5402
    %8055 = vmatpush.bf16.msra.mxu0 %v5394
    %8056 = vmatpush.bf16.msra.mxu0 %v5386
    %8057 = vmatpush.bf16.msra.mxu0 %v5378
    %8058 = vmatmul.bf16.gmra.mxu0 %v992
    %v8059 = vpop.f32.mrf.mxu0
    %v8060 = vadd.f32 %v8047, %v8059
    %v8061 = vpop.f32.mrf.mxu0
    %8062 = vdwg.mxu0
    %8063 = vmatpush.bf16.msra.mxu0 %v5498
    %8064 = vmatpush.bf16.msra.mxu0 %v5490
    %8065 = vmatpush.bf16.msra.mxu0 %v5482
    %8066 = vmatpush.bf16.msra.mxu0 %v5474
    %8067 = vmatpush.bf16.msra.mxu0 %v5466
    %8068 = vmatpush.bf16.msra.mxu0 %v5458
    %8069 = vmatpush.bf16.msra.mxu0 %v5450
    %8070 = vmatpush.bf16.msra.mxu0 %v5442
    %8071 = vmatmul.bf16.gmra.mxu0 %v993
    %v8072 = vpop.f32.mrf.mxu0
    %v8073 = vadd.f32 %v8060, %v8072
    %v8074 = vpop.f32.mrf.mxu0
    %8075 = vdwg.mxu0
    %8076 = vmatpush.bf16.msra.mxu0 %v5562
    %8077 = vmatpush.bf16.msra.mxu0 %v5554
    %8078 = vmatpush.bf16.msra.mxu0 %v5546
    %8079 = vmatpush.bf16.msra.mxu0 %v5538
    %8080 = vmatpush.bf16.msra.mxu0 %v5530
    %8081 = vmatpush.bf16.msra.mxu0 %v5522
    %8082 = vmatpush.bf16.msra.mxu0 %v5514
    %8083 = vmatpush.bf16.msra.mxu0 %v5506
    %8084 = vmatmul.bf16.gmra.mxu0 %v994
    %v8085 = vpop.f32.mrf.mxu0
    %v8086 = vadd.f32 %v8073, %v8085
    %v8087 = vpop.f32.mrf.mxu0
    %8088 = vdwg.mxu0
    %8089 = vmatpush.bf16.msra.mxu0 %v5626
    %8090 = vmatpush.bf16.msra.mxu0 %v5618
    %8091 = vmatpush.bf16.msra.mxu0 %v5610
    %8092 = vmatpush.bf16.msra.mxu0 %v5602
    %8093 = vmatpush.bf16.msra.mxu0 %v5594
    %8094 = vmatpush.bf16.msra.mxu0 %v5586
    %8095 = vmatpush.bf16.msra.mxu0 %v5578
    %8096 = vmatpush.bf16.msra.mxu0 %v5570
    %8097 = vmatmul.bf16.gmra.mxu0 %v995
    %v8098 = vpop.f32.mrf.mxu0
    %v8099 = vadd.f32 %v8086, %v8098
    %v8100 = vpop.f32.mrf.mxu0
    %8101 = vdwg.mxu0
    %8102 = vmatpush.bf16.msra.mxu0 %v5690
    %8103 = vmatpush.bf16.msra.mxu0 %v5682
    %8104 = vmatpush.bf16.msra.mxu0 %v5674
    %8105 = vmatpush.bf16.msra.mxu0 %v5666
    %8106 = vmatpush.bf16.msra.mxu0 %v5658
    %8107 = vmatpush.bf16.msra.mxu0 %v5650
    %8108 = vmatpush.bf16.msra.mxu0 %v5642
    %8109 = vmatpush.bf16.msra.mxu0 %v5634
    %8110 = vmatmul.bf16.gmra.mxu0 %v996
    %v8111 = vpop.f32.mrf.mxu0
    %v8112 = vadd.f32 %v8099, %v8111
    %v8113 = vpop.f32.mrf.mxu0
    %8114 = vdwg.mxu0
    %8115 = vmatpush.bf16.msra.mxu0 %v5754
    %8116 = vmatpush.bf16.msra.mxu0 %v5746
    %8117 = vmatpush.bf16.msra.mxu0 %v5738
    %8118 = vmatpush.bf16.msra.mxu0 %v5730
    %8119 = vmatpush.bf16.msra.mxu0 %v5722
    %8120 = vmatpush.bf16.msra.mxu0 %v5714
    %8121 = vmatpush.bf16.msra.mxu0 %v5706
    %8122 = vmatpush.bf16.msra.mxu0 %v5698
    %8123 = vmatmul.bf16.gmra.mxu0 %v997
    %v8124 = vpop.f32.mrf.mxu0
    %v8125 = vadd.f32 %v8112, %v8124
    %v8126 = vpop.f32.mrf.mxu0
    %8127 = vdwg.mxu0
    %8128 = vmatpush.bf16.msra.mxu0 %v5818
    %8129 = vmatpush.bf16.msra.mxu0 %v5810
    %8130 = vmatpush.bf16.msra.mxu0 %v5802
    %8131 = vmatpush.bf16.msra.mxu0 %v5794
    %8132 = vmatpush.bf16.msra.mxu0 %v5786
    %8133 = vmatpush.bf16.msra.mxu0 %v5778
    %8134 = vmatpush.bf16.msra.mxu0 %v5770
    %8135 = vmatpush.bf16.msra.mxu0 %v5762
    %8136 = vmatmul.bf16.gmra.mxu0 %v998
    %v8137 = vpop.f32.mrf.mxu0
    %v8138 = vadd.f32 %v8125, %v8137
    %v8139 = vpop.f32.mrf.mxu0
    %8140 = vdwg.mxu0
    %8141 = vmatpush.bf16.msra.mxu0 %v5882
    %8142 = vmatpush.bf16.msra.mxu0 %v5874
    %8143 = vmatpush.bf16.msra.mxu0 %v5866
    %8144 = vmatpush.bf16.msra.mxu0 %v5858
    %8145 = vmatpush.bf16.msra.mxu0 %v5850
    %8146 = vmatpush.bf16.msra.mxu0 %v5842
    %8147 = vmatpush.bf16.msra.mxu0 %v5834
    %8148 = vmatpush.bf16.msra.mxu0 %v5826
    %8149 = vmatmul.bf16.gmra.mxu0 %v999
    %v8150 = vpop.f32.mrf.mxu0
    %v8151 = vadd.f32 %v8138, %v8150
    %v8152 = vpop.f32.mrf.mxu0
    %8153 = vdwg.mxu0
    %8154 = vmatpush.bf16.msra.mxu0 %v5946
    %8155 = vmatpush.bf16.msra.mxu0 %v5938
    %8156 = vmatpush.bf16.msra.mxu0 %v5930
    %8157 = vmatpush.bf16.msra.mxu0 %v5922
    %8158 = vmatpush.bf16.msra.mxu0 %v5914
    %8159 = vmatpush.bf16.msra.mxu0 %v5906
    %8160 = vmatpush.bf16.msra.mxu0 %v5898
    %8161 = vmatpush.bf16.msra.mxu0 %v5890
    %8162 = vmatmul.bf16.gmra.mxu0 %v1000
    %v8163 = vpop.f32.mrf.mxu0
    %v8164 = vadd.f32 %v8151, %v8163
    %v8165 = vpop.f32.mrf.mxu0
    %8166 = vdwg.mxu0
    %8167 = vmatpush.bf16.msra.mxu0 %v6010
    %8168 = vmatpush.bf16.msra.mxu0 %v6002
    %8169 = vmatpush.bf16.msra.mxu0 %v5994
    %8170 = vmatpush.bf16.msra.mxu0 %v5986
    %8171 = vmatpush.bf16.msra.mxu0 %v5978
    %8172 = vmatpush.bf16.msra.mxu0 %v5970
    %8173 = vmatpush.bf16.msra.mxu0 %v5962
    %8174 = vmatpush.bf16.msra.mxu0 %v5954
    %8175 = vmatmul.bf16.gmra.mxu0 %v1001
    %v8176 = vpop.f32.mrf.mxu0
    %v8177 = vadd.f32 %v8164, %v8176
    %v8178 = vpop.f32.mrf.mxu0
    %8179 = vdwg.mxu0
    %8180 = vmatpush.bf16.msra.mxu0 %v6074
    %8181 = vmatpush.bf16.msra.mxu0 %v6066
    %8182 = vmatpush.bf16.msra.mxu0 %v6058
    %8183 = vmatpush.bf16.msra.mxu0 %v6050
    %8184 = vmatpush.bf16.msra.mxu0 %v6042
    %8185 = vmatpush.bf16.msra.mxu0 %v6034
    %8186 = vmatpush.bf16.msra.mxu0 %v6026
    %8187 = vmatpush.bf16.msra.mxu0 %v6018
    %8188 = vmatmul.bf16.gmra.mxu0 %v1002
    %v8189 = vpop.f32.mrf.mxu0
    %v8190 = vadd.f32 %v8177, %v8189
    %v8191 = vpop.f32.mrf.mxu0
    %8192 = vdwg.mxu0
    %8193 = vmatpush.bf16.msra.mxu0 %v6138
    %8194 = vmatpush.bf16.msra.mxu0 %v6130
    %8195 = vmatpush.bf16.msra.mxu0 %v6122
    %8196 = vmatpush.bf16.msra.mxu0 %v6114
    %8197 = vmatpush.bf16.msra.mxu0 %v6106
    %8198 = vmatpush.bf16.msra.mxu0 %v6098
    %8199 = vmatpush.bf16.msra.mxu0 %v6090
    %8200 = vmatpush.bf16.msra.mxu0 %v6082
    %8201 = vmatmul.bf16.gmra.mxu0 %v1003
    %v8202 = vpop.f32.mrf.mxu0
    %v8203 = vadd.f32 %v8190, %v8202
    %v8204 = vpop.f32.mrf.mxu0
    %8205 = vdwg.mxu0
    %8206 = vmatpush.bf16.msra.mxu0 %v5179
    %8207 = vmatpush.bf16.msra.mxu0 %v5171
    %8208 = vmatpush.bf16.msra.mxu0 %v5163
    %8209 = vmatpush.bf16.msra.mxu0 %v5155
    %8210 = vmatpush.bf16.msra.mxu0 %v5147
    %8211 = vmatpush.bf16.msra.mxu0 %v5139
    %8212 = vmatpush.bf16.msra.mxu0 %v5131
    %8213 = vmatpush.bf16.msra.mxu0 %v5123
    %8214 = vmatmul.bf16.gmra.mxu0 %v988
    %v8215 = vpop.f32.mrf.mxu0
    %v8216 = vadd.f32 %v2035, %v8215
    %v8217 = vpop.f32.mrf.mxu0
    %8218 = vdwg.mxu0
    %8219 = vmatpush.bf16.msra.mxu0 %v5243
    %8220 = vmatpush.bf16.msra.mxu0 %v5235
    %8221 = vmatpush.bf16.msra.mxu0 %v5227
    %8222 = vmatpush.bf16.msra.mxu0 %v5219
    %8223 = vmatpush.bf16.msra.mxu0 %v5211
    %8224 = vmatpush.bf16.msra.mxu0 %v5203
    %8225 = vmatpush.bf16.msra.mxu0 %v5195
    %8226 = vmatpush.bf16.msra.mxu0 %v5187
    %8227 = vmatmul.bf16.gmra.mxu0 %v989
    %v8228 = vpop.f32.mrf.mxu0
    %v8229 = vadd.f32 %v8216, %v8228
    %v8230 = vpop.f32.mrf.mxu0
    %8231 = vdwg.mxu0
    %8232 = vmatpush.bf16.msra.mxu0 %v5307
    %8233 = vmatpush.bf16.msra.mxu0 %v5299
    %8234 = vmatpush.bf16.msra.mxu0 %v5291
    %8235 = vmatpush.bf16.msra.mxu0 %v5283
    %8236 = vmatpush.bf16.msra.mxu0 %v5275
    %8237 = vmatpush.bf16.msra.mxu0 %v5267
    %8238 = vmatpush.bf16.msra.mxu0 %v5259
    %8239 = vmatpush.bf16.msra.mxu0 %v5251
    %8240 = vmatmul.bf16.gmra.mxu0 %v990
    %v8241 = vpop.f32.mrf.mxu0
    %v8242 = vadd.f32 %v8229, %v8241
    %v8243 = vpop.f32.mrf.mxu0
    %8244 = vdwg.mxu0
    %8245 = vmatpush.bf16.msra.mxu0 %v5371
    %8246 = vmatpush.bf16.msra.mxu0 %v5363
    %8247 = vmatpush.bf16.msra.mxu0 %v5355
    %8248 = vmatpush.bf16.msra.mxu0 %v5347
    %8249 = vmatpush.bf16.msra.mxu0 %v5339
    %8250 = vmatpush.bf16.msra.mxu0 %v5331
    %8251 = vmatpush.bf16.msra.mxu0 %v5323
    %8252 = vmatpush.bf16.msra.mxu0 %v5315
    %8253 = vmatmul.bf16.gmra.mxu0 %v991
    %v8254 = vpop.f32.mrf.mxu0
    %v8255 = vadd.f32 %v8242, %v8254
    %v8256 = vpop.f32.mrf.mxu0
    %8257 = vdwg.mxu0
    %8258 = vmatpush.bf16.msra.mxu0 %v5435
    %8259 = vmatpush.bf16.msra.mxu0 %v5427
    %8260 = vmatpush.bf16.msra.mxu0 %v5419
    %8261 = vmatpush.bf16.msra.mxu0 %v5411
    %8262 = vmatpush.bf16.msra.mxu0 %v5403
    %8263 = vmatpush.bf16.msra.mxu0 %v5395
    %8264 = vmatpush.bf16.msra.mxu0 %v5387
    %8265 = vmatpush.bf16.msra.mxu0 %v5379
    %8266 = vmatmul.bf16.gmra.mxu0 %v992
    %v8267 = vpop.f32.mrf.mxu0
    %v8268 = vadd.f32 %v8255, %v8267
    %v8269 = vpop.f32.mrf.mxu0
    %8270 = vdwg.mxu0
    %8271 = vmatpush.bf16.msra.mxu0 %v5499
    %8272 = vmatpush.bf16.msra.mxu0 %v5491
    %8273 = vmatpush.bf16.msra.mxu0 %v5483
    %8274 = vmatpush.bf16.msra.mxu0 %v5475
    %8275 = vmatpush.bf16.msra.mxu0 %v5467
    %8276 = vmatpush.bf16.msra.mxu0 %v5459
    %8277 = vmatpush.bf16.msra.mxu0 %v5451
    %8278 = vmatpush.bf16.msra.mxu0 %v5443
    %8279 = vmatmul.bf16.gmra.mxu0 %v993
    %v8280 = vpop.f32.mrf.mxu0
    %v8281 = vadd.f32 %v8268, %v8280
    %v8282 = vpop.f32.mrf.mxu0
    %8283 = vdwg.mxu0
    %8284 = vmatpush.bf16.msra.mxu0 %v5563
    %8285 = vmatpush.bf16.msra.mxu0 %v5555
    %8286 = vmatpush.bf16.msra.mxu0 %v5547
    %8287 = vmatpush.bf16.msra.mxu0 %v5539
    %8288 = vmatpush.bf16.msra.mxu0 %v5531
    %8289 = vmatpush.bf16.msra.mxu0 %v5523
    %8290 = vmatpush.bf16.msra.mxu0 %v5515
    %8291 = vmatpush.bf16.msra.mxu0 %v5507
    %8292 = vmatmul.bf16.gmra.mxu0 %v994
    %v8293 = vpop.f32.mrf.mxu0
    %v8294 = vadd.f32 %v8281, %v8293
    %v8295 = vpop.f32.mrf.mxu0
    %8296 = vdwg.mxu0
    %8297 = vmatpush.bf16.msra.mxu0 %v5627
    %8298 = vmatpush.bf16.msra.mxu0 %v5619
    %8299 = vmatpush.bf16.msra.mxu0 %v5611
    %8300 = vmatpush.bf16.msra.mxu0 %v5603
    %8301 = vmatpush.bf16.msra.mxu0 %v5595
    %8302 = vmatpush.bf16.msra.mxu0 %v5587
    %8303 = vmatpush.bf16.msra.mxu0 %v5579
    %8304 = vmatpush.bf16.msra.mxu0 %v5571
    %8305 = vmatmul.bf16.gmra.mxu0 %v995
    %v8306 = vpop.f32.mrf.mxu0
    %v8307 = vadd.f32 %v8294, %v8306
    %v8308 = vpop.f32.mrf.mxu0
    %8309 = vdwg.mxu0
    %8310 = vmatpush.bf16.msra.mxu0 %v5691
    %8311 = vmatpush.bf16.msra.mxu0 %v5683
    %8312 = vmatpush.bf16.msra.mxu0 %v5675
    %8313 = vmatpush.bf16.msra.mxu0 %v5667
    %8314 = vmatpush.bf16.msra.mxu0 %v5659
    %8315 = vmatpush.bf16.msra.mxu0 %v5651
    %8316 = vmatpush.bf16.msra.mxu0 %v5643
    %8317 = vmatpush.bf16.msra.mxu0 %v5635
    %8318 = vmatmul.bf16.gmra.mxu0 %v996
    %v8319 = vpop.f32.mrf.mxu0
    %v8320 = vadd.f32 %v8307, %v8319
    %v8321 = vpop.f32.mrf.mxu0
    %8322 = vdwg.mxu0
    %8323 = vmatpush.bf16.msra.mxu0 %v5755
    %8324 = vmatpush.bf16.msra.mxu0 %v5747
    %8325 = vmatpush.bf16.msra.mxu0 %v5739
    %8326 = vmatpush.bf16.msra.mxu0 %v5731
    %8327 = vmatpush.bf16.msra.mxu0 %v5723
    %8328 = vmatpush.bf16.msra.mxu0 %v5715
    %8329 = vmatpush.bf16.msra.mxu0 %v5707
    %8330 = vmatpush.bf16.msra.mxu0 %v5699
    %8331 = vmatmul.bf16.gmra.mxu0 %v997
    %v8332 = vpop.f32.mrf.mxu0
    %v8333 = vadd.f32 %v8320, %v8332
    %v8334 = vpop.f32.mrf.mxu0
    %8335 = vdwg.mxu0
    %8336 = vmatpush.bf16.msra.mxu0 %v5819
    %8337 = vmatpush.bf16.msra.mxu0 %v5811
    %8338 = vmatpush.bf16.msra.mxu0 %v5803
    %8339 = vmatpush.bf16.msra.mxu0 %v5795
    %8340 = vmatpush.bf16.msra.mxu0 %v5787
    %8341 = vmatpush.bf16.msra.mxu0 %v5779
    %8342 = vmatpush.bf16.msra.mxu0 %v5771
    %8343 = vmatpush.bf16.msra.mxu0 %v5763
    %8344 = vmatmul.bf16.gmra.mxu0 %v998
    %v8345 = vpop.f32.mrf.mxu0
    %v8346 = vadd.f32 %v8333, %v8345
    %v8347 = vpop.f32.mrf.mxu0
    %8348 = vdwg.mxu0
    %8349 = vmatpush.bf16.msra.mxu0 %v5883
    %8350 = vmatpush.bf16.msra.mxu0 %v5875
    %8351 = vmatpush.bf16.msra.mxu0 %v5867
    %8352 = vmatpush.bf16.msra.mxu0 %v5859
    %8353 = vmatpush.bf16.msra.mxu0 %v5851
    %8354 = vmatpush.bf16.msra.mxu0 %v5843
    %8355 = vmatpush.bf16.msra.mxu0 %v5835
    %8356 = vmatpush.bf16.msra.mxu0 %v5827
    %8357 = vmatmul.bf16.gmra.mxu0 %v999
    %v8358 = vpop.f32.mrf.mxu0
    %v8359 = vadd.f32 %v8346, %v8358
    %v8360 = vpop.f32.mrf.mxu0
    %8361 = vdwg.mxu0
    %8362 = vmatpush.bf16.msra.mxu0 %v5947
    %8363 = vmatpush.bf16.msra.mxu0 %v5939
    %8364 = vmatpush.bf16.msra.mxu0 %v5931
    %8365 = vmatpush.bf16.msra.mxu0 %v5923
    %8366 = vmatpush.bf16.msra.mxu0 %v5915
    %8367 = vmatpush.bf16.msra.mxu0 %v5907
    %8368 = vmatpush.bf16.msra.mxu0 %v5899
    %8369 = vmatpush.bf16.msra.mxu0 %v5891
    %8370 = vmatmul.bf16.gmra.mxu0 %v1000
    %v8371 = vpop.f32.mrf.mxu0
    %v8372 = vadd.f32 %v8359, %v8371
    %v8373 = vpop.f32.mrf.mxu0
    %8374 = vdwg.mxu0
    %8375 = vmatpush.bf16.msra.mxu0 %v6011
    %8376 = vmatpush.bf16.msra.mxu0 %v6003
    %8377 = vmatpush.bf16.msra.mxu0 %v5995
    %8378 = vmatpush.bf16.msra.mxu0 %v5987
    %8379 = vmatpush.bf16.msra.mxu0 %v5979
    %8380 = vmatpush.bf16.msra.mxu0 %v5971
    %8381 = vmatpush.bf16.msra.mxu0 %v5963
    %8382 = vmatpush.bf16.msra.mxu0 %v5955
    %8383 = vmatmul.bf16.gmra.mxu0 %v1001
    %v8384 = vpop.f32.mrf.mxu0
    %v8385 = vadd.f32 %v8372, %v8384
    %v8386 = vpop.f32.mrf.mxu0
    %8387 = vdwg.mxu0
    %8388 = vmatpush.bf16.msra.mxu0 %v6075
    %8389 = vmatpush.bf16.msra.mxu0 %v6067
    %8390 = vmatpush.bf16.msra.mxu0 %v6059
    %8391 = vmatpush.bf16.msra.mxu0 %v6051
    %8392 = vmatpush.bf16.msra.mxu0 %v6043
    %8393 = vmatpush.bf16.msra.mxu0 %v6035
    %8394 = vmatpush.bf16.msra.mxu0 %v6027
    %8395 = vmatpush.bf16.msra.mxu0 %v6019
    %8396 = vmatmul.bf16.gmra.mxu0 %v1002
    %v8397 = vpop.f32.mrf.mxu0
    %v8398 = vadd.f32 %v8385, %v8397
    %v8399 = vpop.f32.mrf.mxu0
    %8400 = vdwg.mxu0
    %8401 = vmatpush.bf16.msra.mxu0 %v6139
    %8402 = vmatpush.bf16.msra.mxu0 %v6131
    %8403 = vmatpush.bf16.msra.mxu0 %v6123
    %8404 = vmatpush.bf16.msra.mxu0 %v6115
    %8405 = vmatpush.bf16.msra.mxu0 %v6107
    %8406 = vmatpush.bf16.msra.mxu0 %v6099
    %8407 = vmatpush.bf16.msra.mxu0 %v6091
    %8408 = vmatpush.bf16.msra.mxu0 %v6083
    %8409 = vmatmul.bf16.gmra.mxu0 %v1003
    %v8410 = vpop.f32.mrf.mxu0
    %v8411 = vadd.f32 %v8398, %v8410
    %v8412 = vpop.f32.mrf.mxu0
    %8413 = vdwg.mxu0
    %8414 = vmatpush.bf16.msra.mxu0 %v5180
    %8415 = vmatpush.bf16.msra.mxu0 %v5172
    %8416 = vmatpush.bf16.msra.mxu0 %v5164
    %8417 = vmatpush.bf16.msra.mxu0 %v5156
    %8418 = vmatpush.bf16.msra.mxu0 %v5148
    %8419 = vmatpush.bf16.msra.mxu0 %v5140
    %8420 = vmatpush.bf16.msra.mxu0 %v5132
    %8421 = vmatpush.bf16.msra.mxu0 %v5124
    %8422 = vmatmul.bf16.gmra.mxu0 %v988
    %v8423 = vpop.f32.mrf.mxu0
    %v8424 = vadd.f32 %v2036, %v8423
    %v8425 = vpop.f32.mrf.mxu0
    %8426 = vdwg.mxu0
    %8427 = vmatpush.bf16.msra.mxu0 %v5244
    %8428 = vmatpush.bf16.msra.mxu0 %v5236
    %8429 = vmatpush.bf16.msra.mxu0 %v5228
    %8430 = vmatpush.bf16.msra.mxu0 %v5220
    %8431 = vmatpush.bf16.msra.mxu0 %v5212
    %8432 = vmatpush.bf16.msra.mxu0 %v5204
    %8433 = vmatpush.bf16.msra.mxu0 %v5196
    %8434 = vmatpush.bf16.msra.mxu0 %v5188
    %8435 = vmatmul.bf16.gmra.mxu0 %v989
    %v8436 = vpop.f32.mrf.mxu0
    %v8437 = vadd.f32 %v8424, %v8436
    %v8438 = vpop.f32.mrf.mxu0
    %8439 = vdwg.mxu0
    %8440 = vmatpush.bf16.msra.mxu0 %v5308
    %8441 = vmatpush.bf16.msra.mxu0 %v5300
    %8442 = vmatpush.bf16.msra.mxu0 %v5292
    %8443 = vmatpush.bf16.msra.mxu0 %v5284
    %8444 = vmatpush.bf16.msra.mxu0 %v5276
    %8445 = vmatpush.bf16.msra.mxu0 %v5268
    %8446 = vmatpush.bf16.msra.mxu0 %v5260
    %8447 = vmatpush.bf16.msra.mxu0 %v5252
    %8448 = vmatmul.bf16.gmra.mxu0 %v990
    %v8449 = vpop.f32.mrf.mxu0
    %v8450 = vadd.f32 %v8437, %v8449
    %v8451 = vpop.f32.mrf.mxu0
    %8452 = vdwg.mxu0
    %8453 = vmatpush.bf16.msra.mxu0 %v5372
    %8454 = vmatpush.bf16.msra.mxu0 %v5364
    %8455 = vmatpush.bf16.msra.mxu0 %v5356
    %8456 = vmatpush.bf16.msra.mxu0 %v5348
    %8457 = vmatpush.bf16.msra.mxu0 %v5340
    %8458 = vmatpush.bf16.msra.mxu0 %v5332
    %8459 = vmatpush.bf16.msra.mxu0 %v5324
    %8460 = vmatpush.bf16.msra.mxu0 %v5316
    %8461 = vmatmul.bf16.gmra.mxu0 %v991
    %v8462 = vpop.f32.mrf.mxu0
    %v8463 = vadd.f32 %v8450, %v8462
    %v8464 = vpop.f32.mrf.mxu0
    %8465 = vdwg.mxu0
    %8466 = vmatpush.bf16.msra.mxu0 %v5436
    %8467 = vmatpush.bf16.msra.mxu0 %v5428
    %8468 = vmatpush.bf16.msra.mxu0 %v5420
    %8469 = vmatpush.bf16.msra.mxu0 %v5412
    %8470 = vmatpush.bf16.msra.mxu0 %v5404
    %8471 = vmatpush.bf16.msra.mxu0 %v5396
    %8472 = vmatpush.bf16.msra.mxu0 %v5388
    %8473 = vmatpush.bf16.msra.mxu0 %v5380
    %8474 = vmatmul.bf16.gmra.mxu0 %v992
    %v8475 = vpop.f32.mrf.mxu0
    %v8476 = vadd.f32 %v8463, %v8475
    %v8477 = vpop.f32.mrf.mxu0
    %8478 = vdwg.mxu0
    %8479 = vmatpush.bf16.msra.mxu0 %v5500
    %8480 = vmatpush.bf16.msra.mxu0 %v5492
    %8481 = vmatpush.bf16.msra.mxu0 %v5484
    %8482 = vmatpush.bf16.msra.mxu0 %v5476
    %8483 = vmatpush.bf16.msra.mxu0 %v5468
    %8484 = vmatpush.bf16.msra.mxu0 %v5460
    %8485 = vmatpush.bf16.msra.mxu0 %v5452
    %8486 = vmatpush.bf16.msra.mxu0 %v5444
    %8487 = vmatmul.bf16.gmra.mxu0 %v993
    %v8488 = vpop.f32.mrf.mxu0
    %v8489 = vadd.f32 %v8476, %v8488
    %v8490 = vpop.f32.mrf.mxu0
    %8491 = vdwg.mxu0
    %8492 = vmatpush.bf16.msra.mxu0 %v5564
    %8493 = vmatpush.bf16.msra.mxu0 %v5556
    %8494 = vmatpush.bf16.msra.mxu0 %v5548
    %8495 = vmatpush.bf16.msra.mxu0 %v5540
    %8496 = vmatpush.bf16.msra.mxu0 %v5532
    %8497 = vmatpush.bf16.msra.mxu0 %v5524
    %8498 = vmatpush.bf16.msra.mxu0 %v5516
    %8499 = vmatpush.bf16.msra.mxu0 %v5508
    %8500 = vmatmul.bf16.gmra.mxu0 %v994
    %v8501 = vpop.f32.mrf.mxu0
    %v8502 = vadd.f32 %v8489, %v8501
    %v8503 = vpop.f32.mrf.mxu0
    %8504 = vdwg.mxu0
    %8505 = vmatpush.bf16.msra.mxu0 %v5628
    %8506 = vmatpush.bf16.msra.mxu0 %v5620
    %8507 = vmatpush.bf16.msra.mxu0 %v5612
    %8508 = vmatpush.bf16.msra.mxu0 %v5604
    %8509 = vmatpush.bf16.msra.mxu0 %v5596
    %8510 = vmatpush.bf16.msra.mxu0 %v5588
    %8511 = vmatpush.bf16.msra.mxu0 %v5580
    %8512 = vmatpush.bf16.msra.mxu0 %v5572
    %8513 = vmatmul.bf16.gmra.mxu0 %v995
    %v8514 = vpop.f32.mrf.mxu0
    %v8515 = vadd.f32 %v8502, %v8514
    %v8516 = vpop.f32.mrf.mxu0
    %8517 = vdwg.mxu0
    %8518 = vmatpush.bf16.msra.mxu0 %v5692
    %8519 = vmatpush.bf16.msra.mxu0 %v5684
    %8520 = vmatpush.bf16.msra.mxu0 %v5676
    %8521 = vmatpush.bf16.msra.mxu0 %v5668
    %8522 = vmatpush.bf16.msra.mxu0 %v5660
    %8523 = vmatpush.bf16.msra.mxu0 %v5652
    %8524 = vmatpush.bf16.msra.mxu0 %v5644
    %8525 = vmatpush.bf16.msra.mxu0 %v5636
    %8526 = vmatmul.bf16.gmra.mxu0 %v996
    %v8527 = vpop.f32.mrf.mxu0
    %v8528 = vadd.f32 %v8515, %v8527
    %v8529 = vpop.f32.mrf.mxu0
    %8530 = vdwg.mxu0
    %8531 = vmatpush.bf16.msra.mxu0 %v5756
    %8532 = vmatpush.bf16.msra.mxu0 %v5748
    %8533 = vmatpush.bf16.msra.mxu0 %v5740
    %8534 = vmatpush.bf16.msra.mxu0 %v5732
    %8535 = vmatpush.bf16.msra.mxu0 %v5724
    %8536 = vmatpush.bf16.msra.mxu0 %v5716
    %8537 = vmatpush.bf16.msra.mxu0 %v5708
    %8538 = vmatpush.bf16.msra.mxu0 %v5700
    %8539 = vmatmul.bf16.gmra.mxu0 %v997
    %v8540 = vpop.f32.mrf.mxu0
    %v8541 = vadd.f32 %v8528, %v8540
    %v8542 = vpop.f32.mrf.mxu0
    %8543 = vdwg.mxu0
    %8544 = vmatpush.bf16.msra.mxu0 %v5820
    %8545 = vmatpush.bf16.msra.mxu0 %v5812
    %8546 = vmatpush.bf16.msra.mxu0 %v5804
    %8547 = vmatpush.bf16.msra.mxu0 %v5796
    %8548 = vmatpush.bf16.msra.mxu0 %v5788
    %8549 = vmatpush.bf16.msra.mxu0 %v5780
    %8550 = vmatpush.bf16.msra.mxu0 %v5772
    %8551 = vmatpush.bf16.msra.mxu0 %v5764
    %8552 = vmatmul.bf16.gmra.mxu0 %v998
    %v8553 = vpop.f32.mrf.mxu0
    %v8554 = vadd.f32 %v8541, %v8553
    %v8555 = vpop.f32.mrf.mxu0
    %8556 = vdwg.mxu0
    %8557 = vmatpush.bf16.msra.mxu0 %v5884
    %8558 = vmatpush.bf16.msra.mxu0 %v5876
    %8559 = vmatpush.bf16.msra.mxu0 %v5868
    %8560 = vmatpush.bf16.msra.mxu0 %v5860
    %8561 = vmatpush.bf16.msra.mxu0 %v5852
    %8562 = vmatpush.bf16.msra.mxu0 %v5844
    %8563 = vmatpush.bf16.msra.mxu0 %v5836
    %8564 = vmatpush.bf16.msra.mxu0 %v5828
    %8565 = vmatmul.bf16.gmra.mxu0 %v999
    %v8566 = vpop.f32.mrf.mxu0
    %v8567 = vadd.f32 %v8554, %v8566
    %v8568 = vpop.f32.mrf.mxu0
    %8569 = vdwg.mxu0
    %8570 = vmatpush.bf16.msra.mxu0 %v5948
    %8571 = vmatpush.bf16.msra.mxu0 %v5940
    %8572 = vmatpush.bf16.msra.mxu0 %v5932
    %8573 = vmatpush.bf16.msra.mxu0 %v5924
    %8574 = vmatpush.bf16.msra.mxu0 %v5916
    %8575 = vmatpush.bf16.msra.mxu0 %v5908
    %8576 = vmatpush.bf16.msra.mxu0 %v5900
    %8577 = vmatpush.bf16.msra.mxu0 %v5892
    %8578 = vmatmul.bf16.gmra.mxu0 %v1000
    %v8579 = vpop.f32.mrf.mxu0
    %v8580 = vadd.f32 %v8567, %v8579
    %v8581 = vpop.f32.mrf.mxu0
    %8582 = vdwg.mxu0
    %8583 = vmatpush.bf16.msra.mxu0 %v6012
    %8584 = vmatpush.bf16.msra.mxu0 %v6004
    %8585 = vmatpush.bf16.msra.mxu0 %v5996
    %8586 = vmatpush.bf16.msra.mxu0 %v5988
    %8587 = vmatpush.bf16.msra.mxu0 %v5980
    %8588 = vmatpush.bf16.msra.mxu0 %v5972
    %8589 = vmatpush.bf16.msra.mxu0 %v5964
    %8590 = vmatpush.bf16.msra.mxu0 %v5956
    %8591 = vmatmul.bf16.gmra.mxu0 %v1001
    %v8592 = vpop.f32.mrf.mxu0
    %v8593 = vadd.f32 %v8580, %v8592
    %v8594 = vpop.f32.mrf.mxu0
    %8595 = vdwg.mxu0
    %8596 = vmatpush.bf16.msra.mxu0 %v6076
    %8597 = vmatpush.bf16.msra.mxu0 %v6068
    %8598 = vmatpush.bf16.msra.mxu0 %v6060
    %8599 = vmatpush.bf16.msra.mxu0 %v6052
    %8600 = vmatpush.bf16.msra.mxu0 %v6044
    %8601 = vmatpush.bf16.msra.mxu0 %v6036
    %8602 = vmatpush.bf16.msra.mxu0 %v6028
    %8603 = vmatpush.bf16.msra.mxu0 %v6020
    %8604 = vmatmul.bf16.gmra.mxu0 %v1002
    %v8605 = vpop.f32.mrf.mxu0
    %v8606 = vadd.f32 %v8593, %v8605
    %v8607 = vpop.f32.mrf.mxu0
    %8608 = vdwg.mxu0
    %8609 = vmatpush.bf16.msra.mxu0 %v6140
    %8610 = vmatpush.bf16.msra.mxu0 %v6132
    %8611 = vmatpush.bf16.msra.mxu0 %v6124
    %8612 = vmatpush.bf16.msra.mxu0 %v6116
    %8613 = vmatpush.bf16.msra.mxu0 %v6108
    %8614 = vmatpush.bf16.msra.mxu0 %v6100
    %8615 = vmatpush.bf16.msra.mxu0 %v6092
    %8616 = vmatpush.bf16.msra.mxu0 %v6084
    %8617 = vmatmul.bf16.gmra.mxu0 %v1003
    %v8618 = vpop.f32.mrf.mxu0
    %v8619 = vadd.f32 %v8606, %v8618
    %v8620 = vpop.f32.mrf.mxu0
    %8621 = vdwg.mxu0
    %8622 = vmatpush.bf16.msra.mxu0 %v5181
    %8623 = vmatpush.bf16.msra.mxu0 %v5173
    %8624 = vmatpush.bf16.msra.mxu0 %v5165
    %8625 = vmatpush.bf16.msra.mxu0 %v5157
    %8626 = vmatpush.bf16.msra.mxu0 %v5149
    %8627 = vmatpush.bf16.msra.mxu0 %v5141
    %8628 = vmatpush.bf16.msra.mxu0 %v5133
    %8629 = vmatpush.bf16.msra.mxu0 %v5125
    %8630 = vmatmul.bf16.gmra.mxu0 %v988
    %v8631 = vpop.f32.mrf.mxu0
    %v8632 = vadd.f32 %v2037, %v8631
    %v8633 = vpop.f32.mrf.mxu0
    %8634 = vdwg.mxu0
    %8635 = vmatpush.bf16.msra.mxu0 %v5245
    %8636 = vmatpush.bf16.msra.mxu0 %v5237
    %8637 = vmatpush.bf16.msra.mxu0 %v5229
    %8638 = vmatpush.bf16.msra.mxu0 %v5221
    %8639 = vmatpush.bf16.msra.mxu0 %v5213
    %8640 = vmatpush.bf16.msra.mxu0 %v5205
    %8641 = vmatpush.bf16.msra.mxu0 %v5197
    %8642 = vmatpush.bf16.msra.mxu0 %v5189
    %8643 = vmatmul.bf16.gmra.mxu0 %v989
    %v8644 = vpop.f32.mrf.mxu0
    %v8645 = vadd.f32 %v8632, %v8644
    %v8646 = vpop.f32.mrf.mxu0
    %8647 = vdwg.mxu0
    %8648 = vmatpush.bf16.msra.mxu0 %v5309
    %8649 = vmatpush.bf16.msra.mxu0 %v5301
    %8650 = vmatpush.bf16.msra.mxu0 %v5293
    %8651 = vmatpush.bf16.msra.mxu0 %v5285
    %8652 = vmatpush.bf16.msra.mxu0 %v5277
    %8653 = vmatpush.bf16.msra.mxu0 %v5269
    %8654 = vmatpush.bf16.msra.mxu0 %v5261
    %8655 = vmatpush.bf16.msra.mxu0 %v5253
    %8656 = vmatmul.bf16.gmra.mxu0 %v990
    %v8657 = vpop.f32.mrf.mxu0
    %v8658 = vadd.f32 %v8645, %v8657
    %v8659 = vpop.f32.mrf.mxu0
    %8660 = vdwg.mxu0
    %8661 = vmatpush.bf16.msra.mxu0 %v5373
    %8662 = vmatpush.bf16.msra.mxu0 %v5365
    %8663 = vmatpush.bf16.msra.mxu0 %v5357
    %8664 = vmatpush.bf16.msra.mxu0 %v5349
    %8665 = vmatpush.bf16.msra.mxu0 %v5341
    %8666 = vmatpush.bf16.msra.mxu0 %v5333
    %8667 = vmatpush.bf16.msra.mxu0 %v5325
    %8668 = vmatpush.bf16.msra.mxu0 %v5317
    %8669 = vmatmul.bf16.gmra.mxu0 %v991
    %v8670 = vpop.f32.mrf.mxu0
    %v8671 = vadd.f32 %v8658, %v8670
    %v8672 = vpop.f32.mrf.mxu0
    %8673 = vdwg.mxu0
    %8674 = vmatpush.bf16.msra.mxu0 %v5437
    %8675 = vmatpush.bf16.msra.mxu0 %v5429
    %8676 = vmatpush.bf16.msra.mxu0 %v5421
    %8677 = vmatpush.bf16.msra.mxu0 %v5413
    %8678 = vmatpush.bf16.msra.mxu0 %v5405
    %8679 = vmatpush.bf16.msra.mxu0 %v5397
    %8680 = vmatpush.bf16.msra.mxu0 %v5389
    %8681 = vmatpush.bf16.msra.mxu0 %v5381
    %8682 = vmatmul.bf16.gmra.mxu0 %v992
    %v8683 = vpop.f32.mrf.mxu0
    %v8684 = vadd.f32 %v8671, %v8683
    %v8685 = vpop.f32.mrf.mxu0
    %8686 = vdwg.mxu0
    %8687 = vmatpush.bf16.msra.mxu0 %v5501
    %8688 = vmatpush.bf16.msra.mxu0 %v5493
    %8689 = vmatpush.bf16.msra.mxu0 %v5485
    %8690 = vmatpush.bf16.msra.mxu0 %v5477
    %8691 = vmatpush.bf16.msra.mxu0 %v5469
    %8692 = vmatpush.bf16.msra.mxu0 %v5461
    %8693 = vmatpush.bf16.msra.mxu0 %v5453
    %8694 = vmatpush.bf16.msra.mxu0 %v5445
    %8695 = vmatmul.bf16.gmra.mxu0 %v993
    %v8696 = vpop.f32.mrf.mxu0
    %v8697 = vadd.f32 %v8684, %v8696
    %v8698 = vpop.f32.mrf.mxu0
    %8699 = vdwg.mxu0
    %8700 = vmatpush.bf16.msra.mxu0 %v5565
    %8701 = vmatpush.bf16.msra.mxu0 %v5557
    %8702 = vmatpush.bf16.msra.mxu0 %v5549
    %8703 = vmatpush.bf16.msra.mxu0 %v5541
    %8704 = vmatpush.bf16.msra.mxu0 %v5533
    %8705 = vmatpush.bf16.msra.mxu0 %v5525
    %8706 = vmatpush.bf16.msra.mxu0 %v5517
    %8707 = vmatpush.bf16.msra.mxu0 %v5509
    %8708 = vmatmul.bf16.gmra.mxu0 %v994
    %v8709 = vpop.f32.mrf.mxu0
    %v8710 = vadd.f32 %v8697, %v8709
    %v8711 = vpop.f32.mrf.mxu0
    %8712 = vdwg.mxu0
    %8713 = vmatpush.bf16.msra.mxu0 %v5629
    %8714 = vmatpush.bf16.msra.mxu0 %v5621
    %8715 = vmatpush.bf16.msra.mxu0 %v5613
    %8716 = vmatpush.bf16.msra.mxu0 %v5605
    %8717 = vmatpush.bf16.msra.mxu0 %v5597
    %8718 = vmatpush.bf16.msra.mxu0 %v5589
    %8719 = vmatpush.bf16.msra.mxu0 %v5581
    %8720 = vmatpush.bf16.msra.mxu0 %v5573
    %8721 = vmatmul.bf16.gmra.mxu0 %v995
    %v8722 = vpop.f32.mrf.mxu0
    %v8723 = vadd.f32 %v8710, %v8722
    %v8724 = vpop.f32.mrf.mxu0
    %8725 = vdwg.mxu0
    %8726 = vmatpush.bf16.msra.mxu0 %v5693
    %8727 = vmatpush.bf16.msra.mxu0 %v5685
    %8728 = vmatpush.bf16.msra.mxu0 %v5677
    %8729 = vmatpush.bf16.msra.mxu0 %v5669
    %8730 = vmatpush.bf16.msra.mxu0 %v5661
    %8731 = vmatpush.bf16.msra.mxu0 %v5653
    %8732 = vmatpush.bf16.msra.mxu0 %v5645
    %8733 = vmatpush.bf16.msra.mxu0 %v5637
    %8734 = vmatmul.bf16.gmra.mxu0 %v996
    %v8735 = vpop.f32.mrf.mxu0
    %v8736 = vadd.f32 %v8723, %v8735
    %v8737 = vpop.f32.mrf.mxu0
    %8738 = vdwg.mxu0
    %8739 = vmatpush.bf16.msra.mxu0 %v5757
    %8740 = vmatpush.bf16.msra.mxu0 %v5749
    %8741 = vmatpush.bf16.msra.mxu0 %v5741
    %8742 = vmatpush.bf16.msra.mxu0 %v5733
    %8743 = vmatpush.bf16.msra.mxu0 %v5725
    %8744 = vmatpush.bf16.msra.mxu0 %v5717
    %8745 = vmatpush.bf16.msra.mxu0 %v5709
    %8746 = vmatpush.bf16.msra.mxu0 %v5701
    %8747 = vmatmul.bf16.gmra.mxu0 %v997
    %v8748 = vpop.f32.mrf.mxu0
    %v8749 = vadd.f32 %v8736, %v8748
    %v8750 = vpop.f32.mrf.mxu0
    %8751 = vdwg.mxu0
    %8752 = vmatpush.bf16.msra.mxu0 %v5821
    %8753 = vmatpush.bf16.msra.mxu0 %v5813
    %8754 = vmatpush.bf16.msra.mxu0 %v5805
    %8755 = vmatpush.bf16.msra.mxu0 %v5797
    %8756 = vmatpush.bf16.msra.mxu0 %v5789
    %8757 = vmatpush.bf16.msra.mxu0 %v5781
    %8758 = vmatpush.bf16.msra.mxu0 %v5773
    %8759 = vmatpush.bf16.msra.mxu0 %v5765
    %8760 = vmatmul.bf16.gmra.mxu0 %v998
    %v8761 = vpop.f32.mrf.mxu0
    %v8762 = vadd.f32 %v8749, %v8761
    %v8763 = vpop.f32.mrf.mxu0
    %8764 = vdwg.mxu0
    %8765 = vmatpush.bf16.msra.mxu0 %v5885
    %8766 = vmatpush.bf16.msra.mxu0 %v5877
    %8767 = vmatpush.bf16.msra.mxu0 %v5869
    %8768 = vmatpush.bf16.msra.mxu0 %v5861
    %8769 = vmatpush.bf16.msra.mxu0 %v5853
    %8770 = vmatpush.bf16.msra.mxu0 %v5845
    %8771 = vmatpush.bf16.msra.mxu0 %v5837
    %8772 = vmatpush.bf16.msra.mxu0 %v5829
    %8773 = vmatmul.bf16.gmra.mxu0 %v999
    %v8774 = vpop.f32.mrf.mxu0
    %v8775 = vadd.f32 %v8762, %v8774
    %v8776 = vpop.f32.mrf.mxu0
    %8777 = vdwg.mxu0
    %8778 = vmatpush.bf16.msra.mxu0 %v5949
    %8779 = vmatpush.bf16.msra.mxu0 %v5941
    %8780 = vmatpush.bf16.msra.mxu0 %v5933
    %8781 = vmatpush.bf16.msra.mxu0 %v5925
    %8782 = vmatpush.bf16.msra.mxu0 %v5917
    %8783 = vmatpush.bf16.msra.mxu0 %v5909
    %8784 = vmatpush.bf16.msra.mxu0 %v5901
    %8785 = vmatpush.bf16.msra.mxu0 %v5893
    %8786 = vmatmul.bf16.gmra.mxu0 %v1000
    %v8787 = vpop.f32.mrf.mxu0
    %v8788 = vadd.f32 %v8775, %v8787
    %v8789 = vpop.f32.mrf.mxu0
    %8790 = vdwg.mxu0
    %8791 = vmatpush.bf16.msra.mxu0 %v6013
    %8792 = vmatpush.bf16.msra.mxu0 %v6005
    %8793 = vmatpush.bf16.msra.mxu0 %v5997
    %8794 = vmatpush.bf16.msra.mxu0 %v5989
    %8795 = vmatpush.bf16.msra.mxu0 %v5981
    %8796 = vmatpush.bf16.msra.mxu0 %v5973
    %8797 = vmatpush.bf16.msra.mxu0 %v5965
    %8798 = vmatpush.bf16.msra.mxu0 %v5957
    %8799 = vmatmul.bf16.gmra.mxu0 %v1001
    %v8800 = vpop.f32.mrf.mxu0
    %v8801 = vadd.f32 %v8788, %v8800
    %v8802 = vpop.f32.mrf.mxu0
    %8803 = vdwg.mxu0
    %8804 = vmatpush.bf16.msra.mxu0 %v6077
    %8805 = vmatpush.bf16.msra.mxu0 %v6069
    %8806 = vmatpush.bf16.msra.mxu0 %v6061
    %8807 = vmatpush.bf16.msra.mxu0 %v6053
    %8808 = vmatpush.bf16.msra.mxu0 %v6045
    %8809 = vmatpush.bf16.msra.mxu0 %v6037
    %8810 = vmatpush.bf16.msra.mxu0 %v6029
    %8811 = vmatpush.bf16.msra.mxu0 %v6021
    %8812 = vmatmul.bf16.gmra.mxu0 %v1002
    %v8813 = vpop.f32.mrf.mxu0
    %v8814 = vadd.f32 %v8801, %v8813
    %v8815 = vpop.f32.mrf.mxu0
    %8816 = vdwg.mxu0
    %8817 = vmatpush.bf16.msra.mxu0 %v6141
    %8818 = vmatpush.bf16.msra.mxu0 %v6133
    %8819 = vmatpush.bf16.msra.mxu0 %v6125
    %8820 = vmatpush.bf16.msra.mxu0 %v6117
    %8821 = vmatpush.bf16.msra.mxu0 %v6109
    %8822 = vmatpush.bf16.msra.mxu0 %v6101
    %8823 = vmatpush.bf16.msra.mxu0 %v6093
    %8824 = vmatpush.bf16.msra.mxu0 %v6085
    %8825 = vmatmul.bf16.gmra.mxu0 %v1003
    %v8826 = vpop.f32.mrf.mxu0
    %v8827 = vadd.f32 %v8814, %v8826
    %v8828 = vpop.f32.mrf.mxu0
    %8829 = vdwg.mxu0
    %v8830 = vmax.f32 %v7371, 0.0
    %v8831 = vmax.f32 %v7579, 0.0
    %v8832 = vmax.f32 %v7787, 0.0
    %v8833 = vmax.f32 %v7995, 0.0
    %v8834 = vmax.f32 %v8203, 0.0
    %v8835 = vmax.f32 %v8411, 0.0
    %v8836 = vmax.f32 %v8619, 0.0
    %v8837 = vmax.f32 %v8827, 0.0
    %v8838 = vpack.c.bf16 %v8830, %v8830
    %v8839 = vpack.c.bf16 %v8831, %v8831
    %v8840 = vpack.c.bf16 %v8832, %v8832
    %v8841 = vpack.c.bf16 %v8833, %v8833
    %v8842 = vpack.c.bf16 %v8834, %v8834
    %v8843 = vpack.c.bf16 %v8835, %v8835
    %v8844 = vpack.c.bf16 %v8836, %v8836
    %v8845 = vpack.c.bf16 %v8837, %v8837
    %v8846 = vld [vmem:[#allocation10] sm:$0xf]
    %v8847 = vld [vmem:[#allocation10 + $0x4] sm:$0xf]
    %v8848 = vld [vmem:[#allocation10 + $0x8] sm:$0xf]
    %v8849 = vld [vmem:[#allocation10 + $0xc] sm:$0xf]
    %v8850 = vld [vmem:[#allocation10 + $0x10] sm:$0xf]
    %v8851 = vld [vmem:[#allocation10 + $0x14] sm:$0xf]
    %v8852 = vld [vmem:[#allocation10 + $0x18] sm:$0xf]
    %v8853 = vld [vmem:[#allocation10 + $0x1c] sm:$0xf]
    %v8854 = vld [vmem:[#allocation10 + $0x20] sm:$0xf]
    %v8855 = vld [vmem:[#allocation10 + $0x24] sm:$0xf]
    %v8856 = vld [vmem:[#allocation10 + $0x28] sm:$0xf]
    %v8857 = vld [vmem:[#allocation10 + $0x2c] sm:$0xf]
    %v8858 = vld [vmem:[#allocation10 + $0x30] sm:$0xf]
    %v8859 = vld [vmem:[#allocation10 + $0x34] sm:$0xf]
    %v8860 = vld [vmem:[#allocation10 + $0x38] sm:$0xf]
    %v8861 = vld [vmem:[#allocation10 + $0x3c] sm:$0xf]
    %v8862 = vld [vmem:[#allocation10 + $0x40] sm:$0xf]
    %v8863 = vld [vmem:[#allocation10 + $0x44] sm:$0xf]
    %v8864 = vld [vmem:[#allocation10 + $0x48] sm:$0xf]
    %v8865 = vld [vmem:[#allocation10 + $0x4c] sm:$0xf]
    %v8866 = vld [vmem:[#allocation10 + $0x50] sm:$0xf]
    %v8867 = vld [vmem:[#allocation10 + $0x54] sm:$0xf]
    %v8868 = vld [vmem:[#allocation10 + $0x58] sm:$0xf]
    %v8869 = vld [vmem:[#allocation10 + $0x5c] sm:$0xf]
    %v8870 = vld [vmem:[#allocation10 + $0x60] sm:$0xf]
    %v8871 = vld [vmem:[#allocation10 + $0x64] sm:$0xf]
    %v8872 = vld [vmem:[#allocation10 + $0x68] sm:$0xf]
    %v8873 = vld [vmem:[#allocation10 + $0x6c] sm:$0xf]
    %v8874 = vld [vmem:[#allocation10 + $0x70] sm:$0xf]
    %v8875 = vld [vmem:[#allocation10 + $0x74] sm:$0xf]
    %v8876 = vld [vmem:[#allocation10 + $0x78] sm:$0xf]
    %v8877 = vld [vmem:[#allocation10 + $0x7c] sm:$0xf]
    %v8878 = vld [vmem:[#allocation10 + $0x80] sm:$0xf]
    %v8879 = vld [vmem:[#allocation10 + $0x84] sm:$0xf]
    %v8880 = vld [vmem:[#allocation10 + $0x88] sm:$0xf]
    %v8881 = vld [vmem:[#allocation10 + $0x8c] sm:$0xf]
    %v8882 = vld [vmem:[#allocation10 + $0x90] sm:$0xf]
    %v8883 = vld [vmem:[#allocation10 + $0x94] sm:$0xf]
    %v8884 = vld [vmem:[#allocation10 + $0x98] sm:$0xf]
    %v8885 = vld [vmem:[#allocation10 + $0x9c] sm:$0xf]
    %v8886 = vld [vmem:[#allocation10 + $0xa0] sm:$0xf]
    %v8887 = vld [vmem:[#allocation10 + $0xa4] sm:$0xf]
    %v8888 = vld [vmem:[#allocation10 + $0xa8] sm:$0xf]
    %v8889 = vld [vmem:[#allocation10 + $0xac] sm:$0xf]
    %v8890 = vld [vmem:[#allocation10 + $0xb0] sm:$0xf]
    %v8891 = vld [vmem:[#allocation10 + $0xb4] sm:$0xf]
    %v8892 = vld [vmem:[#allocation10 + $0xb8] sm:$0xf]
    %v8893 = vld [vmem:[#allocation10 + $0xbc] sm:$0xf]
    %v8894 = vld [vmem:[#allocation10 + $0xc0] sm:$0xf]
    %v8895 = vld [vmem:[#allocation10 + $0xc4] sm:$0xf]
    %v8896 = vld [vmem:[#allocation10 + $0xc8] sm:$0xf]
    %v8897 = vld [vmem:[#allocation10 + $0xcc] sm:$0xf]
    %v8898 = vld [vmem:[#allocation10 + $0xd0] sm:$0xf]
    %v8899 = vld [vmem:[#allocation10 + $0xd4] sm:$0xf]
    %v8900 = vld [vmem:[#allocation10 + $0xd8] sm:$0xf]
    %v8901 = vld [vmem:[#allocation10 + $0xdc] sm:$0xf]
    %v8902 = vld [vmem:[#allocation10 + $0xe0] sm:$0xf]
    %v8903 = vld [vmem:[#allocation10 + $0xe4] sm:$0xf]
    %v8904 = vld [vmem:[#allocation10 + $0xe8] sm:$0xf]
    %v8905 = vld [vmem:[#allocation10 + $0xec] sm:$0xf]
    %v8906 = vld [vmem:[#allocation10 + $0xf0] sm:$0xf]
    %v8907 = vld [vmem:[#allocation10 + $0xf4] sm:$0xf]
    %v8908 = vld [vmem:[#allocation10 + $0xf8] sm:$0xf]
    %v8909 = vld [vmem:[#allocation10 + $0xfc] sm:$0xf]
    %v8910 = vld [vmem:[#allocation10 + $0x100] sm:$0xf]
    %v8911 = vld [vmem:[#allocation10 + $0x104] sm:$0xf]
    %v8912 = vld [vmem:[#allocation10 + $0x108] sm:$0xf]
    %v8913 = vld [vmem:[#allocation10 + $0x10c] sm:$0xf]
    %v8914 = vld [vmem:[#allocation10 + $0x110] sm:$0xf]
    %v8915 = vld [vmem:[#allocation10 + $0x114] sm:$0xf]
    %v8916 = vld [vmem:[#allocation10 + $0x118] sm:$0xf]
    %v8917 = vld [vmem:[#allocation10 + $0x11c] sm:$0xf]
    %v8918 = vld [vmem:[#allocation10 + $0x120] sm:$0xf]
    %v8919 = vld [vmem:[#allocation10 + $0x124] sm:$0xf]
    %v8920 = vld [vmem:[#allocation10 + $0x128] sm:$0xf]
    %v8921 = vld [vmem:[#allocation10 + $0x12c] sm:$0xf]
    %v8922 = vld [vmem:[#allocation10 + $0x130] sm:$0xf]
    %v8923 = vld [vmem:[#allocation10 + $0x134] sm:$0xf]
    %v8924 = vld [vmem:[#allocation10 + $0x138] sm:$0xf]
    %v8925 = vld [vmem:[#allocation10 + $0x13c] sm:$0xf]
    %v8926 = vld [vmem:[#allocation10 + $0x140] sm:$0xf]
    %v8927 = vld [vmem:[#allocation10 + $0x144] sm:$0xf]
    %v8928 = vld [vmem:[#allocation10 + $0x148] sm:$0xf]
    %v8929 = vld [vmem:[#allocation10 + $0x14c] sm:$0xf]
    %v8930 = vld [vmem:[#allocation10 + $0x150] sm:$0xf]
    %v8931 = vld [vmem:[#allocation10 + $0x154] sm:$0xf]
    %v8932 = vld [vmem:[#allocation10 + $0x158] sm:$0xf]
    %v8933 = vld [vmem:[#allocation10 + $0x15c] sm:$0xf]
    %v8934 = vld [vmem:[#allocation10 + $0x160] sm:$0xf]
    %v8935 = vld [vmem:[#allocation10 + $0x164] sm:$0xf]
    %v8936 = vld [vmem:[#allocation10 + $0x168] sm:$0xf]
    %v8937 = vld [vmem:[#allocation10 + $0x16c] sm:$0xf]
    %v8938 = vld [vmem:[#allocation10 + $0x170] sm:$0xf]
    %v8939 = vld [vmem:[#allocation10 + $0x174] sm:$0xf]
    %v8940 = vld [vmem:[#allocation10 + $0x178] sm:$0xf]
    %v8941 = vld [vmem:[#allocation10 + $0x17c] sm:$0xf]
    %v8942 = vld [vmem:[#allocation10 + $0x180] sm:$0xf]
    %v8943 = vld [vmem:[#allocation10 + $0x184] sm:$0xf]
    %v8944 = vld [vmem:[#allocation10 + $0x188] sm:$0xf]
    %v8945 = vld [vmem:[#allocation10 + $0x18c] sm:$0xf]
    %v8946 = vld [vmem:[#allocation10 + $0x190] sm:$0xf]
    %v8947 = vld [vmem:[#allocation10 + $0x194] sm:$0xf]
    %v8948 = vld [vmem:[#allocation10 + $0x198] sm:$0xf]
    %v8949 = vld [vmem:[#allocation10 + $0x19c] sm:$0xf]
    %v8950 = vld [vmem:[#allocation10 + $0x1a0] sm:$0xf]
    %v8951 = vld [vmem:[#allocation10 + $0x1a4] sm:$0xf]
    %v8952 = vld [vmem:[#allocation10 + $0x1a8] sm:$0xf]
    %v8953 = vld [vmem:[#allocation10 + $0x1ac] sm:$0xf]
    %v8954 = vld [vmem:[#allocation10 + $0x1b0] sm:$0xf]
    %v8955 = vld [vmem:[#allocation10 + $0x1b4] sm:$0xf]
    %v8956 = vld [vmem:[#allocation10 + $0x1b8] sm:$0xf]
    %v8957 = vld [vmem:[#allocation10 + $0x1bc] sm:$0xf]
    %v8958 = vld [vmem:[#allocation10 + $0x1c0] sm:$0xf]
    %v8959 = vld [vmem:[#allocation10 + $0x1c4] sm:$0xf]
    %v8960 = vld [vmem:[#allocation10 + $0x1c8] sm:$0xf]
    %v8961 = vld [vmem:[#allocation10 + $0x1cc] sm:$0xf]
    %v8962 = vld [vmem:[#allocation10 + $0x1d0] sm:$0xf]
    %v8963 = vld [vmem:[#allocation10 + $0x1d4] sm:$0xf]
    %v8964 = vld [vmem:[#allocation10 + $0x1d8] sm:$0xf]
    %v8965 = vld [vmem:[#allocation10 + $0x1dc] sm:$0xf]
    %v8966 = vld [vmem:[#allocation10 + $0x1e0] sm:$0xf]
    %v8967 = vld [vmem:[#allocation10 + $0x1e4] sm:$0xf]
    %v8968 = vld [vmem:[#allocation10 + $0x1e8] sm:$0xf]
    %v8969 = vld [vmem:[#allocation10 + $0x1ec] sm:$0xf]
    %v8970 = vld [vmem:[#allocation10 + $0x1f0] sm:$0xf]
    %v8971 = vld [vmem:[#allocation10 + $0x1f4] sm:$0xf]
    %v8972 = vld [vmem:[#allocation10 + $0x1f8] sm:$0xf]
    %v8973 = vld [vmem:[#allocation10 + $0x1fc] sm:$0xf]
    %v8974 = vld [vmem:[#allocation11] sm:$0x1]
    %v8976 = vperm.slane %v8974, 0
    %v9106 = vunpack.c.l.b16 %v8846
    %v9107 = vunpack.c.l.b16 %v8847
    %v9108 = vunpack.c.l.b16 %v8848
    %v9109 = vunpack.c.l.b16 %v8849
    %v9110 = vunpack.c.l.b16 %v8850
    %v9111 = vunpack.c.l.b16 %v8851
    %v9112 = vunpack.c.l.b16 %v8852
    %v9113 = vunpack.c.l.b16 %v8853
    %v9114 = vunpack.c.l.b16 %v8854
    %v9115 = vunpack.c.l.b16 %v8855
    %v9116 = vunpack.c.l.b16 %v8856
    %v9117 = vunpack.c.l.b16 %v8857
    %v9118 = vunpack.c.l.b16 %v8858
    %v9119 = vunpack.c.l.b16 %v8859
    %v9120 = vunpack.c.l.b16 %v8860
    %v9121 = vunpack.c.l.b16 %v8861
    %v9122 = vunpack.c.l.b16 %v8862
    %v9123 = vunpack.c.l.b16 %v8863
    %v9124 = vunpack.c.l.b16 %v8864
    %v9125 = vunpack.c.l.b16 %v8865
    %v9126 = vunpack.c.l.b16 %v8866
    %v9127 = vunpack.c.l.b16 %v8867
    %v9128 = vunpack.c.l.b16 %v8868
    %v9129 = vunpack.c.l.b16 %v8869
    %v9130 = vunpack.c.l.b16 %v8870
    %v9131 = vunpack.c.l.b16 %v8871
    %v9132 = vunpack.c.l.b16 %v8872
    %v9133 = vunpack.c.l.b16 %v8873
    %v9134 = vunpack.c.l.b16 %v8874
    %v9135 = vunpack.c.l.b16 %v8875
    %v9136 = vunpack.c.l.b16 %v8876
    %v9137 = vunpack.c.l.b16 %v8877
    %v9138 = vunpack.c.l.b16 %v8878
    %v9139 = vunpack.c.l.b16 %v8879
    %v9140 = vunpack.c.l.b16 %v8880
    %v9141 = vunpack.c.l.b16 %v8881
    %v9142 = vunpack.c.l.b16 %v8882
    %v9143 = vunpack.c.l.b16 %v8883
    %v9144 = vunpack.c.l.b16 %v8884
    %v9145 = vunpack.c.l.b16 %v8885
    %v9146 = vunpack.c.l.b16 %v8886
    %v9147 = vunpack.c.l.b16 %v8887
    %v9148 = vunpack.c.l.b16 %v8888
    %v9149 = vunpack.c.l.b16 %v8889
    %v9150 = vunpack.c.l.b16 %v8890
    %v9151 = vunpack.c.l.b16 %v8891
    %v9152 = vunpack.c.l.b16 %v8892
    %v9153 = vunpack.c.l.b16 %v8893
    %v9154 = vunpack.c.l.b16 %v8894
    %v9155 = vunpack.c.l.b16 %v8895
    %v9156 = vunpack.c.l.b16 %v8896
    %v9157 = vunpack.c.l.b16 %v8897
    %v9158 = vunpack.c.l.b16 %v8898
    %v9159 = vunpack.c.l.b16 %v8899
    %v9160 = vunpack.c.l.b16 %v8900
    %v9161 = vunpack.c.l.b16 %v8901
    %v9162 = vunpack.c.l.b16 %v8902
    %v9163 = vunpack.c.l.b16 %v8903
    %v9164 = vunpack.c.l.b16 %v8904
    %v9165 = vunpack.c.l.b16 %v8905
    %v9166 = vunpack.c.l.b16 %v8906
    %v9167 = vunpack.c.l.b16 %v8907
    %v9168 = vunpack.c.l.b16 %v8908
    %v9169 = vunpack.c.l.b16 %v8909
    %v9170 = vunpack.c.l.b16 %v8910
    %v9171 = vunpack.c.l.b16 %v8911
    %v9172 = vunpack.c.l.b16 %v8912
    %v9173 = vunpack.c.l.b16 %v8913
    %v9174 = vunpack.c.l.b16 %v8914
    %v9175 = vunpack.c.l.b16 %v8915
    %v9176 = vunpack.c.l.b16 %v8916
    %v9177 = vunpack.c.l.b16 %v8917
    %v9178 = vunpack.c.l.b16 %v8918
    %v9179 = vunpack.c.l.b16 %v8919
    %v9180 = vunpack.c.l.b16 %v8920
    %v9181 = vunpack.c.l.b16 %v8921
    %v9182 = vunpack.c.l.b16 %v8922
    %v9183 = vunpack.c.l.b16 %v8923
    %v9184 = vunpack.c.l.b16 %v8924
    %v9185 = vunpack.c.l.b16 %v8925
    %v9186 = vunpack.c.l.b16 %v8926
    %v9187 = vunpack.c.l.b16 %v8927
    %v9188 = vunpack.c.l.b16 %v8928
    %v9189 = vunpack.c.l.b16 %v8929
    %v9190 = vunpack.c.l.b16 %v8930
    %v9191 = vunpack.c.l.b16 %v8931
    %v9192 = vunpack.c.l.b16 %v8932
    %v9193 = vunpack.c.l.b16 %v8933
    %v9194 = vunpack.c.l.b16 %v8934
    %v9195 = vunpack.c.l.b16 %v8935
    %v9196 = vunpack.c.l.b16 %v8936
    %v9197 = vunpack.c.l.b16 %v8937
    %v9198 = vunpack.c.l.b16 %v8938
    %v9199 = vunpack.c.l.b16 %v8939
    %v9200 = vunpack.c.l.b16 %v8940
    %v9201 = vunpack.c.l.b16 %v8941
    %v9202 = vunpack.c.l.b16 %v8942
    %v9203 = vunpack.c.l.b16 %v8943
    %v9204 = vunpack.c.l.b16 %v8944
    %v9205 = vunpack.c.l.b16 %v8945
    %v9206 = vunpack.c.l.b16 %v8946
    %v9207 = vunpack.c.l.b16 %v8947
    %v9208 = vunpack.c.l.b16 %v8948
    %v9209 = vunpack.c.l.b16 %v8949
    %v9210 = vunpack.c.l.b16 %v8950
    %v9211 = vunpack.c.l.b16 %v8951
    %v9212 = vunpack.c.l.b16 %v8952
    %v9213 = vunpack.c.l.b16 %v8953
    %v9214 = vunpack.c.l.b16 %v8954
    %v9215 = vunpack.c.l.b16 %v8955
    %v9216 = vunpack.c.l.b16 %v8956
    %v9217 = vunpack.c.l.b16 %v8957
    %v9218 = vunpack.c.l.b16 %v8958
    %v9219 = vunpack.c.l.b16 %v8959
    %v9220 = vunpack.c.l.b16 %v8960
    %v9221 = vunpack.c.l.b16 %v8961
    %v9222 = vunpack.c.l.b16 %v8962
    %v9223 = vunpack.c.l.b16 %v8963
    %v9224 = vunpack.c.l.b16 %v8964
    %v9225 = vunpack.c.l.b16 %v8965
    %v9226 = vunpack.c.l.b16 %v8966
    %v9227 = vunpack.c.l.b16 %v8967
    %v9228 = vunpack.c.l.b16 %v8968
    %v9229 = vunpack.c.l.b16 %v8969
    %v9230 = vunpack.c.l.b16 %v8970
    %v9231 = vunpack.c.l.b16 %v8971
    %v9232 = vunpack.c.l.b16 %v8972
    %v9233 = vunpack.c.l.b16 %v8973
    %v9234 = vpack.c.b16 %v9107, %v9106
    %v9235 = vpack.c.b16 %v9109, %v9108
    %v9236 = vpack.c.b16 %v9111, %v9110
    %v9237 = vpack.c.b16 %v9113, %v9112
    %v9238 = vpack.c.b16 %v9115, %v9114
    %v9239 = vpack.c.b16 %v9117, %v9116
    %v9240 = vpack.c.b16 %v9119, %v9118
    %v9241 = vpack.c.b16 %v9121, %v9120
    %v9242 = vpack.c.b16 %v9123, %v9122
    %v9243 = vpack.c.b16 %v9125, %v9124
    %v9244 = vpack.c.b16 %v9127, %v9126
    %v9245 = vpack.c.b16 %v9129, %v9128
    %v9246 = vpack.c.b16 %v9131, %v9130
    %v9247 = vpack.c.b16 %v9133, %v9132
    %v9248 = vpack.c.b16 %v9135, %v9134
    %v9249 = vpack.c.b16 %v9137, %v9136
    %v9250 = vpack.c.b16 %v9139, %v9138
    %v9251 = vpack.c.b16 %v9141, %v9140
    %v9252 = vpack.c.b16 %v9143, %v9142
    %v9253 = vpack.c.b16 %v9145, %v9144
    %v9254 = vpack.c.b16 %v9147, %v9146
    %v9255 = vpack.c.b16 %v9149, %v9148
    %v9256 = vpack.c.b16 %v9151, %v9150
    %v9257 = vpack.c.b16 %v9153, %v9152
    %v9258 = vpack.c.b16 %v9155, %v9154
    %v9259 = vpack.c.b16 %v9157, %v9156
    %v9260 = vpack.c.b16 %v9159, %v9158
    %v9261 = vpack.c.b16 %v9161, %v9160
    %v9262 = vpack.c.b16 %v9163, %v9162
    %v9263 = vpack.c.b16 %v9165, %v9164
    %v9264 = vpack.c.b16 %v9167, %v9166
    %v9265 = vpack.c.b16 %v9169, %v9168
    %v9266 = vpack.c.b16 %v9171, %v9170
    %v9267 = vpack.c.b16 %v9173, %v9172
    %v9268 = vpack.c.b16 %v9175, %v9174
    %v9269 = vpack.c.b16 %v9177, %v9176
    %v9270 = vpack.c.b16 %v9179, %v9178
    %v9271 = vpack.c.b16 %v9181, %v9180
    %v9272 = vpack.c.b16 %v9183, %v9182
    %v9273 = vpack.c.b16 %v9185, %v9184
    %v9274 = vpack.c.b16 %v9187, %v9186
    %v9275 = vpack.c.b16 %v9189, %v9188
    %v9276 = vpack.c.b16 %v9191, %v9190
    %v9277 = vpack.c.b16 %v9193, %v9192
    %v9278 = vpack.c.b16 %v9195, %v9194
    %v9279 = vpack.c.b16 %v9197, %v9196
    %v9280 = vpack.c.b16 %v9199, %v9198
    %v9281 = vpack.c.b16 %v9201, %v9200
    %v9282 = vpack.c.b16 %v9203, %v9202
    %v9283 = vpack.c.b16 %v9205, %v9204
    %v9284 = vpack.c.b16 %v9207, %v9206
    %v9285 = vpack.c.b16 %v9209, %v9208
    %v9286 = vpack.c.b16 %v9211, %v9210
    %v9287 = vpack.c.b16 %v9213, %v9212
    %v9288 = vpack.c.b16 %v9215, %v9214
    %v9289 = vpack.c.b16 %v9217, %v9216
    %v9290 = vpack.c.b16 %v9219, %v9218
    %v9291 = vpack.c.b16 %v9221, %v9220
    %v9292 = vpack.c.b16 %v9223, %v9222
    %v9293 = vpack.c.b16 %v9225, %v9224
    %v9294 = vpack.c.b16 %v9227, %v9226
    %v9295 = vpack.c.b16 %v9229, %v9228
    %v9296 = vpack.c.b16 %v9231, %v9230
    %v9297 = vpack.c.b16 %v9233, %v9232
    %9362 = vmatpush.bf16.msra.mxu0 %v9241
    %9363 = vmatpush.bf16.msra.mxu0 %v9240
    %9364 = vmatpush.bf16.msra.mxu0 %v9239
    %9365 = vmatpush.bf16.msra.mxu0 %v9238
    %9366 = vmatpush.bf16.msra.mxu0 %v9237
    %9367 = vmatpush.bf16.msra.mxu0 %v9236
    %9368 = vmatpush.bf16.msra.mxu0 %v9235
    %9369 = vmatpush.bf16.msra.mxu0 %v9234
    %9370 = vmatmul.bf16.gmra.mxu0 %v8838
    %v9371 = vpop.f32.mrf.mxu0
    %v9372 = vadd.f32 %v8976, %v9371
    %v9373 = vpop.f32.mrf.mxu0
    %9374 = vdwg.mxu0
    %9375 = vmatpush.bf16.msra.mxu0 %v9249
    %9376 = vmatpush.bf16.msra.mxu0 %v9248
    %9377 = vmatpush.bf16.msra.mxu0 %v9247
    %9378 = vmatpush.bf16.msra.mxu0 %v9246
    %9379 = vmatpush.bf16.msra.mxu0 %v9245
    %9380 = vmatpush.bf16.msra.mxu0 %v9244
    %9381 = vmatpush.bf16.msra.mxu0 %v9243
    %9382 = vmatpush.bf16.msra.mxu0 %v9242
    %9383 = vmatmul.bf16.gmra.mxu0 %v8839
    %v9384 = vpop.f32.mrf.mxu0
    %v9385 = vadd.f32 %v9372, %v9384
    %v9386 = vpop.f32.mrf.mxu0
    %9387 = vdwg.mxu0
    %9388 = vmatpush.bf16.msra.mxu0 %v9257
    %9389 = vmatpush.bf16.msra.mxu0 %v9256
    %9390 = vmatpush.bf16.msra.mxu0 %v9255
    %9391 = vmatpush.bf16.msra.mxu0 %v9254
    %9392 = vmatpush.bf16.msra.mxu0 %v9253
    %9393 = vmatpush.bf16.msra.mxu0 %v9252
    %9394 = vmatpush.bf16.msra.mxu0 %v9251
    %9395 = vmatpush.bf16.msra.mxu0 %v9250
    %9396 = vmatmul.bf16.gmra.mxu0 %v8840
    %v9397 = vpop.f32.mrf.mxu0
    %v9398 = vadd.f32 %v9385, %v9397
    %v9399 = vpop.f32.mrf.mxu0
    %9400 = vdwg.mxu0
    %9401 = vmatpush.bf16.msra.mxu0 %v9265
    %9402 = vmatpush.bf16.msra.mxu0 %v9264
    %9403 = vmatpush.bf16.msra.mxu0 %v9263
    %9404 = vmatpush.bf16.msra.mxu0 %v9262
    %9405 = vmatpush.bf16.msra.mxu0 %v9261
    %9406 = vmatpush.bf16.msra.mxu0 %v9260
    %9407 = vmatpush.bf16.msra.mxu0 %v9259
    %9408 = vmatpush.bf16.msra.mxu0 %v9258
    %9409 = vmatmul.bf16.gmra.mxu0 %v8841
    %v9410 = vpop.f32.mrf.mxu0
    %v9411 = vadd.f32 %v9398, %v9410
    %v9412 = vpop.f32.mrf.mxu0
    %9413 = vdwg.mxu0
    %9414 = vmatpush.bf16.msra.mxu0 %v9273
    %9415 = vmatpush.bf16.msra.mxu0 %v9272
    %9416 = vmatpush.bf16.msra.mxu0 %v9271
    %9417 = vmatpush.bf16.msra.mxu0 %v9270
    %9418 = vmatpush.bf16.msra.mxu0 %v9269
    %9419 = vmatpush.bf16.msra.mxu0 %v9268
    %9420 = vmatpush.bf16.msra.mxu0 %v9267
    %9421 = vmatpush.bf16.msra.mxu0 %v9266
    %9422 = vmatmul.bf16.gmra.mxu0 %v8842
    %v9423 = vpop.f32.mrf.mxu0
    %v9424 = vadd.f32 %v9411, %v9423
    %v9425 = vpop.f32.mrf.mxu0
    %9426 = vdwg.mxu0
    %9427 = vmatpush.bf16.msra.mxu0 %v9281
    %9428 = vmatpush.bf16.msra.mxu0 %v9280
    %9429 = vmatpush.bf16.msra.mxu0 %v9279
    %9430 = vmatpush.bf16.msra.mxu0 %v9278
    %9431 = vmatpush.bf16.msra.mxu0 %v9277
    %9432 = vmatpush.bf16.msra.mxu0 %v9276
    %9433 = vmatpush.bf16.msra.mxu0 %v9275
    %9434 = vmatpush.bf16.msra.mxu0 %v9274
    %9435 = vmatmul.bf16.gmra.mxu0 %v8843
    %v9436 = vpop.f32.mrf.mxu0
    %v9437 = vadd.f32 %v9424, %v9436
    %v9438 = vpop.f32.mrf.mxu0
    %9439 = vdwg.mxu0
    %9440 = vmatpush.bf16.msra.mxu0 %v9289
    %9441 = vmatpush.bf16.msra.mxu0 %v9288
    %9442 = vmatpush.bf16.msra.mxu0 %v9287
    %9443 = vmatpush.bf16.msra.mxu0 %v9286
    %9444 = vmatpush.bf16.msra.mxu0 %v9285
    %9445 = vmatpush.bf16.msra.mxu0 %v9284
    %9446 = vmatpush.bf16.msra.mxu0 %v9283
    %9447 = vmatpush.bf16.msra.mxu0 %v9282
    %9448 = vmatmul.bf16.gmra.mxu0 %v8844
    %v9449 = vpop.f32.mrf.mxu0
    %v9450 = vadd.f32 %v9437, %v9449
    %v9451 = vpop.f32.mrf.mxu0
    %9452 = vdwg.mxu0
    %9453 = vmatpush.bf16.msra.mxu0 %v9297
    %9454 = vmatpush.bf16.msra.mxu0 %v9296
    %9455 = vmatpush.bf16.msra.mxu0 %v9295
    %9456 = vmatpush.bf16.msra.mxu0 %v9294
    %9457 = vmatpush.bf16.msra.mxu0 %v9293
    %9458 = vmatpush.bf16.msra.mxu0 %v9292
    %9459 = vmatpush.bf16.msra.mxu0 %v9291
    %9460 = vmatpush.bf16.msra.mxu0 %v9290
    %9461 = vmatmul.bf16.gmra.mxu0 %v8845
    %v9462 = vpop.f32.mrf.mxu0
    %v9463 = vadd.f32 %v9450, %v9462
    %v9464 = vpop.f32.mrf.mxu0
    %9465 = vdwg.mxu0
    %9466 = vst [vmem:[#allocation13] sm:$0xff] %v9463
    // Predicated region
    $region54: #{tpu_custom_call.1} parent=1 // pred_check
      _
    $region55: #{tpu_custom_call.1} parent=1 // pred_check_branch
      %9468 = sbr.rel (0) target = $region57
    $region56: #{tpu_custom_call.1} parent=1 // pred_region
      %9470 = vsyncadd [#allocation4], 0
      %s9472 = sshll.u32 [#allocation13], 4
      %s9473 = int_to_ptr.vmem [resolvable:$true] %s9472
      %s9474 = sshll.u32 %s7, 4
      %s9475 = int_to_ptr.hbm [resolvable:$true] %s9474
      %9477 = dma.vmem_to_hbm [thread:$0]  %s9473, 128, %s9475, [#allocation4]
    $region57: #{tpu_custom_call.1} parent=1 // pred_fallthru
      _
    // Predicated region
    $region58: #{tpu_custom_call.1} parent=1 // pred_check
      _
    $region59: #{tpu_custom_call.1} parent=1 // pred_check_branch
      %9479 = sbr.rel (0) target = $region61
    $region60: #{tpu_custom_call.1} parent=1 // pred_region
      %9481 = dma.done [#allocation4], 128
    $region61: #{tpu_custom_call.1} parent=1 // pred_fallthru
      _
    %9482 = vsyncpa [#allocation3], 1
    %9483 = vsyncpa [#allocation6], 1
    %9484 = vsyncpa [#allocation9], 1
    %9485 = vsyncpa [#allocation12], 1
    %9486 = vsyncpa [#allocation4], 1

</llo_original>
